<compile_context>
chip_gen: v7x
topology: tpu7x:2x2x1
jax: 0.10.0
libtpu: 0.0.40
codegen_flags: <defaults>
</compile_context>

<pallas_src>
import jax
import jax.numpy as jnp
from jax.experimental import pallas as pl
from jax.experimental.pallas import tpu as pltpu


# ----------------------------------------------------------------------------
# Dimensions (shape-faithful synthetic stand-ins where external assets would
# be required: pretrained ResNet18, PointNet_MSG, full MANO layer).
# ----------------------------------------------------------------------------
IMG_FEAT = 512                     # resnet18 feature dim
PC_FEAT = 1024                     # PointNet_MSG global feature dim
PC_HIDDEN = 128
MANO_NCOMPS = 30                   # PCA comps -> pose dim = 3 + 30
POSE_DIM = 3 + MANO_NCOMPS         # 33
MANO_SHAPE = 10
N_VERTS = 778
N_JOINTS = 21
CONV_CH = 16
HEAD_HIDDEN = IMG_FEAT // 2        # 256
VJ_DIM = (N_VERTS + N_JOINTS) * 3  # 2397 (verts || joints, flattened)
PS_DIM = POSE_DIM + MANO_SHAPE     # 43   (pose || shape)


def _pad128(n):
    return ((n + 127) // 128) * 128


# 128-aligned offsets inside the single packed bias vector.
_BIAS_SIZES = (
    ("conv_b", 2 * CONV_CH),
    ("proj_b", 2 * IMG_FEAT),
    ("mlp1_b", PC_HIDDEN),
    ("mlp2_b", PC_FEAT),
    ("base1_b", 1024),
    ("base2_b", 256),
    ("ps_b", PS_DIM),
    ("vj_b", VJ_DIM),
    ("rot_b1", HEAD_HIDDEN),
    ("rot_b2", 6),
    ("ts_b1", 2 * HEAD_HIDDEN),
    ("ts_b2", 4),
)
BIAS_OFF = {}
_off = 0
for _name, _size in _BIAS_SIZES:
    BIAS_OFF[_name] = _off
    _off += _pad128(_size)
BIAS_TOTAL = _off                              # 7168

# 128-aligned offsets inside the single fused output slab.
PS_OFF = _pad128(VJ_DIM)                       # 2432
ROT_OFF = PS_OFF + _pad128(PS_DIM)             # 2560
TS_OFF = ROT_OFF + 128                         # 2688
OUT_DIM = TS_OFF + 128                         # 2816 = 22 * 128


# ----------------------------------------------------------------------------
# Fused Pallas kernel: one grid step == TB batch elements, all weights VMEM
# resident, every intermediate stays in VMEM/vregs, one lane-dense output DMA.
# ----------------------------------------------------------------------------
def _pose_mano_kernel(
    patches_ref, pc_ref,
    conv_w, proj_w, mlp1_w, mlp2_w,
    base1_w, base2_w, ps_w, vj_w,
    rot_w1, rot_w2, ts_w1, ts_w2,
    bias_ref, out_ref,
):
    tb, hw, kp = patches_ref.shape
    npts = pc_ref.shape[1]

    def dense(x_bf16, w_ref, bias_name, relu=True):
        """bf16 MXU matmul, f32 accumulate; bias-add/ReLU in f32 (v5e-safe)."""
        n = w_ref.shape[1]
        off = BIAS_OFF[bias_name]
        acc = jnp.dot(x_bf16, w_ref[...], preferred_element_type=jnp.float32)
        acc = acc + bias_ref[:, off:off + n]
        if relu:
            acc = jnp.maximum(acc, 0.0)
        return acc

    # ---- shared image backbone (both resnet stand-ins fused, block-diag) ----
    # TODO(synk): full pretrained ResNet18 not reproduced; conv-stem + mean
    # pool + projection stand-in with identical (B, 512) output per backbone.
    patches = patches_ref[...].reshape(tb * hw, kp)                  # bf16
    conv = dense(patches, conv_w, "conv_b")                          # (tb*hw, 32) f32
    # mean pool -> XLU sum; the 1/(H*W) scale is folded into proj_w.
    pooled = jnp.sum(conv.reshape(tb, hw, 2 * CONV_CH), axis=1)      # (tb, 32) f32
    feats = dense(pooled.astype(jnp.bfloat16), proj_w, "proj_b")     # (tb, 1024) f32
    feats = feats.astype(jnp.bfloat16)                               # single post-ReLU cast
    hand_feat = feats[:, :IMG_FEAT]                                  # (tb, 512)
    img_feat = feats[:, IMG_FEAT:]                                   # (tb, 512)

    # ---- point-cloud encoder ----
    # TODO(synk): PointNet_MSG multi-scale grouping not reproduced; shared
    # per-point MLP + max pool + projection stand-in producing (tb, 1024).
    pts = pc_ref[...].reshape(tb * npts, 3)                          # bf16
    f1 = dense(pts, mlp1_w, "mlp1_b")                                # (tb*N, 128) f32
    g = jnp.max(f1.reshape(tb, npts, PC_HIDDEN), axis=1)             # (tb, 128) f32
    pc_feat = dense(g.astype(jnp.bfloat16), mlp2_w, "mlp2_b")        # (tb, 1024)
    pc_feat = pc_feat.astype(jnp.bfloat16)

    # ---- mano branch ----
    h1 = dense(hand_feat, base1_w, "base1_b").astype(jnp.bfloat16)   # (tb, 1024)
    h2 = dense(h1, base2_w, "base2_b").astype(jnp.bfloat16)          # (tb, 256)
    ps = dense(h2, ps_w, "ps_b", relu=False)                         # (tb, 43) pose||shape
    # TODO(synk): full MANO layer (pose blend shapes + LBS) not reproduced;
    # linear shape-blend stand-in.  vj_w is zero-padded over the pose rows so
    # the merged pose||shape vector multiplies it directly (no unaligned slice).
    vj = dense(ps.astype(jnp.bfloat16), vj_w, "vj_b", relu=False)    # (tb, 2397)

    # ---- rotation head: one matmul on img_feat || pc_feat (lane-aligned) ----
    rot_in = jnp.concatenate([img_feat, pc_feat], axis=-1)           # (tb, 1536) bf16
    rot_h = dense(rot_in, rot_w1, "rot_b1").astype(jnp.bfloat16)     # (tb, 256)
    rot6 = dense(rot_h, rot_w2, "rot_b2", relu=False)                # (tb, 6)

    # ---- trans || scale heads (merged, block-diagonal layer 2) ----
    ts_h = dense(img_feat, ts_w1, "ts_b1").astype(jnp.bfloat16)      # (tb, 512)
    ts = dense(ts_h, ts_w2, "ts_b2", relu=False)                     # (tb, 4) trans||scale

    # ---- single lane-dense output slab (nn.Dropout heads identity in eval) ----
    out_ref[...] = jnp.zeros_like(out_ref)
    out_ref[:, 0:VJ_DIM] = vj
    out_ref[:, PS_OFF:PS_OFF + PS_DIM] = ps
    out_ref[:, ROT_OFF:ROT_OFF + 6] = rot6
    out_ref[:, TS_OFF:TS_OFF + 4] = ts


def fused_pose_mano(patches, pc, weights, bias):
    B, HW, KP = patches.shape
    _, NP, CP = pc.shape

    # Batch-block the grid: fold TB batch elements into the M dim of every
    # matmul.  Small batches run as a single grid step (best for the B=2
    # driver); large batches use TB=8 blocks so the "parallel" grid still has
    # >=2 steps for v7x's two TensorCores.
    MAX_TB = 8
    if B <= MAX_TB:
        TB, Bp = B, B
    else:
        TB = MAX_TB
        Bp = ((B + TB - 1) // TB) * TB
        if Bp != B:
            patches = jnp.pad(patches, ((0, Bp - B), (0, 0), (0, 0)))
            pc = jnp.pad(pc, ((0, Bp - B), (0, 0), (0, 0)))

    in_specs = [
        pl.BlockSpec((TB, HW, KP), lambda b: (b, 0, 0)),
        pl.BlockSpec((TB, NP, CP), lambda b: (b, 0, 0)),
    ]
    # Constant-index weight/bias specs: Pallas skips re-DMA across grid steps.
    in_specs += [pl.BlockSpec(w.shape, lambda b: (0, 0)) for w in weights]
    in_specs += [pl.BlockSpec(bias.shape, lambda b: (0, 0))]

    out = pl.pallas_call(
        _pose_mano_kernel,
        out_shape=jax.ShapeDtypeStruct((Bp, OUT_DIM), jnp.float32),
        grid=(Bp // TB,),
        in_specs=in_specs,
        out_specs=pl.BlockSpec((TB, OUT_DIM), lambda b: (b, 0)),
        compiler_params=pltpu.CompilerParams(
            dimension_semantics=("parallel",)),
    )(patches, pc, *weights, bias)
    return out[:B]


# ----------------------------------------------------------------------------
# Plain-JAX glue
# ----------------------------------------------------------------------------
def im2col_3x3(x_nhwc):
    """3x3, stride 1, pad 1 patch extraction (glue; the conv matmul is in Pallas)."""
    B, H, W, C = x_nhwc.shape
    xp = jnp.pad(x_nhwc, ((0, 0), (1, 1), (1, 1), (0, 0)))
    cols = []
    for dh in range(3):
        for dw in range(3):
            cols.append(xp[:, dh:dh + H, dw:dw + W, :])
    patches = jnp.concatenate(cols, axis=-1)          # (B, H, W, 9*C)
    return patches.reshape(B, H * W, 9 * C)


def sixpose2rotmatrix(rot6):
    """Standard 6D->rotation-matrix (Gram-Schmidt); tiny elementwise glue."""
    a1 = rot6[:, 0:3]
    a2 = rot6[:, 3:6]
    b1 = a1 / (jnp.linalg.norm(a1, axis=1, keepdims=True) + 1e-8)
    b2 = a2 - jnp.sum(b1 * a2, axis=1, keepdims=True) * b1
    b2 = b2 / (jnp.linalg.norm(b2, axis=1, keepdims=True) + 1e-8)
    b3 = jnp.cross(b1, b2)
    return jnp.stack([b1, b2, b3], axis=1)            # (B, 3, 3)


def _pack_biases(named):
    """Pack all biases into one (1, BIAS_TOTAL) f32 row at 128-aligned offsets."""
    pieces = []
    for name, size in _BIAS_SIZES:
        b = named[name].reshape(-1).astype(jnp.float32)
        assert b.shape[0] == size, (name, b.shape, size)
        pad = _pad128(size) - size
        if pad:
            b = jnp.concatenate([b, jnp.zeros((pad,), jnp.float32)])
        pieces.append(b)
    return jnp.concatenate(pieces).reshape(1, BIAS_TOTAL)


def prep_fused_weights(params, hw):
    """Merge sibling weights into lane-denser matrices, fold the mean-pool
    scale into proj_w, cast MXU operands to bf16 and pack biases (f32)."""
    bf = lambda a: a.astype(jnp.bfloat16)

    hb, bb = params["hand_base_net"], params["base_net"]
    conv_w = bf(jnp.concatenate([hb["conv_w"], bb["conv_w"]], axis=1))       # (27, 32)
    z = jnp.zeros((CONV_CH, IMG_FEAT), jnp.float32)
    proj_block = jnp.block([[hb["proj_w"], z], [z, bb["proj_w"]]])           # (32, 1024)
    proj_w = bf(proj_block * (1.0 / hw))        # mean-pool 1/(H*W) folded in

    pe = params["pc_encoder"]
    mlp1_w, mlp2_w = bf(pe["mlp1_w"]), bf(pe["mlp2_w"])

    mb = params["mano_branch"]
    base1_w, base2_w = bf(mb["base1_w"]), bf(mb["base2_w"])
    ps_w = bf(jnp.concatenate([mb["pose_w"], mb["shape_w"]], axis=1))        # (256, 43)
    vj_dirs = jnp.concatenate([mb["shapedirs"], mb["joint_shapedirs"]], axis=1)
    vj_w = bf(jnp.concatenate(                                               # (43, 2397)
        [jnp.zeros((POSE_DIM, VJ_DIM), jnp.float32), vj_dirs], axis=0))

    rb = params["rotation_block"]
    rot_w1, rot_w2 = bf(rb["w1"]), bf(rb["w2"])                              # (1536,256),(256,6)

    tb_, sb_ = params["trans_block"], params["scale_block"]
    ts_w1 = bf(jnp.concatenate([tb_["w1"], sb_["w1"]], axis=1))              # (512, 512)
    ts_w2 = bf(jnp.block([[tb_["w2"], jnp.zeros((HEAD_HIDDEN, 1), jnp.float32)],
                          [jnp.zeros((HEAD_HIDDEN, 3), jnp.float32), sb_["w2"]]]))  # (512, 4)

    weights = [conv_w, proj_w, mlp1_w, mlp2_w, base1_w, base2_w,
               ps_w, vj_w, rot_w1, rot_w2, ts_w1, ts_w2]

    bias = _pack_biases({
        "conv_b": jnp.concatenate([hb["conv_b"], bb["conv_b"]]),
        "proj_b": jnp.concatenate([hb["proj_b"], bb["proj_b"]]),
        "mlp1_b": pe["mlp1_b"], "mlp2_b": pe["mlp2_b"],
        "base1_b": mb["base1_b"], "base2_b": mb["base2_b"],
        "ps_b": jnp.concatenate([mb["pose_b"], mb["shape_b"]]),
        "vj_b": jnp.concatenate([mb["v_template"], mb["joint_template"]]),
        "rot_b1": rb["b1"], "rot_b2": rb["b2"],
        "ts_b1": jnp.concatenate([tb_["b1"], sb_["b1"]]),
        "ts_b2": jnp.concatenate([tb_["b2"], sb_["b2"]]),
    })
    return weights, bias


# ----------------------------------------------------------------------------
# Forward
# ----------------------------------------------------------------------------
def pose_mano_forward(params, image_crop, obj_coarse_pc):
    x = jnp.transpose(image_crop, (0, 2, 3, 1))        # NCHW -> NHWC (glue)
    patches = im2col_3x3(x).astype(jnp.bfloat16)       # (B, H*W, 27), MXU-ready
    pc = obj_coarse_pc.astype(jnp.bfloat16)            # (B, N, 3)
    hw = patches.shape[1]
    weights, bias = prep_fused_weights(params, hw)

    slab = fused_pose_mano(patches, pc, weights, bias)  # (B, OUT_DIM) f32
    B = slab.shape[0]
    vj = slab[:, :VJ_DIM]
    ps = slab[:, PS_OFF:PS_OFF + PS_DIM]
    rot6 = slab[:, ROT_OFF:ROT_OFF + 6]
    ts = slab[:, TS_OFF:TS_OFF + 4]

    verts = vj[:, :N_VERTS * 3].reshape(B, N_VERTS, 3)
    joints = vj[:, N_VERTS * 3:].reshape(B, N_JOINTS, 3)
    root = joints[:, 0:1, :]                           # center_idx = 0
    hand_verts = verts - root
    hand_joints = joints - root
    hand_pose = ps[:, :POSE_DIM]
    hand_shape = ps[:, POSE_DIM:]
    rot_matrix = sixpose2rotmatrix(rot6)
    trans = ts[:, 0:3]
    scale = ts[:, 3:4]
    return hand_verts, hand_joints, hand_shape, hand_pose, rot_matrix, trans, scale


# ----------------------------------------------------------------------------
# Deterministic parameter construction
# ----------------------------------------------------------------------------
def _dense_init(key, fan_in, fan_out):
    kw, kb = jax.random.split(key)
    scale = 1.0 / jnp.sqrt(jnp.float32(fan_in))
    w = jax.random.normal(kw, (fan_in, fan_out), jnp.float32) * scale
    b = jax.random.normal(kb, (fan_out,), jnp.float32) * 0.01
    return w, b


def make_params(key):
    keys = iter(jax.random.split(key, 32))
    params = {}

    for name in ("hand_base_net", "base_net"):
        cw, cb = _dense_init(next(keys), 27, CONV_CH)        # 3x3x3 conv as matmul
        pw, pb = _dense_init(next(keys), CONV_CH, IMG_FEAT)
        params[name] = {"conv_w": cw, "conv_b": cb, "proj_w": pw, "proj_b": pb}

    m1w, m1b = _dense_init(next(keys), 3, PC_HIDDEN)
    m2w, m2b = _dense_init(next(keys), PC_HIDDEN, PC_FEAT)
    params["pc_encoder"] = {"mlp1_w": m1w, "mlp1_b": m1b, "mlp2_w": m2w, "mlp2_b": m2b}

    b1w, b1b = _dense_init(next(keys), IMG_FEAT, 1024)
    b2w, b2b = _dense_init(next(keys), 1024, 256)
    pw, pb = _dense_init(next(keys), 256, POSE_DIM)
    sw, sb = _dense_init(next(keys), 256, MANO_SHAPE)
    v_template = jax.random.normal(next(keys), (N_VERTS, 3), jnp.float32) * 0.1
    shapedirs = jax.random.normal(next(keys), (MANO_SHAPE, N_VERTS, 3), jnp.float32) * 0.01
    j_reg = jax.nn.softmax(
        jax.random.normal(next(keys), (N_JOINTS, N_VERTS), jnp.float32), axis=-1)
    joint_template = j_reg @ v_template                                  # (21, 3)
    joint_shapedirs = jnp.einsum("jv,kvc->kjc", j_reg, shapedirs)        # (10, 21, 3)
    params["mano_branch"] = {
        "base1_w": b1w, "base1_b": b1b, "base2_w": b2w, "base2_b": b2b,
        "pose_w": pw, "pose_b": pb, "shape_w": sw, "shape_b": sb,
        "shapedirs": shapedirs.reshape(MANO_SHAPE, N_VERTS * 3),
        "v_template": v_template.reshape(N_VERTS * 3),
        "joint_shapedirs": joint_shapedirs.reshape(MANO_SHAPE, N_JOINTS * 3),
        "joint_template": joint_template.reshape(N_JOINTS * 3),
    }

    for name, in_dim, out_dim in (
        ("rotation_block", IMG_FEAT + PC_FEAT, 6),
        ("trans_block", IMG_FEAT, 3),
        ("scale_block", IMG_FEAT, 1),
    ):
        w1, bb1 = _dense_init(next(keys), in_dim, HEAD_HIDDEN)
        w2, bb2 = _dense_init(next(keys), HEAD_HIDDEN, out_dim)
        params[name] = {"w1": w1, "b1": bb1, "w2": w2, "b2": bb2}

    return params


# ----------------------------------------------------------------------------
# Driver
# ----------------------------------------------------------------------------
if __name__ == "__main__":
    key = jax.random.PRNGKey(0)
    k_img, k_pc, k_param = jax.random.split(key, 3)

    B, H, W, NPTS = 2, 16, 16, 64
    image_crop = jax.random.normal(k_img, (B, 3, H, W), jnp.float32)       # NCHW
    obj_coarse_pc = jax.random.normal(k_pc, (B, NPTS, 3), jnp.float32)     # (B, N, 3)

    params = make_params(k_param)

    outs = jax.jit(pose_mano_forward)(params, image_crop, obj_coarse_pc)
    outs = jax.block_until_ready(outs)

    hand_verts, hand_joints, hand_shape, hand_pose, rot_matrix, trans, scale = outs
    assert hand_verts.shape == (B, N_VERTS, 3)
    assert hand_joints.shape == (B, N_JOINTS, 3)
    assert hand_shape.shape == (B, MANO_SHAPE)
    assert hand_pose.shape == (B, POSE_DIM)
    assert rot_matrix.shape == (B, 3, 3)
    assert trans.shape == (B, 3)
    assert scale.shape == (B, 1)
    assert bool(jnp.isfinite(hand_verts).all())
    assert bool(jnp.isfinite(rot_matrix).all())
    print("KERNEL_OK")
</pallas_src>

<mosaic_0001>
module attributes {stable_mosaic.version = 11 : i64} {
  func.func @_pose_mano_kernel(%arg0: i32, %arg1: memref<2x256x27xbf16, #tpu.memory_space<vmem>>, %arg2: memref<2x64x3xbf16, #tpu.memory_space<vmem>>, %arg3: memref<27x32xbf16, #tpu.memory_space<vmem>>, %arg4: memref<32x1024xbf16, #tpu.memory_space<vmem>>, %arg5: memref<3x128xbf16, #tpu.memory_space<vmem>>, %arg6: memref<128x1024xbf16, #tpu.memory_space<vmem>>, %arg7: memref<512x1024xbf16, #tpu.memory_space<vmem>>, %arg8: memref<1024x256xbf16, #tpu.memory_space<vmem>>, %arg9: memref<256x43xbf16, #tpu.memory_space<vmem>>, %arg10: memref<43x2397xbf16, #tpu.memory_space<vmem>>, %arg11: memref<1536x256xbf16, #tpu.memory_space<vmem>>, %arg12: memref<256x6xbf16, #tpu.memory_space<vmem>>, %arg13: memref<512x512xbf16, #tpu.memory_space<vmem>>, %arg14: memref<512x4xbf16, #tpu.memory_space<vmem>>, %arg15: memref<1x7168xf32, #tpu.memory_space<vmem>>, %arg16: memref<2x2816xf32, #tpu.memory_space<vmem>>) attributes {dimension_semantics = [#tpu.dimension_semantics<parallel>], iteration_bounds = array<i64: 1>, scalar_prefetch = 0 : i64, scratch_operands = 0 : i64, tpu.core_type = #tpu.core_type<tc>, window_params = [{transform_indices = @transform_0, window_bounds = array<i64: 2, 256, 27>}, {transform_indices = @transform_1, window_bounds = array<i64: 2, 64, 3>}, {pipeline_mode = #tpu.pipeline_mode<synchronous>, transform_indices = @transform_2, window_bounds = array<i64: 27, 32>}, {pipeline_mode = #tpu.pipeline_mode<synchronous>, transform_indices = @transform_3, window_bounds = array<i64: 32, 1024>}, {pipeline_mode = #tpu.pipeline_mode<synchronous>, transform_indices = @transform_4, window_bounds = array<i64: 3, 128>}, {pipeline_mode = #tpu.pipeline_mode<synchronous>, transform_indices = @transform_5, window_bounds = array<i64: 128, 1024>}, {pipeline_mode = #tpu.pipeline_mode<synchronous>, transform_indices = @transform_6, window_bounds = array<i64: 512, 1024>}, {pipeline_mode = #tpu.pipeline_mode<synchronous>, transform_indices = @transform_7, window_bounds = array<i64: 1024, 256>}, {pipeline_mode = #tpu.pipeline_mode<synchronous>, transform_indices = @transform_8, window_bounds = array<i64: 256, 43>}, {pipeline_mode = #tpu.pipeline_mode<synchronous>, transform_indices = @transform_9, window_bounds = array<i64: 43, 2397>}, {pipeline_mode = #tpu.pipeline_mode<synchronous>, transform_indices = @transform_10, window_bounds = array<i64: 1536, 256>}, {pipeline_mode = #tpu.pipeline_mode<synchronous>, transform_indices = @transform_11, window_bounds = array<i64: 256, 6>}, {pipeline_mode = #tpu.pipeline_mode<synchronous>, transform_indices = @transform_12, window_bounds = array<i64: 512, 512>}, {pipeline_mode = #tpu.pipeline_mode<synchronous>, transform_indices = @transform_13, window_bounds = array<i64: 512, 4>}, {pipeline_mode = #tpu.pipeline_mode<synchronous>, transform_indices = @transform_14, window_bounds = array<i64: 1, 7168>}, {transform_indices = @transform_15, window_bounds = array<i64: 2, 2816>}]} {
    %c0 = arith.constant 0 : index
    %c0_0 = arith.constant 0 : index
    %c0_1 = arith.constant 0 : index
    %0 = vector.load %arg1[%c0, %c0_0, %c0_1] : memref<2x256x27xbf16, #tpu.memory_space<vmem>>, vector<2x256x27xbf16>
    %1 = vector.shape_cast %0 : vector<2x256x27xbf16> to vector<512x27xbf16>
    %c0_2 = arith.constant 0 : index
    %c0_3 = arith.constant 0 : index
    %2 = vector.load %arg3[%c0_2, %c0_3] : memref<27x32xbf16, #tpu.memory_space<vmem>>, vector<27x32xbf16>
    %cst = arith.constant dense<0.000000e+00> : vector<512x32xf32>
    %3 = tpu.matmul %1, %2, %cst {dimension_numbers = #tpu.dot_dimension_numbers<[1], [0], [0], [1], [0, 0, 1, 1], [], []>} : vector<512x27xbf16>, vector<27x32xbf16>, vector<512x32xf32> -> vector<512x32xf32>
    %c0_4 = arith.constant 0 : index
    %c0_5 = arith.constant 0 : index
    %4 = vector.load %arg15[%c0_4, %c0_5] : memref<1x7168xf32, #tpu.memory_space<vmem>>, vector<1x32xf32>
    %5 = vector.broadcast %4 : vector<1x32xf32> to vector<512x32xf32>
    %6 = arith.addf %3, %5 : vector<512x32xf32>
    %cst_6 = arith.constant 0.000000e+00 : f32
    %7 = vector.broadcast %cst_6 : f32 to vector<512x32xf32>
    %8 = arith.maximumf %6, %7 : vector<512x32xf32>
    %9 = vector.shape_cast %8 : vector<512x32xf32> to vector<2x256x32xf32>
    %cst_7 = arith.constant dense<0.000000e+00> : vector<2x32xf32>
    %10 = vector.multi_reduction <add>, %9, %cst_7 [1] : vector<2x256x32xf32> to vector<2x32xf32>
    %11 = arith.truncf %10 : vector<2x32xf32> to vector<2x32xbf16>
    %c0_8 = arith.constant 0 : index
    %c0_9 = arith.constant 0 : index
    %12 = vector.load %arg4[%c0_8, %c0_9] : memref<32x1024xbf16, #tpu.memory_space<vmem>>, vector<32x1024xbf16>
    %cst_10 = arith.constant dense<0.000000e+00> : vector<2x1024xf32>
    %13 = tpu.matmul %11, %12, %cst_10 {dimension_numbers = #tpu.dot_dimension_numbers<[1], [0], [0], [1], [0, 0, 1, 1], [], []>} : vector<2x32xbf16>, vector<32x1024xbf16>, vector<2x1024xf32> -> vector<2x1024xf32>
    %c0_11 = arith.constant 0 : index
    %c128 = arith.constant 128 : index
    %14 = vector.load %arg15[%c0_11, %c128] : memref<1x7168xf32, #tpu.memory_space<vmem>>, vector<1x1024xf32>
    %15 = vector.broadcast %14 : vector<1x1024xf32> to vector<2x1024xf32>
    %16 = arith.addf %13, %15 : vector<2x1024xf32>
    %cst_12 = arith.constant 0.000000e+00 : f32
    %17 = vector.broadcast %cst_12 : f32 to vector<2x1024xf32>
    %18 = arith.maximumf %16, %17 : vector<2x1024xf32>
    %19 = arith.truncf %18 : vector<2x1024xf32> to vector<2x1024xbf16>
    %20 = vector.extract_strided_slice %19 {offsets = [0, 0], sizes = [2, 512], strides = [1, 1]} : vector<2x1024xbf16> to vector<2x512xbf16>
    %21 = vector.extract_strided_slice %19 {offsets = [0, 512], sizes = [2, 512], strides = [1, 1]} : vector<2x1024xbf16> to vector<2x512xbf16>
    %c0_13 = arith.constant 0 : index
    %c0_14 = arith.constant 0 : index
    %c0_15 = arith.constant 0 : index
    %22 = vector.load %arg2[%c0_13, %c0_14, %c0_15] : memref<2x64x3xbf16, #tpu.memory_space<vmem>>, vector<2x64x3xbf16>
    %23 = vector.shape_cast %22 : vector<2x64x3xbf16> to vector<128x3xbf16>
    %c0_16 = arith.constant 0 : index
    %c0_17 = arith.constant 0 : index
    %24 = vector.load %arg5[%c0_16, %c0_17] : memref<3x128xbf16, #tpu.memory_space<vmem>>, vector<3x128xbf16>
    %cst_18 = arith.constant dense<0.000000e+00> : vector<128x128xf32>
    %25 = tpu.matmul %23, %24, %cst_18 {dimension_numbers = #tpu.dot_dimension_numbers<[1], [0], [0], [1], [0, 0, 1, 1], [], []>} : vector<128x3xbf16>, vector<3x128xbf16>, vector<128x128xf32> -> vector<128x128xf32>
    %c0_19 = arith.constant 0 : index
    %c1152 = arith.constant 1152 : index
    %26 = vector.load %arg15[%c0_19, %c1152] : memref<1x7168xf32, #tpu.memory_space<vmem>>, vector<1x128xf32>
    %27 = vector.broadcast %26 : vector<1x128xf32> to vector<128x128xf32>
    %28 = arith.addf %25, %27 : vector<128x128xf32>
    %cst_20 = arith.constant 0.000000e+00 : f32
    %29 = vector.broadcast %cst_20 : f32 to vector<128x128xf32>
    %30 = arith.maximumf %28, %29 : vector<128x128xf32>
    %31 = vector.shape_cast %30 : vector<128x128xf32> to vector<2x64x128xf32>
    %cst_21 = arith.constant dense<0xFF800000> : vector<2x128xf32>
    %32 = vector.multi_reduction <maximumf>, %31, %cst_21 [1] : vector<2x64x128xf32> to vector<2x128xf32>
    %33 = arith.truncf %32 : vector<2x128xf32> to vector<2x128xbf16>
    %c0_22 = arith.constant 0 : index
    %c0_23 = arith.constant 0 : index
    %34 = vector.load %arg6[%c0_22, %c0_23] : memref<128x1024xbf16, #tpu.memory_space<vmem>>, vector<128x1024xbf16>
    %cst_24 = arith.constant dense<0.000000e+00> : vector<2x1024xf32>
    %35 = tpu.matmul %33, %34, %cst_24 {dimension_numbers = #tpu.dot_dimension_numbers<[1], [0], [0], [1], [0, 0, 1, 1], [], []>} : vector<2x128xbf16>, vector<128x1024xbf16>, vector<2x1024xf32> -> vector<2x1024xf32>
    %c0_25 = arith.constant 0 : index
    %c1280 = arith.constant 1280 : index
    %36 = vector.load %arg15[%c0_25, %c1280] : memref<1x7168xf32, #tpu.memory_space<vmem>>, vector<1x1024xf32>
    %37 = vector.broadcast %36 : vector<1x1024xf32> to vector<2x1024xf32>
    %38 = arith.addf %35, %37 : vector<2x1024xf32>
    %cst_26 = arith.constant 0.000000e+00 : f32
    %39 = vector.broadcast %cst_26 : f32 to vector<2x1024xf32>
    %40 = arith.maximumf %38, %39 : vector<2x1024xf32>
    %41 = arith.truncf %40 : vector<2x1024xf32> to vector<2x1024xbf16>
    %c0_27 = arith.constant 0 : index
    %c0_28 = arith.constant 0 : index
    %42 = vector.load %arg7[%c0_27, %c0_28] : memref<512x1024xbf16, #tpu.memory_space<vmem>>, vector<512x1024xbf16>
    %cst_29 = arith.constant dense<0.000000e+00> : vector<2x1024xf32>
    %43 = tpu.matmul %20, %42, %cst_29 {dimension_numbers = #tpu.dot_dimension_numbers<[1], [0], [0], [1], [0, 0, 1, 1], [], []>} : vector<2x512xbf16>, vector<512x1024xbf16>, vector<2x1024xf32> -> vector<2x1024xf32>
    %c0_30 = arith.constant 0 : index
    %c2304 = arith.constant 2304 : index
    %44 = vector.load %arg15[%c0_30, %c2304] : memref<1x7168xf32, #tpu.memory_space<vmem>>, vector<1x1024xf32>
    %45 = vector.broadcast %44 : vector<1x1024xf32> to vector<2x1024xf32>
    %46 = arith.addf %43, %45 : vector<2x1024xf32>
    %cst_31 = arith.constant 0.000000e+00 : f32
    %47 = vector.broadcast %cst_31 : f32 to vector<2x1024xf32>
    %48 = arith.maximumf %46, %47 : vector<2x1024xf32>
    %49 = arith.truncf %48 : vector<2x1024xf32> to vector<2x1024xbf16>
    %c0_32 = arith.constant 0 : index
    %c0_33 = arith.constant 0 : index
    %50 = vector.load %arg8[%c0_32, %c0_33] : memref<1024x256xbf16, #tpu.memory_space<vmem>>, vector<1024x256xbf16>
    %cst_34 = arith.constant dense<0.000000e+00> : vector<2x256xf32>
    %51 = tpu.matmul %49, %50, %cst_34 {dimension_numbers = #tpu.dot_dimension_numbers<[1], [0], [0], [1], [0, 0, 1, 1], [], []>} : vector<2x1024xbf16>, vector<1024x256xbf16>, vector<2x256xf32> -> vector<2x256xf32>
    %c0_35 = arith.constant 0 : index
    %c3328 = arith.constant 3328 : index
    %52 = vector.load %arg15[%c0_35, %c3328] : memref<1x7168xf32, #tpu.memory_space<vmem>>, vector<1x256xf32>
    %53 = vector.broadcast %52 : vector<1x256xf32> to vector<2x256xf32>
    %54 = arith.addf %51, %53 : vector<2x256xf32>
    %cst_36 = arith.constant 0.000000e+00 : f32
    %55 = vector.broadcast %cst_36 : f32 to vector<2x256xf32>
    %56 = arith.maximumf %54, %55 : vector<2x256xf32>
    %57 = arith.truncf %56 : vector<2x256xf32> to vector<2x256xbf16>
    %c0_37 = arith.constant 0 : index
    %c0_38 = arith.constant 0 : index
    %58 = vector.load %arg9[%c0_37, %c0_38] : memref<256x43xbf16, #tpu.memory_space<vmem>>, vector<256x43xbf16>
    %cst_39 = arith.constant dense<0.000000e+00> : vector<2x43xf32>
    %59 = tpu.matmul %57, %58, %cst_39 {dimension_numbers = #tpu.dot_dimension_numbers<[1], [0], [0], [1], [0, 0, 1, 1], [], []>} : vector<2x256xbf16>, vector<256x43xbf16>, vector<2x43xf32> -> vector<2x43xf32>
    %c0_40 = arith.constant 0 : index
    %c3584 = arith.constant 3584 : index
    %60 = vector.load %arg15[%c0_40, %c3584] : memref<1x7168xf32, #tpu.memory_space<vmem>>, vector<1x43xf32>
    %61 = vector.broadcast %60 : vector<1x43xf32> to vector<2x43xf32>
    %62 = arith.addf %59, %61 : vector<2x43xf32>
    %63 = arith.truncf %62 : vector<2x43xf32> to vector<2x43xbf16>
    %c0_41 = arith.constant 0 : index
    %c0_42 = arith.constant 0 : index
    %64 = vector.load %arg10[%c0_41, %c0_42] : memref<43x2397xbf16, #tpu.memory_space<vmem>>, vector<43x2397xbf16>
    %cst_43 = arith.constant dense<0.000000e+00> : vector<2x2397xf32>
    %65 = tpu.matmul %63, %64, %cst_43 {dimension_numbers = #tpu.dot_dimension_numbers<[1], [0], [0], [1], [0, 0, 1, 1], [], []>} : vector<2x43xbf16>, vector<43x2397xbf16>, vector<2x2397xf32> -> vector<2x2397xf32>
    %c0_44 = arith.constant 0 : index
    %c3712 = arith.constant 3712 : index
    %66 = vector.load %arg15[%c0_44, %c3712] : memref<1x7168xf32, #tpu.memory_space<vmem>>, vector<1x2397xf32>
    %67 = vector.broadcast %66 : vector<1x2397xf32> to vector<2x2397xf32>
    %68 = arith.addf %65, %67 : vector<2x2397xf32>
    %69 = tpu.concatenate %21, %41 in 1 : vector<2x512xbf16>, vector<2x1024xbf16> -> vector<2x1536xbf16>
    %c0_45 = arith.constant 0 : index
    %c0_46 = arith.constant 0 : index
    %70 = vector.load %arg11[%c0_45, %c0_46] : memref<1536x256xbf16, #tpu.memory_space<vmem>>, vector<1536x256xbf16>
    %cst_47 = arith.constant dense<0.000000e+00> : vector<2x256xf32>
    %71 = tpu.matmul %69, %70, %cst_47 {dimension_numbers = #tpu.dot_dimension_numbers<[1], [0], [0], [1], [0, 0, 1, 1], [], []>} : vector<2x1536xbf16>, vector<1536x256xbf16>, vector<2x256xf32> -> vector<2x256xf32>
    %c0_48 = arith.constant 0 : index
    %c6144 = arith.constant 6144 : index
    %72 = vector.load %arg15[%c0_48, %c6144] : memref<1x7168xf32, #tpu.memory_space<vmem>>, vector<1x256xf32>
    %73 = vector.broadcast %72 : vector<1x256xf32> to vector<2x256xf32>
    %74 = arith.addf %71, %73 : vector<2x256xf32>
    %cst_49 = arith.constant 0.000000e+00 : f32
    %75 = vector.broadcast %cst_49 : f32 to vector<2x256xf32>
    %76 = arith.maximumf %74, %75 : vector<2x256xf32>
    %77 = arith.truncf %76 : vector<2x256xf32> to vector<2x256xbf16>
    %c0_50 = arith.constant 0 : index
    %c0_51 = arith.constant 0 : index
    %78 = vector.load %arg12[%c0_50, %c0_51] : memref<256x6xbf16, #tpu.memory_space<vmem>>, vector<256x6xbf16>
    %cst_52 = arith.constant dense<0.000000e+00> : vector<2x6xf32>
    %79 = tpu.matmul %77, %78, %cst_52 {dimension_numbers = #tpu.dot_dimension_numbers<[1], [0], [0], [1], [0, 0, 1, 1], [], []>} : vector<2x256xbf16>, vector<256x6xbf16>, vector<2x6xf32> -> vector<2x6xf32>
    %c0_53 = arith.constant 0 : index
    %c6400 = arith.constant 6400 : index
    %80 = vector.load %arg15[%c0_53, %c6400] : memref<1x7168xf32, #tpu.memory_space<vmem>>, vector<1x6xf32>
    %81 = vector.broadcast %80 : vector<1x6xf32> to vector<2x6xf32>
    %82 = arith.addf %79, %81 : vector<2x6xf32>
    %c0_54 = arith.constant 0 : index
    %c0_55 = arith.constant 0 : index
    %83 = vector.load %arg13[%c0_54, %c0_55] : memref<512x512xbf16, #tpu.memory_space<vmem>>, vector<512x512xbf16>
    %cst_56 = arith.constant dense<0.000000e+00> : vector<2x512xf32>
    %84 = tpu.matmul %21, %83, %cst_56 {dimension_numbers = #tpu.dot_dimension_numbers<[1], [0], [0], [1], [0, 0, 1, 1], [], []>} : vector<2x512xbf16>, vector<512x512xbf16>, vector<2x512xf32> -> vector<2x512xf32>
    %c0_57 = arith.constant 0 : index
    %c6528 = arith.constant 6528 : index
    %85 = vector.load %arg15[%c0_57, %c6528] : memref<1x7168xf32, #tpu.memory_space<vmem>>, vector<1x512xf32>
    %86 = vector.broadcast %85 : vector<1x512xf32> to vector<2x512xf32>
    %87 = arith.addf %84, %86 : vector<2x512xf32>
    %cst_58 = arith.constant 0.000000e+00 : f32
    %88 = vector.broadcast %cst_58 : f32 to vector<2x512xf32>
    %89 = arith.maximumf %87, %88 : vector<2x512xf32>
    %90 = arith.truncf %89 : vector<2x512xf32> to vector<2x512xbf16>
    %c0_59 = arith.constant 0 : index
    %c0_60 = arith.constant 0 : index
    %91 = vector.load %arg14[%c0_59, %c0_60] : memref<512x4xbf16, #tpu.memory_space<vmem>>, vector<512x4xbf16>
    %cst_61 = arith.constant dense<0.000000e+00> : vector<2x4xf32>
    %92 = tpu.matmul %90, %91, %cst_61 {dimension_numbers = #tpu.dot_dimension_numbers<[1], [0], [0], [1], [0, 0, 1, 1], [], []>} : vector<2x512xbf16>, vector<512x4xbf16>, vector<2x4xf32> -> vector<2x4xf32>
    %c0_62 = arith.constant 0 : index
    %c7040 = arith.constant 7040 : index
    %93 = vector.load %arg15[%c0_62, %c7040] : memref<1x7168xf32, #tpu.memory_space<vmem>>, vector<1x4xf32>
    %94 = vector.broadcast %93 : vector<1x4xf32> to vector<2x4xf32>
    %95 = arith.addf %92, %94 : vector<2x4xf32>
    %cst_63 = arith.constant 0.000000e+00 : f32
    %96 = vector.broadcast %cst_63 : f32 to vector<2x2816xf32>
    %c0_64 = arith.constant 0 : index
    %c0_65 = arith.constant 0 : index
    %97 = vector.load %arg16[%c0_64, %c0_65] : memref<2x2816xf32, #tpu.memory_space<vmem>>, vector<2x2816xf32>
    tpu.vector_store %arg16[%c0_64, %c0_65], %96 {strides = array<i32>} : memref<2x2816xf32, #tpu.memory_space<vmem>>, vector<2x2816xf32>,
    %c0_66 = arith.constant 0 : index
    %c0_67 = arith.constant 0 : index
    %98 = vector.load %arg16[%c0_66, %c0_67] : memref<2x2816xf32, #tpu.memory_space<vmem>>, vector<2x2397xf32>
    tpu.vector_store %arg16[%c0_66, %c0_67], %68 {strides = array<i32>} : memref<2x2816xf32, #tpu.memory_space<vmem>>, vector<2x2397xf32>,
    %c0_68 = arith.constant 0 : index
    %c2432 = arith.constant 2432 : index
    %99 = vector.load %arg16[%c0_68, %c2432] : memref<2x2816xf32, #tpu.memory_space<vmem>>, vector<2x43xf32>
    tpu.vector_store %arg16[%c0_68, %c2432], %62 {strides = array<i32>} : memref<2x2816xf32, #tpu.memory_space<vmem>>, vector<2x43xf32>,
    %c0_69 = arith.constant 0 : index
    %c2560 = arith.constant 2560 : index
    %100 = vector.load %arg16[%c0_69, %c2560] : memref<2x2816xf32, #tpu.memory_space<vmem>>, vector<2x6xf32>
    tpu.vector_store %arg16[%c0_69, %c2560], %82 {strides = array<i32>} : memref<2x2816xf32, #tpu.memory_space<vmem>>, vector<2x6xf32>,
    %c0_70 = arith.constant 0 : index
    %c2688 = arith.constant 2688 : index
    %101 = vector.load %arg16[%c0_70, %c2688] : memref<2x2816xf32, #tpu.memory_space<vmem>>, vector<2x4xf32>
    tpu.vector_store %arg16[%c0_70, %c2688], %95 {strides = array<i32>} : memref<2x2816xf32, #tpu.memory_space<vmem>>, vector<2x4xf32>,
    return
  }
  func.func @transform_0(%arg0: i32) -> (i32, i32, i32) {
    %c0_i32 = arith.constant 0 : i32
    %c0_i32_0 = arith.constant 0 : i32
    %c0_i32_1 = arith.constant 0 : i32
    return %arg0, %c0_i32, %c0_i32_0 : i32, i32, i32
  }
  func.func @transform_1(%arg0: i32) -> (i32, i32, i32) {
    %c0_i32 = arith.constant 0 : i32
    %c0_i32_0 = arith.constant 0 : i32
    %c0_i32_1 = arith.constant 0 : i32
    return %arg0, %c0_i32, %c0_i32_0 : i32, i32, i32
  }
  func.func @transform_2(%arg0: i32) -> (i32, i32) {
    %c0_i32 = arith.constant 0 : i32
    %c0_i32_0 = arith.constant 0 : i32
    %c0_i32_1 = arith.constant 0 : i32
    return %c0_i32, %c0_i32_0 : i32, i32
  }
  func.func @transform_3(%arg0: i32) -> (i32, i32) {
    %c0_i32 = arith.constant 0 : i32
    %c0_i32_0 = arith.constant 0 : i32
    %c0_i32_1 = arith.constant 0 : i32
    return %c0_i32, %c0_i32_0 : i32, i32
  }
  func.func @transform_4(%arg0: i32) -> (i32, i32) {
    %c0_i32 = arith.constant 0 : i32
    %c0_i32_0 = arith.constant 0 : i32
    %c0_i32_1 = arith.constant 0 : i32
    return %c0_i32, %c0_i32_0 : i32, i32
  }
  func.func @transform_5(%arg0: i32) -> (i32, i32) {
    %c0_i32 = arith.constant 0 : i32
    %c0_i32_0 = arith.constant 0 : i32
    %c0_i32_1 = arith.constant 0 : i32
    return %c0_i32, %c0_i32_0 : i32, i32
  }
  func.func @transform_6(%arg0: i32) -> (i32, i32) {
    %c0_i32 = arith.constant 0 : i32
    %c0_i32_0 = arith.constant 0 : i32
    %c0_i32_1 = arith.constant 0 : i32
    return %c0_i32, %c0_i32_0 : i32, i32
  }
  func.func @transform_7(%arg0: i32) -> (i32, i32) {
    %c0_i32 = arith.constant 0 : i32
    %c0_i32_0 = arith.constant 0 : i32
    %c0_i32_1 = arith.constant 0 : i32
    return %c0_i32, %c0_i32_0 : i32, i32
  }
  func.func @transform_8(%arg0: i32) -> (i32, i32) {
    %c0_i32 = arith.constant 0 : i32
    %c0_i32_0 = arith.constant 0 : i32
    %c0_i32_1 = arith.constant 0 : i32
    return %c0_i32, %c0_i32_0 : i32, i32
  }
  func.func @transform_9(%arg0: i32) -> (i32, i32) {
    %c0_i32 = arith.constant 0 : i32
    %c0_i32_0 = arith.constant 0 : i32
    %c0_i32_1 = arith.constant 0 : i32
    return %c0_i32, %c0_i32_0 : i32, i32
  }
  func.func @transform_10(%arg0: i32) -> (i32, i32) {
    %c0_i32 = arith.constant 0 : i32
    %c0_i32_0 = arith.constant 0 : i32
    %c0_i32_1 = arith.constant 0 : i32
    return %c0_i32, %c0_i32_0 : i32, i32
  }
  func.func @transform_11(%arg0: i32) -> (i32, i32) {
    %c0_i32 = arith.constant 0 : i32
    %c0_i32_0 = arith.constant 0 : i32
    %c0_i32_1 = arith.constant 0 : i32
    return %c0_i32, %c0_i32_0 : i32, i32
  }
  func.func @transform_12(%arg0: i32) -> (i32, i32) {
    %c0_i32 = arith.constant 0 : i32
    %c0_i32_0 = arith.constant 0 : i32
    %c0_i32_1 = arith.constant 0 : i32
    return %c0_i32, %c0_i32_0 : i32, i32
  }
  func.func @transform_13(%arg0: i32) -> (i32, i32) {
    %c0_i32 = arith.constant 0 : i32
    %c0_i32_0 = arith.constant 0 : i32
    %c0_i32_1 = arith.constant 0 : i32
    return %c0_i32, %c0_i32_0 : i32, i32
  }
  func.func @transform_14(%arg0: i32) -> (i32, i32) {
    %c0_i32 = arith.constant 0 : i32
    %c0_i32_0 = arith.constant 0 : i32
    %c0_i32_1 = arith.constant 0 : i32
    return %c0_i32, %c0_i32_0 : i32, i32
  }
  func.func @transform_15(%arg0: i32) -> (i32, i32) {
    %c0_i32 = arith.constant 0 : i32
    %c0_i32_0 = arith.constant 0 : i32
    return %arg0, %c0_i32 : i32, i32
  }
}

</mosaic_0001>

<llo_original>
// kernel: pose_mano_forward.1
$region0: #{pose_mano_forward.1}
  #allocation0 [shape = 'u32[]', space=smem, size = 0x4, offset = 0x4, fixed_abs, tag = 'smem constant byte address 0x4 - core index']
  #allocation1 [shape = 'u32[144,128]{1,0:T(1,128)}', space=vmem, size = 0x12000, scoped, tag = 'internal scratch']
  %s0 = inlined_call_operand.vmem [shape: bf16[2,256,27], index: 0, kind: input, shape index: {}]
  %s1 = inlined_call_operand.vmem [shape: bf16[2,64,3], index: 1, kind: input, shape index: {}]
  %s2 = inlined_call_operand.vmem [shape: bf16[27,32], index: 2, kind: input, shape index: {}]
  %s3 = inlined_call_operand.vmem [shape: bf16[32,1024], index: 3, kind: input, shape index: {}]
  %s4 = inlined_call_operand.vmem [shape: bf16[3,128], index: 4, kind: input, shape index: {}]
  %s5 = inlined_call_operand.vmem [shape: bf16[128,1024], index: 5, kind: input, shape index: {}]
  %s6 = inlined_call_operand.vmem [shape: bf16[512,1024], index: 6, kind: input, shape index: {}]
  %s7 = inlined_call_operand.vmem [shape: bf16[1024,256], index: 7, kind: input, shape index: {}]
  %s8 = inlined_call_operand.vmem [shape: bf16[256,43], index: 8, kind: input, shape index: {}]
  %s9 = inlined_call_operand.vmem [shape: bf16[43,2397], index: 9, kind: input, shape index: {}]
  %s10 = inlined_call_operand.vmem [shape: bf16[1536,256], index: 10, kind: input, shape index: {}]
  %s11 = inlined_call_operand.vmem [shape: bf16[256,6], index: 11, kind: input, shape index: {}]
  %s12 = inlined_call_operand.vmem [shape: bf16[512,512], index: 12, kind: input, shape index: {}]
  %s13 = inlined_call_operand.vmem [shape: bf16[512,4], index: 13, kind: input, shape index: {}]
  %s14 = inlined_call_operand.vmem [shape: f32[1,7168], index: 14, kind: input, shape index: {}]
  %s15 = inlined_call_operand.vmem [shape: f32[2,2816], index: 15, kind: output, shape index: {}]
  %s16 = sld [smem:[#allocation0]]
  $region70: #{pose_mano_forward.1} parent=0
    _
  %s18 = ssub.s32 1, %s16
  %s19 = scalar_select 0, %s18, %s16
  // Predicated region
  $region2: #{pose_mano_forward.1} parent=0 // pred_check
    _
  $region3: #{pose_mano_forward.1} parent=0 // pred_check_branch
    %21 = sbr.rel (0) target = $region5
  $region4: #{pose_mano_forward.1} parent=0 // pred_region
    _
  $region5: #{pose_mano_forward.1} parent=0 // pred_fallthru
    _
  // Predicated region
  $region6: #{pose_mano_forward.1} parent=0 // pred_check
    _
  $region7: #{pose_mano_forward.1} parent=0 // pred_check_branch
    %23 = sbr.rel (0) target = $region9
  $region8: #{pose_mano_forward.1} parent=0 // pred_region
    _
  $region9: #{pose_mano_forward.1} parent=0 // pred_fallthru
    _
  // Predicated region
  $region10: #{pose_mano_forward.1} parent=0 // pred_check
    _
  $region11: #{pose_mano_forward.1} parent=0 // pred_check_branch
    %25 = sbr.rel (0) target = $region13
  $region12: #{pose_mano_forward.1} parent=0 // pred_region
    _
  $region13: #{pose_mano_forward.1} parent=0 // pred_fallthru
    _
  // Predicated region
  $region14: #{pose_mano_forward.1} parent=0 // pred_check
    _
  $region15: #{pose_mano_forward.1} parent=0 // pred_check_branch
    %27 = sbr.rel (0) target = $region17
  $region16: #{pose_mano_forward.1} parent=0 // pred_region
    _
  $region17: #{pose_mano_forward.1} parent=0 // pred_fallthru
    _
  // Predicated region
  $region18: #{pose_mano_forward.1} parent=0 // pred_check
    _
  $region19: #{pose_mano_forward.1} parent=0 // pred_check_branch
    %29 = sbr.rel (0) target = $region21
  $region20: #{pose_mano_forward.1} parent=0 // pred_region
    _
  $region21: #{pose_mano_forward.1} parent=0 // pred_fallthru
    _
  // Predicated region
  $region22: #{pose_mano_forward.1} parent=0 // pred_check
    _
  $region23: #{pose_mano_forward.1} parent=0 // pred_check_branch
    %31 = sbr.rel (0) target = $region25
  $region24: #{pose_mano_forward.1} parent=0 // pred_region
    _
  $region25: #{pose_mano_forward.1} parent=0 // pred_fallthru
    _
  // Predicated region
  $region26: #{pose_mano_forward.1} parent=0 // pred_check
    _
  $region27: #{pose_mano_forward.1} parent=0 // pred_check_branch
    %33 = sbr.rel (0) target = $region29
  $region28: #{pose_mano_forward.1} parent=0 // pred_region
    _
  $region29: #{pose_mano_forward.1} parent=0 // pred_fallthru
    _
  // Predicated region
  $region30: #{pose_mano_forward.1} parent=0 // pred_check
    _
  $region31: #{pose_mano_forward.1} parent=0 // pred_check_branch
    %35 = sbr.rel (0) target = $region33
  $region32: #{pose_mano_forward.1} parent=0 // pred_region
    _
  $region33: #{pose_mano_forward.1} parent=0 // pred_fallthru
    _
  // Predicated region
  $region34: #{pose_mano_forward.1} parent=0 // pred_check
    _
  $region35: #{pose_mano_forward.1} parent=0 // pred_check_branch
    %37 = sbr.rel (0) target = $region37
  $region36: #{pose_mano_forward.1} parent=0 // pred_region
    _
  $region37: #{pose_mano_forward.1} parent=0 // pred_fallthru
    _
  // Predicated region
  $region38: #{pose_mano_forward.1} parent=0 // pred_check
    _
  $region39: #{pose_mano_forward.1} parent=0 // pred_check_branch
    %39 = sbr.rel (0) target = $region41
  $region40: #{pose_mano_forward.1} parent=0 // pred_region
    _
  $region41: #{pose_mano_forward.1} parent=0 // pred_fallthru
    _
  // Predicated region
  $region42: #{pose_mano_forward.1} parent=0 // pred_check
    _
  $region43: #{pose_mano_forward.1} parent=0 // pred_check_branch
    %41 = sbr.rel (0) target = $region45
  $region44: #{pose_mano_forward.1} parent=0 // pred_region
    _
  $region45: #{pose_mano_forward.1} parent=0 // pred_fallthru
    _
  // Predicated region
  $region46: #{pose_mano_forward.1} parent=0 // pred_check
    _
  $region47: #{pose_mano_forward.1} parent=0 // pred_check_branch
    %43 = sbr.rel (0) target = $region49
  $region48: #{pose_mano_forward.1} parent=0 // pred_region
    _
  $region49: #{pose_mano_forward.1} parent=0 // pred_fallthru
    _
  // Predicated region
  $region50: #{pose_mano_forward.1} parent=0 // pred_check
    _
  $region51: #{pose_mano_forward.1} parent=0 // pred_check_branch
    %45 = sbr.rel (0) target = $region53
  $region52: #{pose_mano_forward.1} parent=0 // pred_region
    _
  $region53: #{pose_mano_forward.1} parent=0 // pred_fallthru
    _
  // Predicated region
  $region54: #{pose_mano_forward.1} parent=0 // pred_check
    _
  $region55: #{pose_mano_forward.1} parent=0 // pred_check_branch
    %47 = sbr.rel (0) target = $region57
  $region56: #{pose_mano_forward.1} parent=0 // pred_region
    _
  $region57: #{pose_mano_forward.1} parent=0 // pred_fallthru
    _
  // Predicated region
  $region58: #{pose_mano_forward.1} parent=0 // pred_check
    _
  $region59: #{pose_mano_forward.1} parent=0 // pred_check_branch
    %49 = sbr.rel (0) target = $region61
  $region60: #{pose_mano_forward.1} parent=0 // pred_region
    _
  $region61: #{pose_mano_forward.1} parent=0 // pred_fallthru
    _
  %v51 = vld [vmem:[%s0] sm:$0xf]
  %v52 = vld [vmem:[%s0 + $0x4] sm:$0xf]
  %v53 = vld [vmem:[%s0 + $0x8] sm:$0xf]
  %v54 = vld [vmem:[%s0 + $0xc] sm:$0xf]
  %v55 = vld [vmem:[%s0 + $0x10] sm:$0xf]
  %v56 = vld [vmem:[%s0 + $0x14] sm:$0xf]
  %v57 = vld [vmem:[%s0 + $0x18] sm:$0xf]
  %v58 = vld [vmem:[%s0 + $0x1c] sm:$0xf]
  %v59 = vld [vmem:[%s0 + $0x20] sm:$0xf]
  %v60 = vld [vmem:[%s0 + $0x24] sm:$0xf]
  %v61 = vld [vmem:[%s0 + $0x28] sm:$0xf]
  %v62 = vld [vmem:[%s0 + $0x2c] sm:$0xf]
  %v63 = vld [vmem:[%s0 + $0x30] sm:$0xf]
  %v64 = vld [vmem:[%s0 + $0x34] sm:$0xf]
  %v65 = vld [vmem:[%s0 + $0x38] sm:$0xf]
  %v66 = vld [vmem:[%s0 + $0x3c] sm:$0xf]
  %v67 = vld [vmem:[%s0 + $0x40] sm:$0xf]
  %v68 = vld [vmem:[%s0 + $0x44] sm:$0xf]
  %v69 = vld [vmem:[%s0 + $0x48] sm:$0xf]
  %v70 = vld [vmem:[%s0 + $0x4c] sm:$0xf]
  %v71 = vld [vmem:[%s0 + $0x50] sm:$0xf]
  %v72 = vld [vmem:[%s0 + $0x54] sm:$0xf]
  %v73 = vld [vmem:[%s0 + $0x58] sm:$0xf]
  %v74 = vld [vmem:[%s0 + $0x5c] sm:$0xf]
  %v75 = vld [vmem:[%s0 + $0x60] sm:$0xf]
  %v76 = vld [vmem:[%s0 + $0x64] sm:$0xf]
  %v77 = vld [vmem:[%s0 + $0x68] sm:$0xf]
  %v78 = vld [vmem:[%s0 + $0x6c] sm:$0xf]
  %v79 = vld [vmem:[%s0 + $0x70] sm:$0xf]
  %v80 = vld [vmem:[%s0 + $0x74] sm:$0xf]
  %v81 = vld [vmem:[%s0 + $0x78] sm:$0xf]
  %v82 = vld [vmem:[%s0 + $0x7c] sm:$0xf]
  %v83 = vld [vmem:[%s0 + $0x80] sm:$0xf]
  %v84 = vld [vmem:[%s0 + $0x84] sm:$0xf]
  %v85 = vld [vmem:[%s0 + $0x88] sm:$0xf]
  %v86 = vld [vmem:[%s0 + $0x8c] sm:$0xf]
  %v87 = vld [vmem:[%s0 + $0x90] sm:$0xf]
  %v88 = vld [vmem:[%s0 + $0x94] sm:$0xf]
  %v89 = vld [vmem:[%s0 + $0x98] sm:$0xf]
  %v90 = vld [vmem:[%s0 + $0x9c] sm:$0xf]
  %v91 = vld [vmem:[%s0 + $0xa0] sm:$0xf]
  %v92 = vld [vmem:[%s0 + $0xa4] sm:$0xf]
  %v93 = vld [vmem:[%s0 + $0xa8] sm:$0xf]
  %v94 = vld [vmem:[%s0 + $0xac] sm:$0xf]
  %v95 = vld [vmem:[%s0 + $0xb0] sm:$0xf]
  %v96 = vld [vmem:[%s0 + $0xb4] sm:$0xf]
  %v97 = vld [vmem:[%s0 + $0xb8] sm:$0xf]
  %v98 = vld [vmem:[%s0 + $0xbc] sm:$0xf]
  %v99 = vld [vmem:[%s0 + $0xc0] sm:$0xf]
  %v100 = vld [vmem:[%s0 + $0xc4] sm:$0xf]
  %v101 = vld [vmem:[%s0 + $0xc8] sm:$0xf]
  %v102 = vld [vmem:[%s0 + $0xcc] sm:$0xf]
  %v103 = vld [vmem:[%s0 + $0xd0] sm:$0xf]
  %v104 = vld [vmem:[%s0 + $0xd4] sm:$0xf]
  %v105 = vld [vmem:[%s0 + $0xd8] sm:$0xf]
  %v106 = vld [vmem:[%s0 + $0xdc] sm:$0xf]
  %v107 = vld [vmem:[%s0 + $0xe0] sm:$0xf]
  %v108 = vld [vmem:[%s0 + $0xe4] sm:$0xf]
  %v109 = vld [vmem:[%s0 + $0xe8] sm:$0xf]
  %v110 = vld [vmem:[%s0 + $0xec] sm:$0xf]
  %v111 = vld [vmem:[%s0 + $0xf0] sm:$0xf]
  %v112 = vld [vmem:[%s0 + $0xf4] sm:$0xf]
  %v113 = vld [vmem:[%s0 + $0xf8] sm:$0xf]
  %v114 = vld [vmem:[%s0 + $0xfc] sm:$0xf]
  %v115 = vld [vmem:[%s2] sm:$0xf]
  %v116 = vld [vmem:[%s2 + $0x4] sm:$0xf]
  %v117 = vld [vmem:[%s2 + $0x8] sm:$0xf]
  %v118 = vld [vmem:[%s2 + $0xc] sm:$0x3]
  %v119 = vld [vmem:[%s14] sm:$0x1]
  %v121 = vlaneseq
  %v122 = vshrl.u32 %v121, 7
  %v123 = vsub.s32 0, %v122
  %v124 = vrot.slane %v119, %v123
  %v190 = vunpack.c.l.b16 %v51
  %v191 = vunpack.c.l.b16 %v52
  %v192 = vunpack.c.l.b16 %v53
  %v193 = vunpack.c.l.b16 %v54
  %v194 = vunpack.c.l.b16 %v55
  %v195 = vunpack.c.l.b16 %v56
  %v196 = vunpack.c.l.b16 %v57
  %v197 = vunpack.c.l.b16 %v58
  %v198 = vunpack.c.l.b16 %v59
  %v199 = vunpack.c.l.b16 %v60
  %v200 = vunpack.c.l.b16 %v61
  %v201 = vunpack.c.l.b16 %v62
  %v202 = vunpack.c.l.b16 %v63
  %v203 = vunpack.c.l.b16 %v64
  %v204 = vunpack.c.l.b16 %v65
  %v205 = vunpack.c.l.b16 %v66
  %v206 = vunpack.c.l.b16 %v67
  %v207 = vunpack.c.l.b16 %v68
  %v208 = vunpack.c.l.b16 %v69
  %v209 = vunpack.c.l.b16 %v70
  %v210 = vunpack.c.l.b16 %v71
  %v211 = vunpack.c.l.b16 %v72
  %v212 = vunpack.c.l.b16 %v73
  %v213 = vunpack.c.l.b16 %v74
  %v214 = vunpack.c.l.b16 %v75
  %v215 = vunpack.c.l.b16 %v76
  %v216 = vunpack.c.l.b16 %v77
  %v217 = vunpack.c.l.b16 %v78
  %v218 = vunpack.c.l.b16 %v79
  %v219 = vunpack.c.l.b16 %v80
  %v220 = vunpack.c.l.b16 %v81
  %v221 = vunpack.c.l.b16 %v82
  %v222 = vunpack.c.l.b16 %v83
  %v223 = vunpack.c.l.b16 %v84
  %v224 = vunpack.c.l.b16 %v85
  %v225 = vunpack.c.l.b16 %v86
  %v226 = vunpack.c.l.b16 %v87
  %v227 = vunpack.c.l.b16 %v88
  %v228 = vunpack.c.l.b16 %v89
  %v229 = vunpack.c.l.b16 %v90
  %v230 = vunpack.c.l.b16 %v91
  %v231 = vunpack.c.l.b16 %v92
  %v232 = vunpack.c.l.b16 %v93
  %v233 = vunpack.c.l.b16 %v94
  %v234 = vunpack.c.l.b16 %v95
  %v235 = vunpack.c.l.b16 %v96
  %v236 = vunpack.c.l.b16 %v97
  %v237 = vunpack.c.l.b16 %v98
  %v238 = vunpack.c.l.b16 %v99
  %v239 = vunpack.c.l.b16 %v100
  %v240 = vunpack.c.l.b16 %v101
  %v241 = vunpack.c.l.b16 %v102
  %v242 = vunpack.c.l.b16 %v103
  %v243 = vunpack.c.l.b16 %v104
  %v244 = vunpack.c.l.b16 %v105
  %v245 = vunpack.c.l.b16 %v106
  %v246 = vunpack.c.l.b16 %v107
  %v247 = vunpack.c.l.b16 %v108
  %v248 = vunpack.c.l.b16 %v109
  %v249 = vunpack.c.l.b16 %v110
  %v250 = vunpack.c.l.b16 %v111
  %v251 = vunpack.c.l.b16 %v112
  %v252 = vunpack.c.l.b16 %v113
  %v253 = vunpack.c.l.b16 %v114
  %v254 = vpack.c.b16 %v191, %v190
  %v255 = vpack.c.b16 %v193, %v192
  %v256 = vpack.c.b16 %v195, %v194
  %v257 = vpack.c.b16 %v197, %v196
  %v258 = vpack.c.b16 %v199, %v198
  %v259 = vpack.c.b16 %v201, %v200
  %v260 = vpack.c.b16 %v203, %v202
  %v261 = vpack.c.b16 %v205, %v204
  %v262 = vpack.c.b16 %v207, %v206
  %v263 = vpack.c.b16 %v209, %v208
  %v264 = vpack.c.b16 %v211, %v210
  %v265 = vpack.c.b16 %v213, %v212
  %v266 = vpack.c.b16 %v215, %v214
  %v267 = vpack.c.b16 %v217, %v216
  %v268 = vpack.c.b16 %v219, %v218
  %v269 = vpack.c.b16 %v221, %v220
  %v270 = vpack.c.b16 %v223, %v222
  %v271 = vpack.c.b16 %v225, %v224
  %v272 = vpack.c.b16 %v227, %v226
  %v273 = vpack.c.b16 %v229, %v228
  %v274 = vpack.c.b16 %v231, %v230
  %v275 = vpack.c.b16 %v233, %v232
  %v276 = vpack.c.b16 %v235, %v234
  %v277 = vpack.c.b16 %v237, %v236
  %v278 = vpack.c.b16 %v239, %v238
  %v279 = vpack.c.b16 %v241, %v240
  %v280 = vpack.c.b16 %v243, %v242
  %v281 = vpack.c.b16 %v245, %v244
  %v282 = vpack.c.b16 %v247, %v246
  %v283 = vpack.c.b16 %v249, %v248
  %v284 = vpack.c.b16 %v251, %v250
  %v285 = vpack.c.b16 %v253, %v252
  %v290 = vunpack.c.l.b16 %v115
  %v291 = vunpack.c.l.b16 %v116
  %v292 = vunpack.c.l.b16 %v117
  %v293 = vunpack.c.l.b16 %v118
  %v294 = vpack.c.b16 %v291, %v290
  %v295 = vpack.c.b16 %v293, %v292
  %vm297 = vcmask 220160
  %v299 = vsel %vm297, %v254, 0
  %v302 = vsel %vm297, %v255, 0
  %v305 = vsel %vm297, %v256, 0
  %v308 = vsel %vm297, %v257, 0
  %v311 = vsel %vm297, %v258, 0
  %v314 = vsel %vm297, %v259, 0
  %v317 = vsel %vm297, %v260, 0
  %v320 = vsel %vm297, %v261, 0
  %v323 = vsel %vm297, %v262, 0
  %v326 = vsel %vm297, %v263, 0
  %v329 = vsel %vm297, %v264, 0
  %v332 = vsel %vm297, %v265, 0
  %v335 = vsel %vm297, %v266, 0
  %v338 = vsel %vm297, %v267, 0
  %v341 = vsel %vm297, %v268, 0
  %v344 = vsel %vm297, %v269, 0
  %v347 = vsel %vm297, %v270, 0
  %v350 = vsel %vm297, %v271, 0
  %v353 = vsel %vm297, %v272, 0
  %v356 = vsel %vm297, %v273, 0
  %v359 = vsel %vm297, %v274, 0
  %v362 = vsel %vm297, %v275, 0
  %v365 = vsel %vm297, %v276, 0
  %v368 = vsel %vm297, %v277, 0
  %v371 = vsel %vm297, %v278, 0
  %v374 = vsel %vm297, %v279, 0
  %v377 = vsel %vm297, %v280, 0
  %v380 = vsel %vm297, %v281, 0
  %v383 = vsel %vm297, %v282, 0
  %v386 = vsel %vm297, %v283, 0
  %v389 = vsel %vm297, %v284, 0
  %v392 = vsel %vm297, %v285, 0
  %vm394 = vcmask 1044480
  %vm395 = vcmask 1045504
  %v396 = vsel %vm394, 4294967295, 65535
  %v397 = vsel %vm395, %v396, 0
  %v399 = vand.u32 %v295, %v397
  %401 = vmatprep.subr.bf16.mxu0 0
  %402 = vmatpush1.bf16.msra.mxu0 %v294
  %403 = vmatprep.subr.bf16.mxu0 0
  %404 = vmatpush1.bf16.msra.mxu0 %v399
  %405 = vmatprep.subr.bf16.mxu0 0
  %406 = vmatpush1.bf16.msra.mxu0 0
  %407 = vmatprep.subr.bf16.mxu0 0
  %408 = vmatpush1.bf16.msra.mxu0 0
  %409 = vmatprep.subr.bf16.mxu0 0
  %410 = vmatpush1.bf16.msra.mxu0 0
  %411 = vmatprep.subr.bf16.mxu0 0
  %412 = vmatpush1.bf16.msra.mxu0 0
  %413 = vmatprep.subr.bf16.mxu0 0
  %414 = vmatpush1.bf16.msra.mxu0 0
  %415 = vmatprep.subr.bf16.mxu0 0
  %416 = vmatpush1.bf16.msra.mxu0 0
  %417 = vmatprep.subr.bf16.mxu0 0
  %418 = vmatpush1.bf16.msra.mxu0 0
  %419 = vmatprep.subr.bf16.mxu0 0
  %420 = vmatpush1.bf16.msra.mxu0 0
  %421 = vmatprep.subr.bf16.mxu0 0
  %422 = vmatpush1.bf16.msra.mxu0 0
  %423 = vmatprep.subr.bf16.mxu0 0
  %424 = vmatpush1.bf16.msra.mxu0 0
  %425 = vmatprep.subr.bf16.mxu0 0
  %426 = vmatpush1.bf16.msra.mxu0 0
  %427 = vmatprep.subr.bf16.mxu0 0
  %428 = vmatpush1.bf16.msra.mxu0 0
  %429 = vmatprep.subr.bf16.mxu0 0
  %430 = vmatpush1.bf16.msra.mxu0 0
  %431 = vmatprep.subr.bf16.mxu0 0
  %432 = vmatpush1.bf16.msra.mxu0 0
  %433 = vmatprep.mubr.bf16.mxu0 0
  %434 = vmatmul.mubr.bf16.gmra.mrb[0].mxu0 %v299
  %v435 = vpop.f32.mrb[0].mxu0
  %v436 = vadd.f32 %v124, %v435
  %v437 = vpop.f32.mrb[0].mxu0
  %v438 = vpop.f32.mrb[0].mxu0
  %v439 = vadd.f32 %v124, %v438
  %v440 = vpop.f32.mrb[0].mxu0
  %441 = vmatprep.mubr.bf16.mxu0 0
  %442 = vmatmul.mubr.bf16.gmra.mrb[0].mxu0 %v302
  %v443 = vpop.f32.mrb[0].mxu0
  %v444 = vadd.f32 %v124, %v443
  %v445 = vpop.f32.mrb[0].mxu0
  %v446 = vpop.f32.mrb[0].mxu0
  %v447 = vadd.f32 %v124, %v446
  %v448 = vpop.f32.mrb[0].mxu0
  %449 = vmatprep.mubr.bf16.mxu0 0
  %450 = vmatmul.mubr.bf16.gmra.mrb[0].mxu0 %v305
  %v451 = vpop.f32.mrb[0].mxu0
  %v452 = vadd.f32 %v124, %v451
  %v453 = vpop.f32.mrb[0].mxu0
  %v454 = vpop.f32.mrb[0].mxu0
  %v455 = vadd.f32 %v124, %v454
  %v456 = vpop.f32.mrb[0].mxu0
  %457 = vmatprep.mubr.bf16.mxu0 0
  %458 = vmatmul.mubr.bf16.gmra.mrb[0].mxu0 %v308
  %v459 = vpop.f32.mrb[0].mxu0
  %v460 = vadd.f32 %v124, %v459
  %v461 = vpop.f32.mrb[0].mxu0
  %v462 = vpop.f32.mrb[0].mxu0
  %v463 = vadd.f32 %v124, %v462
  %v464 = vpop.f32.mrb[0].mxu0
  %465 = vmatprep.mubr.bf16.mxu0 0
  %466 = vmatmul.mubr.bf16.gmra.mrb[0].mxu0 %v311
  %v467 = vpop.f32.mrb[0].mxu0
  %v468 = vadd.f32 %v124, %v467
  %v469 = vpop.f32.mrb[0].mxu0
  %v470 = vpop.f32.mrb[0].mxu0
  %v471 = vadd.f32 %v124, %v470
  %v472 = vpop.f32.mrb[0].mxu0
  %473 = vmatprep.mubr.bf16.mxu0 0
  %474 = vmatmul.mubr.bf16.gmra.mrb[0].mxu0 %v314
  %v475 = vpop.f32.mrb[0].mxu0
  %v476 = vadd.f32 %v124, %v475
  %v477 = vpop.f32.mrb[0].mxu0
  %v478 = vpop.f32.mrb[0].mxu0
  %v479 = vadd.f32 %v124, %v478
  %v480 = vpop.f32.mrb[0].mxu0
  %481 = vmatprep.mubr.bf16.mxu0 0
  %482 = vmatmul.mubr.bf16.gmra.mrb[0].mxu0 %v317
  %v483 = vpop.f32.mrb[0].mxu0
  %v484 = vadd.f32 %v124, %v483
  %v485 = vpop.f32.mrb[0].mxu0
  %v486 = vpop.f32.mrb[0].mxu0
  %v487 = vadd.f32 %v124, %v486
  %v488 = vpop.f32.mrb[0].mxu0
  %489 = vmatprep.mubr.bf16.mxu0 0
  %490 = vmatmul.mubr.bf16.gmra.mrb[0].mxu0 %v320
  %v491 = vpop.f32.mrb[0].mxu0
  %v492 = vadd.f32 %v124, %v491
  %v493 = vpop.f32.mrb[0].mxu0
  %v494 = vpop.f32.mrb[0].mxu0
  %v495 = vadd.f32 %v124, %v494
  %v496 = vpop.f32.mrb[0].mxu0
  %497 = vmatprep.mubr.bf16.mxu0 0
  %498 = vmatmul.mubr.bf16.gmra.mrb[0].mxu0 %v323
  %v499 = vpop.f32.mrb[0].mxu0
  %v500 = vadd.f32 %v124, %v499
  %v501 = vpop.f32.mrb[0].mxu0
  %v502 = vpop.f32.mrb[0].mxu0
  %v503 = vadd.f32 %v124, %v502
  %v504 = vpop.f32.mrb[0].mxu0
  %505 = vmatprep.mubr.bf16.mxu0 0
  %506 = vmatmul.mubr.bf16.gmra.mrb[0].mxu0 %v326
  %v507 = vpop.f32.mrb[0].mxu0
  %v508 = vadd.f32 %v124, %v507
  %v509 = vpop.f32.mrb[0].mxu0
  %v510 = vpop.f32.mrb[0].mxu0
  %v511 = vadd.f32 %v124, %v510
  %v512 = vpop.f32.mrb[0].mxu0
  %513 = vmatprep.mubr.bf16.mxu0 0
  %514 = vmatmul.mubr.bf16.gmra.mrb[0].mxu0 %v329
  %v515 = vpop.f32.mrb[0].mxu0
  %v516 = vadd.f32 %v124, %v515
  %v517 = vpop.f32.mrb[0].mxu0
  %v518 = vpop.f32.mrb[0].mxu0
  %v519 = vadd.f32 %v124, %v518
  %v520 = vpop.f32.mrb[0].mxu0
  %521 = vmatprep.mubr.bf16.mxu0 0
  %522 = vmatmul.mubr.bf16.gmra.mrb[0].mxu0 %v332
  %v523 = vpop.f32.mrb[0].mxu0
  %v524 = vadd.f32 %v124, %v523
  %v525 = vpop.f32.mrb[0].mxu0
  %v526 = vpop.f32.mrb[0].mxu0
  %v527 = vadd.f32 %v124, %v526
  %v528 = vpop.f32.mrb[0].mxu0
  %529 = vmatprep.mubr.bf16.mxu0 0
  %530 = vmatmul.mubr.bf16.gmra.mrb[0].mxu0 %v335
  %v531 = vpop.f32.mrb[0].mxu0
  %v532 = vadd.f32 %v124, %v531
  %v533 = vpop.f32.mrb[0].mxu0
  %v534 = vpop.f32.mrb[0].mxu0
  %v535 = vadd.f32 %v124, %v534
  %v536 = vpop.f32.mrb[0].mxu0
  %537 = vmatprep.mubr.bf16.mxu0 0
  %538 = vmatmul.mubr.bf16.gmra.mrb[0].mxu0 %v338
  %v539 = vpop.f32.mrb[0].mxu0
  %v540 = vadd.f32 %v124, %v539
  %v541 = vpop.f32.mrb[0].mxu0
  %v542 = vpop.f32.mrb[0].mxu0
  %v543 = vadd.f32 %v124, %v542
  %v544 = vpop.f32.mrb[0].mxu0
  %545 = vmatprep.mubr.bf16.mxu0 0
  %546 = vmatmul.mubr.bf16.gmra.mrb[0].mxu0 %v341
  %v547 = vpop.f32.mrb[0].mxu0
  %v548 = vadd.f32 %v124, %v547
  %v549 = vpop.f32.mrb[0].mxu0
  %v550 = vpop.f32.mrb[0].mxu0
  %v551 = vadd.f32 %v124, %v550
  %v552 = vpop.f32.mrb[0].mxu0
  %553 = vmatprep.mubr.bf16.mxu0 0
  %554 = vmatmul.mubr.bf16.gmra.mrb[0].mxu0 %v344
  %v555 = vpop.f32.mrb[0].mxu0
  %v556 = vadd.f32 %v124, %v555
  %v557 = vpop.f32.mrb[0].mxu0
  %v558 = vpop.f32.mrb[0].mxu0
  %v559 = vadd.f32 %v124, %v558
  %v560 = vpop.f32.mrb[0].mxu0
  %561 = vmatprep.mubr.bf16.mxu0 0
  %562 = vmatmul.mubr.bf16.gmra.mrb[0].mxu0 %v347
  %v563 = vpop.f32.mrb[0].mxu0
  %v564 = vadd.f32 %v124, %v563
  %v565 = vpop.f32.mrb[0].mxu0
  %v566 = vpop.f32.mrb[0].mxu0
  %v567 = vadd.f32 %v124, %v566
  %v568 = vpop.f32.mrb[0].mxu0
  %569 = vmatprep.mubr.bf16.mxu0 0
  %570 = vmatmul.mubr.bf16.gmra.mrb[0].mxu0 %v350
  %v571 = vpop.f32.mrb[0].mxu0
  %v572 = vadd.f32 %v124, %v571
  %v573 = vpop.f32.mrb[0].mxu0
  %v574 = vpop.f32.mrb[0].mxu0
  %v575 = vadd.f32 %v124, %v574
  %v576 = vpop.f32.mrb[0].mxu0
  %577 = vmatprep.mubr.bf16.mxu0 0
  %578 = vmatmul.mubr.bf16.gmra.mrb[0].mxu0 %v353
  %v579 = vpop.f32.mrb[0].mxu0
  %v580 = vadd.f32 %v124, %v579
  %v581 = vpop.f32.mrb[0].mxu0
  %v582 = vpop.f32.mrb[0].mxu0
  %v583 = vadd.f32 %v124, %v582
  %v584 = vpop.f32.mrb[0].mxu0
  %585 = vmatprep.mubr.bf16.mxu0 0
  %586 = vmatmul.mubr.bf16.gmra.mrb[0].mxu0 %v356
  %v587 = vpop.f32.mrb[0].mxu0
  %v588 = vadd.f32 %v124, %v587
  %v589 = vpop.f32.mrb[0].mxu0
  %v590 = vpop.f32.mrb[0].mxu0
  %v591 = vadd.f32 %v124, %v590
  %v592 = vpop.f32.mrb[0].mxu0
  %593 = vmatprep.mubr.bf16.mxu0 0
  %594 = vmatmul.mubr.bf16.gmra.mrb[0].mxu0 %v359
  %v595 = vpop.f32.mrb[0].mxu0
  %v596 = vadd.f32 %v124, %v595
  %v597 = vpop.f32.mrb[0].mxu0
  %v598 = vpop.f32.mrb[0].mxu0
  %v599 = vadd.f32 %v124, %v598
  %v600 = vpop.f32.mrb[0].mxu0
  %601 = vmatprep.mubr.bf16.mxu0 0
  %602 = vmatmul.mubr.bf16.gmra.mrb[0].mxu0 %v362
  %v603 = vpop.f32.mrb[0].mxu0
  %v604 = vadd.f32 %v124, %v603
  %v605 = vpop.f32.mrb[0].mxu0
  %v606 = vpop.f32.mrb[0].mxu0
  %v607 = vadd.f32 %v124, %v606
  %v608 = vpop.f32.mrb[0].mxu0
  %609 = vmatprep.mubr.bf16.mxu0 0
  %610 = vmatmul.mubr.bf16.gmra.mrb[0].mxu0 %v365
  %v611 = vpop.f32.mrb[0].mxu0
  %v612 = vadd.f32 %v124, %v611
  %v613 = vpop.f32.mrb[0].mxu0
  %v614 = vpop.f32.mrb[0].mxu0
  %v615 = vadd.f32 %v124, %v614
  %v616 = vpop.f32.mrb[0].mxu0
  %617 = vmatprep.mubr.bf16.mxu0 0
  %618 = vmatmul.mubr.bf16.gmra.mrb[0].mxu0 %v368
  %v619 = vpop.f32.mrb[0].mxu0
  %v620 = vadd.f32 %v124, %v619
  %v621 = vpop.f32.mrb[0].mxu0
  %v622 = vpop.f32.mrb[0].mxu0
  %v623 = vadd.f32 %v124, %v622
  %v624 = vpop.f32.mrb[0].mxu0
  %625 = vmatprep.mubr.bf16.mxu0 0
  %626 = vmatmul.mubr.bf16.gmra.mrb[0].mxu0 %v371
  %v627 = vpop.f32.mrb[0].mxu0
  %v628 = vadd.f32 %v124, %v627
  %v629 = vpop.f32.mrb[0].mxu0
  %v630 = vpop.f32.mrb[0].mxu0
  %v631 = vadd.f32 %v124, %v630
  %v632 = vpop.f32.mrb[0].mxu0
  %633 = vmatprep.mubr.bf16.mxu0 0
  %634 = vmatmul.mubr.bf16.gmra.mrb[0].mxu0 %v374
  %v635 = vpop.f32.mrb[0].mxu0
  %v636 = vadd.f32 %v124, %v635
  %v637 = vpop.f32.mrb[0].mxu0
  %v638 = vpop.f32.mrb[0].mxu0
  %v639 = vadd.f32 %v124, %v638
  %v640 = vpop.f32.mrb[0].mxu0
  %641 = vmatprep.mubr.bf16.mxu0 0
  %642 = vmatmul.mubr.bf16.gmra.mrb[0].mxu0 %v377
  %v643 = vpop.f32.mrb[0].mxu0
  %v644 = vadd.f32 %v124, %v643
  %v645 = vpop.f32.mrb[0].mxu0
  %v646 = vpop.f32.mrb[0].mxu0
  %v647 = vadd.f32 %v124, %v646
  %v648 = vpop.f32.mrb[0].mxu0
  %649 = vmatprep.mubr.bf16.mxu0 0
  %650 = vmatmul.mubr.bf16.gmra.mrb[0].mxu0 %v380
  %v651 = vpop.f32.mrb[0].mxu0
  %v652 = vadd.f32 %v124, %v651
  %v653 = vpop.f32.mrb[0].mxu0
  %v654 = vpop.f32.mrb[0].mxu0
  %v655 = vadd.f32 %v124, %v654
  %v656 = vpop.f32.mrb[0].mxu0
  %657 = vmatprep.mubr.bf16.mxu0 0
  %658 = vmatmul.mubr.bf16.gmra.mrb[0].mxu0 %v383
  %v659 = vpop.f32.mrb[0].mxu0
  %v660 = vadd.f32 %v124, %v659
  %v661 = vpop.f32.mrb[0].mxu0
  %v662 = vpop.f32.mrb[0].mxu0
  %v663 = vadd.f32 %v124, %v662
  %v664 = vpop.f32.mrb[0].mxu0
  %665 = vmatprep.mubr.bf16.mxu0 0
  %666 = vmatmul.mubr.bf16.gmra.mrb[0].mxu0 %v386
  %v667 = vpop.f32.mrb[0].mxu0
  %v668 = vadd.f32 %v124, %v667
  %v669 = vpop.f32.mrb[0].mxu0
  %v670 = vpop.f32.mrb[0].mxu0
  %v671 = vadd.f32 %v124, %v670
  %v672 = vpop.f32.mrb[0].mxu0
  %673 = vmatprep.mubr.bf16.mxu0 0
  %674 = vmatmul.mubr.bf16.gmra.mrb[0].mxu0 %v389
  %v675 = vpop.f32.mrb[0].mxu0
  %v676 = vadd.f32 %v124, %v675
  %v677 = vpop.f32.mrb[0].mxu0
  %v678 = vpop.f32.mrb[0].mxu0
  %v679 = vadd.f32 %v124, %v678
  %v680 = vpop.f32.mrb[0].mxu0
  %681 = vmatprep.mubr.bf16.mxu0 0
  %682 = vmatmul.mubr.bf16.gmra.mrb[0].mxu0 %v392
  %v683 = vpop.f32.mrb[0].mxu0
  %v684 = vadd.f32 %v124, %v683
  %v685 = vpop.f32.mrb[0].mxu0
  %v686 = vpop.f32.mrb[0].mxu0
  %v687 = vadd.f32 %v124, %v686
  %v688 = vpop.f32.mrb[0].mxu0
  %689 = vdwg.mxu0
  %v690 = vmax.f32 %v436, 0.0
  %v691 = vmax.f32 %v439, 0.0
  %v692 = vmax.f32 %v444, 0.0
  %v693 = vmax.f32 %v447, 0.0
  %v694 = vmax.f32 %v452, 0.0
  %v695 = vmax.f32 %v455, 0.0
  %v696 = vmax.f32 %v460, 0.0
  %v697 = vmax.f32 %v463, 0.0
  %v698 = vmax.f32 %v468, 0.0
  %v699 = vmax.f32 %v471, 0.0
  %v700 = vmax.f32 %v476, 0.0
  %v701 = vmax.f32 %v479, 0.0
  %v702 = vmax.f32 %v484, 0.0
  %v703 = vmax.f32 %v487, 0.0
  %v704 = vmax.f32 %v492, 0.0
  %v705 = vmax.f32 %v495, 0.0
  %v706 = vmax.f32 %v500, 0.0
  %v707 = vmax.f32 %v503, 0.0
  %v708 = vmax.f32 %v508, 0.0
  %v709 = vmax.f32 %v511, 0.0
  %v710 = vmax.f32 %v516, 0.0
  %v711 = vmax.f32 %v519, 0.0
  %v712 = vmax.f32 %v524, 0.0
  %v713 = vmax.f32 %v527, 0.0
  %v714 = vmax.f32 %v532, 0.0
  %v715 = vmax.f32 %v535, 0.0
  %v716 = vmax.f32 %v540, 0.0
  %v717 = vmax.f32 %v543, 0.0
  %v718 = vmax.f32 %v548, 0.0
  %v719 = vmax.f32 %v551, 0.0
  %v720 = vmax.f32 %v556, 0.0
  %v721 = vmax.f32 %v559, 0.0
  %v722 = vmax.f32 %v564, 0.0
  %v723 = vmax.f32 %v567, 0.0
  %v724 = vmax.f32 %v572, 0.0
  %v725 = vmax.f32 %v575, 0.0
  %v726 = vmax.f32 %v580, 0.0
  %v727 = vmax.f32 %v583, 0.0
  %v728 = vmax.f32 %v588, 0.0
  %v729 = vmax.f32 %v591, 0.0
  %v730 = vmax.f32 %v596, 0.0
  %v731 = vmax.f32 %v599, 0.0
  %v732 = vmax.f32 %v604, 0.0
  %v733 = vmax.f32 %v607, 0.0
  %v734 = vmax.f32 %v612, 0.0
  %v735 = vmax.f32 %v615, 0.0
  %v736 = vmax.f32 %v620, 0.0
  %v737 = vmax.f32 %v623, 0.0
  %v738 = vmax.f32 %v628, 0.0
  %v739 = vmax.f32 %v631, 0.0
  %v740 = vmax.f32 %v636, 0.0
  %v741 = vmax.f32 %v639, 0.0
  %v742 = vmax.f32 %v644, 0.0
  %v743 = vmax.f32 %v647, 0.0
  %v744 = vmax.f32 %v652, 0.0
  %v745 = vmax.f32 %v655, 0.0
  %v746 = vmax.f32 %v660, 0.0
  %v747 = vmax.f32 %v663, 0.0
  %v748 = vmax.f32 %v668, 0.0
  %v749 = vmax.f32 %v671, 0.0
  %v750 = vmax.f32 %v676, 0.0
  %v751 = vmax.f32 %v679, 0.0
  %v752 = vmax.f32 %v684, 0.0
  %v753 = vmax.f32 %v687, 0.0
  %vm754 = vcmask 261120
  %v755 = vsel %vm754, %v690, 0.0
  %v756 = vsel %vm754, %v691, 0.0
  %v757 = vadd.f32 %v755, %v756
  %v758 = vsel %vm754, %v692, 0.0
  %v759 = vadd.f32 %v757, %v758
  %v760 = vsel %vm754, %v693, 0.0
  %v761 = vadd.f32 %v759, %v760
  %v762 = vsel %vm754, %v694, 0.0
  %v763 = vadd.f32 %v761, %v762
  %v764 = vsel %vm754, %v695, 0.0
  %v765 = vadd.f32 %v763, %v764
  %v766 = vsel %vm754, %v696, 0.0
  %v767 = vadd.f32 %v765, %v766
  %v768 = vsel %vm754, %v697, 0.0
  %v769 = vadd.f32 %v767, %v768
  %v770 = vsel %vm754, %v698, 0.0
  %v771 = vadd.f32 %v769, %v770
  %v772 = vsel %vm754, %v699, 0.0
  %v773 = vadd.f32 %v771, %v772
  %v774 = vsel %vm754, %v700, 0.0
  %v775 = vadd.f32 %v773, %v774
  %v776 = vsel %vm754, %v701, 0.0
  %v777 = vadd.f32 %v775, %v776
  %v778 = vsel %vm754, %v702, 0.0
  %v779 = vadd.f32 %v777, %v778
  %v780 = vsel %vm754, %v703, 0.0
  %v781 = vadd.f32 %v779, %v780
  %v782 = vsel %vm754, %v704, 0.0
  %v783 = vadd.f32 %v781, %v782
  %v784 = vsel %vm754, %v705, 0.0
  %v785 = vadd.f32 %v783, %v784
  %v786 = vsel %vm754, %v706, 0.0
  %v787 = vadd.f32 %v785, %v786
  %v788 = vsel %vm754, %v707, 0.0
  %v789 = vadd.f32 %v787, %v788
  %v790 = vsel %vm754, %v708, 0.0
  %v791 = vadd.f32 %v789, %v790
  %v792 = vsel %vm754, %v709, 0.0
  %v793 = vadd.f32 %v791, %v792
  %v794 = vsel %vm754, %v710, 0.0
  %v795 = vadd.f32 %v793, %v794
  %v796 = vsel %vm754, %v711, 0.0
  %v797 = vadd.f32 %v795, %v796
  %v798 = vsel %vm754, %v712, 0.0
  %v799 = vadd.f32 %v797, %v798
  %v800 = vsel %vm754, %v713, 0.0
  %v801 = vadd.f32 %v799, %v800
  %v802 = vsel %vm754, %v714, 0.0
  %v803 = vadd.f32 %v801, %v802
  %v804 = vsel %vm754, %v715, 0.0
  %v805 = vadd.f32 %v803, %v804
  %v806 = vsel %vm754, %v716, 0.0
  %v807 = vadd.f32 %v805, %v806
  %v808 = vsel %vm754, %v717, 0.0
  %v809 = vadd.f32 %v807, %v808
  %v810 = vsel %vm754, %v718, 0.0
  %v811 = vadd.f32 %v809, %v810
  %v812 = vsel %vm754, %v719, 0.0
  %v813 = vadd.f32 %v811, %v812
  %v814 = vsel %vm754, %v720, 0.0
  %v815 = vadd.f32 %v813, %v814
  %v816 = vsel %vm754, %v721, 0.0
  %v817 = vadd.f32 %v815, %v816
  %v818 = vrot.slane %v817, 4
  %v819 = vadd.f32 %v817, %v818
  %v820 = vrot.slane %v819, 2
  %v821 = vadd.f32 %v819, %v820
  %v822 = vrot.slane %v821, 1
  %v823 = vadd.f32 %v821, %v822
  %v824 = vsel %vm754, %v722, 0.0
  %v825 = vsel %vm754, %v723, 0.0
  %v826 = vadd.f32 %v824, %v825
  %v827 = vsel %vm754, %v724, 0.0
  %v828 = vadd.f32 %v826, %v827
  %v829 = vsel %vm754, %v725, 0.0
  %v830 = vadd.f32 %v828, %v829
  %v831 = vsel %vm754, %v726, 0.0
  %v832 = vadd.f32 %v830, %v831
  %v833 = vsel %vm754, %v727, 0.0
  %v834 = vadd.f32 %v832, %v833
  %v835 = vsel %vm754, %v728, 0.0
  %v836 = vadd.f32 %v834, %v835
  %v837 = vsel %vm754, %v729, 0.0
  %v838 = vadd.f32 %v836, %v837
  %v839 = vsel %vm754, %v730, 0.0
  %v840 = vadd.f32 %v838, %v839
  %v841 = vsel %vm754, %v731, 0.0
  %v842 = vadd.f32 %v840, %v841
  %v843 = vsel %vm754, %v732, 0.0
  %v844 = vadd.f32 %v842, %v843
  %v845 = vsel %vm754, %v733, 0.0
  %v846 = vadd.f32 %v844, %v845
  %v847 = vsel %vm754, %v734, 0.0
  %v848 = vadd.f32 %v846, %v847
  %v849 = vsel %vm754, %v735, 0.0
  %v850 = vadd.f32 %v848, %v849
  %v851 = vsel %vm754, %v736, 0.0
  %v852 = vadd.f32 %v850, %v851
  %v853 = vsel %vm754, %v737, 0.0
  %v854 = vadd.f32 %v852, %v853
  %v855 = vsel %vm754, %v738, 0.0
  %v856 = vadd.f32 %v854, %v855
  %v857 = vsel %vm754, %v739, 0.0
  %v858 = vadd.f32 %v856, %v857
  %v859 = vsel %vm754, %v740, 0.0
  %v860 = vadd.f32 %v858, %v859
  %v861 = vsel %vm754, %v741, 0.0
  %v862 = vadd.f32 %v860, %v861
  %v863 = vsel %vm754, %v742, 0.0
  %v864 = vadd.f32 %v862, %v863
  %v865 = vsel %vm754, %v743, 0.0
  %v866 = vadd.f32 %v864, %v865
  %v867 = vsel %vm754, %v744, 0.0
  %v868 = vadd.f32 %v866, %v867
  %v869 = vsel %vm754, %v745, 0.0
  %v870 = vadd.f32 %v868, %v869
  %v871 = vsel %vm754, %v746, 0.0
  %v872 = vadd.f32 %v870, %v871
  %v873 = vsel %vm754, %v747, 0.0
  %v874 = vadd.f32 %v872, %v873
  %v875 = vsel %vm754, %v748, 0.0
  %v876 = vadd.f32 %v874, %v875
  %v877 = vsel %vm754, %v749, 0.0
  %v878 = vadd.f32 %v876, %v877
  %v879 = vsel %vm754, %v750, 0.0
  %v880 = vadd.f32 %v878, %v879
  %v881 = vsel %vm754, %v751, 0.0
  %v882 = vadd.f32 %v880, %v881
  %v883 = vsel %vm754, %v752, 0.0
  %v884 = vadd.f32 %v882, %v883
  %v885 = vsel %vm754, %v753, 0.0
  %v886 = vadd.f32 %v884, %v885
  %v887 = vrot.slane %v886, 4
  %v888 = vadd.f32 %v886, %v887
  %v889 = vrot.slane %v888, 2
  %v890 = vadd.f32 %v888, %v889
  %v891 = vrot.slane %v890, 1
  %v892 = vadd.f32 %v890, %v891
  %v893 = vpack.c.bf16 %v823, %v823
  %v894 = vpack.c.bf16 %v892, %v892
  %v895 = vld [vmem:[%s3] sm:$0xff]
  %v896 = vld [vmem:[%s3 + $0x8] sm:$0xff]
  %v897 = vld [vmem:[%s3 + $0x10] sm:$0xff]
  %v898 = vld [vmem:[%s3 + $0x18] sm:$0xff]
  %v899 = vld [vmem:[%s3 + $0x20] sm:$0xff]
  %v900 = vld [vmem:[%s3 + $0x28] sm:$0xff]
  %v901 = vld [vmem:[%s3 + $0x30] sm:$0xff]
  %v902 = vld [vmem:[%s3 + $0x38] sm:$0xff]
  %v903 = vld [vmem:[%s3 + $0x40] sm:$0xff]
  %v904 = vld [vmem:[%s3 + $0x48] sm:$0xff]
  %v905 = vld [vmem:[%s3 + $0x50] sm:$0xff]
  %v906 = vld [vmem:[%s3 + $0x58] sm:$0xff]
  %v907 = vld [vmem:[%s3 + $0x60] sm:$0xff]
  %v908 = vld [vmem:[%s3 + $0x68] sm:$0xff]
  %v909 = vld [vmem:[%s3 + $0x70] sm:$0xff]
  %v910 = vld [vmem:[%s3 + $0x78] sm:$0xff]
  %v911 = vld [vmem:[%s14 + $0x1] sm:$0xff]
  %v913 = vlaneseq
  %v914 = vshrl.u32 %v913, 7
  %v915 = vsub.s32 0, %v914
  %v916 = vrot.slane %v911, %v915
  %v917 = vlaneseq
  %v918 = vshrl.u32 %v917, 7
  %v919 = vsub.s32 1, %v918
  %v920 = vrot.slane %v911, %v919
  %v921 = vlaneseq
  %v922 = vshrl.u32 %v921, 7
  %v923 = vsub.s32 2, %v922
  %v924 = vrot.slane %v911, %v923
  %v925 = vlaneseq
  %v926 = vshrl.u32 %v925, 7
  %v927 = vsub.s32 3, %v926
  %v928 = vrot.slane %v911, %v927
  %v929 = vlaneseq
  %v930 = vshrl.u32 %v929, 7
  %v931 = vsub.s32 4, %v930
  %v932 = vrot.slane %v911, %v931
  %v933 = vlaneseq
  %v934 = vshrl.u32 %v933, 7
  %v935 = vsub.s32 5, %v934
  %v936 = vrot.slane %v911, %v935
  %v937 = vlaneseq
  %v938 = vshrl.u32 %v937, 7
  %v939 = vsub.s32 6, %v938
  %v940 = vrot.slane %v911, %v939
  %v941 = vlaneseq
  %v942 = vshrl.u32 %v941, 7
  %v943 = vsub.s32 7, %v942
  %v944 = vrot.slane %v911, %v943
  %v955 = vunpack.c.l.b16 %v893
  %v956 = vunpack.c.l.b16 %v894
  %vm957 = vcmask 1041409
  %v958 = vsel %vm957, %v956, %v955
  %v959 = vpack.c.b16 %v958, %v958
  %v976 = vunpack.c.l.b16 %v895
  %v977 = vunpack.c.h.b16 %v895
  %v978 = vunpack.c.l.b16 %v896
  %v979 = vunpack.c.h.b16 %v896
  %v980 = vunpack.c.l.b16 %v897
  %v981 = vunpack.c.h.b16 %v897
  %v982 = vunpack.c.l.b16 %v898
  %v983 = vunpack.c.h.b16 %v898
  %v984 = vunpack.c.l.b16 %v899
  %v985 = vunpack.c.h.b16 %v899
  %v986 = vunpack.c.l.b16 %v900
  %v987 = vunpack.c.h.b16 %v900
  %v988 = vunpack.c.l.b16 %v901
  %v989 = vunpack.c.h.b16 %v901
  %v990 = vunpack.c.l.b16 %v902
  %v991 = vunpack.c.h.b16 %v902
  %v992 = vunpack.c.l.b16 %v903
  %v993 = vunpack.c.h.b16 %v903
  %v994 = vunpack.c.l.b16 %v904
  %v995 = vunpack.c.h.b16 %v904
  %v996 = vunpack.c.l.b16 %v905
  %v997 = vunpack.c.h.b16 %v905
  %v998 = vunpack.c.l.b16 %v906
  %v999 = vunpack.c.h.b16 %v906
  %v1000 = vunpack.c.l.b16 %v907
  %v1001 = vunpack.c.h.b16 %v907
  %v1002 = vunpack.c.l.b16 %v908
  %v1003 = vunpack.c.h.b16 %v908
  %v1004 = vunpack.c.l.b16 %v909
  %v1005 = vunpack.c.h.b16 %v909
  %v1006 = vunpack.c.l.b16 %v910
  %v1007 = vunpack.c.h.b16 %v910
  %v1008 = vpack.c.b16 %v984, %v976
  %v1009 = vpack.c.b16 %v985, %v977
  %v1010 = vpack.c.b16 %v986, %v978
  %v1011 = vpack.c.b16 %v987, %v979
  %v1012 = vpack.c.b16 %v988, %v980
  %v1013 = vpack.c.b16 %v989, %v981
  %v1014 = vpack.c.b16 %v990, %v982
  %v1015 = vpack.c.b16 %v991, %v983
  %v1016 = vpack.c.b16 %v1000, %v992
  %v1017 = vpack.c.b16 %v1001, %v993
  %v1018 = vpack.c.b16 %v1002, %v994
  %v1019 = vpack.c.b16 %v1003, %v995
  %v1020 = vpack.c.b16 %v1004, %v996
  %v1021 = vpack.c.b16 %v1005, %v997
  %v1022 = vpack.c.b16 %v1006, %v998
  %v1023 = vpack.c.b16 %v1007, %v999
  %v1041 = vsel %vm754, %v959, 0
  %1043 = vmatprep.subr.bf16.mxu0 %v1009
  %1044 = vmatpush1.bf16.msra.mxu0 %v1008
  %1045 = vmatprep.subr.bf16.mxu0 %v1017
  %1046 = vmatpush1.bf16.msra.mxu0 %v1016
  %1047 = vmatprep.subr.bf16.mxu0 0
  %1048 = vmatpush1.bf16.msra.mxu0 0
  %1049 = vmatprep.subr.bf16.mxu0 0
  %1050 = vmatpush1.bf16.msra.mxu0 0
  %1051 = vmatprep.subr.bf16.mxu0 0
  %1052 = vmatpush1.bf16.msra.mxu0 0
  %1053 = vmatprep.subr.bf16.mxu0 0
  %1054 = vmatpush1.bf16.msra.mxu0 0
  %1055 = vmatprep.subr.bf16.mxu0 0
  %1056 = vmatpush1.bf16.msra.mxu0 0
  %1057 = vmatprep.subr.bf16.mxu0 0
  %1058 = vmatpush1.bf16.msra.mxu0 0
  %1059 = vmatprep.subr.bf16.mxu0 0
  %1060 = vmatpush1.bf16.msra.mxu0 0
  %1061 = vmatprep.subr.bf16.mxu0 0
  %1062 = vmatpush1.bf16.msra.mxu0 0
  %1063 = vmatprep.subr.bf16.mxu0 0
  %1064 = vmatpush1.bf16.msra.mxu0 0
  %1065 = vmatprep.subr.bf16.mxu0 0
  %1066 = vmatpush1.bf16.msra.mxu0 0
  %1067 = vmatprep.subr.bf16.mxu0 0
  %1068 = vmatpush1.bf16.msra.mxu0 0
  %1069 = vmatprep.subr.bf16.mxu0 0
  %1070 = vmatpush1.bf16.msra.mxu0 0
  %1071 = vmatprep.subr.bf16.mxu0 0
  %1072 = vmatpush1.bf16.msra.mxu0 0
  %1073 = vmatprep.subr.bf16.mxu0 0
  %1074 = vmatpush1.bf16.msra.mxu0 0
  %1075 = vmatprep.mubr.bf16.mxu0 0
  %1076 = vmatmul.mubr.bf16.gmra.mrb[0].mxu0 %v1041
  %v1077 = vpop.f32.mrb[0].mxu0
  %v1078 = vadd.f32 %v916, %v1077
  %v1079 = vpop.f32.mrb[0].mxu0
  %v1080 = vadd.f32 %v920, %v1079
  %v1081 = vpop.f32.mrb[0].mxu0
  %v1082 = vpop.f32.mrb[0].mxu0
  %1083 = vdwg.mxu0
  %1084 = vmatprep.subr.bf16.mxu0 %v1011
  %1085 = vmatpush1.bf16.msra.mxu0 %v1010
  %1086 = vmatprep.subr.bf16.mxu0 %v1019
  %1087 = vmatpush1.bf16.msra.mxu0 %v1018
  %1088 = vmatprep.subr.bf16.mxu0 0
  %1089 = vmatpush1.bf16.msra.mxu0 0
  %1090 = vmatprep.subr.bf16.mxu0 0
  %1091 = vmatpush1.bf16.msra.mxu0 0
  %1092 = vmatprep.subr.bf16.mxu0 0
  %1093 = vmatpush1.bf16.msra.mxu0 0
  %1094 = vmatprep.subr.bf16.mxu0 0
  %1095 = vmatpush1.bf16.msra.mxu0 0
  %1096 = vmatprep.subr.bf16.mxu0 0
  %1097 = vmatpush1.bf16.msra.mxu0 0
  %1098 = vmatprep.subr.bf16.mxu0 0
  %1099 = vmatpush1.bf16.msra.mxu0 0
  %1100 = vmatprep.subr.bf16.mxu0 0
  %1101 = vmatpush1.bf16.msra.mxu0 0
  %1102 = vmatprep.subr.bf16.mxu0 0
  %1103 = vmatpush1.bf16.msra.mxu0 0
  %1104 = vmatprep.subr.bf16.mxu0 0
  %1105 = vmatpush1.bf16.msra.mxu0 0
  %1106 = vmatprep.subr.bf16.mxu0 0
  %1107 = vmatpush1.bf16.msra.mxu0 0
  %1108 = vmatprep.subr.bf16.mxu0 0
  %1109 = vmatpush1.bf16.msra.mxu0 0
  %1110 = vmatprep.subr.bf16.mxu0 0
  %1111 = vmatpush1.bf16.msra.mxu0 0
  %1112 = vmatprep.subr.bf16.mxu0 0
  %1113 = vmatpush1.bf16.msra.mxu0 0
  %1114 = vmatprep.subr.bf16.mxu0 0
  %1115 = vmatpush1.bf16.msra.mxu0 0
  %1116 = vmatprep.mubr.bf16.mxu0 0
  %1117 = vmatmul.mubr.bf16.gmra.mrb[0].mxu0 %v1041
  %v1118 = vpop.f32.mrb[0].mxu0
  %v1119 = vadd.f32 %v924, %v1118
  %v1120 = vpop.f32.mrb[0].mxu0
  %v1121 = vadd.f32 %v928, %v1120
  %v1122 = vpop.f32.mrb[0].mxu0
  %v1123 = vpop.f32.mrb[0].mxu0
  %1124 = vdwg.mxu0
  %1125 = vmatprep.subr.bf16.mxu0 %v1013
  %1126 = vmatpush1.bf16.msra.mxu0 %v1012
  %1127 = vmatprep.subr.bf16.mxu0 %v1021
  %1128 = vmatpush1.bf16.msra.mxu0 %v1020
  %1129 = vmatprep.subr.bf16.mxu0 0
  %1130 = vmatpush1.bf16.msra.mxu0 0
  %1131 = vmatprep.subr.bf16.mxu0 0
  %1132 = vmatpush1.bf16.msra.mxu0 0
  %1133 = vmatprep.subr.bf16.mxu0 0
  %1134 = vmatpush1.bf16.msra.mxu0 0
  %1135 = vmatprep.subr.bf16.mxu0 0
  %1136 = vmatpush1.bf16.msra.mxu0 0
  %1137 = vmatprep.subr.bf16.mxu0 0
  %1138 = vmatpush1.bf16.msra.mxu0 0
  %1139 = vmatprep.subr.bf16.mxu0 0
  %1140 = vmatpush1.bf16.msra.mxu0 0
  %1141 = vmatprep.subr.bf16.mxu0 0
  %1142 = vmatpush1.bf16.msra.mxu0 0
  %1143 = vmatprep.subr.bf16.mxu0 0
  %1144 = vmatpush1.bf16.msra.mxu0 0
  %1145 = vmatprep.subr.bf16.mxu0 0
  %1146 = vmatpush1.bf16.msra.mxu0 0
  %1147 = vmatprep.subr.bf16.mxu0 0
  %1148 = vmatpush1.bf16.msra.mxu0 0
  %1149 = vmatprep.subr.bf16.mxu0 0
  %1150 = vmatpush1.bf16.msra.mxu0 0
  %1151 = vmatprep.subr.bf16.mxu0 0
  %1152 = vmatpush1.bf16.msra.mxu0 0
  %1153 = vmatprep.subr.bf16.mxu0 0
  %1154 = vmatpush1.bf16.msra.mxu0 0
  %1155 = vmatprep.subr.bf16.mxu0 0
  %1156 = vmatpush1.bf16.msra.mxu0 0
  %1157 = vmatprep.mubr.bf16.mxu0 0
  %1158 = vmatmul.mubr.bf16.gmra.mrb[0].mxu0 %v1041
  %v1159 = vpop.f32.mrb[0].mxu0
  %v1160 = vadd.f32 %v932, %v1159
  %v1161 = vpop.f32.mrb[0].mxu0
  %v1162 = vadd.f32 %v936, %v1161
  %v1163 = vpop.f32.mrb[0].mxu0
  %v1164 = vpop.f32.mrb[0].mxu0
  %1165 = vdwg.mxu0
  %1166 = vmatprep.subr.bf16.mxu0 %v1015
  %1167 = vmatpush1.bf16.msra.mxu0 %v1014
  %1168 = vmatprep.subr.bf16.mxu0 %v1023
  %1169 = vmatpush1.bf16.msra.mxu0 %v1022
  %1170 = vmatprep.subr.bf16.mxu0 0
  %1171 = vmatpush1.bf16.msra.mxu0 0
  %1172 = vmatprep.subr.bf16.mxu0 0
  %1173 = vmatpush1.bf16.msra.mxu0 0
  %1174 = vmatprep.subr.bf16.mxu0 0
  %1175 = vmatpush1.bf16.msra.mxu0 0
  %1176 = vmatprep.subr.bf16.mxu0 0
  %1177 = vmatpush1.bf16.msra.mxu0 0
  %1178 = vmatprep.subr.bf16.mxu0 0
  %1179 = vmatpush1.bf16.msra.mxu0 0
  %1180 = vmatprep.subr.bf16.mxu0 0
  %1181 = vmatpush1.bf16.msra.mxu0 0
  %1182 = vmatprep.subr.bf16.mxu0 0
  %1183 = vmatpush1.bf16.msra.mxu0 0
  %1184 = vmatprep.subr.bf16.mxu0 0
  %1185 = vmatpush1.bf16.msra.mxu0 0
  %1186 = vmatprep.subr.bf16.mxu0 0
  %1187 = vmatpush1.bf16.msra.mxu0 0
  %1188 = vmatprep.subr.bf16.mxu0 0
  %1189 = vmatpush1.bf16.msra.mxu0 0
  %1190 = vmatprep.subr.bf16.mxu0 0
  %1191 = vmatpush1.bf16.msra.mxu0 0
  %1192 = vmatprep.subr.bf16.mxu0 0
  %1193 = vmatpush1.bf16.msra.mxu0 0
  %1194 = vmatprep.subr.bf16.mxu0 0
  %1195 = vmatpush1.bf16.msra.mxu0 0
  %1196 = vmatprep.subr.bf16.mxu0 0
  %1197 = vmatpush1.bf16.msra.mxu0 0
  %1198 = vmatprep.mubr.bf16.mxu0 0
  %1199 = vmatmul.mubr.bf16.gmra.mrb[0].mxu0 %v1041
  %v1200 = vpop.f32.mrb[0].mxu0
  %v1201 = vadd.f32 %v940, %v1200
  %v1202 = vpop.f32.mrb[0].mxu0
  %v1203 = vadd.f32 %v944, %v1202
  %v1204 = vpop.f32.mrb[0].mxu0
  %v1205 = vpop.f32.mrb[0].mxu0
  %1206 = vdwg.mxu0
  %v1207 = vmax.f32 %v1078, 0.0
  %v1208 = vmax.f32 %v1080, 0.0
  %v1209 = vmax.f32 %v1119, 0.0
  %v1210 = vmax.f32 %v1121, 0.0
  %v1211 = vmax.f32 %v1160, 0.0
  %v1212 = vmax.f32 %v1162, 0.0
  %v1213 = vmax.f32 %v1201, 0.0
  %v1214 = vmax.f32 %v1203, 0.0
  %v1215 = vpack.c.bf16 %v1207, %v1207
  %v1216 = vpack.c.bf16 %v1208, %v1208
  %v1217 = vpack.c.bf16 %v1209, %v1209
  %v1218 = vpack.c.bf16 %v1210, %v1210
  %v1219 = vpack.c.bf16 %v1211, %v1211
  %v1220 = vpack.c.bf16 %v1212, %v1212
  %v1221 = vpack.c.bf16 %v1213, %v1213
  %v1222 = vpack.c.bf16 %v1214, %v1214
  %v1223 = vld [vmem:[%s1] sm:$0xf]
  %v1224 = vld [vmem:[%s1 + $0x4] sm:$0xf]
  %v1225 = vld [vmem:[%s1 + $0x8] sm:$0xf]
  %v1226 = vld [vmem:[%s1 + $0xc] sm:$0xf]
  %v1227 = vld [vmem:[%s1 + $0x10] sm:$0xf]
  %v1228 = vld [vmem:[%s1 + $0x14] sm:$0xf]
  %v1229 = vld [vmem:[%s1 + $0x18] sm:$0xf]
  %v1230 = vld [vmem:[%s1 + $0x1c] sm:$0xf]
  %v1231 = vld [vmem:[%s1 + $0x20] sm:$0xf]
  %v1232 = vld [vmem:[%s1 + $0x24] sm:$0xf]
  %v1233 = vld [vmem:[%s1 + $0x28] sm:$0xf]
  %v1234 = vld [vmem:[%s1 + $0x2c] sm:$0xf]
  %v1235 = vld [vmem:[%s1 + $0x30] sm:$0xf]
  %v1236 = vld [vmem:[%s1 + $0x34] sm:$0xf]
  %v1237 = vld [vmem:[%s1 + $0x38] sm:$0xf]
  %v1238 = vld [vmem:[%s1 + $0x3c] sm:$0xf]
  %v1239 = vld [vmem:[%s4] sm:$0x3]
  %v1240 = vld [vmem:[%s14 + $0x9] sm:$0x1]
  %v1242 = vlaneseq
  %v1243 = vshrl.u32 %v1242, 7
  %v1244 = vsub.s32 0, %v1243
  %v1245 = vrot.slane %v1240, %v1244
  %v1263 = vunpack.c.l.b16 %v1223
  %v1264 = vunpack.c.l.b16 %v1224
  %v1265 = vunpack.c.l.b16 %v1225
  %v1266 = vunpack.c.l.b16 %v1226
  %v1267 = vunpack.c.l.b16 %v1227
  %v1268 = vunpack.c.l.b16 %v1228
  %v1269 = vunpack.c.l.b16 %v1229
  %v1270 = vunpack.c.l.b16 %v1230
  %v1271 = vunpack.c.l.b16 %v1231
  %v1272 = vunpack.c.l.b16 %v1232
  %v1273 = vunpack.c.l.b16 %v1233
  %v1274 = vunpack.c.l.b16 %v1234
  %v1275 = vunpack.c.l.b16 %v1235
  %v1276 = vunpack.c.l.b16 %v1236
  %v1277 = vunpack.c.l.b16 %v1237
  %v1278 = vunpack.c.l.b16 %v1238
  %v1279 = vpack.c.b16 %v1264, %v1263
  %v1280 = vpack.c.b16 %v1266, %v1265
  %v1281 = vpack.c.b16 %v1268, %v1267
  %v1282 = vpack.c.b16 %v1270, %v1269
  %v1283 = vpack.c.b16 %v1272, %v1271
  %v1284 = vpack.c.b16 %v1274, %v1273
  %v1285 = vpack.c.b16 %v1276, %v1275
  %v1286 = vpack.c.b16 %v1278, %v1277
  %vm1287 = vcmask 23552
  %v1289 = vsel %vm1287, %v1279, 0
  %v1292 = vsel %vm1287, %v1280, 0
  %v1295 = vsel %vm1287, %v1281, 0
  %v1298 = vsel %vm1287, %v1282, 0
  %v1301 = vsel %vm1287, %v1283, 0
  %v1304 = vsel %vm1287, %v1284, 0
  %v1307 = vsel %vm1287, %v1285, 0
  %v1310 = vsel %vm1287, %v1286, 0
  %vm1312 = vcmask 1040384
  %vm1313 = vcmask 1041408
  %v1314 = vsel %vm1312, 4294967295, 65535
  %v1315 = vsel %vm1313, %v1314, 0
  %v1317 = vand.u32 %v1239, %v1315
  %1319 = vmatprep.subr.bf16.mxu0 0
  %1320 = vmatpush1.bf16.msra.mxu0 %v1317
  %1321 = vmatprep.subr.bf16.mxu0 0
  %1322 = vmatpush1.bf16.msra.mxu0 0
  %1323 = vmatprep.subr.bf16.mxu0 0
  %1324 = vmatpush1.bf16.msra.mxu0 0
  %1325 = vmatprep.subr.bf16.mxu0 0
  %1326 = vmatpush1.bf16.msra.mxu0 0
  %1327 = vmatprep.subr.bf16.mxu0 0
  %1328 = vmatpush1.bf16.msra.mxu0 0
  %1329 = vmatprep.subr.bf16.mxu0 0
  %1330 = vmatpush1.bf16.msra.mxu0 0
  %1331 = vmatprep.subr.bf16.mxu0 0
  %1332 = vmatpush1.bf16.msra.mxu0 0
  %1333 = vmatprep.subr.bf16.mxu0 0
  %1334 = vmatpush1.bf16.msra.mxu0 0
  %1335 = vmatprep.subr.bf16.mxu0 0
  %1336 = vmatpush1.bf16.msra.mxu0 0
  %1337 = vmatprep.subr.bf16.mxu0 0
  %1338 = vmatpush1.bf16.msra.mxu0 0
  %1339 = vmatprep.subr.bf16.mxu0 0
  %1340 = vmatpush1.bf16.msra.mxu0 0
  %1341 = vmatprep.subr.bf16.mxu0 0
  %1342 = vmatpush1.bf16.msra.mxu0 0
  %1343 = vmatprep.subr.bf16.mxu0 0
  %1344 = vmatpush1.bf16.msra.mxu0 0
  %1345 = vmatprep.subr.bf16.mxu0 0
  %1346 = vmatpush1.bf16.msra.mxu0 0
  %1347 = vmatprep.subr.bf16.mxu0 0
  %1348 = vmatpush1.bf16.msra.mxu0 0
  %1349 = vmatprep.subr.bf16.mxu0 0
  %1350 = vmatpush1.bf16.msra.mxu0 0
  %1351 = vmatprep.mubr.bf16.mxu0 0
  %1352 = vmatmul.mubr.bf16.gmra.mrb[0].mxu0 %v1289
  %v1353 = vpop.f32.mrb[0].mxu0
  %v1354 = vadd.f32 %v1245, %v1353
  %v1355 = vpop.f32.mrb[0].mxu0
  %v1356 = vpop.f32.mrb[0].mxu0
  %v1357 = vadd.f32 %v1245, %v1356
  %v1358 = vpop.f32.mrb[0].mxu0
  %1359 = vmatprep.mubr.bf16.mxu0 0
  %1360 = vmatmul.mubr.bf16.gmra.mrb[0].mxu0 %v1292
  %v1361 = vpop.f32.mrb[0].mxu0
  %v1362 = vadd.f32 %v1245, %v1361
  %v1363 = vpop.f32.mrb[0].mxu0
  %v1364 = vpop.f32.mrb[0].mxu0
  %v1365 = vadd.f32 %v1245, %v1364
  %v1366 = vpop.f32.mrb[0].mxu0
  %1367 = vmatprep.mubr.bf16.mxu0 0
  %1368 = vmatmul.mubr.bf16.gmra.mrb[0].mxu0 %v1295
  %v1369 = vpop.f32.mrb[0].mxu0
  %v1370 = vadd.f32 %v1245, %v1369
  %v1371 = vpop.f32.mrb[0].mxu0
  %v1372 = vpop.f32.mrb[0].mxu0
  %v1373 = vadd.f32 %v1245, %v1372
  %v1374 = vpop.f32.mrb[0].mxu0
  %1375 = vmatprep.mubr.bf16.mxu0 0
  %1376 = vmatmul.mubr.bf16.gmra.mrb[0].mxu0 %v1298
  %v1377 = vpop.f32.mrb[0].mxu0
  %v1378 = vadd.f32 %v1245, %v1377
  %v1379 = vpop.f32.mrb[0].mxu0
  %v1380 = vpop.f32.mrb[0].mxu0
  %v1381 = vadd.f32 %v1245, %v1380
  %v1382 = vpop.f32.mrb[0].mxu0
  %1383 = vmatprep.mubr.bf16.mxu0 0
  %1384 = vmatmul.mubr.bf16.gmra.mrb[0].mxu0 %v1301
  %v1385 = vpop.f32.mrb[0].mxu0
  %v1386 = vadd.f32 %v1245, %v1385
  %v1387 = vpop.f32.mrb[0].mxu0
  %v1388 = vpop.f32.mrb[0].mxu0
  %v1389 = vadd.f32 %v1245, %v1388
  %v1390 = vpop.f32.mrb[0].mxu0
  %1391 = vmatprep.mubr.bf16.mxu0 0
  %1392 = vmatmul.mubr.bf16.gmra.mrb[0].mxu0 %v1304
  %v1393 = vpop.f32.mrb[0].mxu0
  %v1394 = vadd.f32 %v1245, %v1393
  %v1395 = vpop.f32.mrb[0].mxu0
  %v1396 = vpop.f32.mrb[0].mxu0
  %v1397 = vadd.f32 %v1245, %v1396
  %v1398 = vpop.f32.mrb[0].mxu0
  %1399 = vmatprep.mubr.bf16.mxu0 0
  %1400 = vmatmul.mubr.bf16.gmra.mrb[0].mxu0 %v1307
  %v1401 = vpop.f32.mrb[0].mxu0
  %v1402 = vadd.f32 %v1245, %v1401
  %v1403 = vpop.f32.mrb[0].mxu0
  %v1404 = vpop.f32.mrb[0].mxu0
  %v1405 = vadd.f32 %v1245, %v1404
  %v1406 = vpop.f32.mrb[0].mxu0
  %1407 = vmatprep.mubr.bf16.mxu0 0
  %1408 = vmatmul.mubr.bf16.gmra.mrb[0].mxu0 %v1310
  %v1409 = vpop.f32.mrb[0].mxu0
  %v1410 = vadd.f32 %v1245, %v1409
  %v1411 = vpop.f32.mrb[0].mxu0
  %v1412 = vpop.f32.mrb[0].mxu0
  %v1413 = vadd.f32 %v1245, %v1412
  %v1414 = vpop.f32.mrb[0].mxu0
  %1415 = vdwg.mxu0
  %v1416 = vmax.f32 %v1354, 0.0
  %v1417 = vmax.f32 %v1357, 0.0
  %v1418 = vmax.f32 %v1362, 0.0
  %v1419 = vmax.f32 %v1365, 0.0
  %v1420 = vmax.f32 %v1370, 0.0
  %v1421 = vmax.f32 %v1373, 0.0
  %v1422 = vmax.f32 %v1378, 0.0
  %v1423 = vmax.f32 %v1381, 0.0
  %v1424 = vmax.f32 %v1386, 0.0
  %v1425 = vmax.f32 %v1389, 0.0
  %v1426 = vmax.f32 %v1394, 0.0
  %v1427 = vmax.f32 %v1397, 0.0
  %v1428 = vmax.f32 %v1402, 0.0
  %v1429 = vmax.f32 %v1405, 0.0
  %v1430 = vmax.f32 %v1410, 0.0
  %v1431 = vmax.f32 %v1413, 0.0
  %v1432 = vmax.f32 %v1416, %v1418
  %v1433 = vmax.f32 %v1417, %v1419
  %v1434 = vmax.f32 %v1432, %v1420
  %v1435 = vmax.f32 %v1433, %v1421
  %v1436 = vmax.f32 %v1434, %v1422
  %v1437 = vmax.f32 %v1435, %v1423
  %v1438 = vmax.f32 %v1436, %v1437
  %v1439 = vrot.slane %v1438, 4
  %v1440 = vmax.f32 %v1438, %v1439
  %v1441 = vrot.slane %v1440, 2
  %v1442 = vmax.f32 %v1440, %v1441
  %v1443 = vrot.slane %v1442, 1
  %v1444 = vmax.f32 %v1442, %v1443
  %v1445 = vmax.f32 %v1424, %v1426
  %v1446 = vmax.f32 %v1425, %v1427
  %v1447 = vmax.f32 %v1445, %v1428
  %v1448 = vmax.f32 %v1446, %v1429
  %v1449 = vmax.f32 %v1447, %v1430
  %v1450 = vmax.f32 %v1448, %v1431
  %v1451 = vmax.f32 %v1449, %v1450
  %v1452 = vrot.slane %v1451, 4
  %v1453 = vmax.f32 %v1451, %v1452
  %v1454 = vrot.slane %v1453, 2
  %v1455 = vmax.f32 %v1453, %v1454
  %v1456 = vrot.slane %v1455, 1
  %v1457 = vmax.f32 %v1455, %v1456
  %v1458 = vpack.c.bf16 %v1444, %v1444
  %v1459 = vpack.c.bf16 %v1457, %v1457
  %v1460 = vld [vmem:[%s5] sm:$0xff]
  %v1461 = vld [vmem:[%s5 + $0x8] sm:$0xff]
  %v1462 = vld [vmem:[%s5 + $0x10] sm:$0xff]
  %v1463 = vld [vmem:[%s5 + $0x18] sm:$0xff]
  %v1464 = vld [vmem:[%s5 + $0x20] sm:$0xff]
  %v1465 = vld [vmem:[%s5 + $0x28] sm:$0xff]
  %v1466 = vld [vmem:[%s5 + $0x30] sm:$0xff]
  %v1467 = vld [vmem:[%s5 + $0x38] sm:$0xff]
  %v1468 = vld [vmem:[%s5 + $0x40] sm:$0xff]
  %v1469 = vld [vmem:[%s5 + $0x48] sm:$0xff]
  %v1470 = vld [vmem:[%s5 + $0x50] sm:$0xff]
  %v1471 = vld [vmem:[%s5 + $0x58] sm:$0xff]
  %v1472 = vld [vmem:[%s5 + $0x60] sm:$0xff]
  %v1473 = vld [vmem:[%s5 + $0x68] sm:$0xff]
  %v1474 = vld [vmem:[%s5 + $0x70] sm:$0xff]
  %v1475 = vld [vmem:[%s5 + $0x78] sm:$0xff]
  %v1476 = vld [vmem:[%s5 + $0x80] sm:$0xff]
  %v1477 = vld [vmem:[%s5 + $0x88] sm:$0xff]
  %v1478 = vld [vmem:[%s5 + $0x90] sm:$0xff]
  %v1479 = vld [vmem:[%s5 + $0x98] sm:$0xff]
  %v1480 = vld [vmem:[%s5 + $0xa0] sm:$0xff]
  %v1481 = vld [vmem:[%s5 + $0xa8] sm:$0xff]
  %v1482 = vld [vmem:[%s5 + $0xb0] sm:$0xff]
  %v1483 = vld [vmem:[%s5 + $0xb8] sm:$0xff]
  %v1484 = vld [vmem:[%s5 + $0xc0] sm:$0xff]
  %v1485 = vld [vmem:[%s5 + $0xc8] sm:$0xff]
  %v1486 = vld [vmem:[%s5 + $0xd0] sm:$0xff]
  %v1487 = vld [vmem:[%s5 + $0xd8] sm:$0xff]
  %v1488 = vld [vmem:[%s5 + $0xe0] sm:$0xff]
  %v1489 = vld [vmem:[%s5 + $0xe8] sm:$0xff]
  %v1490 = vld [vmem:[%s5 + $0xf0] sm:$0xff]
  %v1491 = vld [vmem:[%s5 + $0xf8] sm:$0xff]
  %v1492 = vld [vmem:[%s5 + $0x100] sm:$0xff]
  %v1493 = vld [vmem:[%s5 + $0x108] sm:$0xff]
  %v1494 = vld [vmem:[%s5 + $0x110] sm:$0xff]
  %v1495 = vld [vmem:[%s5 + $0x118] sm:$0xff]
  %v1496 = vld [vmem:[%s5 + $0x120] sm:$0xff]
  %v1497 = vld [vmem:[%s5 + $0x128] sm:$0xff]
  %v1498 = vld [vmem:[%s5 + $0x130] sm:$0xff]
  %v1499 = vld [vmem:[%s5 + $0x138] sm:$0xff]
  %v1500 = vld [vmem:[%s5 + $0x140] sm:$0xff]
  %v1501 = vld [vmem:[%s5 + $0x148] sm:$0xff]
  %v1502 = vld [vmem:[%s5 + $0x150] sm:$0xff]
  %v1503 = vld [vmem:[%s5 + $0x158] sm:$0xff]
  %v1504 = vld [vmem:[%s5 + $0x160] sm:$0xff]
  %v1505 = vld [vmem:[%s5 + $0x168] sm:$0xff]
  %v1506 = vld [vmem:[%s5 + $0x170] sm:$0xff]
  %v1507 = vld [vmem:[%s5 + $0x178] sm:$0xff]
  %v1508 = vld [vmem:[%s5 + $0x180] sm:$0xff]
  %v1509 = vld [vmem:[%s5 + $0x188] sm:$0xff]
  %v1510 = vld [vmem:[%s5 + $0x190] sm:$0xff]
  %v1511 = vld [vmem:[%s5 + $0x198] sm:$0xff]
  %v1512 = vld [vmem:[%s5 + $0x1a0] sm:$0xff]
  %v1513 = vld [vmem:[%s5 + $0x1a8] sm:$0xff]
  %v1514 = vld [vmem:[%s5 + $0x1b0] sm:$0xff]
  %v1515 = vld [vmem:[%s5 + $0x1b8] sm:$0xff]
  %v1516 = vld [vmem:[%s5 + $0x1c0] sm:$0xff]
  %v1517 = vld [vmem:[%s5 + $0x1c8] sm:$0xff]
  %v1518 = vld [vmem:[%s5 + $0x1d0] sm:$0xff]
  %v1519 = vld [vmem:[%s5 + $0x1d8] sm:$0xff]
  %v1520 = vld [vmem:[%s5 + $0x1e0] sm:$0xff]
  %v1521 = vld [vmem:[%s5 + $0x1e8] sm:$0xff]
  %v1522 = vld [vmem:[%s5 + $0x1f0] sm:$0xff]
  %v1523 = vld [vmem:[%s5 + $0x1f8] sm:$0xff]
  %v1524 = vld [vmem:[%s14 + $0xa] sm:$0xff]
  %v1526 = vlaneseq
  %v1527 = vshrl.u32 %v1526, 7
  %v1528 = vsub.s32 0, %v1527
  %v1529 = vrot.slane %v1524, %v1528
  %v1530 = vlaneseq
  %v1531 = vshrl.u32 %v1530, 7
  %v1532 = vsub.s32 1, %v1531
  %v1533 = vrot.slane %v1524, %v1532
  %v1534 = vlaneseq
  %v1535 = vshrl.u32 %v1534, 7
  %v1536 = vsub.s32 2, %v1535
  %v1537 = vrot.slane %v1524, %v1536
  %v1538 = vlaneseq
  %v1539 = vshrl.u32 %v1538, 7
  %v1540 = vsub.s32 3, %v1539
  %v1541 = vrot.slane %v1524, %v1540
  %v1542 = vlaneseq
  %v1543 = vshrl.u32 %v1542, 7
  %v1544 = vsub.s32 4, %v1543
  %v1545 = vrot.slane %v1524, %v1544
  %v1546 = vlaneseq
  %v1547 = vshrl.u32 %v1546, 7
  %v1548 = vsub.s32 5, %v1547
  %v1549 = vrot.slane %v1524, %v1548
  %v1550 = vlaneseq
  %v1551 = vshrl.u32 %v1550, 7
  %v1552 = vsub.s32 6, %v1551
  %v1553 = vrot.slane %v1524, %v1552
  %v1554 = vlaneseq
  %v1555 = vshrl.u32 %v1554, 7
  %v1556 = vsub.s32 7, %v1555
  %v1557 = vrot.slane %v1524, %v1556
  %v1568 = vunpack.c.l.b16 %v1458
  %v1569 = vunpack.c.l.b16 %v1459
  %v1570 = vsel %vm957, %v1569, %v1568
  %v1571 = vpack.c.b16 %v1570, %v1570
  %v1637 = vunpack.c.l.b16 %v1460
  %v1638 = vunpack.c.h.b16 %v1460
  %v1639 = vunpack.c.l.b16 %v1461
  %v1640 = vunpack.c.h.b16 %v1461
  %v1641 = vunpack.c.l.b16 %v1462
  %v1642 = vunpack.c.h.b16 %v1462
  %v1643 = vunpack.c.l.b16 %v1463
  %v1644 = vunpack.c.h.b16 %v1463
  %v1645 = vunpack.c.l.b16 %v1464
  %v1646 = vunpack.c.h.b16 %v1464
  %v1647 = vunpack.c.l.b16 %v1465
  %v1648 = vunpack.c.h.b16 %v1465
  %v1649 = vunpack.c.l.b16 %v1466
  %v1650 = vunpack.c.h.b16 %v1466
  %v1651 = vunpack.c.l.b16 %v1467
  %v1652 = vunpack.c.h.b16 %v1467
  %v1653 = vunpack.c.l.b16 %v1468
  %v1654 = vunpack.c.h.b16 %v1468
  %v1655 = vunpack.c.l.b16 %v1469
  %v1656 = vunpack.c.h.b16 %v1469
  %v1657 = vunpack.c.l.b16 %v1470
  %v1658 = vunpack.c.h.b16 %v1470
  %v1659 = vunpack.c.l.b16 %v1471
  %v1660 = vunpack.c.h.b16 %v1471
  %v1661 = vunpack.c.l.b16 %v1472
  %v1662 = vunpack.c.h.b16 %v1472
  %v1663 = vunpack.c.l.b16 %v1473
  %v1664 = vunpack.c.h.b16 %v1473
  %v1665 = vunpack.c.l.b16 %v1474
  %v1666 = vunpack.c.h.b16 %v1474
  %v1667 = vunpack.c.l.b16 %v1475
  %v1668 = vunpack.c.h.b16 %v1475
  %v1669 = vunpack.c.l.b16 %v1476
  %v1670 = vunpack.c.h.b16 %v1476
  %v1671 = vunpack.c.l.b16 %v1477
  %v1672 = vunpack.c.h.b16 %v1477
  %v1673 = vunpack.c.l.b16 %v1478
  %v1674 = vunpack.c.h.b16 %v1478
  %v1675 = vunpack.c.l.b16 %v1479
  %v1676 = vunpack.c.h.b16 %v1479
  %v1677 = vunpack.c.l.b16 %v1480
  %v1678 = vunpack.c.h.b16 %v1480
  %v1679 = vunpack.c.l.b16 %v1481
  %v1680 = vunpack.c.h.b16 %v1481
  %v1681 = vunpack.c.l.b16 %v1482
  %v1682 = vunpack.c.h.b16 %v1482
  %v1683 = vunpack.c.l.b16 %v1483
  %v1684 = vunpack.c.h.b16 %v1483
  %v1685 = vunpack.c.l.b16 %v1484
  %v1686 = vunpack.c.h.b16 %v1484
  %v1687 = vunpack.c.l.b16 %v1485
  %v1688 = vunpack.c.h.b16 %v1485
  %v1689 = vunpack.c.l.b16 %v1486
  %v1690 = vunpack.c.h.b16 %v1486
  %v1691 = vunpack.c.l.b16 %v1487
  %v1692 = vunpack.c.h.b16 %v1487
  %v1693 = vunpack.c.l.b16 %v1488
  %v1694 = vunpack.c.h.b16 %v1488
  %v1695 = vunpack.c.l.b16 %v1489
  %v1696 = vunpack.c.h.b16 %v1489
  %v1697 = vunpack.c.l.b16 %v1490
  %v1698 = vunpack.c.h.b16 %v1490
  %v1699 = vunpack.c.l.b16 %v1491
  %v1700 = vunpack.c.h.b16 %v1491
  %v1701 = vunpack.c.l.b16 %v1492
  %v1702 = vunpack.c.h.b16 %v1492
  %v1703 = vunpack.c.l.b16 %v1493
  %v1704 = vunpack.c.h.b16 %v1493
  %v1705 = vunpack.c.l.b16 %v1494
  %v1706 = vunpack.c.h.b16 %v1494
  %v1707 = vunpack.c.l.b16 %v1495
  %v1708 = vunpack.c.h.b16 %v1495
  %v1709 = vunpack.c.l.b16 %v1496
  %v1710 = vunpack.c.h.b16 %v1496
  %v1711 = vunpack.c.l.b16 %v1497
  %v1712 = vunpack.c.h.b16 %v1497
  %v1713 = vunpack.c.l.b16 %v1498
  %v1714 = vunpack.c.h.b16 %v1498
  %v1715 = vunpack.c.l.b16 %v1499
  %v1716 = vunpack.c.h.b16 %v1499
  %v1717 = vunpack.c.l.b16 %v1500
  %v1718 = vunpack.c.h.b16 %v1500
  %v1719 = vunpack.c.l.b16 %v1501
  %v1720 = vunpack.c.h.b16 %v1501
  %v1721 = vunpack.c.l.b16 %v1502
  %v1722 = vunpack.c.h.b16 %v1502
  %v1723 = vunpack.c.l.b16 %v1503
  %v1724 = vunpack.c.h.b16 %v1503
  %v1725 = vunpack.c.l.b16 %v1504
  %v1726 = vunpack.c.h.b16 %v1504
  %v1727 = vunpack.c.l.b16 %v1505
  %v1728 = vunpack.c.h.b16 %v1505
  %v1729 = vunpack.c.l.b16 %v1506
  %v1730 = vunpack.c.h.b16 %v1506
  %v1731 = vunpack.c.l.b16 %v1507
  %v1732 = vunpack.c.h.b16 %v1507
  %v1733 = vunpack.c.l.b16 %v1508
  %v1734 = vunpack.c.h.b16 %v1508
  %v1735 = vunpack.c.l.b16 %v1509
  %v1736 = vunpack.c.h.b16 %v1509
  %v1737 = vunpack.c.l.b16 %v1510
  %v1738 = vunpack.c.h.b16 %v1510
  %v1739 = vunpack.c.l.b16 %v1511
  %v1740 = vunpack.c.h.b16 %v1511
  %v1741 = vunpack.c.l.b16 %v1512
  %v1742 = vunpack.c.h.b16 %v1512
  %v1743 = vunpack.c.l.b16 %v1513
  %v1744 = vunpack.c.h.b16 %v1513
  %v1745 = vunpack.c.l.b16 %v1514
  %v1746 = vunpack.c.h.b16 %v1514
  %v1747 = vunpack.c.l.b16 %v1515
  %v1748 = vunpack.c.h.b16 %v1515
  %v1749 = vunpack.c.l.b16 %v1516
  %v1750 = vunpack.c.h.b16 %v1516
  %v1751 = vunpack.c.l.b16 %v1517
  %v1752 = vunpack.c.h.b16 %v1517
  %v1753 = vunpack.c.l.b16 %v1518
  %v1754 = vunpack.c.h.b16 %v1518
  %v1755 = vunpack.c.l.b16 %v1519
  %v1756 = vunpack.c.h.b16 %v1519
  %v1757 = vunpack.c.l.b16 %v1520
  %v1758 = vunpack.c.h.b16 %v1520
  %v1759 = vunpack.c.l.b16 %v1521
  %v1760 = vunpack.c.h.b16 %v1521
  %v1761 = vunpack.c.l.b16 %v1522
  %v1762 = vunpack.c.h.b16 %v1522
  %v1763 = vunpack.c.l.b16 %v1523
  %v1764 = vunpack.c.h.b16 %v1523
  %v1765 = vpack.c.b16 %v1645, %v1637
  %v1766 = vpack.c.b16 %v1646, %v1638
  %v1767 = vpack.c.b16 %v1647, %v1639
  %v1768 = vpack.c.b16 %v1648, %v1640
  %v1769 = vpack.c.b16 %v1649, %v1641
  %v1770 = vpack.c.b16 %v1650, %v1642
  %v1771 = vpack.c.b16 %v1651, %v1643
  %v1772 = vpack.c.b16 %v1652, %v1644
  %v1773 = vpack.c.b16 %v1661, %v1653
  %v1774 = vpack.c.b16 %v1662, %v1654
  %v1775 = vpack.c.b16 %v1663, %v1655
  %v1776 = vpack.c.b16 %v1664, %v1656
  %v1777 = vpack.c.b16 %v1665, %v1657
  %v1778 = vpack.c.b16 %v1666, %v1658
  %v1779 = vpack.c.b16 %v1667, %v1659
  %v1780 = vpack.c.b16 %v1668, %v1660
  %v1781 = vpack.c.b16 %v1677, %v1669
  %v1782 = vpack.c.b16 %v1678, %v1670
  %v1783 = vpack.c.b16 %v1679, %v1671
  %v1784 = vpack.c.b16 %v1680, %v1672
  %v1785 = vpack.c.b16 %v1681, %v1673
  %v1786 = vpack.c.b16 %v1682, %v1674
  %v1787 = vpack.c.b16 %v1683, %v1675
  %v1788 = vpack.c.b16 %v1684, %v1676
  %v1789 = vpack.c.b16 %v1693, %v1685
  %v1790 = vpack.c.b16 %v1694, %v1686
  %v1791 = vpack.c.b16 %v1695, %v1687
  %v1792 = vpack.c.b16 %v1696, %v1688
  %v1793 = vpack.c.b16 %v1697, %v1689
  %v1794 = vpack.c.b16 %v1698, %v1690
  %v1795 = vpack.c.b16 %v1699, %v1691
  %v1796 = vpack.c.b16 %v1700, %v1692
  %v1797 = vpack.c.b16 %v1709, %v1701
  %v1798 = vpack.c.b16 %v1710, %v1702
  %v1799 = vpack.c.b16 %v1711, %v1703
  %v1800 = vpack.c.b16 %v1712, %v1704
  %v1801 = vpack.c.b16 %v1713, %v1705
  %v1802 = vpack.c.b16 %v1714, %v1706
  %v1803 = vpack.c.b16 %v1715, %v1707
  %v1804 = vpack.c.b16 %v1716, %v1708
  %v1805 = vpack.c.b16 %v1725, %v1717
  %v1806 = vpack.c.b16 %v1726, %v1718
  %v1807 = vpack.c.b16 %v1727, %v1719
  %v1808 = vpack.c.b16 %v1728, %v1720
  %v1809 = vpack.c.b16 %v1729, %v1721
  %v1810 = vpack.c.b16 %v1730, %v1722
  %v1811 = vpack.c.b16 %v1731, %v1723
  %v1812 = vpack.c.b16 %v1732, %v1724
  %v1813 = vpack.c.b16 %v1741, %v1733
  %v1814 = vpack.c.b16 %v1742, %v1734
  %v1815 = vpack.c.b16 %v1743, %v1735
  %v1816 = vpack.c.b16 %v1744, %v1736
  %v1817 = vpack.c.b16 %v1745, %v1737
  %v1818 = vpack.c.b16 %v1746, %v1738
  %v1819 = vpack.c.b16 %v1747, %v1739
  %v1820 = vpack.c.b16 %v1748, %v1740
  %v1821 = vpack.c.b16 %v1757, %v1749
  %v1822 = vpack.c.b16 %v1758, %v1750
  %v1823 = vpack.c.b16 %v1759, %v1751
  %v1824 = vpack.c.b16 %v1760, %v1752
  %v1825 = vpack.c.b16 %v1761, %v1753
  %v1826 = vpack.c.b16 %v1762, %v1754
  %v1827 = vpack.c.b16 %v1763, %v1755
  %v1828 = vpack.c.b16 %v1764, %v1756
  %1893 = vmatprep.subr.bf16.mxu0 %v1766
  %1894 = vmatpush1.bf16.msra.mxu0 %v1765
  %1895 = vmatprep.subr.bf16.mxu0 %v1774
  %1896 = vmatpush1.bf16.msra.mxu0 %v1773
  %1897 = vmatprep.subr.bf16.mxu0 %v1782
  %1898 = vmatpush1.bf16.msra.mxu0 %v1781
  %1899 = vmatprep.subr.bf16.mxu0 %v1790
  %1900 = vmatpush1.bf16.msra.mxu0 %v1789
  %1901 = vmatprep.subr.bf16.mxu0 %v1798
  %1902 = vmatpush1.bf16.msra.mxu0 %v1797
  %1903 = vmatprep.subr.bf16.mxu0 %v1806
  %1904 = vmatpush1.bf16.msra.mxu0 %v1805
  %1905 = vmatprep.subr.bf16.mxu0 %v1814
  %1906 = vmatpush1.bf16.msra.mxu0 %v1813
  %1907 = vmatprep.subr.bf16.mxu0 %v1822
  %1908 = vmatpush1.bf16.msra.mxu0 %v1821
  %1909 = vmatprep.subr.bf16.mxu0 0
  %1910 = vmatpush1.bf16.msra.mxu0 0
  %1911 = vmatprep.subr.bf16.mxu0 0
  %1912 = vmatpush1.bf16.msra.mxu0 0
  %1913 = vmatprep.subr.bf16.mxu0 0
  %1914 = vmatpush1.bf16.msra.mxu0 0
  %1915 = vmatprep.subr.bf16.mxu0 0
  %1916 = vmatpush1.bf16.msra.mxu0 0
  %1917 = vmatprep.subr.bf16.mxu0 0
  %1918 = vmatpush1.bf16.msra.mxu0 0
  %1919 = vmatprep.subr.bf16.mxu0 0
  %1920 = vmatpush1.bf16.msra.mxu0 0
  %1921 = vmatprep.subr.bf16.mxu0 0
  %1922 = vmatpush1.bf16.msra.mxu0 0
  %1923 = vmatprep.subr.bf16.mxu0 0
  %1924 = vmatpush1.bf16.msra.mxu0 0
  %1925 = vmatprep.mubr.bf16.mxu0 0
  %1926 = vmatmul.mubr.bf16.gmra.mrb[0].mxu0 %v1571
  %v1927 = vpop.f32.mrb[0].mxu0
  %v1928 = vadd.f32 %v1529, %v1927
  %v1929 = vpop.f32.mrb[0].mxu0
  %v1930 = vadd.f32 %v1533, %v1929
  %v1931 = vpop.f32.mrb[0].mxu0
  %v1932 = vpop.f32.mrb[0].mxu0
  %1933 = vdwg.mxu0
  %1934 = vmatprep.subr.bf16.mxu0 %v1768
  %1935 = vmatpush1.bf16.msra.mxu0 %v1767
  %1936 = vmatprep.subr.bf16.mxu0 %v1776
  %1937 = vmatpush1.bf16.msra.mxu0 %v1775
  %1938 = vmatprep.subr.bf16.mxu0 %v1784
  %1939 = vmatpush1.bf16.msra.mxu0 %v1783
  %1940 = vmatprep.subr.bf16.mxu0 %v1792
  %1941 = vmatpush1.bf16.msra.mxu0 %v1791
  %1942 = vmatprep.subr.bf16.mxu0 %v1800
  %1943 = vmatpush1.bf16.msra.mxu0 %v1799
  %1944 = vmatprep.subr.bf16.mxu0 %v1808
  %1945 = vmatpush1.bf16.msra.mxu0 %v1807
  %1946 = vmatprep.subr.bf16.mxu0 %v1816
  %1947 = vmatpush1.bf16.msra.mxu0 %v1815
  %1948 = vmatprep.subr.bf16.mxu0 %v1824
  %1949 = vmatpush1.bf16.msra.mxu0 %v1823
  %1950 = vmatprep.subr.bf16.mxu0 0
  %1951 = vmatpush1.bf16.msra.mxu0 0
  %1952 = vmatprep.subr.bf16.mxu0 0
  %1953 = vmatpush1.bf16.msra.mxu0 0
  %1954 = vmatprep.subr.bf16.mxu0 0
  %1955 = vmatpush1.bf16.msra.mxu0 0
  %1956 = vmatprep.subr.bf16.mxu0 0
  %1957 = vmatpush1.bf16.msra.mxu0 0
  %1958 = vmatprep.subr.bf16.mxu0 0
  %1959 = vmatpush1.bf16.msra.mxu0 0
  %1960 = vmatprep.subr.bf16.mxu0 0
  %1961 = vmatpush1.bf16.msra.mxu0 0
  %1962 = vmatprep.subr.bf16.mxu0 0
  %1963 = vmatpush1.bf16.msra.mxu0 0
  %1964 = vmatprep.subr.bf16.mxu0 0
  %1965 = vmatpush1.bf16.msra.mxu0 0
  %1966 = vmatprep.mubr.bf16.mxu0 0
  %1967 = vmatmul.mubr.bf16.gmra.mrb[0].mxu0 %v1571
  %v1968 = vpop.f32.mrb[0].mxu0
  %v1969 = vadd.f32 %v1537, %v1968
  %v1970 = vpop.f32.mrb[0].mxu0
  %v1971 = vadd.f32 %v1541, %v1970
  %v1972 = vpop.f32.mrb[0].mxu0
  %v1973 = vpop.f32.mrb[0].mxu0
  %1974 = vdwg.mxu0
  %1975 = vmatprep.subr.bf16.mxu0 %v1770
  %1976 = vmatpush1.bf16.msra.mxu0 %v1769
  %1977 = vmatprep.subr.bf16.mxu0 %v1778
  %1978 = vmatpush1.bf16.msra.mxu0 %v1777
  %1979 = vmatprep.subr.bf16.mxu0 %v1786
  %1980 = vmatpush1.bf16.msra.mxu0 %v1785
  %1981 = vmatprep.subr.bf16.mxu0 %v1794
  %1982 = vmatpush1.bf16.msra.mxu0 %v1793
  %1983 = vmatprep.subr.bf16.mxu0 %v1802
  %1984 = vmatpush1.bf16.msra.mxu0 %v1801
  %1985 = vmatprep.subr.bf16.mxu0 %v1810
  %1986 = vmatpush1.bf16.msra.mxu0 %v1809
  %1987 = vmatprep.subr.bf16.mxu0 %v1818
  %1988 = vmatpush1.bf16.msra.mxu0 %v1817
  %1989 = vmatprep.subr.bf16.mxu0 %v1826
  %1990 = vmatpush1.bf16.msra.mxu0 %v1825
  %1991 = vmatprep.subr.bf16.mxu0 0
  %1992 = vmatpush1.bf16.msra.mxu0 0
  %1993 = vmatprep.subr.bf16.mxu0 0
  %1994 = vmatpush1.bf16.msra.mxu0 0
  %1995 = vmatprep.subr.bf16.mxu0 0
  %1996 = vmatpush1.bf16.msra.mxu0 0
  %1997 = vmatprep.subr.bf16.mxu0 0
  %1998 = vmatpush1.bf16.msra.mxu0 0
  %1999 = vmatprep.subr.bf16.mxu0 0
  %2000 = vmatpush1.bf16.msra.mxu0 0
  %2001 = vmatprep.subr.bf16.mxu0 0
  %2002 = vmatpush1.bf16.msra.mxu0 0
  %2003 = vmatprep.subr.bf16.mxu0 0
  %2004 = vmatpush1.bf16.msra.mxu0 0
  %2005 = vmatprep.subr.bf16.mxu0 0
  %2006 = vmatpush1.bf16.msra.mxu0 0
  %2007 = vmatprep.mubr.bf16.mxu0 0
  %2008 = vmatmul.mubr.bf16.gmra.mrb[0].mxu0 %v1571
  %v2009 = vpop.f32.mrb[0].mxu0
  %v2010 = vadd.f32 %v1545, %v2009
  %v2011 = vpop.f32.mrb[0].mxu0
  %v2012 = vadd.f32 %v1549, %v2011
  %v2013 = vpop.f32.mrb[0].mxu0
  %v2014 = vpop.f32.mrb[0].mxu0
  %2015 = vdwg.mxu0
  %2016 = vmatprep.subr.bf16.mxu0 %v1772
  %2017 = vmatpush1.bf16.msra.mxu0 %v1771
  %2018 = vmatprep.subr.bf16.mxu0 %v1780
  %2019 = vmatpush1.bf16.msra.mxu0 %v1779
  %2020 = vmatprep.subr.bf16.mxu0 %v1788
  %2021 = vmatpush1.bf16.msra.mxu0 %v1787
  %2022 = vmatprep.subr.bf16.mxu0 %v1796
  %2023 = vmatpush1.bf16.msra.mxu0 %v1795
  %2024 = vmatprep.subr.bf16.mxu0 %v1804
  %2025 = vmatpush1.bf16.msra.mxu0 %v1803
  %2026 = vmatprep.subr.bf16.mxu0 %v1812
  %2027 = vmatpush1.bf16.msra.mxu0 %v1811
  %2028 = vmatprep.subr.bf16.mxu0 %v1820
  %2029 = vmatpush1.bf16.msra.mxu0 %v1819
  %2030 = vmatprep.subr.bf16.mxu0 %v1828
  %2031 = vmatpush1.bf16.msra.mxu0 %v1827
  %2032 = vmatprep.subr.bf16.mxu0 0
  %2033 = vmatpush1.bf16.msra.mxu0 0
  %2034 = vmatprep.subr.bf16.mxu0 0
  %2035 = vmatpush1.bf16.msra.mxu0 0
  %2036 = vmatprep.subr.bf16.mxu0 0
  %2037 = vmatpush1.bf16.msra.mxu0 0
  %2038 = vmatprep.subr.bf16.mxu0 0
  %2039 = vmatpush1.bf16.msra.mxu0 0
  %2040 = vmatprep.subr.bf16.mxu0 0
  %2041 = vmatpush1.bf16.msra.mxu0 0
  %2042 = vmatprep.subr.bf16.mxu0 0
  %2043 = vmatpush1.bf16.msra.mxu0 0
  %2044 = vmatprep.subr.bf16.mxu0 0
  %2045 = vmatpush1.bf16.msra.mxu0 0
  %2046 = vmatprep.subr.bf16.mxu0 0
  %2047 = vmatpush1.bf16.msra.mxu0 0
  %2048 = vmatprep.mubr.bf16.mxu0 0
  %2049 = vmatmul.mubr.bf16.gmra.mrb[0].mxu0 %v1571
  %v2050 = vpop.f32.mrb[0].mxu0
  %v2051 = vadd.f32 %v1553, %v2050
  %v2052 = vpop.f32.mrb[0].mxu0
  %v2053 = vadd.f32 %v1557, %v2052
  %v2054 = vpop.f32.mrb[0].mxu0
  %v2055 = vpop.f32.mrb[0].mxu0
  %2056 = vdwg.mxu0
  %v2057 = vmax.f32 %v1928, 0.0
  %v2058 = vmax.f32 %v1930, 0.0
  %v2059 = vmax.f32 %v1969, 0.0
  %v2060 = vmax.f32 %v1971, 0.0
  %v2061 = vmax.f32 %v2010, 0.0
  %v2062 = vmax.f32 %v2012, 0.0
  %v2063 = vmax.f32 %v2051, 0.0
  %v2064 = vmax.f32 %v2053, 0.0
  %v2065 = vpack.c.bf16 %v2057, %v2057
  %v2066 = vpack.c.bf16 %v2058, %v2058
  %v2067 = vpack.c.bf16 %v2059, %v2059
  %v2068 = vpack.c.bf16 %v2060, %v2060
  %v2069 = vpack.c.bf16 %v2061, %v2061
  %v2070 = vpack.c.bf16 %v2062, %v2062
  %v2071 = vpack.c.bf16 %v2063, %v2063
  %v2072 = vpack.c.bf16 %v2064, %v2064
  %v2073 = vld [vmem:[%s6] sm:$0xff]
  %v2074 = vld [vmem:[%s6 + $0x8] sm:$0xff]
  %v2075 = vld [vmem:[%s6 + $0x10] sm:$0xff]
  %v2076 = vld [vmem:[%s6 + $0x18] sm:$0xff]
  %v2077 = vld [vmem:[%s6 + $0x20] sm:$0xff]
  %v2078 = vld [vmem:[%s6 + $0x28] sm:$0xff]
  %v2079 = vld [vmem:[%s6 + $0x30] sm:$0xff]
  %v2080 = vld [vmem:[%s6 + $0x38] sm:$0xff]
  %v2081 = vld [vmem:[%s6 + $0x40] sm:$0xff]
  %v2082 = vld [vmem:[%s6 + $0x48] sm:$0xff]
  %v2083 = vld [vmem:[%s6 + $0x50] sm:$0xff]
  %v2084 = vld [vmem:[%s6 + $0x58] sm:$0xff]
  %v2085 = vld [vmem:[%s6 + $0x60] sm:$0xff]
  %v2086 = vld [vmem:[%s6 + $0x68] sm:$0xff]
  %v2087 = vld [vmem:[%s6 + $0x70] sm:$0xff]
  %v2088 = vld [vmem:[%s6 + $0x78] sm:$0xff]
  %v2089 = vld [vmem:[%s6 + $0x80] sm:$0xff]
  %v2090 = vld [vmem:[%s6 + $0x88] sm:$0xff]
  %v2091 = vld [vmem:[%s6 + $0x90] sm:$0xff]
  %v2092 = vld [vmem:[%s6 + $0x98] sm:$0xff]
  %v2093 = vld [vmem:[%s6 + $0xa0] sm:$0xff]
  %v2094 = vld [vmem:[%s6 + $0xa8] sm:$0xff]
  %v2095 = vld [vmem:[%s6 + $0xb0] sm:$0xff]
  %v2096 = vld [vmem:[%s6 + $0xb8] sm:$0xff]
  %v2097 = vld [vmem:[%s6 + $0xc0] sm:$0xff]
  %v2098 = vld [vmem:[%s6 + $0xc8] sm:$0xff]
  %v2099 = vld [vmem:[%s6 + $0xd0] sm:$0xff]
  %v2100 = vld [vmem:[%s6 + $0xd8] sm:$0xff]
  %v2101 = vld [vmem:[%s6 + $0xe0] sm:$0xff]
  %v2102 = vld [vmem:[%s6 + $0xe8] sm:$0xff]
  %v2103 = vld [vmem:[%s6 + $0xf0] sm:$0xff]
  %v2104 = vld [vmem:[%s6 + $0xf8] sm:$0xff]
  %v2105 = vld [vmem:[%s6 + $0x100] sm:$0xff]
  %v2106 = vld [vmem:[%s6 + $0x108] sm:$0xff]
  %v2107 = vld [vmem:[%s6 + $0x110] sm:$0xff]
  %v2108 = vld [vmem:[%s6 + $0x118] sm:$0xff]
  %v2109 = vld [vmem:[%s6 + $0x120] sm:$0xff]
  %v2110 = vld [vmem:[%s6 + $0x128] sm:$0xff]
  %v2111 = vld [vmem:[%s6 + $0x130] sm:$0xff]
  %v2112 = vld [vmem:[%s6 + $0x138] sm:$0xff]
  %v2113 = vld [vmem:[%s6 + $0x140] sm:$0xff]
  %v2114 = vld [vmem:[%s6 + $0x148] sm:$0xff]
  %v2115 = vld [vmem:[%s6 + $0x150] sm:$0xff]
  %v2116 = vld [vmem:[%s6 + $0x158] sm:$0xff]
  %v2117 = vld [vmem:[%s6 + $0x160] sm:$0xff]
  %v2118 = vld [vmem:[%s6 + $0x168] sm:$0xff]
  %v2119 = vld [vmem:[%s6 + $0x170] sm:$0xff]
  %v2120 = vld [vmem:[%s6 + $0x178] sm:$0xff]
  %v2121 = vld [vmem:[%s6 + $0x180] sm:$0xff]
  %v2122 = vld [vmem:[%s6 + $0x188] sm:$0xff]
  %v2123 = vld [vmem:[%s6 + $0x190] sm:$0xff]
  %v2124 = vld [vmem:[%s6 + $0x198] sm:$0xff]
  %v2125 = vld [vmem:[%s6 + $0x1a0] sm:$0xff]
  %v2126 = vld [vmem:[%s6 + $0x1a8] sm:$0xff]
  %v2127 = vld [vmem:[%s6 + $0x1b0] sm:$0xff]
  %v2128 = vld [vmem:[%s6 + $0x1b8] sm:$0xff]
  %v2129 = vld [vmem:[%s6 + $0x1c0] sm:$0xff]
  %v2130 = vld [vmem:[%s6 + $0x1c8] sm:$0xff]
  %v2131 = vld [vmem:[%s6 + $0x1d0] sm:$0xff]
  %v2132 = vld [vmem:[%s6 + $0x1d8] sm:$0xff]
  %v2133 = vld [vmem:[%s6 + $0x1e0] sm:$0xff]
  %v2134 = vld [vmem:[%s6 + $0x1e8] sm:$0xff]
  %v2135 = vld [vmem:[%s6 + $0x1f0] sm:$0xff]
  %v2136 = vld [vmem:[%s6 + $0x1f8] sm:$0xff]
  %v2137 = vld [vmem:[%s6 + $0x200] sm:$0xff]
  %v2138 = vld [vmem:[%s6 + $0x208] sm:$0xff]
  %v2139 = vld [vmem:[%s6 + $0x210] sm:$0xff]
  %v2140 = vld [vmem:[%s6 + $0x218] sm:$0xff]
  %v2141 = vld [vmem:[%s6 + $0x220] sm:$0xff]
  %v2142 = vld [vmem:[%s6 + $0x228] sm:$0xff]
  %v2143 = vld [vmem:[%s6 + $0x230] sm:$0xff]
  %v2144 = vld [vmem:[%s6 + $0x238] sm:$0xff]
  %v2145 = vld [vmem:[%s6 + $0x240] sm:$0xff]
  %v2146 = vld [vmem:[%s6 + $0x248] sm:$0xff]
  %v2147 = vld [vmem:[%s6 + $0x250] sm:$0xff]
  %v2148 = vld [vmem:[%s6 + $0x258] sm:$0xff]
  %v2149 = vld [vmem:[%s6 + $0x260] sm:$0xff]
  %v2150 = vld [vmem:[%s6 + $0x268] sm:$0xff]
  %v2151 = vld [vmem:[%s6 + $0x270] sm:$0xff]
  %v2152 = vld [vmem:[%s6 + $0x278] sm:$0xff]
  %v2153 = vld [vmem:[%s6 + $0x280] sm:$0xff]
  %v2154 = vld [vmem:[%s6 + $0x288] sm:$0xff]
  %v2155 = vld [vmem:[%s6 + $0x290] sm:$0xff]
  %v2156 = vld [vmem:[%s6 + $0x298] sm:$0xff]
  %v2157 = vld [vmem:[%s6 + $0x2a0] sm:$0xff]
  %v2158 = vld [vmem:[%s6 + $0x2a8] sm:$0xff]
  %v2159 = vld [vmem:[%s6 + $0x2b0] sm:$0xff]
  %v2160 = vld [vmem:[%s6 + $0x2b8] sm:$0xff]
  %v2161 = vld [vmem:[%s6 + $0x2c0] sm:$0xff]
  %v2162 = vld [vmem:[%s6 + $0x2c8] sm:$0xff]
  %v2163 = vld [vmem:[%s6 + $0x2d0] sm:$0xff]
  %v2164 = vld [vmem:[%s6 + $0x2d8] sm:$0xff]
  %v2165 = vld [vmem:[%s6 + $0x2e0] sm:$0xff]
  %v2166 = vld [vmem:[%s6 + $0x2e8] sm:$0xff]
  %v2167 = vld [vmem:[%s6 + $0x2f0] sm:$0xff]
  %v2168 = vld [vmem:[%s6 + $0x2f8] sm:$0xff]
  %v2169 = vld [vmem:[%s6 + $0x300] sm:$0xff]
  %v2170 = vld [vmem:[%s6 + $0x308] sm:$0xff]
  %v2171 = vld [vmem:[%s6 + $0x310] sm:$0xff]
  %v2172 = vld [vmem:[%s6 + $0x318] sm:$0xff]
  %v2173 = vld [vmem:[%s6 + $0x320] sm:$0xff]
  %v2174 = vld [vmem:[%s6 + $0x328] sm:$0xff]
  %v2175 = vld [vmem:[%s6 + $0x330] sm:$0xff]
  %v2176 = vld [vmem:[%s6 + $0x338] sm:$0xff]
  %v2177 = vld [vmem:[%s6 + $0x340] sm:$0xff]
  %v2178 = vld [vmem:[%s6 + $0x348] sm:$0xff]
  %v2179 = vld [vmem:[%s6 + $0x350] sm:$0xff]
  %v2180 = vld [vmem:[%s6 + $0x358] sm:$0xff]
  %v2181 = vld [vmem:[%s6 + $0x360] sm:$0xff]
  %v2182 = vld [vmem:[%s6 + $0x368] sm:$0xff]
  %v2183 = vld [vmem:[%s6 + $0x370] sm:$0xff]
  %v2184 = vld [vmem:[%s6 + $0x378] sm:$0xff]
  %v2185 = vld [vmem:[%s6 + $0x380] sm:$0xff]
  %v2186 = vld [vmem:[%s6 + $0x388] sm:$0xff]
  %v2187 = vld [vmem:[%s6 + $0x390] sm:$0xff]
  %v2188 = vld [vmem:[%s6 + $0x398] sm:$0xff]
  %v2189 = vld [vmem:[%s6 + $0x3a0] sm:$0xff]
  %v2190 = vld [vmem:[%s6 + $0x3a8] sm:$0xff]
  %v2191 = vld [vmem:[%s6 + $0x3b0] sm:$0xff]
  %v2192 = vld [vmem:[%s6 + $0x3b8] sm:$0xff]
  %v2193 = vld [vmem:[%s6 + $0x3c0] sm:$0xff]
  %v2194 = vld [vmem:[%s6 + $0x3c8] sm:$0xff]
  %v2195 = vld [vmem:[%s6 + $0x3d0] sm:$0xff]
  %v2196 = vld [vmem:[%s6 + $0x3d8] sm:$0xff]
  %v2197 = vld [vmem:[%s6 + $0x3e0] sm:$0xff]
  %v2198 = vld [vmem:[%s6 + $0x3e8] sm:$0xff]
  %v2199 = vld [vmem:[%s6 + $0x3f0] sm:$0xff]
  %v2200 = vld [vmem:[%s6 + $0x3f8] sm:$0xff]
  %v2201 = vld [vmem:[%s6 + $0x400] sm:$0xff]
  %v2202 = vld [vmem:[%s6 + $0x408] sm:$0xff]
  %v2203 = vld [vmem:[%s6 + $0x410] sm:$0xff]
  %v2204 = vld [vmem:[%s6 + $0x418] sm:$0xff]
  %v2205 = vld [vmem:[%s6 + $0x420] sm:$0xff]
  %v2206 = vld [vmem:[%s6 + $0x428] sm:$0xff]
  %v2207 = vld [vmem:[%s6 + $0x430] sm:$0xff]
  %v2208 = vld [vmem:[%s6 + $0x438] sm:$0xff]
  %v2209 = vld [vmem:[%s6 + $0x440] sm:$0xff]
  %v2210 = vld [vmem:[%s6 + $0x448] sm:$0xff]
  %v2211 = vld [vmem:[%s6 + $0x450] sm:$0xff]
  %v2212 = vld [vmem:[%s6 + $0x458] sm:$0xff]
  %v2213 = vld [vmem:[%s6 + $0x460] sm:$0xff]
  %v2214 = vld [vmem:[%s6 + $0x468] sm:$0xff]
  %v2215 = vld [vmem:[%s6 + $0x470] sm:$0xff]
  %v2216 = vld [vmem:[%s6 + $0x478] sm:$0xff]
  %v2217 = vld [vmem:[%s6 + $0x480] sm:$0xff]
  %v2218 = vld [vmem:[%s6 + $0x488] sm:$0xff]
  %v2219 = vld [vmem:[%s6 + $0x490] sm:$0xff]
  %v2220 = vld [vmem:[%s6 + $0x498] sm:$0xff]
  %v2221 = vld [vmem:[%s6 + $0x4a0] sm:$0xff]
  %v2222 = vld [vmem:[%s6 + $0x4a8] sm:$0xff]
  %v2223 = vld [vmem:[%s6 + $0x4b0] sm:$0xff]
  %v2224 = vld [vmem:[%s6 + $0x4b8] sm:$0xff]
  %v2225 = vld [vmem:[%s6 + $0x4c0] sm:$0xff]
  %v2226 = vld [vmem:[%s6 + $0x4c8] sm:$0xff]
  %v2227 = vld [vmem:[%s6 + $0x4d0] sm:$0xff]
  %v2228 = vld [vmem:[%s6 + $0x4d8] sm:$0xff]
  %v2229 = vld [vmem:[%s6 + $0x4e0] sm:$0xff]
  %v2230 = vld [vmem:[%s6 + $0x4e8] sm:$0xff]
  %v2231 = vld [vmem:[%s6 + $0x4f0] sm:$0xff]
  %v2232 = vld [vmem:[%s6 + $0x4f8] sm:$0xff]
  %v2233 = vld [vmem:[%s6 + $0x500] sm:$0xff]
  %v2234 = vld [vmem:[%s6 + $0x508] sm:$0xff]
  %v2235 = vld [vmem:[%s6 + $0x510] sm:$0xff]
  %v2236 = vld [vmem:[%s6 + $0x518] sm:$0xff]
  %v2237 = vld [vmem:[%s6 + $0x520] sm:$0xff]
  %v2238 = vld [vmem:[%s6 + $0x528] sm:$0xff]
  %v2239 = vld [vmem:[%s6 + $0x530] sm:$0xff]
  %v2240 = vld [vmem:[%s6 + $0x538] sm:$0xff]
  %v2241 = vld [vmem:[%s6 + $0x540] sm:$0xff]
  %v2242 = vld [vmem:[%s6 + $0x548] sm:$0xff]
  %v2243 = vld [vmem:[%s6 + $0x550] sm:$0xff]
  %v2244 = vld [vmem:[%s6 + $0x558] sm:$0xff]
  %v2245 = vld [vmem:[%s6 + $0x560] sm:$0xff]
  %v2246 = vld [vmem:[%s6 + $0x568] sm:$0xff]
  %v2247 = vld [vmem:[%s6 + $0x570] sm:$0xff]
  %v2248 = vld [vmem:[%s6 + $0x578] sm:$0xff]
  %v2249 = vld [vmem:[%s6 + $0x580] sm:$0xff]
  %v2250 = vld [vmem:[%s6 + $0x588] sm:$0xff]
  %v2251 = vld [vmem:[%s6 + $0x590] sm:$0xff]
  %v2252 = vld [vmem:[%s6 + $0x598] sm:$0xff]
  %v2253 = vld [vmem:[%s6 + $0x5a0] sm:$0xff]
  %v2254 = vld [vmem:[%s6 + $0x5a8] sm:$0xff]
  %v2255 = vld [vmem:[%s6 + $0x5b0] sm:$0xff]
  %v2256 = vld [vmem:[%s6 + $0x5b8] sm:$0xff]
  %v2257 = vld [vmem:[%s6 + $0x5c0] sm:$0xff]
  %v2258 = vld [vmem:[%s6 + $0x5c8] sm:$0xff]
  %v2259 = vld [vmem:[%s6 + $0x5d0] sm:$0xff]
  %v2260 = vld [vmem:[%s6 + $0x5d8] sm:$0xff]
  %v2261 = vld [vmem:[%s6 + $0x5e0] sm:$0xff]
  %v2262 = vld [vmem:[%s6 + $0x5e8] sm:$0xff]
  %v2263 = vld [vmem:[%s6 + $0x5f0] sm:$0xff]
  %v2264 = vld [vmem:[%s6 + $0x5f8] sm:$0xff]
  %v2265 = vld [vmem:[%s6 + $0x600] sm:$0xff]
  %v2266 = vld [vmem:[%s6 + $0x608] sm:$0xff]
  %v2267 = vld [vmem:[%s6 + $0x610] sm:$0xff]
  %v2268 = vld [vmem:[%s6 + $0x618] sm:$0xff]
  %v2269 = vld [vmem:[%s6 + $0x620] sm:$0xff]
  %v2270 = vld [vmem:[%s6 + $0x628] sm:$0xff]
  %v2271 = vld [vmem:[%s6 + $0x630] sm:$0xff]
  %v2272 = vld [vmem:[%s6 + $0x638] sm:$0xff]
  %v2273 = vld [vmem:[%s6 + $0x640] sm:$0xff]
  %v2274 = vld [vmem:[%s6 + $0x648] sm:$0xff]
  %v2275 = vld [vmem:[%s6 + $0x650] sm:$0xff]
  %v2276 = vld [vmem:[%s6 + $0x658] sm:$0xff]
  %v2277 = vld [vmem:[%s6 + $0x660] sm:$0xff]
  %v2278 = vld [vmem:[%s6 + $0x668] sm:$0xff]
  %v2279 = vld [vmem:[%s6 + $0x670] sm:$0xff]
  %v2280 = vld [vmem:[%s6 + $0x678] sm:$0xff]
  %v2281 = vld [vmem:[%s6 + $0x680] sm:$0xff]
  %v2282 = vld [vmem:[%s6 + $0x688] sm:$0xff]
  %v2283 = vld [vmem:[%s6 + $0x690] sm:$0xff]
  %v2284 = vld [vmem:[%s6 + $0x698] sm:$0xff]
  %v2285 = vld [vmem:[%s6 + $0x6a0] sm:$0xff]
  %v2286 = vld [vmem:[%s6 + $0x6a8] sm:$0xff]
  %v2287 = vld [vmem:[%s6 + $0x6b0] sm:$0xff]
  %v2288 = vld [vmem:[%s6 + $0x6b8] sm:$0xff]
  %v2289 = vld [vmem:[%s6 + $0x6c0] sm:$0xff]
  %v2290 = vld [vmem:[%s6 + $0x6c8] sm:$0xff]
  %v2291 = vld [vmem:[%s6 + $0x6d0] sm:$0xff]
  %v2292 = vld [vmem:[%s6 + $0x6d8] sm:$0xff]
  %v2293 = vld [vmem:[%s6 + $0x6e0] sm:$0xff]
  %v2294 = vld [vmem:[%s6 + $0x6e8] sm:$0xff]
  %v2295 = vld [vmem:[%s6 + $0x6f0] sm:$0xff]
  %v2296 = vld [vmem:[%s6 + $0x6f8] sm:$0xff]
  %v2297 = vld [vmem:[%s6 + $0x700] sm:$0xff]
  %v2298 = vld [vmem:[%s6 + $0x708] sm:$0xff]
  %v2299 = vld [vmem:[%s6 + $0x710] sm:$0xff]
  %v2300 = vld [vmem:[%s6 + $0x718] sm:$0xff]
  %v2301 = vld [vmem:[%s6 + $0x720] sm:$0xff]
  %v2302 = vld [vmem:[%s6 + $0x728] sm:$0xff]
  %v2303 = vld [vmem:[%s6 + $0x730] sm:$0xff]
  %v2304 = vld [vmem:[%s6 + $0x738] sm:$0xff]
  %v2305 = vld [vmem:[%s6 + $0x740] sm:$0xff]
  %v2306 = vld [vmem:[%s6 + $0x748] sm:$0xff]
  %v2307 = vld [vmem:[%s6 + $0x750] sm:$0xff]
  %v2308 = vld [vmem:[%s6 + $0x758] sm:$0xff]
  %v2309 = vld [vmem:[%s6 + $0x760] sm:$0xff]
  %v2310 = vld [vmem:[%s6 + $0x768] sm:$0xff]
  %v2311 = vld [vmem:[%s6 + $0x770] sm:$0xff]
  %v2312 = vld [vmem:[%s6 + $0x778] sm:$0xff]
  %v2313 = vld [vmem:[%s6 + $0x780] sm:$0xff]
  %v2314 = vld [vmem:[%s6 + $0x788] sm:$0xff]
  %v2315 = vld [vmem:[%s6 + $0x790] sm:$0xff]
  %v2316 = vld [vmem:[%s6 + $0x798] sm:$0xff]
  %v2317 = vld [vmem:[%s6 + $0x7a0] sm:$0xff]
  %v2318 = vld [vmem:[%s6 + $0x7a8] sm:$0xff]
  %v2319 = vld [vmem:[%s6 + $0x7b0] sm:$0xff]
  %v2320 = vld [vmem:[%s6 + $0x7b8] sm:$0xff]
  %v2321 = vld [vmem:[%s6 + $0x7c0] sm:$0xff]
  %v2322 = vld [vmem:[%s6 + $0x7c8] sm:$0xff]
  %v2323 = vld [vmem:[%s6 + $0x7d0] sm:$0xff]
  %v2324 = vld [vmem:[%s6 + $0x7d8] sm:$0xff]
  %v2325 = vld [vmem:[%s6 + $0x7e0] sm:$0xff]
  %v2326 = vld [vmem:[%s6 + $0x7e8] sm:$0xff]
  %v2327 = vld [vmem:[%s6 + $0x7f0] sm:$0xff]
  %v2328 = vld [vmem:[%s6 + $0x7f8] sm:$0xff]
  %v2329 = vld [vmem:[%s14 + $0x12] sm:$0xff]
  %v2331 = vlaneseq
  %v2332 = vshrl.u32 %v2331, 7
  %v2333 = vsub.s32 0, %v2332
  %v2334 = vrot.slane %v2329, %v2333
  %v2335 = vlaneseq
  %v2336 = vshrl.u32 %v2335, 7
  %v2337 = vsub.s32 1, %v2336
  %v2338 = vrot.slane %v2329, %v2337
  %v2339 = vlaneseq
  %v2340 = vshrl.u32 %v2339, 7
  %v2341 = vsub.s32 2, %v2340
  %v2342 = vrot.slane %v2329, %v2341
  %v2343 = vlaneseq
  %v2344 = vshrl.u32 %v2343, 7
  %v2345 = vsub.s32 3, %v2344
  %v2346 = vrot.slane %v2329, %v2345
  %v2347 = vlaneseq
  %v2348 = vshrl.u32 %v2347, 7
  %v2349 = vsub.s32 4, %v2348
  %v2350 = vrot.slane %v2329, %v2349
  %v2351 = vlaneseq
  %v2352 = vshrl.u32 %v2351, 7
  %v2353 = vsub.s32 5, %v2352
  %v2354 = vrot.slane %v2329, %v2353
  %v2355 = vlaneseq
  %v2356 = vshrl.u32 %v2355, 7
  %v2357 = vsub.s32 6, %v2356
  %v2358 = vrot.slane %v2329, %v2357
  %v2359 = vlaneseq
  %v2360 = vshrl.u32 %v2359, 7
  %v2361 = vsub.s32 7, %v2360
  %v2362 = vrot.slane %v2329, %v2361
  %v2627 = vunpack.c.l.b16 %v2073
  %v2628 = vunpack.c.h.b16 %v2073
  %v2629 = vunpack.c.l.b16 %v2074
  %v2630 = vunpack.c.h.b16 %v2074
  %v2631 = vunpack.c.l.b16 %v2075
  %v2632 = vunpack.c.h.b16 %v2075
  %v2633 = vunpack.c.l.b16 %v2076
  %v2634 = vunpack.c.h.b16 %v2076
  %v2635 = vunpack.c.l.b16 %v2077
  %v2636 = vunpack.c.h.b16 %v2077
  %v2637 = vunpack.c.l.b16 %v2078
  %v2638 = vunpack.c.h.b16 %v2078
  %v2639 = vunpack.c.l.b16 %v2079
  %v2640 = vunpack.c.h.b16 %v2079
  %v2641 = vunpack.c.l.b16 %v2080
  %v2642 = vunpack.c.h.b16 %v2080
  %v2643 = vunpack.c.l.b16 %v2081
  %v2644 = vunpack.c.h.b16 %v2081
  %v2645 = vunpack.c.l.b16 %v2082
  %v2646 = vunpack.c.h.b16 %v2082
  %v2647 = vunpack.c.l.b16 %v2083
  %v2648 = vunpack.c.h.b16 %v2083
  %v2649 = vunpack.c.l.b16 %v2084
  %v2650 = vunpack.c.h.b16 %v2084
  %v2651 = vunpack.c.l.b16 %v2085
  %v2652 = vunpack.c.h.b16 %v2085
  %v2653 = vunpack.c.l.b16 %v2086
  %v2654 = vunpack.c.h.b16 %v2086
  %v2655 = vunpack.c.l.b16 %v2087
  %v2656 = vunpack.c.h.b16 %v2087
  %v2657 = vunpack.c.l.b16 %v2088
  %v2658 = vunpack.c.h.b16 %v2088
  %v2659 = vunpack.c.l.b16 %v2089
  %v2660 = vunpack.c.h.b16 %v2089
  %v2661 = vunpack.c.l.b16 %v2090
  %v2662 = vunpack.c.h.b16 %v2090
  %v2663 = vunpack.c.l.b16 %v2091
  %v2664 = vunpack.c.h.b16 %v2091
  %v2665 = vunpack.c.l.b16 %v2092
  %v2666 = vunpack.c.h.b16 %v2092
  %v2667 = vunpack.c.l.b16 %v2093
  %v2668 = vunpack.c.h.b16 %v2093
  %v2669 = vunpack.c.l.b16 %v2094
  %v2670 = vunpack.c.h.b16 %v2094
  %v2671 = vunpack.c.l.b16 %v2095
  %v2672 = vunpack.c.h.b16 %v2095
  %v2673 = vunpack.c.l.b16 %v2096
  %v2674 = vunpack.c.h.b16 %v2096
  %v2675 = vunpack.c.l.b16 %v2097
  %v2676 = vunpack.c.h.b16 %v2097
  %v2677 = vunpack.c.l.b16 %v2098
  %v2678 = vunpack.c.h.b16 %v2098
  %v2679 = vunpack.c.l.b16 %v2099
  %v2680 = vunpack.c.h.b16 %v2099
  %v2681 = vunpack.c.l.b16 %v2100
  %v2682 = vunpack.c.h.b16 %v2100
  %v2683 = vunpack.c.l.b16 %v2101
  %v2684 = vunpack.c.h.b16 %v2101
  %v2685 = vunpack.c.l.b16 %v2102
  %v2686 = vunpack.c.h.b16 %v2102
  %v2687 = vunpack.c.l.b16 %v2103
  %v2688 = vunpack.c.h.b16 %v2103
  %v2689 = vunpack.c.l.b16 %v2104
  %v2690 = vunpack.c.h.b16 %v2104
  %v2691 = vunpack.c.l.b16 %v2105
  %v2692 = vunpack.c.h.b16 %v2105
  %v2693 = vunpack.c.l.b16 %v2106
  %v2694 = vunpack.c.h.b16 %v2106
  %v2695 = vunpack.c.l.b16 %v2107
  %v2696 = vunpack.c.h.b16 %v2107
  %v2697 = vunpack.c.l.b16 %v2108
  %v2698 = vunpack.c.h.b16 %v2108
  %v2699 = vunpack.c.l.b16 %v2109
  %v2700 = vunpack.c.h.b16 %v2109
  %v2701 = vunpack.c.l.b16 %v2110
  %v2702 = vunpack.c.h.b16 %v2110
  %v2703 = vunpack.c.l.b16 %v2111
  %v2704 = vunpack.c.h.b16 %v2111
  %v2705 = vunpack.c.l.b16 %v2112
  %v2706 = vunpack.c.h.b16 %v2112
  %v2707 = vunpack.c.l.b16 %v2113
  %v2708 = vunpack.c.h.b16 %v2113
  %v2709 = vunpack.c.l.b16 %v2114
  %v2710 = vunpack.c.h.b16 %v2114
  %v2711 = vunpack.c.l.b16 %v2115
  %v2712 = vunpack.c.h.b16 %v2115
  %v2713 = vunpack.c.l.b16 %v2116
  %v2714 = vunpack.c.h.b16 %v2116
  %v2715 = vunpack.c.l.b16 %v2117
  %v2716 = vunpack.c.h.b16 %v2117
  %v2717 = vunpack.c.l.b16 %v2118
  %v2718 = vunpack.c.h.b16 %v2118
  %v2719 = vunpack.c.l.b16 %v2119
  %v2720 = vunpack.c.h.b16 %v2119
  %v2721 = vunpack.c.l.b16 %v2120
  %v2722 = vunpack.c.h.b16 %v2120
  %v2723 = vunpack.c.l.b16 %v2121
  %v2724 = vunpack.c.h.b16 %v2121
  %v2725 = vunpack.c.l.b16 %v2122
  %v2726 = vunpack.c.h.b16 %v2122
  %v2727 = vunpack.c.l.b16 %v2123
  %v2728 = vunpack.c.h.b16 %v2123
  %v2729 = vunpack.c.l.b16 %v2124
  %v2730 = vunpack.c.h.b16 %v2124
  %v2731 = vunpack.c.l.b16 %v2125
  %v2732 = vunpack.c.h.b16 %v2125
  %v2733 = vunpack.c.l.b16 %v2126
  %v2734 = vunpack.c.h.b16 %v2126
  %v2735 = vunpack.c.l.b16 %v2127
  %v2736 = vunpack.c.h.b16 %v2127
  %v2737 = vunpack.c.l.b16 %v2128
  %v2738 = vunpack.c.h.b16 %v2128
  %v2739 = vunpack.c.l.b16 %v2129
  %v2740 = vunpack.c.h.b16 %v2129
  %v2741 = vunpack.c.l.b16 %v2130
  %v2742 = vunpack.c.h.b16 %v2130
  %v2743 = vunpack.c.l.b16 %v2131
  %v2744 = vunpack.c.h.b16 %v2131
  %v2745 = vunpack.c.l.b16 %v2132
  %v2746 = vunpack.c.h.b16 %v2132
  %v2747 = vunpack.c.l.b16 %v2133
  %v2748 = vunpack.c.h.b16 %v2133
  %v2749 = vunpack.c.l.b16 %v2134
  %v2750 = vunpack.c.h.b16 %v2134
  %v2751 = vunpack.c.l.b16 %v2135
  %v2752 = vunpack.c.h.b16 %v2135
  %v2753 = vunpack.c.l.b16 %v2136
  %v2754 = vunpack.c.h.b16 %v2136
  %v2755 = vunpack.c.l.b16 %v2137
  %v2756 = vunpack.c.h.b16 %v2137
  %v2757 = vunpack.c.l.b16 %v2138
  %v2758 = vunpack.c.h.b16 %v2138
  %v2759 = vunpack.c.l.b16 %v2139
  %v2760 = vunpack.c.h.b16 %v2139
  %v2761 = vunpack.c.l.b16 %v2140
  %v2762 = vunpack.c.h.b16 %v2140
  %v2763 = vunpack.c.l.b16 %v2141
  %v2764 = vunpack.c.h.b16 %v2141
  %v2765 = vunpack.c.l.b16 %v2142
  %v2766 = vunpack.c.h.b16 %v2142
  %v2767 = vunpack.c.l.b16 %v2143
  %v2768 = vunpack.c.h.b16 %v2143
  %v2769 = vunpack.c.l.b16 %v2144
  %v2770 = vunpack.c.h.b16 %v2144
  %v2771 = vunpack.c.l.b16 %v2145
  %v2772 = vunpack.c.h.b16 %v2145
  %v2773 = vunpack.c.l.b16 %v2146
  %v2774 = vunpack.c.h.b16 %v2146
  %v2775 = vunpack.c.l.b16 %v2147
  %v2776 = vunpack.c.h.b16 %v2147
  %v2777 = vunpack.c.l.b16 %v2148
  %v2778 = vunpack.c.h.b16 %v2148
  %v2779 = vunpack.c.l.b16 %v2149
  %v2780 = vunpack.c.h.b16 %v2149
  %v2781 = vunpack.c.l.b16 %v2150
  %v2782 = vunpack.c.h.b16 %v2150
  %v2783 = vunpack.c.l.b16 %v2151
  %v2784 = vunpack.c.h.b16 %v2151
  %v2785 = vunpack.c.l.b16 %v2152
  %v2786 = vunpack.c.h.b16 %v2152
  %v2787 = vunpack.c.l.b16 %v2153
  %v2788 = vunpack.c.h.b16 %v2153
  %v2789 = vunpack.c.l.b16 %v2154
  %v2790 = vunpack.c.h.b16 %v2154
  %v2791 = vunpack.c.l.b16 %v2155
  %v2792 = vunpack.c.h.b16 %v2155
  %v2793 = vunpack.c.l.b16 %v2156
  %v2794 = vunpack.c.h.b16 %v2156
  %v2795 = vunpack.c.l.b16 %v2157
  %v2796 = vunpack.c.h.b16 %v2157
  %v2797 = vunpack.c.l.b16 %v2158
  %v2798 = vunpack.c.h.b16 %v2158
  %v2799 = vunpack.c.l.b16 %v2159
  %v2800 = vunpack.c.h.b16 %v2159
  %v2801 = vunpack.c.l.b16 %v2160
  %v2802 = vunpack.c.h.b16 %v2160
  %v2803 = vunpack.c.l.b16 %v2161
  %v2804 = vunpack.c.h.b16 %v2161
  %v2805 = vunpack.c.l.b16 %v2162
  %v2806 = vunpack.c.h.b16 %v2162
  %v2807 = vunpack.c.l.b16 %v2163
  %v2808 = vunpack.c.h.b16 %v2163
  %v2809 = vunpack.c.l.b16 %v2164
  %v2810 = vunpack.c.h.b16 %v2164
  %v2811 = vunpack.c.l.b16 %v2165
  %v2812 = vunpack.c.h.b16 %v2165
  %v2813 = vunpack.c.l.b16 %v2166
  %v2814 = vunpack.c.h.b16 %v2166
  %v2815 = vunpack.c.l.b16 %v2167
  %v2816 = vunpack.c.h.b16 %v2167
  %v2817 = vunpack.c.l.b16 %v2168
  %v2818 = vunpack.c.h.b16 %v2168
  %v2819 = vunpack.c.l.b16 %v2169
  %v2820 = vunpack.c.h.b16 %v2169
  %v2821 = vunpack.c.l.b16 %v2170
  %v2822 = vunpack.c.h.b16 %v2170
  %v2823 = vunpack.c.l.b16 %v2171
  %v2824 = vunpack.c.h.b16 %v2171
  %v2825 = vunpack.c.l.b16 %v2172
  %v2826 = vunpack.c.h.b16 %v2172
  %v2827 = vunpack.c.l.b16 %v2173
  %v2828 = vunpack.c.h.b16 %v2173
  %v2829 = vunpack.c.l.b16 %v2174
  %v2830 = vunpack.c.h.b16 %v2174
  %v2831 = vunpack.c.l.b16 %v2175
  %v2832 = vunpack.c.h.b16 %v2175
  %v2833 = vunpack.c.l.b16 %v2176
  %v2834 = vunpack.c.h.b16 %v2176
  %v2835 = vunpack.c.l.b16 %v2177
  %v2836 = vunpack.c.h.b16 %v2177
  %v2837 = vunpack.c.l.b16 %v2178
  %v2838 = vunpack.c.h.b16 %v2178
  %v2839 = vunpack.c.l.b16 %v2179
  %v2840 = vunpack.c.h.b16 %v2179
  %v2841 = vunpack.c.l.b16 %v2180
  %v2842 = vunpack.c.h.b16 %v2180
  %v2843 = vunpack.c.l.b16 %v2181
  %v2844 = vunpack.c.h.b16 %v2181
  %v2845 = vunpack.c.l.b16 %v2182
  %v2846 = vunpack.c.h.b16 %v2182
  %v2847 = vunpack.c.l.b16 %v2183
  %v2848 = vunpack.c.h.b16 %v2183
  %v2849 = vunpack.c.l.b16 %v2184
  %v2850 = vunpack.c.h.b16 %v2184
  %v2851 = vunpack.c.l.b16 %v2185
  %v2852 = vunpack.c.h.b16 %v2185
  %v2853 = vunpack.c.l.b16 %v2186
  %v2854 = vunpack.c.h.b16 %v2186
  %v2855 = vunpack.c.l.b16 %v2187
  %v2856 = vunpack.c.h.b16 %v2187
  %v2857 = vunpack.c.l.b16 %v2188
  %v2858 = vunpack.c.h.b16 %v2188
  %v2859 = vunpack.c.l.b16 %v2189
  %v2860 = vunpack.c.h.b16 %v2189
  %v2861 = vunpack.c.l.b16 %v2190
  %v2862 = vunpack.c.h.b16 %v2190
  %v2863 = vunpack.c.l.b16 %v2191
  %v2864 = vunpack.c.h.b16 %v2191
  %v2865 = vunpack.c.l.b16 %v2192
  %v2866 = vunpack.c.h.b16 %v2192
  %v2867 = vunpack.c.l.b16 %v2193
  %v2868 = vunpack.c.h.b16 %v2193
  %v2869 = vunpack.c.l.b16 %v2194
  %v2870 = vunpack.c.h.b16 %v2194
  %v2871 = vunpack.c.l.b16 %v2195
  %v2872 = vunpack.c.h.b16 %v2195
  %v2873 = vunpack.c.l.b16 %v2196
  %v2874 = vunpack.c.h.b16 %v2196
  %v2875 = vunpack.c.l.b16 %v2197
  %v2876 = vunpack.c.h.b16 %v2197
  %v2877 = vunpack.c.l.b16 %v2198
  %v2878 = vunpack.c.h.b16 %v2198
  %v2879 = vunpack.c.l.b16 %v2199
  %v2880 = vunpack.c.h.b16 %v2199
  %v2881 = vunpack.c.l.b16 %v2200
  %v2882 = vunpack.c.h.b16 %v2200
  %v2883 = vunpack.c.l.b16 %v2201
  %v2884 = vunpack.c.h.b16 %v2201
  %v2885 = vunpack.c.l.b16 %v2202
  %v2886 = vunpack.c.h.b16 %v2202
  %v2887 = vunpack.c.l.b16 %v2203
  %v2888 = vunpack.c.h.b16 %v2203
  %v2889 = vunpack.c.l.b16 %v2204
  %v2890 = vunpack.c.h.b16 %v2204
  %v2891 = vunpack.c.l.b16 %v2205
  %v2892 = vunpack.c.h.b16 %v2205
  %v2893 = vunpack.c.l.b16 %v2206
  %v2894 = vunpack.c.h.b16 %v2206
  %v2895 = vunpack.c.l.b16 %v2207
  %v2896 = vunpack.c.h.b16 %v2207
  %v2897 = vunpack.c.l.b16 %v2208
  %v2898 = vunpack.c.h.b16 %v2208
  %v2899 = vunpack.c.l.b16 %v2209
  %v2900 = vunpack.c.h.b16 %v2209
  %v2901 = vunpack.c.l.b16 %v2210
  %v2902 = vunpack.c.h.b16 %v2210
  %v2903 = vunpack.c.l.b16 %v2211
  %v2904 = vunpack.c.h.b16 %v2211
  %v2905 = vunpack.c.l.b16 %v2212
  %v2906 = vunpack.c.h.b16 %v2212
  %v2907 = vunpack.c.l.b16 %v2213
  %v2908 = vunpack.c.h.b16 %v2213
  %v2909 = vunpack.c.l.b16 %v2214
  %v2910 = vunpack.c.h.b16 %v2214
  %v2911 = vunpack.c.l.b16 %v2215
  %v2912 = vunpack.c.h.b16 %v2215
  %v2913 = vunpack.c.l.b16 %v2216
  %v2914 = vunpack.c.h.b16 %v2216
  %v2915 = vunpack.c.l.b16 %v2217
  %v2916 = vunpack.c.h.b16 %v2217
  %v2917 = vunpack.c.l.b16 %v2218
  %v2918 = vunpack.c.h.b16 %v2218
  %v2919 = vunpack.c.l.b16 %v2219
  %v2920 = vunpack.c.h.b16 %v2219
  %v2921 = vunpack.c.l.b16 %v2220
  %v2922 = vunpack.c.h.b16 %v2220
  %v2923 = vunpack.c.l.b16 %v2221
  %v2924 = vunpack.c.h.b16 %v2221
  %v2925 = vunpack.c.l.b16 %v2222
  %v2926 = vunpack.c.h.b16 %v2222
  %v2927 = vunpack.c.l.b16 %v2223
  %v2928 = vunpack.c.h.b16 %v2223
  %v2929 = vunpack.c.l.b16 %v2224
  %v2930 = vunpack.c.h.b16 %v2224
  %v2931 = vunpack.c.l.b16 %v2225
  %v2932 = vunpack.c.h.b16 %v2225
  %v2933 = vunpack.c.l.b16 %v2226
  %v2934 = vunpack.c.h.b16 %v2226
  %v2935 = vunpack.c.l.b16 %v2227
  %v2936 = vunpack.c.h.b16 %v2227
  %v2937 = vunpack.c.l.b16 %v2228
  %v2938 = vunpack.c.h.b16 %v2228
  %v2939 = vunpack.c.l.b16 %v2229
  %v2940 = vunpack.c.h.b16 %v2229
  %v2941 = vunpack.c.l.b16 %v2230
  %v2942 = vunpack.c.h.b16 %v2230
  %v2943 = vunpack.c.l.b16 %v2231
  %v2944 = vunpack.c.h.b16 %v2231
  %v2945 = vunpack.c.l.b16 %v2232
  %v2946 = vunpack.c.h.b16 %v2232
  %v2947 = vunpack.c.l.b16 %v2233
  %v2948 = vunpack.c.h.b16 %v2233
  %v2949 = vunpack.c.l.b16 %v2234
  %v2950 = vunpack.c.h.b16 %v2234
  %v2951 = vunpack.c.l.b16 %v2235
  %v2952 = vunpack.c.h.b16 %v2235
  %v2953 = vunpack.c.l.b16 %v2236
  %v2954 = vunpack.c.h.b16 %v2236
  %v2955 = vunpack.c.l.b16 %v2237
  %v2956 = vunpack.c.h.b16 %v2237
  %v2957 = vunpack.c.l.b16 %v2238
  %v2958 = vunpack.c.h.b16 %v2238
  %v2959 = vunpack.c.l.b16 %v2239
  %v2960 = vunpack.c.h.b16 %v2239
  %v2961 = vunpack.c.l.b16 %v2240
  %v2962 = vunpack.c.h.b16 %v2240
  %v2963 = vunpack.c.l.b16 %v2241
  %v2964 = vunpack.c.h.b16 %v2241
  %v2965 = vunpack.c.l.b16 %v2242
  %v2966 = vunpack.c.h.b16 %v2242
  %v2967 = vunpack.c.l.b16 %v2243
  %v2968 = vunpack.c.h.b16 %v2243
  %v2969 = vunpack.c.l.b16 %v2244
  %v2970 = vunpack.c.h.b16 %v2244
  %v2971 = vunpack.c.l.b16 %v2245
  %v2972 = vunpack.c.h.b16 %v2245
  %v2973 = vunpack.c.l.b16 %v2246
  %v2974 = vunpack.c.h.b16 %v2246
  %v2975 = vunpack.c.l.b16 %v2247
  %v2976 = vunpack.c.h.b16 %v2247
  %v2977 = vunpack.c.l.b16 %v2248
  %v2978 = vunpack.c.h.b16 %v2248
  %v2979 = vunpack.c.l.b16 %v2249
  %v2980 = vunpack.c.h.b16 %v2249
  %v2981 = vunpack.c.l.b16 %v2250
  %v2982 = vunpack.c.h.b16 %v2250
  %v2983 = vunpack.c.l.b16 %v2251
  %v2984 = vunpack.c.h.b16 %v2251
  %v2985 = vunpack.c.l.b16 %v2252
  %v2986 = vunpack.c.h.b16 %v2252
  %v2987 = vunpack.c.l.b16 %v2253
  %v2988 = vunpack.c.h.b16 %v2253
  %v2989 = vunpack.c.l.b16 %v2254
  %v2990 = vunpack.c.h.b16 %v2254
  %v2991 = vunpack.c.l.b16 %v2255
  %v2992 = vunpack.c.h.b16 %v2255
  %v2993 = vunpack.c.l.b16 %v2256
  %v2994 = vunpack.c.h.b16 %v2256
  %v2995 = vunpack.c.l.b16 %v2257
  %v2996 = vunpack.c.h.b16 %v2257
  %v2997 = vunpack.c.l.b16 %v2258
  %v2998 = vunpack.c.h.b16 %v2258
  %v2999 = vunpack.c.l.b16 %v2259
  %v3000 = vunpack.c.h.b16 %v2259
  %v3001 = vunpack.c.l.b16 %v2260
  %v3002 = vunpack.c.h.b16 %v2260
  %v3003 = vunpack.c.l.b16 %v2261
  %v3004 = vunpack.c.h.b16 %v2261
  %v3005 = vunpack.c.l.b16 %v2262
  %v3006 = vunpack.c.h.b16 %v2262
  %v3007 = vunpack.c.l.b16 %v2263
  %v3008 = vunpack.c.h.b16 %v2263
  %v3009 = vunpack.c.l.b16 %v2264
  %v3010 = vunpack.c.h.b16 %v2264
  %v3011 = vunpack.c.l.b16 %v2265
  %v3012 = vunpack.c.h.b16 %v2265
  %v3013 = vunpack.c.l.b16 %v2266
  %v3014 = vunpack.c.h.b16 %v2266
  %v3015 = vunpack.c.l.b16 %v2267
  %v3016 = vunpack.c.h.b16 %v2267
  %v3017 = vunpack.c.l.b16 %v2268
  %v3018 = vunpack.c.h.b16 %v2268
  %v3019 = vunpack.c.l.b16 %v2269
  %v3020 = vunpack.c.h.b16 %v2269
  %v3021 = vunpack.c.l.b16 %v2270
  %v3022 = vunpack.c.h.b16 %v2270
  %v3023 = vunpack.c.l.b16 %v2271
  %v3024 = vunpack.c.h.b16 %v2271
  %v3025 = vunpack.c.l.b16 %v2272
  %v3026 = vunpack.c.h.b16 %v2272
  %v3027 = vunpack.c.l.b16 %v2273
  %v3028 = vunpack.c.h.b16 %v2273
  %v3029 = vunpack.c.l.b16 %v2274
  %v3030 = vunpack.c.h.b16 %v2274
  %v3031 = vunpack.c.l.b16 %v2275
  %v3032 = vunpack.c.h.b16 %v2275
  %v3033 = vunpack.c.l.b16 %v2276
  %v3034 = vunpack.c.h.b16 %v2276
  %v3035 = vunpack.c.l.b16 %v2277
  %v3036 = vunpack.c.h.b16 %v2277
  %v3037 = vunpack.c.l.b16 %v2278
  %v3038 = vunpack.c.h.b16 %v2278
  %v3039 = vunpack.c.l.b16 %v2279
  %v3040 = vunpack.c.h.b16 %v2279
  %v3041 = vunpack.c.l.b16 %v2280
  %v3042 = vunpack.c.h.b16 %v2280
  %v3043 = vunpack.c.l.b16 %v2281
  %v3044 = vunpack.c.h.b16 %v2281
  %v3045 = vunpack.c.l.b16 %v2282
  %v3046 = vunpack.c.h.b16 %v2282
  %v3047 = vunpack.c.l.b16 %v2283
  %v3048 = vunpack.c.h.b16 %v2283
  %v3049 = vunpack.c.l.b16 %v2284
  %v3050 = vunpack.c.h.b16 %v2284
  %v3051 = vunpack.c.l.b16 %v2285
  %v3052 = vunpack.c.h.b16 %v2285
  %v3053 = vunpack.c.l.b16 %v2286
  %v3054 = vunpack.c.h.b16 %v2286
  %v3055 = vunpack.c.l.b16 %v2287
  %v3056 = vunpack.c.h.b16 %v2287
  %v3057 = vunpack.c.l.b16 %v2288
  %v3058 = vunpack.c.h.b16 %v2288
  %v3059 = vunpack.c.l.b16 %v2289
  %v3060 = vunpack.c.h.b16 %v2289
  %v3061 = vunpack.c.l.b16 %v2290
  %v3062 = vunpack.c.h.b16 %v2290
  %v3063 = vunpack.c.l.b16 %v2291
  %v3064 = vunpack.c.h.b16 %v2291
  %v3065 = vunpack.c.l.b16 %v2292
  %v3066 = vunpack.c.h.b16 %v2292
  %v3067 = vunpack.c.l.b16 %v2293
  %v3068 = vunpack.c.h.b16 %v2293
  %v3069 = vunpack.c.l.b16 %v2294
  %v3070 = vunpack.c.h.b16 %v2294
  %v3071 = vunpack.c.l.b16 %v2295
  %v3072 = vunpack.c.h.b16 %v2295
  %v3073 = vunpack.c.l.b16 %v2296
  %v3074 = vunpack.c.h.b16 %v2296
  %v3075 = vunpack.c.l.b16 %v2297
  %v3076 = vunpack.c.h.b16 %v2297
  %v3077 = vunpack.c.l.b16 %v2298
  %v3078 = vunpack.c.h.b16 %v2298
  %v3079 = vunpack.c.l.b16 %v2299
  %v3080 = vunpack.c.h.b16 %v2299
  %v3081 = vunpack.c.l.b16 %v2300
  %v3082 = vunpack.c.h.b16 %v2300
  %v3083 = vunpack.c.l.b16 %v2301
  %v3084 = vunpack.c.h.b16 %v2301
  %v3085 = vunpack.c.l.b16 %v2302
  %v3086 = vunpack.c.h.b16 %v2302
  %v3087 = vunpack.c.l.b16 %v2303
  %v3088 = vunpack.c.h.b16 %v2303
  %v3089 = vunpack.c.l.b16 %v2304
  %v3090 = vunpack.c.h.b16 %v2304
  %v3091 = vunpack.c.l.b16 %v2305
  %v3092 = vunpack.c.h.b16 %v2305
  %v3093 = vunpack.c.l.b16 %v2306
  %v3094 = vunpack.c.h.b16 %v2306
  %v3095 = vunpack.c.l.b16 %v2307
  %v3096 = vunpack.c.h.b16 %v2307
  %v3097 = vunpack.c.l.b16 %v2308
  %v3098 = vunpack.c.h.b16 %v2308
  %v3099 = vunpack.c.l.b16 %v2309
  %v3100 = vunpack.c.h.b16 %v2309
  %v3101 = vunpack.c.l.b16 %v2310
  %v3102 = vunpack.c.h.b16 %v2310
  %v3103 = vunpack.c.l.b16 %v2311
  %v3104 = vunpack.c.h.b16 %v2311
  %v3105 = vunpack.c.l.b16 %v2312
  %v3106 = vunpack.c.h.b16 %v2312
  %v3107 = vunpack.c.l.b16 %v2313
  %v3108 = vunpack.c.h.b16 %v2313
  %v3109 = vunpack.c.l.b16 %v2314
  %v3110 = vunpack.c.h.b16 %v2314
  %v3111 = vunpack.c.l.b16 %v2315
  %v3112 = vunpack.c.h.b16 %v2315
  %v3113 = vunpack.c.l.b16 %v2316
  %v3114 = vunpack.c.h.b16 %v2316
  %v3115 = vunpack.c.l.b16 %v2317
  %v3116 = vunpack.c.h.b16 %v2317
  %v3117 = vunpack.c.l.b16 %v2318
  %v3118 = vunpack.c.h.b16 %v2318
  %v3119 = vunpack.c.l.b16 %v2319
  %v3120 = vunpack.c.h.b16 %v2319
  %v3121 = vunpack.c.l.b16 %v2320
  %v3122 = vunpack.c.h.b16 %v2320
  %v3123 = vunpack.c.l.b16 %v2321
  %v3124 = vunpack.c.h.b16 %v2321
  %v3125 = vunpack.c.l.b16 %v2322
  %v3126 = vunpack.c.h.b16 %v2322
  %v3127 = vunpack.c.l.b16 %v2323
  %v3128 = vunpack.c.h.b16 %v2323
  %v3129 = vunpack.c.l.b16 %v2324
  %v3130 = vunpack.c.h.b16 %v2324
  %v3131 = vunpack.c.l.b16 %v2325
  %v3132 = vunpack.c.h.b16 %v2325
  %v3133 = vunpack.c.l.b16 %v2326
  %v3134 = vunpack.c.h.b16 %v2326
  %v3135 = vunpack.c.l.b16 %v2327
  %v3136 = vunpack.c.h.b16 %v2327
  %v3137 = vunpack.c.l.b16 %v2328
  %v3138 = vunpack.c.h.b16 %v2328
  %v3139 = vpack.c.b16 %v2635, %v2627
  %v3140 = vpack.c.b16 %v2636, %v2628
  %v3141 = vpack.c.b16 %v2637, %v2629
  %v3142 = vpack.c.b16 %v2638, %v2630
  %v3143 = vpack.c.b16 %v2639, %v2631
  %v3144 = vpack.c.b16 %v2640, %v2632
  %v3145 = vpack.c.b16 %v2641, %v2633
  %v3146 = vpack.c.b16 %v2642, %v2634
  %v3147 = vpack.c.b16 %v2651, %v2643
  %v3148 = vpack.c.b16 %v2652, %v2644
  %v3149 = vpack.c.b16 %v2653, %v2645
  %v3150 = vpack.c.b16 %v2654, %v2646
  %v3151 = vpack.c.b16 %v2655, %v2647
  %v3152 = vpack.c.b16 %v2656, %v2648
  %v3153 = vpack.c.b16 %v2657, %v2649
  %v3154 = vpack.c.b16 %v2658, %v2650
  %v3155 = vpack.c.b16 %v2667, %v2659
  %v3156 = vpack.c.b16 %v2668, %v2660
  %v3157 = vpack.c.b16 %v2669, %v2661
  %v3158 = vpack.c.b16 %v2670, %v2662
  %v3159 = vpack.c.b16 %v2671, %v2663
  %v3160 = vpack.c.b16 %v2672, %v2664
  %v3161 = vpack.c.b16 %v2673, %v2665
  %v3162 = vpack.c.b16 %v2674, %v2666
  %v3163 = vpack.c.b16 %v2683, %v2675
  %v3164 = vpack.c.b16 %v2684, %v2676
  %v3165 = vpack.c.b16 %v2685, %v2677
  %v3166 = vpack.c.b16 %v2686, %v2678
  %v3167 = vpack.c.b16 %v2687, %v2679
  %v3168 = vpack.c.b16 %v2688, %v2680
  %v3169 = vpack.c.b16 %v2689, %v2681
  %v3170 = vpack.c.b16 %v2690, %v2682
  %v3171 = vpack.c.b16 %v2699, %v2691
  %v3172 = vpack.c.b16 %v2700, %v2692
  %v3173 = vpack.c.b16 %v2701, %v2693
  %v3174 = vpack.c.b16 %v2702, %v2694
  %v3175 = vpack.c.b16 %v2703, %v2695
  %v3176 = vpack.c.b16 %v2704, %v2696
  %v3177 = vpack.c.b16 %v2705, %v2697
  %v3178 = vpack.c.b16 %v2706, %v2698
  %v3179 = vpack.c.b16 %v2715, %v2707
  %v3180 = vpack.c.b16 %v2716, %v2708
  %v3181 = vpack.c.b16 %v2717, %v2709
  %v3182 = vpack.c.b16 %v2718, %v2710
  %v3183 = vpack.c.b16 %v2719, %v2711
  %v3184 = vpack.c.b16 %v2720, %v2712
  %v3185 = vpack.c.b16 %v2721, %v2713
  %v3186 = vpack.c.b16 %v2722, %v2714
  %v3187 = vpack.c.b16 %v2731, %v2723
  %v3188 = vpack.c.b16 %v2732, %v2724
  %v3189 = vpack.c.b16 %v2733, %v2725
  %v3190 = vpack.c.b16 %v2734, %v2726
  %v3191 = vpack.c.b16 %v2735, %v2727
  %v3192 = vpack.c.b16 %v2736, %v2728
  %v3193 = vpack.c.b16 %v2737, %v2729
  %v3194 = vpack.c.b16 %v2738, %v2730
  %v3195 = vpack.c.b16 %v2747, %v2739
  %v3196 = vpack.c.b16 %v2748, %v2740
  %v3197 = vpack.c.b16 %v2749, %v2741
  %v3198 = vpack.c.b16 %v2750, %v2742
  %v3199 = vpack.c.b16 %v2751, %v2743
  %v3200 = vpack.c.b16 %v2752, %v2744
  %v3201 = vpack.c.b16 %v2753, %v2745
  %v3202 = vpack.c.b16 %v2754, %v2746
  %v3203 = vpack.c.b16 %v2763, %v2755
  %v3204 = vpack.c.b16 %v2764, %v2756
  %v3205 = vpack.c.b16 %v2765, %v2757
  %v3206 = vpack.c.b16 %v2766, %v2758
  %v3207 = vpack.c.b16 %v2767, %v2759
  %v3208 = vpack.c.b16 %v2768, %v2760
  %v3209 = vpack.c.b16 %v2769, %v2761
  %v3210 = vpack.c.b16 %v2770, %v2762
  %v3211 = vpack.c.b16 %v2779, %v2771
  %v3212 = vpack.c.b16 %v2780, %v2772
  %v3213 = vpack.c.b16 %v2781, %v2773
  %v3214 = vpack.c.b16 %v2782, %v2774
  %v3215 = vpack.c.b16 %v2783, %v2775
  %v3216 = vpack.c.b16 %v2784, %v2776
  %v3217 = vpack.c.b16 %v2785, %v2777
  %v3218 = vpack.c.b16 %v2786, %v2778
  %v3219 = vpack.c.b16 %v2795, %v2787
  %v3220 = vpack.c.b16 %v2796, %v2788
  %v3221 = vpack.c.b16 %v2797, %v2789
  %v3222 = vpack.c.b16 %v2798, %v2790
  %v3223 = vpack.c.b16 %v2799, %v2791
  %v3224 = vpack.c.b16 %v2800, %v2792
  %v3225 = vpack.c.b16 %v2801, %v2793
  %v3226 = vpack.c.b16 %v2802, %v2794
  %v3227 = vpack.c.b16 %v2811, %v2803
  %v3228 = vpack.c.b16 %v2812, %v2804
  %v3229 = vpack.c.b16 %v2813, %v2805
  %v3230 = vpack.c.b16 %v2814, %v2806
  %v3231 = vpack.c.b16 %v2815, %v2807
  %v3232 = vpack.c.b16 %v2816, %v2808
  %v3233 = vpack.c.b16 %v2817, %v2809
  %v3234 = vpack.c.b16 %v2818, %v2810
  %v3235 = vpack.c.b16 %v2827, %v2819
  %v3236 = vpack.c.b16 %v2828, %v2820
  %v3237 = vpack.c.b16 %v2829, %v2821
  %v3238 = vpack.c.b16 %v2830, %v2822
  %v3239 = vpack.c.b16 %v2831, %v2823
  %v3240 = vpack.c.b16 %v2832, %v2824
  %v3241 = vpack.c.b16 %v2833, %v2825
  %v3242 = vpack.c.b16 %v2834, %v2826
  %v3243 = vpack.c.b16 %v2843, %v2835
  %v3244 = vpack.c.b16 %v2844, %v2836
  %v3245 = vpack.c.b16 %v2845, %v2837
  %v3246 = vpack.c.b16 %v2846, %v2838
  %v3247 = vpack.c.b16 %v2847, %v2839
  %v3248 = vpack.c.b16 %v2848, %v2840
  %v3249 = vpack.c.b16 %v2849, %v2841
  %v3250 = vpack.c.b16 %v2850, %v2842
  %v3251 = vpack.c.b16 %v2859, %v2851
  %v3252 = vpack.c.b16 %v2860, %v2852
  %v3253 = vpack.c.b16 %v2861, %v2853
  %v3254 = vpack.c.b16 %v2862, %v2854
  %v3255 = vpack.c.b16 %v2863, %v2855
  %v3256 = vpack.c.b16 %v2864, %v2856
  %v3257 = vpack.c.b16 %v2865, %v2857
  %v3258 = vpack.c.b16 %v2866, %v2858
  %v3259 = vpack.c.b16 %v2875, %v2867
  %v3260 = vpack.c.b16 %v2876, %v2868
  %v3261 = vpack.c.b16 %v2877, %v2869
  %v3262 = vpack.c.b16 %v2878, %v2870
  %v3263 = vpack.c.b16 %v2879, %v2871
  %v3264 = vpack.c.b16 %v2880, %v2872
  %v3265 = vpack.c.b16 %v2881, %v2873
  %v3266 = vpack.c.b16 %v2882, %v2874
  %v3267 = vpack.c.b16 %v2891, %v2883
  %v3268 = vpack.c.b16 %v2892, %v2884
  %v3269 = vpack.c.b16 %v2893, %v2885
  %v3270 = vpack.c.b16 %v2894, %v2886
  %v3271 = vpack.c.b16 %v2895, %v2887
  %v3272 = vpack.c.b16 %v2896, %v2888
  %v3273 = vpack.c.b16 %v2897, %v2889
  %v3274 = vpack.c.b16 %v2898, %v2890
  %v3275 = vpack.c.b16 %v2907, %v2899
  %v3276 = vpack.c.b16 %v2908, %v2900
  %v3277 = vpack.c.b16 %v2909, %v2901
  %v3278 = vpack.c.b16 %v2910, %v2902
  %v3279 = vpack.c.b16 %v2911, %v2903
  %v3280 = vpack.c.b16 %v2912, %v2904
  %v3281 = vpack.c.b16 %v2913, %v2905
  %v3282 = vpack.c.b16 %v2914, %v2906
  %v3283 = vpack.c.b16 %v2923, %v2915
  %v3284 = vpack.c.b16 %v2924, %v2916
  %v3285 = vpack.c.b16 %v2925, %v2917
  %v3286 = vpack.c.b16 %v2926, %v2918
  %v3287 = vpack.c.b16 %v2927, %v2919
  %v3288 = vpack.c.b16 %v2928, %v2920
  %v3289 = vpack.c.b16 %v2929, %v2921
  %v3290 = vpack.c.b16 %v2930, %v2922
  %v3291 = vpack.c.b16 %v2939, %v2931
  %v3292 = vpack.c.b16 %v2940, %v2932
  %v3293 = vpack.c.b16 %v2941, %v2933
  %v3294 = vpack.c.b16 %v2942, %v2934
  %v3295 = vpack.c.b16 %v2943, %v2935
  %v3296 = vpack.c.b16 %v2944, %v2936
  %v3297 = vpack.c.b16 %v2945, %v2937
  %v3298 = vpack.c.b16 %v2946, %v2938
  %v3299 = vpack.c.b16 %v2955, %v2947
  %v3300 = vpack.c.b16 %v2956, %v2948
  %v3301 = vpack.c.b16 %v2957, %v2949
  %v3302 = vpack.c.b16 %v2958, %v2950
  %v3303 = vpack.c.b16 %v2959, %v2951
  %v3304 = vpack.c.b16 %v2960, %v2952
  %v3305 = vpack.c.b16 %v2961, %v2953
  %v3306 = vpack.c.b16 %v2962, %v2954
  %v3307 = vpack.c.b16 %v2971, %v2963
  %v3308 = vpack.c.b16 %v2972, %v2964
  %v3309 = vpack.c.b16 %v2973, %v2965
  %v3310 = vpack.c.b16 %v2974, %v2966
  %v3311 = vpack.c.b16 %v2975, %v2967
  %v3312 = vpack.c.b16 %v2976, %v2968
  %v3313 = vpack.c.b16 %v2977, %v2969
  %v3314 = vpack.c.b16 %v2978, %v2970
  %v3315 = vpack.c.b16 %v2987, %v2979
  %v3316 = vpack.c.b16 %v2988, %v2980
  %v3317 = vpack.c.b16 %v2989, %v2981
  %v3318 = vpack.c.b16 %v2990, %v2982
  %v3319 = vpack.c.b16 %v2991, %v2983
  %v3320 = vpack.c.b16 %v2992, %v2984
  %v3321 = vpack.c.b16 %v2993, %v2985
  %v3322 = vpack.c.b16 %v2994, %v2986
  %v3323 = vpack.c.b16 %v3003, %v2995
  %v3324 = vpack.c.b16 %v3004, %v2996
  %v3325 = vpack.c.b16 %v3005, %v2997
  %v3326 = vpack.c.b16 %v3006, %v2998
  %v3327 = vpack.c.b16 %v3007, %v2999
  %v3328 = vpack.c.b16 %v3008, %v3000
  %v3329 = vpack.c.b16 %v3009, %v3001
  %v3330 = vpack.c.b16 %v3010, %v3002
  %v3331 = vpack.c.b16 %v3019, %v3011
  %v3332 = vpack.c.b16 %v3020, %v3012
  %v3333 = vpack.c.b16 %v3021, %v3013
  %v3334 = vpack.c.b16 %v3022, %v3014
  %v3335 = vpack.c.b16 %v3023, %v3015
  %v3336 = vpack.c.b16 %v3024, %v3016
  %v3337 = vpack.c.b16 %v3025, %v3017
  %v3338 = vpack.c.b16 %v3026, %v3018
  %v3339 = vpack.c.b16 %v3035, %v3027
  %v3340 = vpack.c.b16 %v3036, %v3028
  %v3341 = vpack.c.b16 %v3037, %v3029
  %v3342 = vpack.c.b16 %v3038, %v3030
  %v3343 = vpack.c.b16 %v3039, %v3031
  %v3344 = vpack.c.b16 %v3040, %v3032
  %v3345 = vpack.c.b16 %v3041, %v3033
  %v3346 = vpack.c.b16 %v3042, %v3034
  %v3347 = vpack.c.b16 %v3051, %v3043
  %v3348 = vpack.c.b16 %v3052, %v3044
  %v3349 = vpack.c.b16 %v3053, %v3045
  %v3350 = vpack.c.b16 %v3054, %v3046
  %v3351 = vpack.c.b16 %v3055, %v3047
  %v3352 = vpack.c.b16 %v3056, %v3048
  %v3353 = vpack.c.b16 %v3057, %v3049
  %v3354 = vpack.c.b16 %v3058, %v3050
  %v3355 = vpack.c.b16 %v3067, %v3059
  %v3356 = vpack.c.b16 %v3068, %v3060
  %v3357 = vpack.c.b16 %v3069, %v3061
  %v3358 = vpack.c.b16 %v3070, %v3062
  %v3359 = vpack.c.b16 %v3071, %v3063
  %v3360 = vpack.c.b16 %v3072, %v3064
  %v3361 = vpack.c.b16 %v3073, %v3065
  %v3362 = vpack.c.b16 %v3074, %v3066
  %v3363 = vpack.c.b16 %v3083, %v3075
  %v3364 = vpack.c.b16 %v3084, %v3076
  %v3365 = vpack.c.b16 %v3085, %v3077
  %v3366 = vpack.c.b16 %v3086, %v3078
  %v3367 = vpack.c.b16 %v3087, %v3079
  %v3368 = vpack.c.b16 %v3088, %v3080
  %v3369 = vpack.c.b16 %v3089, %v3081
  %v3370 = vpack.c.b16 %v3090, %v3082
  %v3371 = vpack.c.b16 %v3099, %v3091
  %v3372 = vpack.c.b16 %v3100, %v3092
  %v3373 = vpack.c.b16 %v3101, %v3093
  %v3374 = vpack.c.b16 %v3102, %v3094
  %v3375 = vpack.c.b16 %v3103, %v3095
  %v3376 = vpack.c.b16 %v3104, %v3096
  %v3377 = vpack.c.b16 %v3105, %v3097
  %v3378 = vpack.c.b16 %v3106, %v3098
  %v3379 = vpack.c.b16 %v3115, %v3107
  %v3380 = vpack.c.b16 %v3116, %v3108
  %v3381 = vpack.c.b16 %v3117, %v3109
  %v3382 = vpack.c.b16 %v3118, %v3110
  %v3383 = vpack.c.b16 %v3119, %v3111
  %v3384 = vpack.c.b16 %v3120, %v3112
  %v3385 = vpack.c.b16 %v3121, %v3113
  %v3386 = vpack.c.b16 %v3122, %v3114
  %v3387 = vpack.c.b16 %v3131, %v3123
  %v3388 = vpack.c.b16 %v3132, %v3124
  %v3389 = vpack.c.b16 %v3133, %v3125
  %v3390 = vpack.c.b16 %v3134, %v3126
  %v3391 = vpack.c.b16 %v3135, %v3127
  %v3392 = vpack.c.b16 %v3136, %v3128
  %v3393 = vpack.c.b16 %v3137, %v3129
  %v3394 = vpack.c.b16 %v3138, %v3130
  %3651 = vmatprep.subr.bf16.mxu0 %v3140
  %3652 = vmatpush1.bf16.msra.mxu0 %v3139
  %3653 = vmatprep.subr.bf16.mxu0 %v3148
  %3654 = vmatpush1.bf16.msra.mxu0 %v3147
  %3655 = vmatprep.subr.bf16.mxu0 %v3156
  %3656 = vmatpush1.bf16.msra.mxu0 %v3155
  %3657 = vmatprep.subr.bf16.mxu0 %v3164
  %3658 = vmatpush1.bf16.msra.mxu0 %v3163
  %3659 = vmatprep.subr.bf16.mxu0 %v3172
  %3660 = vmatpush1.bf16.msra.mxu0 %v3171
  %3661 = vmatprep.subr.bf16.mxu0 %v3180
  %3662 = vmatpush1.bf16.msra.mxu0 %v3179
  %3663 = vmatprep.subr.bf16.mxu0 %v3188
  %3664 = vmatpush1.bf16.msra.mxu0 %v3187
  %3665 = vmatprep.subr.bf16.mxu0 %v3196
  %3666 = vmatpush1.bf16.msra.mxu0 %v3195
  %3667 = vmatprep.subr.bf16.mxu0 %v3204
  %3668 = vmatpush1.bf16.msra.mxu0 %v3203
  %3669 = vmatprep.subr.bf16.mxu0 %v3212
  %3670 = vmatpush1.bf16.msra.mxu0 %v3211
  %3671 = vmatprep.subr.bf16.mxu0 %v3220
  %3672 = vmatpush1.bf16.msra.mxu0 %v3219
  %3673 = vmatprep.subr.bf16.mxu0 %v3228
  %3674 = vmatpush1.bf16.msra.mxu0 %v3227
  %3675 = vmatprep.subr.bf16.mxu0 %v3236
  %3676 = vmatpush1.bf16.msra.mxu0 %v3235
  %3677 = vmatprep.subr.bf16.mxu0 %v3244
  %3678 = vmatpush1.bf16.msra.mxu0 %v3243
  %3679 = vmatprep.subr.bf16.mxu0 %v3252
  %3680 = vmatpush1.bf16.msra.mxu0 %v3251
  %3681 = vmatprep.subr.bf16.mxu0 %v3260
  %3682 = vmatpush1.bf16.msra.mxu0 %v3259
  %3683 = vmatprep.mubr.bf16.mxu0 %v1216
  %3684 = vmatmul.mubr.bf16.gmra.mrb[0].mxu0 %v1215
  %v3685 = vpop.f32.mrb[0].mxu0
  %v3686 = vadd.f32 %v2334, %v3685
  %v3687 = vpop.f32.mrb[0].mxu0
  %v3688 = vadd.f32 %v2338, %v3687
  %v3689 = vpop.f32.mrb[0].mxu0
  %v3690 = vpop.f32.mrb[0].mxu0
  %3691 = vdwg.mxu0
  %3692 = vmatprep.subr.bf16.mxu0 %v3268
  %3693 = vmatpush1.bf16.msra.mxu0 %v3267
  %3694 = vmatprep.subr.bf16.mxu0 %v3276
  %3695 = vmatpush1.bf16.msra.mxu0 %v3275
  %3696 = vmatprep.subr.bf16.mxu0 %v3284
  %3697 = vmatpush1.bf16.msra.mxu0 %v3283
  %3698 = vmatprep.subr.bf16.mxu0 %v3292
  %3699 = vmatpush1.bf16.msra.mxu0 %v3291
  %3700 = vmatprep.subr.bf16.mxu0 %v3300
  %3701 = vmatpush1.bf16.msra.mxu0 %v3299
  %3702 = vmatprep.subr.bf16.mxu0 %v3308
  %3703 = vmatpush1.bf16.msra.mxu0 %v3307
  %3704 = vmatprep.subr.bf16.mxu0 %v3316
  %3705 = vmatpush1.bf16.msra.mxu0 %v3315
  %3706 = vmatprep.subr.bf16.mxu0 %v3324
  %3707 = vmatpush1.bf16.msra.mxu0 %v3323
  %3708 = vmatprep.subr.bf16.mxu0 %v3332
  %3709 = vmatpush1.bf16.msra.mxu0 %v3331
  %3710 = vmatprep.subr.bf16.mxu0 %v3340
  %3711 = vmatpush1.bf16.msra.mxu0 %v3339
  %3712 = vmatprep.subr.bf16.mxu0 %v3348
  %3713 = vmatpush1.bf16.msra.mxu0 %v3347
  %3714 = vmatprep.subr.bf16.mxu0 %v3356
  %3715 = vmatpush1.bf16.msra.mxu0 %v3355
  %3716 = vmatprep.subr.bf16.mxu0 %v3364
  %3717 = vmatpush1.bf16.msra.mxu0 %v3363
  %3718 = vmatprep.subr.bf16.mxu0 %v3372
  %3719 = vmatpush1.bf16.msra.mxu0 %v3371
  %3720 = vmatprep.subr.bf16.mxu0 %v3380
  %3721 = vmatpush1.bf16.msra.mxu0 %v3379
  %3722 = vmatprep.subr.bf16.mxu0 %v3388
  %3723 = vmatpush1.bf16.msra.mxu0 %v3387
  %3724 = vmatprep.mubr.bf16.mxu0 %v1218
  %3725 = vmatmul.mubr.bf16.gmra.mrb[0].mxu0 %v1217
  %v3726 = vpop.f32.mrb[0].mxu0
  %v3727 = vadd.f32 %v3686, %v3726
  %v3728 = vpop.f32.mrb[0].mxu0
  %v3729 = vadd.f32 %v3688, %v3728
  %v3730 = vpop.f32.mrb[0].mxu0
  %v3731 = vpop.f32.mrb[0].mxu0
  %3732 = vdwg.mxu0
  %3733 = vmatprep.subr.bf16.mxu0 %v3142
  %3734 = vmatpush1.bf16.msra.mxu0 %v3141
  %3735 = vmatprep.subr.bf16.mxu0 %v3150
  %3736 = vmatpush1.bf16.msra.mxu0 %v3149
  %3737 = vmatprep.subr.bf16.mxu0 %v3158
  %3738 = vmatpush1.bf16.msra.mxu0 %v3157
  %3739 = vmatprep.subr.bf16.mxu0 %v3166
  %3740 = vmatpush1.bf16.msra.mxu0 %v3165
  %3741 = vmatprep.subr.bf16.mxu0 %v3174
  %3742 = vmatpush1.bf16.msra.mxu0 %v3173
  %3743 = vmatprep.subr.bf16.mxu0 %v3182
  %3744 = vmatpush1.bf16.msra.mxu0 %v3181
  %3745 = vmatprep.subr.bf16.mxu0 %v3190
  %3746 = vmatpush1.bf16.msra.mxu0 %v3189
  %3747 = vmatprep.subr.bf16.mxu0 %v3198
  %3748 = vmatpush1.bf16.msra.mxu0 %v3197
  %3749 = vmatprep.subr.bf16.mxu0 %v3206
  %3750 = vmatpush1.bf16.msra.mxu0 %v3205
  %3751 = vmatprep.subr.bf16.mxu0 %v3214
  %3752 = vmatpush1.bf16.msra.mxu0 %v3213
  %3753 = vmatprep.subr.bf16.mxu0 %v3222
  %3754 = vmatpush1.bf16.msra.mxu0 %v3221
  %3755 = vmatprep.subr.bf16.mxu0 %v3230
  %3756 = vmatpush1.bf16.msra.mxu0 %v3229
  %3757 = vmatprep.subr.bf16.mxu0 %v3238
  %3758 = vmatpush1.bf16.msra.mxu0 %v3237
  %3759 = vmatprep.subr.bf16.mxu0 %v3246
  %3760 = vmatpush1.bf16.msra.mxu0 %v3245
  %3761 = vmatprep.subr.bf16.mxu0 %v3254
  %3762 = vmatpush1.bf16.msra.mxu0 %v3253
  %3763 = vmatprep.subr.bf16.mxu0 %v3262
  %3764 = vmatpush1.bf16.msra.mxu0 %v3261
  %3765 = vmatprep.mubr.bf16.mxu0 %v1216
  %3766 = vmatmul.mubr.bf16.gmra.mrb[0].mxu0 %v1215
  %v3767 = vpop.f32.mrb[0].mxu0
  %v3768 = vadd.f32 %v2342, %v3767
  %v3769 = vpop.f32.mrb[0].mxu0
  %v3770 = vadd.f32 %v2346, %v3769
  %v3771 = vpop.f32.mrb[0].mxu0
  %v3772 = vpop.f32.mrb[0].mxu0
  %3773 = vdwg.mxu0
  %3774 = vmatprep.subr.bf16.mxu0 %v3270
  %3775 = vmatpush1.bf16.msra.mxu0 %v3269
  %3776 = vmatprep.subr.bf16.mxu0 %v3278
  %3777 = vmatpush1.bf16.msra.mxu0 %v3277
  %3778 = vmatprep.subr.bf16.mxu0 %v3286
  %3779 = vmatpush1.bf16.msra.mxu0 %v3285
  %3780 = vmatprep.subr.bf16.mxu0 %v3294
  %3781 = vmatpush1.bf16.msra.mxu0 %v3293
  %3782 = vmatprep.subr.bf16.mxu0 %v3302
  %3783 = vmatpush1.bf16.msra.mxu0 %v3301
  %3784 = vmatprep.subr.bf16.mxu0 %v3310
  %3785 = vmatpush1.bf16.msra.mxu0 %v3309
  %3786 = vmatprep.subr.bf16.mxu0 %v3318
  %3787 = vmatpush1.bf16.msra.mxu0 %v3317
  %3788 = vmatprep.subr.bf16.mxu0 %v3326
  %3789 = vmatpush1.bf16.msra.mxu0 %v3325
  %3790 = vmatprep.subr.bf16.mxu0 %v3334
  %3791 = vmatpush1.bf16.msra.mxu0 %v3333
  %3792 = vmatprep.subr.bf16.mxu0 %v3342
  %3793 = vmatpush1.bf16.msra.mxu0 %v3341
  %3794 = vmatprep.subr.bf16.mxu0 %v3350
  %3795 = vmatpush1.bf16.msra.mxu0 %v3349
  %3796 = vmatprep.subr.bf16.mxu0 %v3358
  %3797 = vmatpush1.bf16.msra.mxu0 %v3357
  %3798 = vmatprep.subr.bf16.mxu0 %v3366
  %3799 = vmatpush1.bf16.msra.mxu0 %v3365
  %3800 = vmatprep.subr.bf16.mxu0 %v3374
  %3801 = vmatpush1.bf16.msra.mxu0 %v3373
  %3802 = vmatprep.subr.bf16.mxu0 %v3382
  %3803 = vmatpush1.bf16.msra.mxu0 %v3381
  %3804 = vmatprep.subr.bf16.mxu0 %v3390
  %3805 = vmatpush1.bf16.msra.mxu0 %v3389
  %3806 = vmatprep.mubr.bf16.mxu0 %v1218
  %3807 = vmatmul.mubr.bf16.gmra.mrb[0].mxu0 %v1217
  %v3808 = vpop.f32.mrb[0].mxu0
  %v3809 = vadd.f32 %v3768, %v3808
  %v3810 = vpop.f32.mrb[0].mxu0
  %v3811 = vadd.f32 %v3770, %v3810
  %v3812 = vpop.f32.mrb[0].mxu0
  %v3813 = vpop.f32.mrb[0].mxu0
  %3814 = vdwg.mxu0
  %3815 = vmatprep.subr.bf16.mxu0 %v3144
  %3816 = vmatpush1.bf16.msra.mxu0 %v3143
  %3817 = vmatprep.subr.bf16.mxu0 %v3152
  %3818 = vmatpush1.bf16.msra.mxu0 %v3151
  %3819 = vmatprep.subr.bf16.mxu0 %v3160
  %3820 = vmatpush1.bf16.msra.mxu0 %v3159
  %3821 = vmatprep.subr.bf16.mxu0 %v3168
  %3822 = vmatpush1.bf16.msra.mxu0 %v3167
  %3823 = vmatprep.subr.bf16.mxu0 %v3176
  %3824 = vmatpush1.bf16.msra.mxu0 %v3175
  %3825 = vmatprep.subr.bf16.mxu0 %v3184
  %3826 = vmatpush1.bf16.msra.mxu0 %v3183
  %3827 = vmatprep.subr.bf16.mxu0 %v3192
  %3828 = vmatpush1.bf16.msra.mxu0 %v3191
  %3829 = vmatprep.subr.bf16.mxu0 %v3200
  %3830 = vmatpush1.bf16.msra.mxu0 %v3199
  %3831 = vmatprep.subr.bf16.mxu0 %v3208
  %3832 = vmatpush1.bf16.msra.mxu0 %v3207
  %3833 = vmatprep.subr.bf16.mxu0 %v3216
  %3834 = vmatpush1.bf16.msra.mxu0 %v3215
  %3835 = vmatprep.subr.bf16.mxu0 %v3224
  %3836 = vmatpush1.bf16.msra.mxu0 %v3223
  %3837 = vmatprep.subr.bf16.mxu0 %v3232
  %3838 = vmatpush1.bf16.msra.mxu0 %v3231
  %3839 = vmatprep.subr.bf16.mxu0 %v3240
  %3840 = vmatpush1.bf16.msra.mxu0 %v3239
  %3841 = vmatprep.subr.bf16.mxu0 %v3248
  %3842 = vmatpush1.bf16.msra.mxu0 %v3247
  %3843 = vmatprep.subr.bf16.mxu0 %v3256
  %3844 = vmatpush1.bf16.msra.mxu0 %v3255
  %3845 = vmatprep.subr.bf16.mxu0 %v3264
  %3846 = vmatpush1.bf16.msra.mxu0 %v3263
  %3847 = vmatprep.mubr.bf16.mxu0 %v1216
  %3848 = vmatmul.mubr.bf16.gmra.mrb[0].mxu0 %v1215
  %v3849 = vpop.f32.mrb[0].mxu0
  %v3850 = vadd.f32 %v2350, %v3849
  %v3851 = vpop.f32.mrb[0].mxu0
  %v3852 = vadd.f32 %v2354, %v3851
  %v3853 = vpop.f32.mrb[0].mxu0
  %v3854 = vpop.f32.mrb[0].mxu0
  %3855 = vdwg.mxu0
  %3856 = vmatprep.subr.bf16.mxu0 %v3272
  %3857 = vmatpush1.bf16.msra.mxu0 %v3271
  %3858 = vmatprep.subr.bf16.mxu0 %v3280
  %3859 = vmatpush1.bf16.msra.mxu0 %v3279
  %3860 = vmatprep.subr.bf16.mxu0 %v3288
  %3861 = vmatpush1.bf16.msra.mxu0 %v3287
  %3862 = vmatprep.subr.bf16.mxu0 %v3296
  %3863 = vmatpush1.bf16.msra.mxu0 %v3295
  %3864 = vmatprep.subr.bf16.mxu0 %v3304
  %3865 = vmatpush1.bf16.msra.mxu0 %v3303
  %3866 = vmatprep.subr.bf16.mxu0 %v3312
  %3867 = vmatpush1.bf16.msra.mxu0 %v3311
  %3868 = vmatprep.subr.bf16.mxu0 %v3320
  %3869 = vmatpush1.bf16.msra.mxu0 %v3319
  %3870 = vmatprep.subr.bf16.mxu0 %v3328
  %3871 = vmatpush1.bf16.msra.mxu0 %v3327
  %3872 = vmatprep.subr.bf16.mxu0 %v3336
  %3873 = vmatpush1.bf16.msra.mxu0 %v3335
  %3874 = vmatprep.subr.bf16.mxu0 %v3344
  %3875 = vmatpush1.bf16.msra.mxu0 %v3343
  %3876 = vmatprep.subr.bf16.mxu0 %v3352
  %3877 = vmatpush1.bf16.msra.mxu0 %v3351
  %3878 = vmatprep.subr.bf16.mxu0 %v3360
  %3879 = vmatpush1.bf16.msra.mxu0 %v3359
  %3880 = vmatprep.subr.bf16.mxu0 %v3368
  %3881 = vmatpush1.bf16.msra.mxu0 %v3367
  %3882 = vmatprep.subr.bf16.mxu0 %v3376
  %3883 = vmatpush1.bf16.msra.mxu0 %v3375
  %3884 = vmatprep.subr.bf16.mxu0 %v3384
  %3885 = vmatpush1.bf16.msra.mxu0 %v3383
  %3886 = vmatprep.subr.bf16.mxu0 %v3392
  %3887 = vmatpush1.bf16.msra.mxu0 %v3391
  %3888 = vmatprep.mubr.bf16.mxu0 %v1218
  %3889 = vmatmul.mubr.bf16.gmra.mrb[0].mxu0 %v1217
  %v3890 = vpop.f32.mrb[0].mxu0
  %v3891 = vadd.f32 %v3850, %v3890
  %v3892 = vpop.f32.mrb[0].mxu0
  %v3893 = vadd.f32 %v3852, %v3892
  %v3894 = vpop.f32.mrb[0].mxu0
  %v3895 = vpop.f32.mrb[0].mxu0
  %3896 = vdwg.mxu0
  %3897 = vmatprep.subr.bf16.mxu0 %v3146
  %3898 = vmatpush1.bf16.msra.mxu0 %v3145
  %3899 = vmatprep.subr.bf16.mxu0 %v3154
  %3900 = vmatpush1.bf16.msra.mxu0 %v3153
  %3901 = vmatprep.subr.bf16.mxu0 %v3162
  %3902 = vmatpush1.bf16.msra.mxu0 %v3161
  %3903 = vmatprep.subr.bf16.mxu0 %v3170
  %3904 = vmatpush1.bf16.msra.mxu0 %v3169
  %3905 = vmatprep.subr.bf16.mxu0 %v3178
  %3906 = vmatpush1.bf16.msra.mxu0 %v3177
  %3907 = vmatprep.subr.bf16.mxu0 %v3186
  %3908 = vmatpush1.bf16.msra.mxu0 %v3185
  %3909 = vmatprep.subr.bf16.mxu0 %v3194
  %3910 = vmatpush1.bf16.msra.mxu0 %v3193
  %3911 = vmatprep.subr.bf16.mxu0 %v3202
  %3912 = vmatpush1.bf16.msra.mxu0 %v3201
  %3913 = vmatprep.subr.bf16.mxu0 %v3210
  %3914 = vmatpush1.bf16.msra.mxu0 %v3209
  %3915 = vmatprep.subr.bf16.mxu0 %v3218
  %3916 = vmatpush1.bf16.msra.mxu0 %v3217
  %3917 = vmatprep.subr.bf16.mxu0 %v3226
  %3918 = vmatpush1.bf16.msra.mxu0 %v3225
  %3919 = vmatprep.subr.bf16.mxu0 %v3234
  %3920 = vmatpush1.bf16.msra.mxu0 %v3233
  %3921 = vmatprep.subr.bf16.mxu0 %v3242
  %3922 = vmatpush1.bf16.msra.mxu0 %v3241
  %3923 = vmatprep.subr.bf16.mxu0 %v3250
  %3924 = vmatpush1.bf16.msra.mxu0 %v3249
  %3925 = vmatprep.subr.bf16.mxu0 %v3258
  %3926 = vmatpush1.bf16.msra.mxu0 %v3257
  %3927 = vmatprep.subr.bf16.mxu0 %v3266
  %3928 = vmatpush1.bf16.msra.mxu0 %v3265
  %3929 = vmatprep.mubr.bf16.mxu0 %v1216
  %3930 = vmatmul.mubr.bf16.gmra.mrb[0].mxu0 %v1215
  %v3931 = vpop.f32.mrb[0].mxu0
  %v3932 = vadd.f32 %v2358, %v3931
  %v3933 = vpop.f32.mrb[0].mxu0
  %v3934 = vadd.f32 %v2362, %v3933
  %v3935 = vpop.f32.mrb[0].mxu0
  %v3936 = vpop.f32.mrb[0].mxu0
  %3937 = vdwg.mxu0
  %3938 = vmatprep.subr.bf16.mxu0 %v3274
  %3939 = vmatpush1.bf16.msra.mxu0 %v3273
  %3940 = vmatprep.subr.bf16.mxu0 %v3282
  %3941 = vmatpush1.bf16.msra.mxu0 %v3281
  %3942 = vmatprep.subr.bf16.mxu0 %v3290
  %3943 = vmatpush1.bf16.msra.mxu0 %v3289
  %3944 = vmatprep.subr.bf16.mxu0 %v3298
  %3945 = vmatpush1.bf16.msra.mxu0 %v3297
  %3946 = vmatprep.subr.bf16.mxu0 %v3306
  %3947 = vmatpush1.bf16.msra.mxu0 %v3305
  %3948 = vmatprep.subr.bf16.mxu0 %v3314
  %3949 = vmatpush1.bf16.msra.mxu0 %v3313
  %3950 = vmatprep.subr.bf16.mxu0 %v3322
  %3951 = vmatpush1.bf16.msra.mxu0 %v3321
  %3952 = vmatprep.subr.bf16.mxu0 %v3330
  %3953 = vmatpush1.bf16.msra.mxu0 %v3329
  %3954 = vmatprep.subr.bf16.mxu0 %v3338
  %3955 = vmatpush1.bf16.msra.mxu0 %v3337
  %3956 = vmatprep.subr.bf16.mxu0 %v3346
  %3957 = vmatpush1.bf16.msra.mxu0 %v3345
  %3958 = vmatprep.subr.bf16.mxu0 %v3354
  %3959 = vmatpush1.bf16.msra.mxu0 %v3353
  %3960 = vmatprep.subr.bf16.mxu0 %v3362
  %3961 = vmatpush1.bf16.msra.mxu0 %v3361
  %3962 = vmatprep.subr.bf16.mxu0 %v3370
  %3963 = vmatpush1.bf16.msra.mxu0 %v3369
  %3964 = vmatprep.subr.bf16.mxu0 %v3378
  %3965 = vmatpush1.bf16.msra.mxu0 %v3377
  %3966 = vmatprep.subr.bf16.mxu0 %v3386
  %3967 = vmatpush1.bf16.msra.mxu0 %v3385
  %3968 = vmatprep.subr.bf16.mxu0 %v3394
  %3969 = vmatpush1.bf16.msra.mxu0 %v3393
  %3970 = vmatprep.mubr.bf16.mxu0 %v1218
  %3971 = vmatmul.mubr.bf16.gmra.mrb[0].mxu0 %v1217
  %v3972 = vpop.f32.mrb[0].mxu0
  %v3973 = vadd.f32 %v3932, %v3972
  %v3974 = vpop.f32.mrb[0].mxu0
  %v3975 = vadd.f32 %v3934, %v3974
  %v3976 = vpop.f32.mrb[0].mxu0
  %v3977 = vpop.f32.mrb[0].mxu0
  %3978 = vdwg.mxu0
  %v3979 = vmax.f32 %v3727, 0.0
  %v3980 = vmax.f32 %v3729, 0.0
  %v3981 = vmax.f32 %v3809, 0.0
  %v3982 = vmax.f32 %v3811, 0.0
  %v3983 = vmax.f32 %v3891, 0.0
  %v3984 = vmax.f32 %v3893, 0.0
  %v3985 = vmax.f32 %v3973, 0.0
  %v3986 = vmax.f32 %v3975, 0.0
  %v3987 = vpack.c.bf16 %v3979, %v3979
  %v3988 = vpack.c.bf16 %v3980, %v3980
  %v3989 = vpack.c.bf16 %v3981, %v3981
  %v3990 = vpack.c.bf16 %v3982, %v3982
  %v3991 = vpack.c.bf16 %v3983, %v3983
  %v3992 = vpack.c.bf16 %v3984, %v3984
  %v3993 = vpack.c.bf16 %v3985, %v3985
  %v3994 = vpack.c.bf16 %v3986, %v3986
  %v3995 = vld [vmem:[%s7] sm:$0xff]
  %v3996 = vld [vmem:[%s7 + $0x8] sm:$0xff]
  %v3997 = vld [vmem:[%s7 + $0x10] sm:$0xff]
  %v3998 = vld [vmem:[%s7 + $0x18] sm:$0xff]
  %v3999 = vld [vmem:[%s7 + $0x20] sm:$0xff]
  %v4000 = vld [vmem:[%s7 + $0x28] sm:$0xff]
  %v4001 = vld [vmem:[%s7 + $0x30] sm:$0xff]
  %v4002 = vld [vmem:[%s7 + $0x38] sm:$0xff]
  %v4003 = vld [vmem:[%s7 + $0x40] sm:$0xff]
  %v4004 = vld [vmem:[%s7 + $0x48] sm:$0xff]
  %v4005 = vld [vmem:[%s7 + $0x50] sm:$0xff]
  %v4006 = vld [vmem:[%s7 + $0x58] sm:$0xff]
  %v4007 = vld [vmem:[%s7 + $0x60] sm:$0xff]
  %v4008 = vld [vmem:[%s7 + $0x68] sm:$0xff]
  %v4009 = vld [vmem:[%s7 + $0x70] sm:$0xff]
  %v4010 = vld [vmem:[%s7 + $0x78] sm:$0xff]
  %v4011 = vld [vmem:[%s7 + $0x80] sm:$0xff]
  %v4012 = vld [vmem:[%s7 + $0x88] sm:$0xff]
  %v4013 = vld [vmem:[%s7 + $0x90] sm:$0xff]
  %v4014 = vld [vmem:[%s7 + $0x98] sm:$0xff]
  %v4015 = vld [vmem:[%s7 + $0xa0] sm:$0xff]
  %v4016 = vld [vmem:[%s7 + $0xa8] sm:$0xff]
  %v4017 = vld [vmem:[%s7 + $0xb0] sm:$0xff]
  %v4018 = vld [vmem:[%s7 + $0xb8] sm:$0xff]
  %v4019 = vld [vmem:[%s7 + $0xc0] sm:$0xff]
  %v4020 = vld [vmem:[%s7 + $0xc8] sm:$0xff]
  %v4021 = vld [vmem:[%s7 + $0xd0] sm:$0xff]
  %v4022 = vld [vmem:[%s7 + $0xd8] sm:$0xff]
  %v4023 = vld [vmem:[%s7 + $0xe0] sm:$0xff]
  %v4024 = vld [vmem:[%s7 + $0xe8] sm:$0xff]
  %v4025 = vld [vmem:[%s7 + $0xf0] sm:$0xff]
  %v4026 = vld [vmem:[%s7 + $0xf8] sm:$0xff]
  %v4027 = vld [vmem:[%s7 + $0x100] sm:$0xff]
  %v4028 = vld [vmem:[%s7 + $0x108] sm:$0xff]
  %v4029 = vld [vmem:[%s7 + $0x110] sm:$0xff]
  %v4030 = vld [vmem:[%s7 + $0x118] sm:$0xff]
  %v4031 = vld [vmem:[%s7 + $0x120] sm:$0xff]
  %v4032 = vld [vmem:[%s7 + $0x128] sm:$0xff]
  %v4033 = vld [vmem:[%s7 + $0x130] sm:$0xff]
  %v4034 = vld [vmem:[%s7 + $0x138] sm:$0xff]
  %v4035 = vld [vmem:[%s7 + $0x140] sm:$0xff]
  %v4036 = vld [vmem:[%s7 + $0x148] sm:$0xff]
  %v4037 = vld [vmem:[%s7 + $0x150] sm:$0xff]
  %v4038 = vld [vmem:[%s7 + $0x158] sm:$0xff]
  %v4039 = vld [vmem:[%s7 + $0x160] sm:$0xff]
  %v4040 = vld [vmem:[%s7 + $0x168] sm:$0xff]
  %v4041 = vld [vmem:[%s7 + $0x170] sm:$0xff]
  %v4042 = vld [vmem:[%s7 + $0x178] sm:$0xff]
  %v4043 = vld [vmem:[%s7 + $0x180] sm:$0xff]
  %v4044 = vld [vmem:[%s7 + $0x188] sm:$0xff]
  %v4045 = vld [vmem:[%s7 + $0x190] sm:$0xff]
  %v4046 = vld [vmem:[%s7 + $0x198] sm:$0xff]
  %v4047 = vld [vmem:[%s7 + $0x1a0] sm:$0xff]
  %v4048 = vld [vmem:[%s7 + $0x1a8] sm:$0xff]
  %v4049 = vld [vmem:[%s7 + $0x1b0] sm:$0xff]
  %v4050 = vld [vmem:[%s7 + $0x1b8] sm:$0xff]
  %v4051 = vld [vmem:[%s7 + $0x1c0] sm:$0xff]
  %v4052 = vld [vmem:[%s7 + $0x1c8] sm:$0xff]
  %v4053 = vld [vmem:[%s7 + $0x1d0] sm:$0xff]
  %v4054 = vld [vmem:[%s7 + $0x1d8] sm:$0xff]
  %v4055 = vld [vmem:[%s7 + $0x1e0] sm:$0xff]
  %v4056 = vld [vmem:[%s7 + $0x1e8] sm:$0xff]
  %v4057 = vld [vmem:[%s7 + $0x1f0] sm:$0xff]
  %v4058 = vld [vmem:[%s7 + $0x1f8] sm:$0xff]
  %v4059 = vld [vmem:[%s7 + $0x200] sm:$0xff]
  %v4060 = vld [vmem:[%s7 + $0x208] sm:$0xff]
  %v4061 = vld [vmem:[%s7 + $0x210] sm:$0xff]
  %v4062 = vld [vmem:[%s7 + $0x218] sm:$0xff]
  %v4063 = vld [vmem:[%s7 + $0x220] sm:$0xff]
  %v4064 = vld [vmem:[%s7 + $0x228] sm:$0xff]
  %v4065 = vld [vmem:[%s7 + $0x230] sm:$0xff]
  %v4066 = vld [vmem:[%s7 + $0x238] sm:$0xff]
  %v4067 = vld [vmem:[%s7 + $0x240] sm:$0xff]
  %v4068 = vld [vmem:[%s7 + $0x248] sm:$0xff]
  %v4069 = vld [vmem:[%s7 + $0x250] sm:$0xff]
  %v4070 = vld [vmem:[%s7 + $0x258] sm:$0xff]
  %v4071 = vld [vmem:[%s7 + $0x260] sm:$0xff]
  %v4072 = vld [vmem:[%s7 + $0x268] sm:$0xff]
  %v4073 = vld [vmem:[%s7 + $0x270] sm:$0xff]
  %v4074 = vld [vmem:[%s7 + $0x278] sm:$0xff]
  %v4075 = vld [vmem:[%s7 + $0x280] sm:$0xff]
  %v4076 = vld [vmem:[%s7 + $0x288] sm:$0xff]
  %v4077 = vld [vmem:[%s7 + $0x290] sm:$0xff]
  %v4078 = vld [vmem:[%s7 + $0x298] sm:$0xff]
  %v4079 = vld [vmem:[%s7 + $0x2a0] sm:$0xff]
  %v4080 = vld [vmem:[%s7 + $0x2a8] sm:$0xff]
  %v4081 = vld [vmem:[%s7 + $0x2b0] sm:$0xff]
  %v4082 = vld [vmem:[%s7 + $0x2b8] sm:$0xff]
  %v4083 = vld [vmem:[%s7 + $0x2c0] sm:$0xff]
  %v4084 = vld [vmem:[%s7 + $0x2c8] sm:$0xff]
  %v4085 = vld [vmem:[%s7 + $0x2d0] sm:$0xff]
  %v4086 = vld [vmem:[%s7 + $0x2d8] sm:$0xff]
  %v4087 = vld [vmem:[%s7 + $0x2e0] sm:$0xff]
  %v4088 = vld [vmem:[%s7 + $0x2e8] sm:$0xff]
  %v4089 = vld [vmem:[%s7 + $0x2f0] sm:$0xff]
  %v4090 = vld [vmem:[%s7 + $0x2f8] sm:$0xff]
  %v4091 = vld [vmem:[%s7 + $0x300] sm:$0xff]
  %v4092 = vld [vmem:[%s7 + $0x308] sm:$0xff]
  %v4093 = vld [vmem:[%s7 + $0x310] sm:$0xff]
  %v4094 = vld [vmem:[%s7 + $0x318] sm:$0xff]
  %v4095 = vld [vmem:[%s7 + $0x320] sm:$0xff]
  %v4096 = vld [vmem:[%s7 + $0x328] sm:$0xff]
  %v4097 = vld [vmem:[%s7 + $0x330] sm:$0xff]
  %v4098 = vld [vmem:[%s7 + $0x338] sm:$0xff]
  %v4099 = vld [vmem:[%s7 + $0x340] sm:$0xff]
  %v4100 = vld [vmem:[%s7 + $0x348] sm:$0xff]
  %v4101 = vld [vmem:[%s7 + $0x350] sm:$0xff]
  %v4102 = vld [vmem:[%s7 + $0x358] sm:$0xff]
  %v4103 = vld [vmem:[%s7 + $0x360] sm:$0xff]
  %v4104 = vld [vmem:[%s7 + $0x368] sm:$0xff]
  %v4105 = vld [vmem:[%s7 + $0x370] sm:$0xff]
  %v4106 = vld [vmem:[%s7 + $0x378] sm:$0xff]
  %v4107 = vld [vmem:[%s7 + $0x380] sm:$0xff]
  %v4108 = vld [vmem:[%s7 + $0x388] sm:$0xff]
  %v4109 = vld [vmem:[%s7 + $0x390] sm:$0xff]
  %v4110 = vld [vmem:[%s7 + $0x398] sm:$0xff]
  %v4111 = vld [vmem:[%s7 + $0x3a0] sm:$0xff]
  %v4112 = vld [vmem:[%s7 + $0x3a8] sm:$0xff]
  %v4113 = vld [vmem:[%s7 + $0x3b0] sm:$0xff]
  %v4114 = vld [vmem:[%s7 + $0x3b8] sm:$0xff]
  %v4115 = vld [vmem:[%s7 + $0x3c0] sm:$0xff]
  %v4116 = vld [vmem:[%s7 + $0x3c8] sm:$0xff]
  %v4117 = vld [vmem:[%s7 + $0x3d0] sm:$0xff]
  %v4118 = vld [vmem:[%s7 + $0x3d8] sm:$0xff]
  %v4119 = vld [vmem:[%s7 + $0x3e0] sm:$0xff]
  %v4120 = vld [vmem:[%s7 + $0x3e8] sm:$0xff]
  %v4121 = vld [vmem:[%s7 + $0x3f0] sm:$0xff]
  %v4122 = vld [vmem:[%s7 + $0x3f8] sm:$0xff]
  %v4123 = vld [vmem:[%s14 + $0x1a] sm:$0x3]
  %v4125 = vlaneseq
  %v4126 = vshrl.u32 %v4125, 7
  %v4127 = vsub.s32 0, %v4126
  %v4128 = vrot.slane %v4123, %v4127
  %v4129 = vlaneseq
  %v4130 = vshrl.u32 %v4129, 7
  %v4131 = vsub.s32 1, %v4130
  %v4132 = vrot.slane %v4123, %v4131
  %v4263 = vunpack.c.l.b16 %v3995
  %v4264 = vunpack.c.h.b16 %v3995
  %v4265 = vunpack.c.l.b16 %v3996
  %v4266 = vunpack.c.h.b16 %v3996
  %v4267 = vunpack.c.l.b16 %v3997
  %v4268 = vunpack.c.h.b16 %v3997
  %v4269 = vunpack.c.l.b16 %v3998
  %v4270 = vunpack.c.h.b16 %v3998
  %v4271 = vunpack.c.l.b16 %v3999
  %v4272 = vunpack.c.h.b16 %v3999
  %v4273 = vunpack.c.l.b16 %v4000
  %v4274 = vunpack.c.h.b16 %v4000
  %v4275 = vunpack.c.l.b16 %v4001
  %v4276 = vunpack.c.h.b16 %v4001
  %v4277 = vunpack.c.l.b16 %v4002
  %v4278 = vunpack.c.h.b16 %v4002
  %v4279 = vunpack.c.l.b16 %v4003
  %v4280 = vunpack.c.h.b16 %v4003
  %v4281 = vunpack.c.l.b16 %v4004
  %v4282 = vunpack.c.h.b16 %v4004
  %v4283 = vunpack.c.l.b16 %v4005
  %v4284 = vunpack.c.h.b16 %v4005
  %v4285 = vunpack.c.l.b16 %v4006
  %v4286 = vunpack.c.h.b16 %v4006
  %v4287 = vunpack.c.l.b16 %v4007
  %v4288 = vunpack.c.h.b16 %v4007
  %v4289 = vunpack.c.l.b16 %v4008
  %v4290 = vunpack.c.h.b16 %v4008
  %v4291 = vunpack.c.l.b16 %v4009
  %v4292 = vunpack.c.h.b16 %v4009
  %v4293 = vunpack.c.l.b16 %v4010
  %v4294 = vunpack.c.h.b16 %v4010
  %v4295 = vunpack.c.l.b16 %v4011
  %v4296 = vunpack.c.h.b16 %v4011
  %v4297 = vunpack.c.l.b16 %v4012
  %v4298 = vunpack.c.h.b16 %v4012
  %v4299 = vunpack.c.l.b16 %v4013
  %v4300 = vunpack.c.h.b16 %v4013
  %v4301 = vunpack.c.l.b16 %v4014
  %v4302 = vunpack.c.h.b16 %v4014
  %v4303 = vunpack.c.l.b16 %v4015
  %v4304 = vunpack.c.h.b16 %v4015
  %v4305 = vunpack.c.l.b16 %v4016
  %v4306 = vunpack.c.h.b16 %v4016
  %v4307 = vunpack.c.l.b16 %v4017
  %v4308 = vunpack.c.h.b16 %v4017
  %v4309 = vunpack.c.l.b16 %v4018
  %v4310 = vunpack.c.h.b16 %v4018
  %v4311 = vunpack.c.l.b16 %v4019
  %v4312 = vunpack.c.h.b16 %v4019
  %v4313 = vunpack.c.l.b16 %v4020
  %v4314 = vunpack.c.h.b16 %v4020
  %v4315 = vunpack.c.l.b16 %v4021
  %v4316 = vunpack.c.h.b16 %v4021
  %v4317 = vunpack.c.l.b16 %v4022
  %v4318 = vunpack.c.h.b16 %v4022
  %v4319 = vunpack.c.l.b16 %v4023
  %v4320 = vunpack.c.h.b16 %v4023
  %v4321 = vunpack.c.l.b16 %v4024
  %v4322 = vunpack.c.h.b16 %v4024
  %v4323 = vunpack.c.l.b16 %v4025
  %v4324 = vunpack.c.h.b16 %v4025
  %v4325 = vunpack.c.l.b16 %v4026
  %v4326 = vunpack.c.h.b16 %v4026
  %v4327 = vunpack.c.l.b16 %v4027
  %v4328 = vunpack.c.h.b16 %v4027
  %v4329 = vunpack.c.l.b16 %v4028
  %v4330 = vunpack.c.h.b16 %v4028
  %v4331 = vunpack.c.l.b16 %v4029
  %v4332 = vunpack.c.h.b16 %v4029
  %v4333 = vunpack.c.l.b16 %v4030
  %v4334 = vunpack.c.h.b16 %v4030
  %v4335 = vunpack.c.l.b16 %v4031
  %v4336 = vunpack.c.h.b16 %v4031
  %v4337 = vunpack.c.l.b16 %v4032
  %v4338 = vunpack.c.h.b16 %v4032
  %v4339 = vunpack.c.l.b16 %v4033
  %v4340 = vunpack.c.h.b16 %v4033
  %v4341 = vunpack.c.l.b16 %v4034
  %v4342 = vunpack.c.h.b16 %v4034
  %v4343 = vunpack.c.l.b16 %v4035
  %v4344 = vunpack.c.h.b16 %v4035
  %v4345 = vunpack.c.l.b16 %v4036
  %v4346 = vunpack.c.h.b16 %v4036
  %v4347 = vunpack.c.l.b16 %v4037
  %v4348 = vunpack.c.h.b16 %v4037
  %v4349 = vunpack.c.l.b16 %v4038
  %v4350 = vunpack.c.h.b16 %v4038
  %v4351 = vunpack.c.l.b16 %v4039
  %v4352 = vunpack.c.h.b16 %v4039
  %v4353 = vunpack.c.l.b16 %v4040
  %v4354 = vunpack.c.h.b16 %v4040
  %v4355 = vunpack.c.l.b16 %v4041
  %v4356 = vunpack.c.h.b16 %v4041
  %v4357 = vunpack.c.l.b16 %v4042
  %v4358 = vunpack.c.h.b16 %v4042
  %v4359 = vunpack.c.l.b16 %v4043
  %v4360 = vunpack.c.h.b16 %v4043
  %v4361 = vunpack.c.l.b16 %v4044
  %v4362 = vunpack.c.h.b16 %v4044
  %v4363 = vunpack.c.l.b16 %v4045
  %v4364 = vunpack.c.h.b16 %v4045
  %v4365 = vunpack.c.l.b16 %v4046
  %v4366 = vunpack.c.h.b16 %v4046
  %v4367 = vunpack.c.l.b16 %v4047
  %v4368 = vunpack.c.h.b16 %v4047
  %v4369 = vunpack.c.l.b16 %v4048
  %v4370 = vunpack.c.h.b16 %v4048
  %v4371 = vunpack.c.l.b16 %v4049
  %v4372 = vunpack.c.h.b16 %v4049
  %v4373 = vunpack.c.l.b16 %v4050
  %v4374 = vunpack.c.h.b16 %v4050
  %v4375 = vunpack.c.l.b16 %v4051
  %v4376 = vunpack.c.h.b16 %v4051
  %v4377 = vunpack.c.l.b16 %v4052
  %v4378 = vunpack.c.h.b16 %v4052
  %v4379 = vunpack.c.l.b16 %v4053
  %v4380 = vunpack.c.h.b16 %v4053
  %v4381 = vunpack.c.l.b16 %v4054
  %v4382 = vunpack.c.h.b16 %v4054
  %v4383 = vunpack.c.l.b16 %v4055
  %v4384 = vunpack.c.h.b16 %v4055
  %v4385 = vunpack.c.l.b16 %v4056
  %v4386 = vunpack.c.h.b16 %v4056
  %v4387 = vunpack.c.l.b16 %v4057
  %v4388 = vunpack.c.h.b16 %v4057
  %v4389 = vunpack.c.l.b16 %v4058
  %v4390 = vunpack.c.h.b16 %v4058
  %v4391 = vunpack.c.l.b16 %v4059
  %v4392 = vunpack.c.h.b16 %v4059
  %v4393 = vunpack.c.l.b16 %v4060
  %v4394 = vunpack.c.h.b16 %v4060
  %v4395 = vunpack.c.l.b16 %v4061
  %v4396 = vunpack.c.h.b16 %v4061
  %v4397 = vunpack.c.l.b16 %v4062
  %v4398 = vunpack.c.h.b16 %v4062
  %v4399 = vunpack.c.l.b16 %v4063
  %v4400 = vunpack.c.h.b16 %v4063
  %v4401 = vunpack.c.l.b16 %v4064
  %v4402 = vunpack.c.h.b16 %v4064
  %v4403 = vunpack.c.l.b16 %v4065
  %v4404 = vunpack.c.h.b16 %v4065
  %v4405 = vunpack.c.l.b16 %v4066
  %v4406 = vunpack.c.h.b16 %v4066
  %v4407 = vunpack.c.l.b16 %v4067
  %v4408 = vunpack.c.h.b16 %v4067
  %v4409 = vunpack.c.l.b16 %v4068
  %v4410 = vunpack.c.h.b16 %v4068
  %v4411 = vunpack.c.l.b16 %v4069
  %v4412 = vunpack.c.h.b16 %v4069
  %v4413 = vunpack.c.l.b16 %v4070
  %v4414 = vunpack.c.h.b16 %v4070
  %v4415 = vunpack.c.l.b16 %v4071
  %v4416 = vunpack.c.h.b16 %v4071
  %v4417 = vunpack.c.l.b16 %v4072
  %v4418 = vunpack.c.h.b16 %v4072
  %v4419 = vunpack.c.l.b16 %v4073
  %v4420 = vunpack.c.h.b16 %v4073
  %v4421 = vunpack.c.l.b16 %v4074
  %v4422 = vunpack.c.h.b16 %v4074
  %v4423 = vunpack.c.l.b16 %v4075
  %v4424 = vunpack.c.h.b16 %v4075
  %v4425 = vunpack.c.l.b16 %v4076
  %v4426 = vunpack.c.h.b16 %v4076
  %v4427 = vunpack.c.l.b16 %v4077
  %v4428 = vunpack.c.h.b16 %v4077
  %v4429 = vunpack.c.l.b16 %v4078
  %v4430 = vunpack.c.h.b16 %v4078
  %v4431 = vunpack.c.l.b16 %v4079
  %v4432 = vunpack.c.h.b16 %v4079
  %v4433 = vunpack.c.l.b16 %v4080
  %v4434 = vunpack.c.h.b16 %v4080
  %v4435 = vunpack.c.l.b16 %v4081
  %v4436 = vunpack.c.h.b16 %v4081
  %v4437 = vunpack.c.l.b16 %v4082
  %v4438 = vunpack.c.h.b16 %v4082
  %v4439 = vunpack.c.l.b16 %v4083
  %v4440 = vunpack.c.h.b16 %v4083
  %v4441 = vunpack.c.l.b16 %v4084
  %v4442 = vunpack.c.h.b16 %v4084
  %v4443 = vunpack.c.l.b16 %v4085
  %v4444 = vunpack.c.h.b16 %v4085
  %v4445 = vunpack.c.l.b16 %v4086
  %v4446 = vunpack.c.h.b16 %v4086
  %v4447 = vunpack.c.l.b16 %v4087
  %v4448 = vunpack.c.h.b16 %v4087
  %v4449 = vunpack.c.l.b16 %v4088
  %v4450 = vunpack.c.h.b16 %v4088
  %v4451 = vunpack.c.l.b16 %v4089
  %v4452 = vunpack.c.h.b16 %v4089
  %v4453 = vunpack.c.l.b16 %v4090
  %v4454 = vunpack.c.h.b16 %v4090
  %v4455 = vunpack.c.l.b16 %v4091
  %v4456 = vunpack.c.h.b16 %v4091
  %v4457 = vunpack.c.l.b16 %v4092
  %v4458 = vunpack.c.h.b16 %v4092
  %v4459 = vunpack.c.l.b16 %v4093
  %v4460 = vunpack.c.h.b16 %v4093
  %v4461 = vunpack.c.l.b16 %v4094
  %v4462 = vunpack.c.h.b16 %v4094
  %v4463 = vunpack.c.l.b16 %v4095
  %v4464 = vunpack.c.h.b16 %v4095
  %v4465 = vunpack.c.l.b16 %v4096
  %v4466 = vunpack.c.h.b16 %v4096
  %v4467 = vunpack.c.l.b16 %v4097
  %v4468 = vunpack.c.h.b16 %v4097
  %v4469 = vunpack.c.l.b16 %v4098
  %v4470 = vunpack.c.h.b16 %v4098
  %v4471 = vunpack.c.l.b16 %v4099
  %v4472 = vunpack.c.h.b16 %v4099
  %v4473 = vunpack.c.l.b16 %v4100
  %v4474 = vunpack.c.h.b16 %v4100
  %v4475 = vunpack.c.l.b16 %v4101
  %v4476 = vunpack.c.h.b16 %v4101
  %v4477 = vunpack.c.l.b16 %v4102
  %v4478 = vunpack.c.h.b16 %v4102
  %v4479 = vunpack.c.l.b16 %v4103
  %v4480 = vunpack.c.h.b16 %v4103
  %v4481 = vunpack.c.l.b16 %v4104
  %v4482 = vunpack.c.h.b16 %v4104
  %v4483 = vunpack.c.l.b16 %v4105
  %v4484 = vunpack.c.h.b16 %v4105
  %v4485 = vunpack.c.l.b16 %v4106
  %v4486 = vunpack.c.h.b16 %v4106
  %v4487 = vunpack.c.l.b16 %v4107
  %v4488 = vunpack.c.h.b16 %v4107
  %v4489 = vunpack.c.l.b16 %v4108
  %v4490 = vunpack.c.h.b16 %v4108
  %v4491 = vunpack.c.l.b16 %v4109
  %v4492 = vunpack.c.h.b16 %v4109
  %v4493 = vunpack.c.l.b16 %v4110
  %v4494 = vunpack.c.h.b16 %v4110
  %v4495 = vunpack.c.l.b16 %v4111
  %v4496 = vunpack.c.h.b16 %v4111
  %v4497 = vunpack.c.l.b16 %v4112
  %v4498 = vunpack.c.h.b16 %v4112
  %v4499 = vunpack.c.l.b16 %v4113
  %v4500 = vunpack.c.h.b16 %v4113
  %v4501 = vunpack.c.l.b16 %v4114
  %v4502 = vunpack.c.h.b16 %v4114
  %v4503 = vunpack.c.l.b16 %v4115
  %v4504 = vunpack.c.h.b16 %v4115
  %v4505 = vunpack.c.l.b16 %v4116
  %v4506 = vunpack.c.h.b16 %v4116
  %v4507 = vunpack.c.l.b16 %v4117
  %v4508 = vunpack.c.h.b16 %v4117
  %v4509 = vunpack.c.l.b16 %v4118
  %v4510 = vunpack.c.h.b16 %v4118
  %v4511 = vunpack.c.l.b16 %v4119
  %v4512 = vunpack.c.h.b16 %v4119
  %v4513 = vunpack.c.l.b16 %v4120
  %v4514 = vunpack.c.h.b16 %v4120
  %v4515 = vunpack.c.l.b16 %v4121
  %v4516 = vunpack.c.h.b16 %v4121
  %v4517 = vunpack.c.l.b16 %v4122
  %v4518 = vunpack.c.h.b16 %v4122
  %v4519 = vpack.c.b16 %v4265, %v4263
  %v4520 = vpack.c.b16 %v4266, %v4264
  %v4521 = vpack.c.b16 %v4269, %v4267
  %v4522 = vpack.c.b16 %v4270, %v4268
  %v4523 = vpack.c.b16 %v4273, %v4271
  %v4524 = vpack.c.b16 %v4274, %v4272
  %v4525 = vpack.c.b16 %v4277, %v4275
  %v4526 = vpack.c.b16 %v4278, %v4276
  %v4527 = vpack.c.b16 %v4281, %v4279
  %v4528 = vpack.c.b16 %v4282, %v4280
  %v4529 = vpack.c.b16 %v4285, %v4283
  %v4530 = vpack.c.b16 %v4286, %v4284
  %v4531 = vpack.c.b16 %v4289, %v4287
  %v4532 = vpack.c.b16 %v4290, %v4288
  %v4533 = vpack.c.b16 %v4293, %v4291
  %v4534 = vpack.c.b16 %v4294, %v4292
  %v4535 = vpack.c.b16 %v4297, %v4295
  %v4536 = vpack.c.b16 %v4298, %v4296
  %v4537 = vpack.c.b16 %v4301, %v4299
  %v4538 = vpack.c.b16 %v4302, %v4300
  %v4539 = vpack.c.b16 %v4305, %v4303
  %v4540 = vpack.c.b16 %v4306, %v4304
  %v4541 = vpack.c.b16 %v4309, %v4307
  %v4542 = vpack.c.b16 %v4310, %v4308
  %v4543 = vpack.c.b16 %v4313, %v4311
  %v4544 = vpack.c.b16 %v4314, %v4312
  %v4545 = vpack.c.b16 %v4317, %v4315
  %v4546 = vpack.c.b16 %v4318, %v4316
  %v4547 = vpack.c.b16 %v4321, %v4319
  %v4548 = vpack.c.b16 %v4322, %v4320
  %v4549 = vpack.c.b16 %v4325, %v4323
  %v4550 = vpack.c.b16 %v4326, %v4324
  %v4551 = vpack.c.b16 %v4329, %v4327
  %v4552 = vpack.c.b16 %v4330, %v4328
  %v4553 = vpack.c.b16 %v4333, %v4331
  %v4554 = vpack.c.b16 %v4334, %v4332
  %v4555 = vpack.c.b16 %v4337, %v4335
  %v4556 = vpack.c.b16 %v4338, %v4336
  %v4557 = vpack.c.b16 %v4341, %v4339
  %v4558 = vpack.c.b16 %v4342, %v4340
  %v4559 = vpack.c.b16 %v4345, %v4343
  %v4560 = vpack.c.b16 %v4346, %v4344
  %v4561 = vpack.c.b16 %v4349, %v4347
  %v4562 = vpack.c.b16 %v4350, %v4348
  %v4563 = vpack.c.b16 %v4353, %v4351
  %v4564 = vpack.c.b16 %v4354, %v4352
  %v4565 = vpack.c.b16 %v4357, %v4355
  %v4566 = vpack.c.b16 %v4358, %v4356
  %v4567 = vpack.c.b16 %v4361, %v4359
  %v4568 = vpack.c.b16 %v4362, %v4360
  %v4569 = vpack.c.b16 %v4365, %v4363
  %v4570 = vpack.c.b16 %v4366, %v4364
  %v4571 = vpack.c.b16 %v4369, %v4367
  %v4572 = vpack.c.b16 %v4370, %v4368
  %v4573 = vpack.c.b16 %v4373, %v4371
  %v4574 = vpack.c.b16 %v4374, %v4372
  %v4575 = vpack.c.b16 %v4377, %v4375
  %v4576 = vpack.c.b16 %v4378, %v4376
  %v4577 = vpack.c.b16 %v4381, %v4379
  %v4578 = vpack.c.b16 %v4382, %v4380
  %v4579 = vpack.c.b16 %v4385, %v4383
  %v4580 = vpack.c.b16 %v4386, %v4384
  %v4581 = vpack.c.b16 %v4389, %v4387
  %v4582 = vpack.c.b16 %v4390, %v4388
  %v4583 = vpack.c.b16 %v4393, %v4391
  %v4584 = vpack.c.b16 %v4394, %v4392
  %v4585 = vpack.c.b16 %v4397, %v4395
  %v4586 = vpack.c.b16 %v4398, %v4396
  %v4587 = vpack.c.b16 %v4401, %v4399
  %v4588 = vpack.c.b16 %v4402, %v4400
  %v4589 = vpack.c.b16 %v4405, %v4403
  %v4590 = vpack.c.b16 %v4406, %v4404
  %v4591 = vpack.c.b16 %v4409, %v4407
  %v4592 = vpack.c.b16 %v4410, %v4408
  %v4593 = vpack.c.b16 %v4413, %v4411
  %v4594 = vpack.c.b16 %v4414, %v4412
  %v4595 = vpack.c.b16 %v4417, %v4415
  %v4596 = vpack.c.b16 %v4418, %v4416
  %v4597 = vpack.c.b16 %v4421, %v4419
  %v4598 = vpack.c.b16 %v4422, %v4420
  %v4599 = vpack.c.b16 %v4425, %v4423
  %v4600 = vpack.c.b16 %v4426, %v4424
  %v4601 = vpack.c.b16 %v4429, %v4427
  %v4602 = vpack.c.b16 %v4430, %v4428
  %v4603 = vpack.c.b16 %v4433, %v4431
  %v4604 = vpack.c.b16 %v4434, %v4432
  %v4605 = vpack.c.b16 %v4437, %v4435
  %v4606 = vpack.c.b16 %v4438, %v4436
  %v4607 = vpack.c.b16 %v4441, %v4439
  %v4608 = vpack.c.b16 %v4442, %v4440
  %v4609 = vpack.c.b16 %v4445, %v4443
  %v4610 = vpack.c.b16 %v4446, %v4444
  %v4611 = vpack.c.b16 %v4449, %v4447
  %v4612 = vpack.c.b16 %v4450, %v4448
  %v4613 = vpack.c.b16 %v4453, %v4451
  %v4614 = vpack.c.b16 %v4454, %v4452
  %v4615 = vpack.c.b16 %v4457, %v4455
  %v4616 = vpack.c.b16 %v4458, %v4456
  %v4617 = vpack.c.b16 %v4461, %v4459
  %v4618 = vpack.c.b16 %v4462, %v4460
  %v4619 = vpack.c.b16 %v4465, %v4463
  %v4620 = vpack.c.b16 %v4466, %v4464
  %v4621 = vpack.c.b16 %v4469, %v4467
  %v4622 = vpack.c.b16 %v4470, %v4468
  %v4623 = vpack.c.b16 %v4473, %v4471
  %v4624 = vpack.c.b16 %v4474, %v4472
  %v4625 = vpack.c.b16 %v4477, %v4475
  %v4626 = vpack.c.b16 %v4478, %v4476
  %v4627 = vpack.c.b16 %v4481, %v4479
  %v4628 = vpack.c.b16 %v4482, %v4480
  %v4629 = vpack.c.b16 %v4485, %v4483
  %v4630 = vpack.c.b16 %v4486, %v4484
  %v4631 = vpack.c.b16 %v4489, %v4487
  %v4632 = vpack.c.b16 %v4490, %v4488
  %v4633 = vpack.c.b16 %v4493, %v4491
  %v4634 = vpack.c.b16 %v4494, %v4492
  %v4635 = vpack.c.b16 %v4497, %v4495
  %v4636 = vpack.c.b16 %v4498, %v4496
  %v4637 = vpack.c.b16 %v4501, %v4499
  %v4638 = vpack.c.b16 %v4502, %v4500
  %v4639 = vpack.c.b16 %v4505, %v4503
  %v4640 = vpack.c.b16 %v4506, %v4504
  %v4641 = vpack.c.b16 %v4509, %v4507
  %v4642 = vpack.c.b16 %v4510, %v4508
  %v4643 = vpack.c.b16 %v4513, %v4511
  %v4644 = vpack.c.b16 %v4514, %v4512
  %v4645 = vpack.c.b16 %v4517, %v4515
  %v4646 = vpack.c.b16 %v4518, %v4516
  %4775 = vmatprep.subr.bf16.mxu0 %v4520
  %4776 = vmatpush1.bf16.msra.mxu0 %v4519
  %4777 = vmatprep.subr.bf16.mxu0 %v4522
  %4778 = vmatpush1.bf16.msra.mxu0 %v4521
  %4779 = vmatprep.subr.bf16.mxu0 %v4524
  %4780 = vmatpush1.bf16.msra.mxu0 %v4523
  %4781 = vmatprep.subr.bf16.mxu0 %v4526
  %4782 = vmatpush1.bf16.msra.mxu0 %v4525
  %4783 = vmatprep.subr.bf16.mxu0 %v4528
  %4784 = vmatpush1.bf16.msra.mxu0 %v4527
  %4785 = vmatprep.subr.bf16.mxu0 %v4530
  %4786 = vmatpush1.bf16.msra.mxu0 %v4529
  %4787 = vmatprep.subr.bf16.mxu0 %v4532
  %4788 = vmatpush1.bf16.msra.mxu0 %v4531
  %4789 = vmatprep.subr.bf16.mxu0 %v4534
  %4790 = vmatpush1.bf16.msra.mxu0 %v4533
  %4791 = vmatprep.subr.bf16.mxu0 %v4536
  %4792 = vmatpush1.bf16.msra.mxu0 %v4535
  %4793 = vmatprep.subr.bf16.mxu0 %v4538
  %4794 = vmatpush1.bf16.msra.mxu0 %v4537
  %4795 = vmatprep.subr.bf16.mxu0 %v4540
  %4796 = vmatpush1.bf16.msra.mxu0 %v4539
  %4797 = vmatprep.subr.bf16.mxu0 %v4542
  %4798 = vmatpush1.bf16.msra.mxu0 %v4541
  %4799 = vmatprep.subr.bf16.mxu0 %v4544
  %4800 = vmatpush1.bf16.msra.mxu0 %v4543
  %4801 = vmatprep.subr.bf16.mxu0 %v4546
  %4802 = vmatpush1.bf16.msra.mxu0 %v4545
  %4803 = vmatprep.subr.bf16.mxu0 %v4548
  %4804 = vmatpush1.bf16.msra.mxu0 %v4547
  %4805 = vmatprep.subr.bf16.mxu0 %v4550
  %4806 = vmatpush1.bf16.msra.mxu0 %v4549
  %4807 = vmatprep.mubr.bf16.mxu0 %v3988
  %4808 = vmatmul.mubr.bf16.gmra.mrb[0].mxu0 %v3987
  %v4809 = vpop.f32.mrb[0].mxu0
  %v4810 = vadd.f32 %v4128, %v4809
  %v4811 = vpop.f32.mrb[0].mxu0
  %v4812 = vadd.f32 %v4132, %v4811
  %v4813 = vpop.f32.mrb[0].mxu0
  %v4814 = vpop.f32.mrb[0].mxu0
  %4815 = vdwg.mxu0
  %4816 = vmatprep.subr.bf16.mxu0 %v4552
  %4817 = vmatpush1.bf16.msra.mxu0 %v4551
  %4818 = vmatprep.subr.bf16.mxu0 %v4554
  %4819 = vmatpush1.bf16.msra.mxu0 %v4553
  %4820 = vmatprep.subr.bf16.mxu0 %v4556
  %4821 = vmatpush1.bf16.msra.mxu0 %v4555
  %4822 = vmatprep.subr.bf16.mxu0 %v4558
  %4823 = vmatpush1.bf16.msra.mxu0 %v4557
  %4824 = vmatprep.subr.bf16.mxu0 %v4560
  %4825 = vmatpush1.bf16.msra.mxu0 %v4559
  %4826 = vmatprep.subr.bf16.mxu0 %v4562
  %4827 = vmatpush1.bf16.msra.mxu0 %v4561
  %4828 = vmatprep.subr.bf16.mxu0 %v4564
  %4829 = vmatpush1.bf16.msra.mxu0 %v4563
  %4830 = vmatprep.subr.bf16.mxu0 %v4566
  %4831 = vmatpush1.bf16.msra.mxu0 %v4565
  %4832 = vmatprep.subr.bf16.mxu0 %v4568
  %4833 = vmatpush1.bf16.msra.mxu0 %v4567
  %4834 = vmatprep.subr.bf16.mxu0 %v4570
  %4835 = vmatpush1.bf16.msra.mxu0 %v4569
  %4836 = vmatprep.subr.bf16.mxu0 %v4572
  %4837 = vmatpush1.bf16.msra.mxu0 %v4571
  %4838 = vmatprep.subr.bf16.mxu0 %v4574
  %4839 = vmatpush1.bf16.msra.mxu0 %v4573
  %4840 = vmatprep.subr.bf16.mxu0 %v4576
  %4841 = vmatpush1.bf16.msra.mxu0 %v4575
  %4842 = vmatprep.subr.bf16.mxu0 %v4578
  %4843 = vmatpush1.bf16.msra.mxu0 %v4577
  %4844 = vmatprep.subr.bf16.mxu0 %v4580
  %4845 = vmatpush1.bf16.msra.mxu0 %v4579
  %4846 = vmatprep.subr.bf16.mxu0 %v4582
  %4847 = vmatpush1.bf16.msra.mxu0 %v4581
  %4848 = vmatprep.mubr.bf16.mxu0 %v3990
  %4849 = vmatmul.mubr.bf16.gmra.mrb[0].mxu0 %v3989
  %v4850 = vpop.f32.mrb[0].mxu0
  %v4851 = vadd.f32 %v4810, %v4850
  %v4852 = vpop.f32.mrb[0].mxu0
  %v4853 = vadd.f32 %v4812, %v4852
  %v4854 = vpop.f32.mrb[0].mxu0
  %v4855 = vpop.f32.mrb[0].mxu0
  %4856 = vdwg.mxu0
  %4857 = vmatprep.subr.bf16.mxu0 %v4584
  %4858 = vmatpush1.bf16.msra.mxu0 %v4583
  %4859 = vmatprep.subr.bf16.mxu0 %v4586
  %4860 = vmatpush1.bf16.msra.mxu0 %v4585
  %4861 = vmatprep.subr.bf16.mxu0 %v4588
  %4862 = vmatpush1.bf16.msra.mxu0 %v4587
  %4863 = vmatprep.subr.bf16.mxu0 %v4590
  %4864 = vmatpush1.bf16.msra.mxu0 %v4589
  %4865 = vmatprep.subr.bf16.mxu0 %v4592
  %4866 = vmatpush1.bf16.msra.mxu0 %v4591
  %4867 = vmatprep.subr.bf16.mxu0 %v4594
  %4868 = vmatpush1.bf16.msra.mxu0 %v4593
  %4869 = vmatprep.subr.bf16.mxu0 %v4596
  %4870 = vmatpush1.bf16.msra.mxu0 %v4595
  %4871 = vmatprep.subr.bf16.mxu0 %v4598
  %4872 = vmatpush1.bf16.msra.mxu0 %v4597
  %4873 = vmatprep.subr.bf16.mxu0 %v4600
  %4874 = vmatpush1.bf16.msra.mxu0 %v4599
  %4875 = vmatprep.subr.bf16.mxu0 %v4602
  %4876 = vmatpush1.bf16.msra.mxu0 %v4601
  %4877 = vmatprep.subr.bf16.mxu0 %v4604
  %4878 = vmatpush1.bf16.msra.mxu0 %v4603
  %4879 = vmatprep.subr.bf16.mxu0 %v4606
  %4880 = vmatpush1.bf16.msra.mxu0 %v4605
  %4881 = vmatprep.subr.bf16.mxu0 %v4608
  %4882 = vmatpush1.bf16.msra.mxu0 %v4607
  %4883 = vmatprep.subr.bf16.mxu0 %v4610
  %4884 = vmatpush1.bf16.msra.mxu0 %v4609
  %4885 = vmatprep.subr.bf16.mxu0 %v4612
  %4886 = vmatpush1.bf16.msra.mxu0 %v4611
  %4887 = vmatprep.subr.bf16.mxu0 %v4614
  %4888 = vmatpush1.bf16.msra.mxu0 %v4613
  %4889 = vmatprep.mubr.bf16.mxu0 %v3992
  %4890 = vmatmul.mubr.bf16.gmra.mrb[0].mxu0 %v3991
  %v4891 = vpop.f32.mrb[0].mxu0
  %v4892 = vadd.f32 %v4851, %v4891
  %v4893 = vpop.f32.mrb[0].mxu0
  %v4894 = vadd.f32 %v4853, %v4893
  %v4895 = vpop.f32.mrb[0].mxu0
  %v4896 = vpop.f32.mrb[0].mxu0
  %4897 = vdwg.mxu0
  %4898 = vmatprep.subr.bf16.mxu0 %v4616
  %4899 = vmatpush1.bf16.msra.mxu0 %v4615
  %4900 = vmatprep.subr.bf16.mxu0 %v4618
  %4901 = vmatpush1.bf16.msra.mxu0 %v4617
  %4902 = vmatprep.subr.bf16.mxu0 %v4620
  %4903 = vmatpush1.bf16.msra.mxu0 %v4619
  %4904 = vmatprep.subr.bf16.mxu0 %v4622
  %4905 = vmatpush1.bf16.msra.mxu0 %v4621
  %4906 = vmatprep.subr.bf16.mxu0 %v4624
  %4907 = vmatpush1.bf16.msra.mxu0 %v4623
  %4908 = vmatprep.subr.bf16.mxu0 %v4626
  %4909 = vmatpush1.bf16.msra.mxu0 %v4625
  %4910 = vmatprep.subr.bf16.mxu0 %v4628
  %4911 = vmatpush1.bf16.msra.mxu0 %v4627
  %4912 = vmatprep.subr.bf16.mxu0 %v4630
  %4913 = vmatpush1.bf16.msra.mxu0 %v4629
  %4914 = vmatprep.subr.bf16.mxu0 %v4632
  %4915 = vmatpush1.bf16.msra.mxu0 %v4631
  %4916 = vmatprep.subr.bf16.mxu0 %v4634
  %4917 = vmatpush1.bf16.msra.mxu0 %v4633
  %4918 = vmatprep.subr.bf16.mxu0 %v4636
  %4919 = vmatpush1.bf16.msra.mxu0 %v4635
  %4920 = vmatprep.subr.bf16.mxu0 %v4638
  %4921 = vmatpush1.bf16.msra.mxu0 %v4637
  %4922 = vmatprep.subr.bf16.mxu0 %v4640
  %4923 = vmatpush1.bf16.msra.mxu0 %v4639
  %4924 = vmatprep.subr.bf16.mxu0 %v4642
  %4925 = vmatpush1.bf16.msra.mxu0 %v4641
  %4926 = vmatprep.subr.bf16.mxu0 %v4644
  %4927 = vmatpush1.bf16.msra.mxu0 %v4643
  %4928 = vmatprep.subr.bf16.mxu0 %v4646
  %4929 = vmatpush1.bf16.msra.mxu0 %v4645
  %4930 = vmatprep.mubr.bf16.mxu0 %v3994
  %4931 = vmatmul.mubr.bf16.gmra.mrb[0].mxu0 %v3993
  %v4932 = vpop.f32.mrb[0].mxu0
  %v4933 = vadd.f32 %v4892, %v4932
  %v4934 = vpop.f32.mrb[0].mxu0
  %v4935 = vadd.f32 %v4894, %v4934
  %v4936 = vpop.f32.mrb[0].mxu0
  %v4937 = vpop.f32.mrb[0].mxu0
  %4938 = vdwg.mxu0
  %v4939 = vmax.f32 %v4933, 0.0
  %v4940 = vmax.f32 %v4935, 0.0
  %v4941 = vpack.c.bf16 %v4939, %v4939
  %v4942 = vpack.c.bf16 %v4940, %v4940
  %v4943 = vld [vmem:[%s8] sm:$0xf]
  %v4944 = vld [vmem:[%s8 + $0x4] sm:$0xf]
  %v4945 = vld [vmem:[%s8 + $0x8] sm:$0xf]
  %v4946 = vld [vmem:[%s8 + $0xc] sm:$0xf]
  %v4947 = vld [vmem:[%s8 + $0x10] sm:$0xf]
  %v4948 = vld [vmem:[%s8 + $0x14] sm:$0xf]
  %v4949 = vld [vmem:[%s8 + $0x18] sm:$0xf]
  %v4950 = vld [vmem:[%s8 + $0x1c] sm:$0xf]
  %v4951 = vld [vmem:[%s8 + $0x20] sm:$0xf]
  %v4952 = vld [vmem:[%s8 + $0x24] sm:$0xf]
  %v4953 = vld [vmem:[%s8 + $0x28] sm:$0xf]
  %v4954 = vld [vmem:[%s8 + $0x2c] sm:$0xf]
  %v4955 = vld [vmem:[%s8 + $0x30] sm:$0xf]
  %v4956 = vld [vmem:[%s8 + $0x34] sm:$0xf]
  %v4957 = vld [vmem:[%s8 + $0x38] sm:$0xf]
  %v4958 = vld [vmem:[%s8 + $0x3c] sm:$0xf]
  %v4959 = vld [vmem:[%s8 + $0x40] sm:$0xf]
  %v4960 = vld [vmem:[%s8 + $0x44] sm:$0xf]
  %v4961 = vld [vmem:[%s8 + $0x48] sm:$0xf]
  %v4962 = vld [vmem:[%s8 + $0x4c] sm:$0xf]
  %v4963 = vld [vmem:[%s8 + $0x50] sm:$0xf]
  %v4964 = vld [vmem:[%s8 + $0x54] sm:$0xf]
  %v4965 = vld [vmem:[%s8 + $0x58] sm:$0xf]
  %v4966 = vld [vmem:[%s8 + $0x5c] sm:$0xf]
  %v4967 = vld [vmem:[%s8 + $0x60] sm:$0xf]
  %v4968 = vld [vmem:[%s8 + $0x64] sm:$0xf]
  %v4969 = vld [vmem:[%s8 + $0x68] sm:$0xf]
  %v4970 = vld [vmem:[%s8 + $0x6c] sm:$0xf]
  %v4971 = vld [vmem:[%s8 + $0x70] sm:$0xf]
  %v4972 = vld [vmem:[%s8 + $0x74] sm:$0xf]
  %v4973 = vld [vmem:[%s8 + $0x78] sm:$0xf]
  %v4974 = vld [vmem:[%s8 + $0x7c] sm:$0xf]
  %v4975 = vld [vmem:[%s14 + $0x1c] sm:$0x1]
  %v4977 = vlaneseq
  %v4978 = vshrl.u32 %v4977, 7
  %v4979 = vsub.s32 0, %v4978
  %v4980 = vrot.slane %v4975, %v4979
  %v5014 = vunpack.c.l.b16 %v4943
  %v5015 = vunpack.c.l.b16 %v4944
  %v5016 = vunpack.c.l.b16 %v4945
  %v5017 = vunpack.c.l.b16 %v4946
  %v5018 = vunpack.c.l.b16 %v4947
  %v5019 = vunpack.c.l.b16 %v4948
  %v5020 = vunpack.c.l.b16 %v4949
  %v5021 = vunpack.c.l.b16 %v4950
  %v5022 = vunpack.c.l.b16 %v4951
  %v5023 = vunpack.c.l.b16 %v4952
  %v5024 = vunpack.c.l.b16 %v4953
  %v5025 = vunpack.c.l.b16 %v4954
  %v5026 = vunpack.c.l.b16 %v4955
  %v5027 = vunpack.c.l.b16 %v4956
  %v5028 = vunpack.c.l.b16 %v4957
  %v5029 = vunpack.c.l.b16 %v4958
  %v5030 = vunpack.c.l.b16 %v4959
  %v5031 = vunpack.c.l.b16 %v4960
  %v5032 = vunpack.c.l.b16 %v4961
  %v5033 = vunpack.c.l.b16 %v4962
  %v5034 = vunpack.c.l.b16 %v4963
  %v5035 = vunpack.c.l.b16 %v4964
  %v5036 = vunpack.c.l.b16 %v4965
  %v5037 = vunpack.c.l.b16 %v4966
  %v5038 = vunpack.c.l.b16 %v4967
  %v5039 = vunpack.c.l.b16 %v4968
  %v5040 = vunpack.c.l.b16 %v4969
  %v5041 = vunpack.c.l.b16 %v4970
  %v5042 = vunpack.c.l.b16 %v4971
  %v5043 = vunpack.c.l.b16 %v4972
  %v5044 = vunpack.c.l.b16 %v4973
  %v5045 = vunpack.c.l.b16 %v4974
  %v5046 = vpack.c.b16 %v5015, %v5014
  %v5047 = vpack.c.b16 %v5017, %v5016
  %v5048 = vpack.c.b16 %v5019, %v5018
  %v5049 = vpack.c.b16 %v5021, %v5020
  %v5050 = vpack.c.b16 %v5023, %v5022
  %v5051 = vpack.c.b16 %v5025, %v5024
  %v5052 = vpack.c.b16 %v5027, %v5026
  %v5053 = vpack.c.b16 %v5029, %v5028
  %v5054 = vpack.c.b16 %v5031, %v5030
  %v5055 = vpack.c.b16 %v5033, %v5032
  %v5056 = vpack.c.b16 %v5035, %v5034
  %v5057 = vpack.c.b16 %v5037, %v5036
  %v5058 = vpack.c.b16 %v5039, %v5038
  %v5059 = vpack.c.b16 %v5041, %v5040
  %v5060 = vpack.c.b16 %v5043, %v5042
  %v5061 = vpack.c.b16 %v5045, %v5044
  %5078 = vmatprep.subr.bf16.mxu0 0
  %5079 = vmatpush1.bf16.msra.mxu0 %v5046
  %5080 = vmatprep.subr.bf16.mxu0 0
  %5081 = vmatpush1.bf16.msra.mxu0 %v5047
  %5082 = vmatprep.subr.bf16.mxu0 0
  %5083 = vmatpush1.bf16.msra.mxu0 %v5048
  %5084 = vmatprep.subr.bf16.mxu0 0
  %5085 = vmatpush1.bf16.msra.mxu0 %v5049
  %5086 = vmatprep.subr.bf16.mxu0 0
  %5087 = vmatpush1.bf16.msra.mxu0 %v5050
  %5088 = vmatprep.subr.bf16.mxu0 0
  %5089 = vmatpush1.bf16.msra.mxu0 %v5051
  %5090 = vmatprep.subr.bf16.mxu0 0
  %5091 = vmatpush1.bf16.msra.mxu0 %v5052
  %5092 = vmatprep.subr.bf16.mxu0 0
  %5093 = vmatpush1.bf16.msra.mxu0 %v5053
  %5094 = vmatprep.subr.bf16.mxu0 0
  %5095 = vmatpush1.bf16.msra.mxu0 %v5054
  %5096 = vmatprep.subr.bf16.mxu0 0
  %5097 = vmatpush1.bf16.msra.mxu0 %v5055
  %5098 = vmatprep.subr.bf16.mxu0 0
  %5099 = vmatpush1.bf16.msra.mxu0 %v5056
  %5100 = vmatprep.subr.bf16.mxu0 0
  %5101 = vmatpush1.bf16.msra.mxu0 %v5057
  %5102 = vmatprep.subr.bf16.mxu0 0
  %5103 = vmatpush1.bf16.msra.mxu0 %v5058
  %5104 = vmatprep.subr.bf16.mxu0 0
  %5105 = vmatpush1.bf16.msra.mxu0 %v5059
  %5106 = vmatprep.subr.bf16.mxu0 0
  %5107 = vmatpush1.bf16.msra.mxu0 %v5060
  %5108 = vmatprep.subr.bf16.mxu0 0
  %5109 = vmatpush1.bf16.msra.mxu0 %v5061
  %5110 = vmatprep.mubr.bf16.mxu0 %v4942
  %5111 = vmatmul.mubr.bf16.gmra.mrb[0].mxu0 %v4941
  %v5112 = vpop.f32.mrb[0].mxu0
  %v5113 = vadd.f32 %v4980, %v5112
  %v5114 = vpop.f32.mrb[0].mxu0
  %v5115 = vpop.f32.mrb[0].mxu0
  %v5116 = vpop.f32.mrb[0].mxu0
  %5117 = vdwg.mxu0
  %v5118 = vpack.c.bf16 %v5113, %v5113
  %v5119 = vld [vmem:[%s9] sm:$0xff]
  %v5120 = vld [vmem:[%s9 + $0x8] sm:$0xff]
  %v5121 = vld [vmem:[%s9 + $0x10] sm:$0xff]
  %v5122 = vld [vmem:[%s9 + $0x18] sm:$0xff]
  %v5123 = vld [vmem:[%s9 + $0x20] sm:$0xff]
  %v5124 = vld [vmem:[%s9 + $0x28] sm:$0xff]
  %v5125 = vld [vmem:[%s9 + $0x30] sm:$0xff]
  %v5126 = vld [vmem:[%s9 + $0x38] sm:$0xff]
  %v5127 = vld [vmem:[%s9 + $0x40] sm:$0xff]
  %v5128 = vld [vmem:[%s9 + $0x48] sm:$0xf]
  %v5129 = vld [vmem:[%s9 + $0x4c] sm:$0xff]
  %v5130 = vld [vmem:[%s9 + $0x54] sm:$0xff]
  %v5131 = vld [vmem:[%s9 + $0x5c] sm:$0xff]
  %v5132 = vld [vmem:[%s9 + $0x64] sm:$0xff]
  %v5133 = vld [vmem:[%s9 + $0x6c] sm:$0xff]
  %v5134 = vld [vmem:[%s9 + $0x74] sm:$0xff]
  %v5135 = vld [vmem:[%s9 + $0x7c] sm:$0xff]
  %v5136 = vld [vmem:[%s9 + $0x84] sm:$0xff]
  %v5137 = vld [vmem:[%s9 + $0x8c] sm:$0xff]
  %v5138 = vld [vmem:[%s9 + $0x94] sm:$0xf]
  %v5139 = vld [vmem:[%s9 + $0x98] sm:$0xff]
  %v5140 = vld [vmem:[%s9 + $0xa0] sm:$0xff]
  %v5141 = vld [vmem:[%s9 + $0xa8] sm:$0xff]
  %v5142 = vld [vmem:[%s9 + $0xb0] sm:$0xff]
  %v5143 = vld [vmem:[%s9 + $0xb8] sm:$0xff]
  %v5144 = vld [vmem:[%s9 + $0xc0] sm:$0xff]
  %v5145 = vld [vmem:[%s9 + $0xc8] sm:$0xff]
  %v5146 = vld [vmem:[%s9 + $0xd0] sm:$0xff]
  %v5147 = vld [vmem:[%s9 + $0xd8] sm:$0xff]
  %v5148 = vld [vmem:[%s9 + $0xe0] sm:$0xf]
  %v5149 = vld [vmem:[%s9 + $0xe4] sm:$0xff]
  %v5150 = vld [vmem:[%s9 + $0xec] sm:$0xff]
  %v5151 = vld [vmem:[%s9 + $0xf4] sm:$0xff]
  %v5152 = vld [vmem:[%s9 + $0xfc] sm:$0xff]
  %v5153 = vld [vmem:[%s9 + $0x104] sm:$0xff]
  %v5154 = vld [vmem:[%s9 + $0x10c] sm:$0xff]
  %v5155 = vld [vmem:[%s9 + $0x114] sm:$0xff]
  %v5156 = vld [vmem:[%s9 + $0x11c] sm:$0xff]
  %v5157 = vld [vmem:[%s9 + $0x124] sm:$0xff]
  %v5158 = vld [vmem:[%s9 + $0x12c] sm:$0xf]
  %v5159 = vld [vmem:[%s9 + $0x130] sm:$0xff]
  %v5160 = vld [vmem:[%s9 + $0x138] sm:$0xff]
  %v5161 = vld [vmem:[%s9 + $0x140] sm:$0xff]
  %v5162 = vld [vmem:[%s9 + $0x148] sm:$0xff]
  %v5163 = vld [vmem:[%s9 + $0x150] sm:$0xff]
  %v5164 = vld [vmem:[%s9 + $0x158] sm:$0xff]
  %v5165 = vld [vmem:[%s9 + $0x160] sm:$0xff]
  %v5166 = vld [vmem:[%s9 + $0x168] sm:$0xff]
  %v5167 = vld [vmem:[%s9 + $0x170] sm:$0xff]
  %v5168 = vld [vmem:[%s9 + $0x178] sm:$0xf]
  %v5169 = vld [vmem:[%s9 + $0x17c] sm:$0x33]
  %v5170 = vld [vmem:[%s9 + $0x184] sm:$0x33]
  %v5171 = vld [vmem:[%s9 + $0x18c] sm:$0x33]
  %v5172 = vld [vmem:[%s9 + $0x194] sm:$0x33]
  %v5173 = vld [vmem:[%s9 + $0x19c] sm:$0x33]
  %v5174 = vld [vmem:[%s9 + $0x1a4] sm:$0x33]
  %v5175 = vld [vmem:[%s9 + $0x1ac] sm:$0x33]
  %v5176 = vld [vmem:[%s9 + $0x1b4] sm:$0x33]
  %v5177 = vld [vmem:[%s9 + $0x1bc] sm:$0x33]
  %v5178 = vld [vmem:[%s9 + $0x1c4] sm:$0x3]
  %v5179 = vld [vmem:[%s14 + $0x1d] sm:$0xff]
  %v5180 = vld [vmem:[%s14 + $0x25] sm:$0xff]
  %v5181 = vld [vmem:[%s14 + $0x2d] sm:$0x7]
  %v5185 = vlaneseq
  %v5186 = vshrl.u32 %v5185, 7
  %v5187 = vsub.s32 0, %v5186
  %v5188 = vrot.slane %v5179, %v5187
  %v5189 = vlaneseq
  %v5190 = vshrl.u32 %v5189, 7
  %v5191 = vsub.s32 1, %v5190
  %v5192 = vrot.slane %v5179, %v5191
  %v5193 = vlaneseq
  %v5194 = vshrl.u32 %v5193, 7
  %v5195 = vsub.s32 2, %v5194
  %v5196 = vrot.slane %v5179, %v5195
  %v5197 = vlaneseq
  %v5198 = vshrl.u32 %v5197, 7
  %v5199 = vsub.s32 3, %v5198
  %v5200 = vrot.slane %v5179, %v5199
  %v5201 = vlaneseq
  %v5202 = vshrl.u32 %v5201, 7
  %v5203 = vsub.s32 4, %v5202
  %v5204 = vrot.slane %v5179, %v5203
  %v5205 = vlaneseq
  %v5206 = vshrl.u32 %v5205, 7
  %v5207 = vsub.s32 5, %v5206
  %v5208 = vrot.slane %v5179, %v5207
  %v5209 = vlaneseq
  %v5210 = vshrl.u32 %v5209, 7
  %v5211 = vsub.s32 6, %v5210
  %v5212 = vrot.slane %v5179, %v5211
  %v5213 = vlaneseq
  %v5214 = vshrl.u32 %v5213, 7
  %v5215 = vsub.s32 7, %v5214
  %v5216 = vrot.slane %v5179, %v5215
  %v5217 = vlaneseq
  %v5218 = vshrl.u32 %v5217, 7
  %v5219 = vsub.s32 0, %v5218
  %v5220 = vrot.slane %v5180, %v5219
  %v5221 = vlaneseq
  %v5222 = vshrl.u32 %v5221, 7
  %v5223 = vsub.s32 1, %v5222
  %v5224 = vrot.slane %v5180, %v5223
  %v5225 = vlaneseq
  %v5226 = vshrl.u32 %v5225, 7
  %v5227 = vsub.s32 2, %v5226
  %v5228 = vrot.slane %v5180, %v5227
  %v5229 = vlaneseq
  %v5230 = vshrl.u32 %v5229, 7
  %v5231 = vsub.s32 3, %v5230
  %v5232 = vrot.slane %v5180, %v5231
  %v5233 = vlaneseq
  %v5234 = vshrl.u32 %v5233, 7
  %v5235 = vsub.s32 4, %v5234
  %v5236 = vrot.slane %v5180, %v5235
  %v5237 = vlaneseq
  %v5238 = vshrl.u32 %v5237, 7
  %v5239 = vsub.s32 5, %v5238
  %v5240 = vrot.slane %v5180, %v5239
  %v5241 = vlaneseq
  %v5242 = vshrl.u32 %v5241, 7
  %v5243 = vsub.s32 6, %v5242
  %v5244 = vrot.slane %v5180, %v5243
  %v5245 = vlaneseq
  %v5246 = vshrl.u32 %v5245, 7
  %v5247 = vsub.s32 7, %v5246
  %v5248 = vrot.slane %v5180, %v5247
  %v5249 = vlaneseq
  %v5250 = vshrl.u32 %v5249, 7
  %v5251 = vsub.s32 0, %v5250
  %v5252 = vrot.slane %v5181, %v5251
  %v5253 = vlaneseq
  %v5254 = vshrl.u32 %v5253, 7
  %v5255 = vsub.s32 1, %v5254
  %v5256 = vrot.slane %v5181, %v5255
  %v5257 = vlaneseq
  %v5258 = vshrl.u32 %v5257, 7
  %v5259 = vsub.s32 2, %v5258
  %v5260 = vrot.slane %v5181, %v5259
  %v5340 = vunpack.c.l.b16 %v5119
  %v5341 = vunpack.c.h.b16 %v5119
  %v5342 = vunpack.c.l.b16 %v5120
  %v5343 = vunpack.c.h.b16 %v5120
  %v5344 = vunpack.c.l.b16 %v5121
  %v5345 = vunpack.c.h.b16 %v5121
  %v5346 = vunpack.c.l.b16 %v5122
  %v5347 = vunpack.c.h.b16 %v5122
  %v5348 = vunpack.c.l.b16 %v5123
  %v5349 = vunpack.c.h.b16 %v5123
  %v5350 = vunpack.c.l.b16 %v5124
  %v5351 = vunpack.c.h.b16 %v5124
  %v5352 = vunpack.c.l.b16 %v5125
  %v5353 = vunpack.c.h.b16 %v5125
  %v5354 = vunpack.c.l.b16 %v5126
  %v5355 = vunpack.c.h.b16 %v5126
  %v5356 = vunpack.c.l.b16 %v5127
  %v5357 = vunpack.c.h.b16 %v5127
  %v5358 = vunpack.c.l.b16 %v5128
  %v5359 = vunpack.c.l.b16 %v5129
  %v5360 = vunpack.c.h.b16 %v5129
  %v5361 = vunpack.c.l.b16 %v5130
  %v5362 = vunpack.c.h.b16 %v5130
  %v5363 = vunpack.c.l.b16 %v5131
  %v5364 = vunpack.c.h.b16 %v5131
  %v5365 = vunpack.c.l.b16 %v5132
  %v5366 = vunpack.c.h.b16 %v5132
  %v5367 = vunpack.c.l.b16 %v5133
  %v5368 = vunpack.c.h.b16 %v5133
  %v5369 = vunpack.c.l.b16 %v5134
  %v5370 = vunpack.c.h.b16 %v5134
  %v5371 = vunpack.c.l.b16 %v5135
  %v5372 = vunpack.c.h.b16 %v5135
  %v5373 = vunpack.c.l.b16 %v5136
  %v5374 = vunpack.c.h.b16 %v5136
  %v5375 = vunpack.c.l.b16 %v5137
  %v5376 = vunpack.c.h.b16 %v5137
  %v5377 = vunpack.c.l.b16 %v5138
  %v5378 = vunpack.c.l.b16 %v5139
  %v5379 = vunpack.c.h.b16 %v5139
  %v5380 = vunpack.c.l.b16 %v5140
  %v5381 = vunpack.c.h.b16 %v5140
  %v5382 = vunpack.c.l.b16 %v5141
  %v5383 = vunpack.c.h.b16 %v5141
  %v5384 = vunpack.c.l.b16 %v5142
  %v5385 = vunpack.c.h.b16 %v5142
  %v5386 = vunpack.c.l.b16 %v5143
  %v5387 = vunpack.c.h.b16 %v5143
  %v5388 = vunpack.c.l.b16 %v5144
  %v5389 = vunpack.c.h.b16 %v5144
  %v5390 = vunpack.c.l.b16 %v5145
  %v5391 = vunpack.c.h.b16 %v5145
  %v5392 = vunpack.c.l.b16 %v5146
  %v5393 = vunpack.c.h.b16 %v5146
  %v5394 = vunpack.c.l.b16 %v5147
  %v5395 = vunpack.c.h.b16 %v5147
  %v5396 = vunpack.c.l.b16 %v5148
  %v5397 = vunpack.c.l.b16 %v5149
  %v5398 = vunpack.c.h.b16 %v5149
  %v5399 = vunpack.c.l.b16 %v5150
  %v5400 = vunpack.c.h.b16 %v5150
  %v5401 = vunpack.c.l.b16 %v5151
  %v5402 = vunpack.c.h.b16 %v5151
  %v5403 = vunpack.c.l.b16 %v5152
  %v5404 = vunpack.c.h.b16 %v5152
  %v5405 = vunpack.c.l.b16 %v5153
  %v5406 = vunpack.c.h.b16 %v5153
  %v5407 = vunpack.c.l.b16 %v5154
  %v5408 = vunpack.c.h.b16 %v5154
  %v5409 = vunpack.c.l.b16 %v5155
  %v5410 = vunpack.c.h.b16 %v5155
  %v5411 = vunpack.c.l.b16 %v5156
  %v5412 = vunpack.c.h.b16 %v5156
  %v5413 = vunpack.c.l.b16 %v5157
  %v5414 = vunpack.c.h.b16 %v5157
  %v5415 = vunpack.c.l.b16 %v5158
  %v5416 = vunpack.c.l.b16 %v5159
  %v5417 = vunpack.c.h.b16 %v5159
  %v5418 = vunpack.c.l.b16 %v5160
  %v5419 = vunpack.c.h.b16 %v5160
  %v5420 = vunpack.c.l.b16 %v5161
  %v5421 = vunpack.c.h.b16 %v5161
  %v5422 = vunpack.c.l.b16 %v5162
  %v5423 = vunpack.c.h.b16 %v5162
  %v5424 = vunpack.c.l.b16 %v5163
  %v5425 = vunpack.c.h.b16 %v5163
  %v5426 = vunpack.c.l.b16 %v5164
  %v5427 = vunpack.c.h.b16 %v5164
  %v5428 = vunpack.c.l.b16 %v5165
  %v5429 = vunpack.c.h.b16 %v5165
  %v5430 = vunpack.c.l.b16 %v5166
  %v5431 = vunpack.c.h.b16 %v5166
  %v5432 = vunpack.c.l.b16 %v5167
  %v5433 = vunpack.c.h.b16 %v5167
  %v5434 = vunpack.c.l.b16 %v5168
  %v5435 = vunpack.c.l.b16 %v5169
  %v5436 = vunpack.c.h.b16 %v5169
  %v5437 = vunpack.c.l.b16 %v5170
  %v5438 = vunpack.c.h.b16 %v5170
  %v5439 = vunpack.c.l.b16 %v5171
  %v5440 = vunpack.c.h.b16 %v5171
  %v5441 = vunpack.c.l.b16 %v5172
  %v5442 = vunpack.c.h.b16 %v5172
  %v5443 = vunpack.c.l.b16 %v5173
  %v5444 = vunpack.c.h.b16 %v5173
  %v5445 = vunpack.c.l.b16 %v5174
  %v5446 = vunpack.c.h.b16 %v5174
  %v5447 = vunpack.c.l.b16 %v5175
  %v5448 = vunpack.c.h.b16 %v5175
  %v5449 = vunpack.c.l.b16 %v5176
  %v5450 = vunpack.c.h.b16 %v5176
  %v5451 = vunpack.c.l.b16 %v5177
  %v5452 = vunpack.c.h.b16 %v5177
  %v5453 = vunpack.c.l.b16 %v5178
  %v5454 = vpack.c.b16 %v5359, %v5340
  %v5455 = vpack.c.b16 %v5360, %v5341
  %v5456 = vpack.c.b16 %v5361, %v5342
  %v5457 = vpack.c.b16 %v5362, %v5343
  %v5458 = vpack.c.b16 %v5363, %v5344
  %v5459 = vpack.c.b16 %v5364, %v5345
  %v5460 = vpack.c.b16 %v5365, %v5346
  %v5461 = vpack.c.b16 %v5366, %v5347
  %v5462 = vpack.c.b16 %v5367, %v5348
  %v5463 = vpack.c.b16 %v5368, %v5349
  %v5464 = vpack.c.b16 %v5369, %v5350
  %v5465 = vpack.c.b16 %v5370, %v5351
  %v5466 = vpack.c.b16 %v5371, %v5352
  %v5467 = vpack.c.b16 %v5372, %v5353
  %v5468 = vpack.c.b16 %v5373, %v5354
  %v5469 = vpack.c.b16 %v5374, %v5355
  %v5470 = vpack.c.b16 %v5375, %v5356
  %v5471 = vpack.c.b16 %v5376, %v5357
  %v5472 = vpack.c.b16 %v5377, %v5358
  %v5473 = vpack.c.b16 %v5397, %v5378
  %v5474 = vpack.c.b16 %v5398, %v5379
  %v5475 = vpack.c.b16 %v5399, %v5380
  %v5476 = vpack.c.b16 %v5400, %v5381
  %v5477 = vpack.c.b16 %v5401, %v5382
  %v5478 = vpack.c.b16 %v5402, %v5383
  %v5479 = vpack.c.b16 %v5403, %v5384
  %v5480 = vpack.c.b16 %v5404, %v5385
  %v5481 = vpack.c.b16 %v5405, %v5386
  %v5482 = vpack.c.b16 %v5406, %v5387
  %v5483 = vpack.c.b16 %v5407, %v5388
  %v5484 = vpack.c.b16 %v5408, %v5389
  %v5485 = vpack.c.b16 %v5409, %v5390
  %v5486 = vpack.c.b16 %v5410, %v5391
  %v5487 = vpack.c.b16 %v5411, %v5392
  %v5488 = vpack.c.b16 %v5412, %v5393
  %v5489 = vpack.c.b16 %v5413, %v5394
  %v5490 = vpack.c.b16 %v5414, %v5395
  %v5491 = vpack.c.b16 %v5415, %v5396
  %v5492 = vpack.c.b16 %v5435, %v5416
  %v5493 = vpack.c.b16 %v5436, %v5417
  %v5494 = vpack.c.b16 %v5437, %v5418
  %v5495 = vpack.c.b16 %v5438, %v5419
  %v5496 = vpack.c.b16 %v5439, %v5420
  %v5497 = vpack.c.b16 %v5440, %v5421
  %v5498 = vpack.c.b16 %v5441, %v5422
  %v5499 = vpack.c.b16 %v5442, %v5423
  %v5500 = vpack.c.b16 %v5443, %v5424
  %v5501 = vpack.c.b16 %v5444, %v5425
  %v5502 = vpack.c.b16 %v5445, %v5426
  %v5503 = vpack.c.b16 %v5446, %v5427
  %v5504 = vpack.c.b16 %v5447, %v5428
  %v5505 = vpack.c.b16 %v5448, %v5429
  %v5506 = vpack.c.b16 %v5449, %v5430
  %v5507 = vpack.c.b16 %v5450, %v5431
  %v5508 = vpack.c.b16 %v5451, %v5432
  %v5509 = vpack.c.b16 %v5452, %v5433
  %v5510 = vpack.c.b16 %v5453, %v5434
  %vm5549 = vcmask 351232
  %v5551 = vsel %vm5549, %v5118, 0
  %v5554 = vand.u32 %v5492, %v397
  %v5557 = vand.u32 %v5493, %v397
  %v5560 = vand.u32 %v5494, %v397
  %v5563 = vand.u32 %v5495, %v397
  %v5566 = vand.u32 %v5496, %v397
  %v5569 = vand.u32 %v5497, %v397
  %v5572 = vand.u32 %v5498, %v397
  %v5575 = vand.u32 %v5499, %v397
  %v5578 = vand.u32 %v5500, %v397
  %v5581 = vand.u32 %v5501, %v397
  %v5584 = vand.u32 %v5502, %v397
  %v5587 = vand.u32 %v5503, %v397
  %v5590 = vand.u32 %v5504, %v397
  %v5593 = vand.u32 %v5505, %v397
  %v5596 = vand.u32 %v5506, %v397
  %v5599 = vand.u32 %v5507, %v397
  %v5602 = vand.u32 %v5508, %v397
  %v5605 = vand.u32 %v5509, %v397
  %v5608 = vand.u32 %v5510, %v397
  %5610 = vmatprep.subr.bf16.mxu0 %v5455
  %5611 = vmatpush1.bf16.msra.mxu0 %v5454
  %5612 = vmatprep.subr.bf16.mxu0 %v5474
  %5613 = vmatpush1.bf16.msra.mxu0 %v5473
  %5614 = vmatprep.subr.bf16.mxu0 %v5557
  %5615 = vmatpush1.bf16.msra.mxu0 %v5554
  %5616 = vmatprep.subr.bf16.mxu0 0
  %5617 = vmatpush1.bf16.msra.mxu0 0
  %5618 = vmatprep.subr.bf16.mxu0 0
  %5619 = vmatpush1.bf16.msra.mxu0 0
  %5620 = vmatprep.subr.bf16.mxu0 0
  %5621 = vmatpush1.bf16.msra.mxu0 0
  %5622 = vmatprep.subr.bf16.mxu0 0
  %5623 = vmatpush1.bf16.msra.mxu0 0
  %5624 = vmatprep.subr.bf16.mxu0 0
  %5625 = vmatpush1.bf16.msra.mxu0 0
  %5626 = vmatprep.subr.bf16.mxu0 0
  %5627 = vmatpush1.bf16.msra.mxu0 0
  %5628 = vmatprep.subr.bf16.mxu0 0
  %5629 = vmatpush1.bf16.msra.mxu0 0
  %5630 = vmatprep.subr.bf16.mxu0 0
  %5631 = vmatpush1.bf16.msra.mxu0 0
  %5632 = vmatprep.subr.bf16.mxu0 0
  %5633 = vmatpush1.bf16.msra.mxu0 0
  %5634 = vmatprep.subr.bf16.mxu0 0
  %5635 = vmatpush1.bf16.msra.mxu0 0
  %5636 = vmatprep.subr.bf16.mxu0 0
  %5637 = vmatpush1.bf16.msra.mxu0 0
  %5638 = vmatprep.subr.bf16.mxu0 0
  %5639 = vmatpush1.bf16.msra.mxu0 0
  %5640 = vmatprep.subr.bf16.mxu0 0
  %5641 = vmatpush1.bf16.msra.mxu0 0
  %5642 = vmatprep.mubr.bf16.mxu0 0
  %5643 = vmatmul.mubr.bf16.gmra.mrb[0].mxu0 %v5551
  %v5644 = vpop.f32.mrb[0].mxu0
  %v5645 = vadd.f32 %v5188, %v5644
  %v5646 = vpop.f32.mrb[0].mxu0
  %v5647 = vadd.f32 %v5192, %v5646
  %v5648 = vpop.f32.mrb[0].mxu0
  %v5649 = vpop.f32.mrb[0].mxu0
  %5650 = vdwg.mxu0
  %5651 = vmatprep.subr.bf16.mxu0 %v5457
  %5652 = vmatpush1.bf16.msra.mxu0 %v5456
  %5653 = vmatprep.subr.bf16.mxu0 %v5476
  %5654 = vmatpush1.bf16.msra.mxu0 %v5475
  %5655 = vmatprep.subr.bf16.mxu0 %v5563
  %5656 = vmatpush1.bf16.msra.mxu0 %v5560
  %5657 = vmatprep.subr.bf16.mxu0 0
  %5658 = vmatpush1.bf16.msra.mxu0 0
  %5659 = vmatprep.subr.bf16.mxu0 0
  %5660 = vmatpush1.bf16.msra.mxu0 0
  %5661 = vmatprep.subr.bf16.mxu0 0
  %5662 = vmatpush1.bf16.msra.mxu0 0
  %5663 = vmatprep.subr.bf16.mxu0 0
  %5664 = vmatpush1.bf16.msra.mxu0 0
  %5665 = vmatprep.subr.bf16.mxu0 0
  %5666 = vmatpush1.bf16.msra.mxu0 0
  %5667 = vmatprep.subr.bf16.mxu0 0
  %5668 = vmatpush1.bf16.msra.mxu0 0
  %5669 = vmatprep.subr.bf16.mxu0 0
  %5670 = vmatpush1.bf16.msra.mxu0 0
  %5671 = vmatprep.subr.bf16.mxu0 0
  %5672 = vmatpush1.bf16.msra.mxu0 0
  %5673 = vmatprep.subr.bf16.mxu0 0
  %5674 = vmatpush1.bf16.msra.mxu0 0
  %5675 = vmatprep.subr.bf16.mxu0 0
  %5676 = vmatpush1.bf16.msra.mxu0 0
  %5677 = vmatprep.subr.bf16.mxu0 0
  %5678 = vmatpush1.bf16.msra.mxu0 0
  %5679 = vmatprep.subr.bf16.mxu0 0
  %5680 = vmatpush1.bf16.msra.mxu0 0
  %5681 = vmatprep.subr.bf16.mxu0 0
  %5682 = vmatpush1.bf16.msra.mxu0 0
  %5683 = vmatprep.mubr.bf16.mxu0 0
  %5684 = vmatmul.mubr.bf16.gmra.mrb[0].mxu0 %v5551
  %v5685 = vpop.f32.mrb[0].mxu0
  %v5686 = vadd.f32 %v5196, %v5685
  %v5687 = vpop.f32.mrb[0].mxu0
  %v5688 = vadd.f32 %v5200, %v5687
  %v5689 = vpop.f32.mrb[0].mxu0
  %v5690 = vpop.f32.mrb[0].mxu0
  %5691 = vdwg.mxu0
  %5692 = vmatprep.subr.bf16.mxu0 %v5459
  %5693 = vmatpush1.bf16.msra.mxu0 %v5458
  %5694 = vmatprep.subr.bf16.mxu0 %v5478
  %5695 = vmatpush1.bf16.msra.mxu0 %v5477
  %5696 = vmatprep.subr.bf16.mxu0 %v5569
  %5697 = vmatpush1.bf16.msra.mxu0 %v5566
  %5698 = vmatprep.subr.bf16.mxu0 0
  %5699 = vmatpush1.bf16.msra.mxu0 0
  %5700 = vmatprep.subr.bf16.mxu0 0
  %5701 = vmatpush1.bf16.msra.mxu0 0
  %5702 = vmatprep.subr.bf16.mxu0 0
  %5703 = vmatpush1.bf16.msra.mxu0 0
  %5704 = vmatprep.subr.bf16.mxu0 0
  %5705 = vmatpush1.bf16.msra.mxu0 0
  %5706 = vmatprep.subr.bf16.mxu0 0
  %5707 = vmatpush1.bf16.msra.mxu0 0
  %5708 = vmatprep.subr.bf16.mxu0 0
  %5709 = vmatpush1.bf16.msra.mxu0 0
  %5710 = vmatprep.subr.bf16.mxu0 0
  %5711 = vmatpush1.bf16.msra.mxu0 0
  %5712 = vmatprep.subr.bf16.mxu0 0
  %5713 = vmatpush1.bf16.msra.mxu0 0
  %5714 = vmatprep.subr.bf16.mxu0 0
  %5715 = vmatpush1.bf16.msra.mxu0 0
  %5716 = vmatprep.subr.bf16.mxu0 0
  %5717 = vmatpush1.bf16.msra.mxu0 0
  %5718 = vmatprep.subr.bf16.mxu0 0
  %5719 = vmatpush1.bf16.msra.mxu0 0
  %5720 = vmatprep.subr.bf16.mxu0 0
  %5721 = vmatpush1.bf16.msra.mxu0 0
  %5722 = vmatprep.subr.bf16.mxu0 0
  %5723 = vmatpush1.bf16.msra.mxu0 0
  %5724 = vmatprep.mubr.bf16.mxu0 0
  %5725 = vmatmul.mubr.bf16.gmra.mrb[0].mxu0 %v5551
  %v5726 = vpop.f32.mrb[0].mxu0
  %v5727 = vadd.f32 %v5204, %v5726
  %v5728 = vpop.f32.mrb[0].mxu0
  %v5729 = vadd.f32 %v5208, %v5728
  %v5730 = vpop.f32.mrb[0].mxu0
  %v5731 = vpop.f32.mrb[0].mxu0
  %5732 = vdwg.mxu0
  %5733 = vmatprep.subr.bf16.mxu0 %v5461
  %5734 = vmatpush1.bf16.msra.mxu0 %v5460
  %5735 = vmatprep.subr.bf16.mxu0 %v5480
  %5736 = vmatpush1.bf16.msra.mxu0 %v5479
  %5737 = vmatprep.subr.bf16.mxu0 %v5575
  %5738 = vmatpush1.bf16.msra.mxu0 %v5572
  %5739 = vmatprep.subr.bf16.mxu0 0
  %5740 = vmatpush1.bf16.msra.mxu0 0
  %5741 = vmatprep.subr.bf16.mxu0 0
  %5742 = vmatpush1.bf16.msra.mxu0 0
  %5743 = vmatprep.subr.bf16.mxu0 0
  %5744 = vmatpush1.bf16.msra.mxu0 0
  %5745 = vmatprep.subr.bf16.mxu0 0
  %5746 = vmatpush1.bf16.msra.mxu0 0
  %5747 = vmatprep.subr.bf16.mxu0 0
  %5748 = vmatpush1.bf16.msra.mxu0 0
  %5749 = vmatprep.subr.bf16.mxu0 0
  %5750 = vmatpush1.bf16.msra.mxu0 0
  %5751 = vmatprep.subr.bf16.mxu0 0
  %5752 = vmatpush1.bf16.msra.mxu0 0
  %5753 = vmatprep.subr.bf16.mxu0 0
  %5754 = vmatpush1.bf16.msra.mxu0 0
  %5755 = vmatprep.subr.bf16.mxu0 0
  %5756 = vmatpush1.bf16.msra.mxu0 0
  %5757 = vmatprep.subr.bf16.mxu0 0
  %5758 = vmatpush1.bf16.msra.mxu0 0
  %5759 = vmatprep.subr.bf16.mxu0 0
  %5760 = vmatpush1.bf16.msra.mxu0 0
  %5761 = vmatprep.subr.bf16.mxu0 0
  %5762 = vmatpush1.bf16.msra.mxu0 0
  %5763 = vmatprep.subr.bf16.mxu0 0
  %5764 = vmatpush1.bf16.msra.mxu0 0
  %5765 = vmatprep.mubr.bf16.mxu0 0
  %5766 = vmatmul.mubr.bf16.gmra.mrb[0].mxu0 %v5551
  %v5767 = vpop.f32.mrb[0].mxu0
  %v5768 = vadd.f32 %v5212, %v5767
  %v5769 = vpop.f32.mrb[0].mxu0
  %v5770 = vadd.f32 %v5216, %v5769
  %v5771 = vpop.f32.mrb[0].mxu0
  %v5772 = vpop.f32.mrb[0].mxu0
  %5773 = vdwg.mxu0
  %5774 = vmatprep.subr.bf16.mxu0 %v5463
  %5775 = vmatpush1.bf16.msra.mxu0 %v5462
  %5776 = vmatprep.subr.bf16.mxu0 %v5482
  %5777 = vmatpush1.bf16.msra.mxu0 %v5481
  %5778 = vmatprep.subr.bf16.mxu0 %v5581
  %5779 = vmatpush1.bf16.msra.mxu0 %v5578
  %5780 = vmatprep.subr.bf16.mxu0 0
  %5781 = vmatpush1.bf16.msra.mxu0 0
  %5782 = vmatprep.subr.bf16.mxu0 0
  %5783 = vmatpush1.bf16.msra.mxu0 0
  %5784 = vmatprep.subr.bf16.mxu0 0
  %5785 = vmatpush1.bf16.msra.mxu0 0
  %5786 = vmatprep.subr.bf16.mxu0 0
  %5787 = vmatpush1.bf16.msra.mxu0 0
  %5788 = vmatprep.subr.bf16.mxu0 0
  %5789 = vmatpush1.bf16.msra.mxu0 0
  %5790 = vmatprep.subr.bf16.mxu0 0
  %5791 = vmatpush1.bf16.msra.mxu0 0
  %5792 = vmatprep.subr.bf16.mxu0 0
  %5793 = vmatpush1.bf16.msra.mxu0 0
  %5794 = vmatprep.subr.bf16.mxu0 0
  %5795 = vmatpush1.bf16.msra.mxu0 0
  %5796 = vmatprep.subr.bf16.mxu0 0
  %5797 = vmatpush1.bf16.msra.mxu0 0
  %5798 = vmatprep.subr.bf16.mxu0 0
  %5799 = vmatpush1.bf16.msra.mxu0 0
  %5800 = vmatprep.subr.bf16.mxu0 0
  %5801 = vmatpush1.bf16.msra.mxu0 0
  %5802 = vmatprep.subr.bf16.mxu0 0
  %5803 = vmatpush1.bf16.msra.mxu0 0
  %5804 = vmatprep.subr.bf16.mxu0 0
  %5805 = vmatpush1.bf16.msra.mxu0 0
  %5806 = vmatprep.mubr.bf16.mxu0 0
  %5807 = vmatmul.mubr.bf16.gmra.mrb[0].mxu0 %v5551
  %v5808 = vpop.f32.mrb[0].mxu0
  %v5809 = vadd.f32 %v5220, %v5808
  %v5810 = vpop.f32.mrb[0].mxu0
  %v5811 = vadd.f32 %v5224, %v5810
  %v5812 = vpop.f32.mrb[0].mxu0
  %v5813 = vpop.f32.mrb[0].mxu0
  %5814 = vdwg.mxu0
  %5815 = vmatprep.subr.bf16.mxu0 %v5465
  %5816 = vmatpush1.bf16.msra.mxu0 %v5464
  %5817 = vmatprep.subr.bf16.mxu0 %v5484
  %5818 = vmatpush1.bf16.msra.mxu0 %v5483
  %5819 = vmatprep.subr.bf16.mxu0 %v5587
  %5820 = vmatpush1.bf16.msra.mxu0 %v5584
  %5821 = vmatprep.subr.bf16.mxu0 0
  %5822 = vmatpush1.bf16.msra.mxu0 0
  %5823 = vmatprep.subr.bf16.mxu0 0
  %5824 = vmatpush1.bf16.msra.mxu0 0
  %5825 = vmatprep.subr.bf16.mxu0 0
  %5826 = vmatpush1.bf16.msra.mxu0 0
  %5827 = vmatprep.subr.bf16.mxu0 0
  %5828 = vmatpush1.bf16.msra.mxu0 0
  %5829 = vmatprep.subr.bf16.mxu0 0
  %5830 = vmatpush1.bf16.msra.mxu0 0
  %5831 = vmatprep.subr.bf16.mxu0 0
  %5832 = vmatpush1.bf16.msra.mxu0 0
  %5833 = vmatprep.subr.bf16.mxu0 0
  %5834 = vmatpush1.bf16.msra.mxu0 0
  %5835 = vmatprep.subr.bf16.mxu0 0
  %5836 = vmatpush1.bf16.msra.mxu0 0
  %5837 = vmatprep.subr.bf16.mxu0 0
  %5838 = vmatpush1.bf16.msra.mxu0 0
  %5839 = vmatprep.subr.bf16.mxu0 0
  %5840 = vmatpush1.bf16.msra.mxu0 0
  %5841 = vmatprep.subr.bf16.mxu0 0
  %5842 = vmatpush1.bf16.msra.mxu0 0
  %5843 = vmatprep.subr.bf16.mxu0 0
  %5844 = vmatpush1.bf16.msra.mxu0 0
  %5845 = vmatprep.subr.bf16.mxu0 0
  %5846 = vmatpush1.bf16.msra.mxu0 0
  %5847 = vmatprep.mubr.bf16.mxu0 0
  %5848 = vmatmul.mubr.bf16.gmra.mrb[0].mxu0 %v5551
  %v5849 = vpop.f32.mrb[0].mxu0
  %v5850 = vadd.f32 %v5228, %v5849
  %v5851 = vpop.f32.mrb[0].mxu0
  %v5852 = vadd.f32 %v5232, %v5851
  %v5853 = vpop.f32.mrb[0].mxu0
  %v5854 = vpop.f32.mrb[0].mxu0
  %5855 = vdwg.mxu0
  %5856 = vmatprep.subr.bf16.mxu0 %v5467
  %5857 = vmatpush1.bf16.msra.mxu0 %v5466
  %5858 = vmatprep.subr.bf16.mxu0 %v5486
  %5859 = vmatpush1.bf16.msra.mxu0 %v5485
  %5860 = vmatprep.subr.bf16.mxu0 %v5593
  %5861 = vmatpush1.bf16.msra.mxu0 %v5590
  %5862 = vmatprep.subr.bf16.mxu0 0
  %5863 = vmatpush1.bf16.msra.mxu0 0
  %5864 = vmatprep.subr.bf16.mxu0 0
  %5865 = vmatpush1.bf16.msra.mxu0 0
  %5866 = vmatprep.subr.bf16.mxu0 0
  %5867 = vmatpush1.bf16.msra.mxu0 0
  %5868 = vmatprep.subr.bf16.mxu0 0
  %5869 = vmatpush1.bf16.msra.mxu0 0
  %5870 = vmatprep.subr.bf16.mxu0 0
  %5871 = vmatpush1.bf16.msra.mxu0 0
  %5872 = vmatprep.subr.bf16.mxu0 0
  %5873 = vmatpush1.bf16.msra.mxu0 0
  %5874 = vmatprep.subr.bf16.mxu0 0
  %5875 = vmatpush1.bf16.msra.mxu0 0
  %5876 = vmatprep.subr.bf16.mxu0 0
  %5877 = vmatpush1.bf16.msra.mxu0 0
  %5878 = vmatprep.subr.bf16.mxu0 0
  %5879 = vmatpush1.bf16.msra.mxu0 0
  %5880 = vmatprep.subr.bf16.mxu0 0
  %5881 = vmatpush1.bf16.msra.mxu0 0
  %5882 = vmatprep.subr.bf16.mxu0 0
  %5883 = vmatpush1.bf16.msra.mxu0 0
  %5884 = vmatprep.subr.bf16.mxu0 0
  %5885 = vmatpush1.bf16.msra.mxu0 0
  %5886 = vmatprep.subr.bf16.mxu0 0
  %5887 = vmatpush1.bf16.msra.mxu0 0
  %5888 = vmatprep.mubr.bf16.mxu0 0
  %5889 = vmatmul.mubr.bf16.gmra.mrb[0].mxu0 %v5551
  %v5890 = vpop.f32.mrb[0].mxu0
  %v5891 = vadd.f32 %v5236, %v5890
  %v5892 = vpop.f32.mrb[0].mxu0
  %v5893 = vadd.f32 %v5240, %v5892
  %v5894 = vpop.f32.mrb[0].mxu0
  %v5895 = vpop.f32.mrb[0].mxu0
  %5896 = vdwg.mxu0
  %5897 = vmatprep.subr.bf16.mxu0 %v5469
  %5898 = vmatpush1.bf16.msra.mxu0 %v5468
  %5899 = vmatprep.subr.bf16.mxu0 %v5488
  %5900 = vmatpush1.bf16.msra.mxu0 %v5487
  %5901 = vmatprep.subr.bf16.mxu0 %v5599
  %5902 = vmatpush1.bf16.msra.mxu0 %v5596
  %5903 = vmatprep.subr.bf16.mxu0 0
  %5904 = vmatpush1.bf16.msra.mxu0 0
  %5905 = vmatprep.subr.bf16.mxu0 0
  %5906 = vmatpush1.bf16.msra.mxu0 0
  %5907 = vmatprep.subr.bf16.mxu0 0
  %5908 = vmatpush1.bf16.msra.mxu0 0
  %5909 = vmatprep.subr.bf16.mxu0 0
  %5910 = vmatpush1.bf16.msra.mxu0 0
  %5911 = vmatprep.subr.bf16.mxu0 0
  %5912 = vmatpush1.bf16.msra.mxu0 0
  %5913 = vmatprep.subr.bf16.mxu0 0
  %5914 = vmatpush1.bf16.msra.mxu0 0
  %5915 = vmatprep.subr.bf16.mxu0 0
  %5916 = vmatpush1.bf16.msra.mxu0 0
  %5917 = vmatprep.subr.bf16.mxu0 0
  %5918 = vmatpush1.bf16.msra.mxu0 0
  %5919 = vmatprep.subr.bf16.mxu0 0
  %5920 = vmatpush1.bf16.msra.mxu0 0
  %5921 = vmatprep.subr.bf16.mxu0 0
  %5922 = vmatpush1.bf16.msra.mxu0 0
  %5923 = vmatprep.subr.bf16.mxu0 0
  %5924 = vmatpush1.bf16.msra.mxu0 0
  %5925 = vmatprep.subr.bf16.mxu0 0
  %5926 = vmatpush1.bf16.msra.mxu0 0
  %5927 = vmatprep.subr.bf16.mxu0 0
  %5928 = vmatpush1.bf16.msra.mxu0 0
  %5929 = vmatprep.mubr.bf16.mxu0 0
  %5930 = vmatmul.mubr.bf16.gmra.mrb[0].mxu0 %v5551
  %v5931 = vpop.f32.mrb[0].mxu0
  %v5932 = vadd.f32 %v5244, %v5931
  %v5933 = vpop.f32.mrb[0].mxu0
  %v5934 = vadd.f32 %v5248, %v5933
  %v5935 = vpop.f32.mrb[0].mxu0
  %v5936 = vpop.f32.mrb[0].mxu0
  %5937 = vdwg.mxu0
  %5938 = vmatprep.subr.bf16.mxu0 %v5471
  %5939 = vmatpush1.bf16.msra.mxu0 %v5470
  %5940 = vmatprep.subr.bf16.mxu0 %v5490
  %5941 = vmatpush1.bf16.msra.mxu0 %v5489
  %5942 = vmatprep.subr.bf16.mxu0 %v5605
  %5943 = vmatpush1.bf16.msra.mxu0 %v5602
  %5944 = vmatprep.subr.bf16.mxu0 0
  %5945 = vmatpush1.bf16.msra.mxu0 0
  %5946 = vmatprep.subr.bf16.mxu0 0
  %5947 = vmatpush1.bf16.msra.mxu0 0
  %5948 = vmatprep.subr.bf16.mxu0 0
  %5949 = vmatpush1.bf16.msra.mxu0 0
  %5950 = vmatprep.subr.bf16.mxu0 0
  %5951 = vmatpush1.bf16.msra.mxu0 0
  %5952 = vmatprep.subr.bf16.mxu0 0
  %5953 = vmatpush1.bf16.msra.mxu0 0
  %5954 = vmatprep.subr.bf16.mxu0 0
  %5955 = vmatpush1.bf16.msra.mxu0 0
  %5956 = vmatprep.subr.bf16.mxu0 0
  %5957 = vmatpush1.bf16.msra.mxu0 0
  %5958 = vmatprep.subr.bf16.mxu0 0
  %5959 = vmatpush1.bf16.msra.mxu0 0
  %5960 = vmatprep.subr.bf16.mxu0 0
  %5961 = vmatpush1.bf16.msra.mxu0 0
  %5962 = vmatprep.subr.bf16.mxu0 0
  %5963 = vmatpush1.bf16.msra.mxu0 0
  %5964 = vmatprep.subr.bf16.mxu0 0
  %5965 = vmatpush1.bf16.msra.mxu0 0
  %5966 = vmatprep.subr.bf16.mxu0 0
  %5967 = vmatpush1.bf16.msra.mxu0 0
  %5968 = vmatprep.subr.bf16.mxu0 0
  %5969 = vmatpush1.bf16.msra.mxu0 0
  %5970 = vmatprep.mubr.bf16.mxu0 0
  %5971 = vmatmul.mubr.bf16.gmra.mrb[0].mxu0 %v5551
  %v5972 = vpop.f32.mrb[0].mxu0
  %v5973 = vadd.f32 %v5252, %v5972
  %v5974 = vpop.f32.mrb[0].mxu0
  %v5975 = vadd.f32 %v5256, %v5974
  %v5976 = vpop.f32.mrb[0].mxu0
  %v5977 = vpop.f32.mrb[0].mxu0
  %5978 = vdwg.mxu0
  %5979 = vmatprep.subr.bf16.mxu0 0
  %5980 = vmatpush1.bf16.msra.mxu0 %v5472
  %5981 = vmatprep.subr.bf16.mxu0 0
  %5982 = vmatpush1.bf16.msra.mxu0 %v5491
  %5983 = vmatprep.subr.bf16.mxu0 0
  %5984 = vmatpush1.bf16.msra.mxu0 %v5608
  %5985 = vmatprep.subr.bf16.mxu0 0
  %5986 = vmatpush1.bf16.msra.mxu0 0
  %5987 = vmatprep.subr.bf16.mxu0 0
  %5988 = vmatpush1.bf16.msra.mxu0 0
  %5989 = vmatprep.subr.bf16.mxu0 0
  %5990 = vmatpush1.bf16.msra.mxu0 0
  %5991 = vmatprep.subr.bf16.mxu0 0
  %5992 = vmatpush1.bf16.msra.mxu0 0
  %5993 = vmatprep.subr.bf16.mxu0 0
  %5994 = vmatpush1.bf16.msra.mxu0 0
  %5995 = vmatprep.subr.bf16.mxu0 0
  %5996 = vmatpush1.bf16.msra.mxu0 0
  %5997 = vmatprep.subr.bf16.mxu0 0
  %5998 = vmatpush1.bf16.msra.mxu0 0
  %5999 = vmatprep.subr.bf16.mxu0 0
  %6000 = vmatpush1.bf16.msra.mxu0 0
  %6001 = vmatprep.subr.bf16.mxu0 0
  %6002 = vmatpush1.bf16.msra.mxu0 0
  %6003 = vmatprep.subr.bf16.mxu0 0
  %6004 = vmatpush1.bf16.msra.mxu0 0
  %6005 = vmatprep.subr.bf16.mxu0 0
  %6006 = vmatpush1.bf16.msra.mxu0 0
  %6007 = vmatprep.subr.bf16.mxu0 0
  %6008 = vmatpush1.bf16.msra.mxu0 0
  %6009 = vmatprep.subr.bf16.mxu0 0
  %6010 = vmatpush1.bf16.msra.mxu0 0
  %6011 = vmatprep.mubr.bf16.mxu0 0
  %6012 = vmatmul.mubr.bf16.gmra.mrb[0].mxu0 %v5551
  %v6013 = vpop.f32.mrb[0].mxu0
  %v6014 = vadd.f32 %v5260, %v6013
  %v6015 = vpop.f32.mrb[0].mxu0
  %v6016 = vpop.f32.mrb[0].mxu0
  %v6017 = vpop.f32.mrb[0].mxu0
  %6018 = vdwg.mxu0
  %v6019 = vld [vmem:[%s10] sm:$0xff]
  %v6020 = vld [vmem:[%s10 + $0x8] sm:$0xff]
  %v6021 = vld [vmem:[%s10 + $0x10] sm:$0xff]
  %v6022 = vld [vmem:[%s10 + $0x18] sm:$0xff]
  %v6023 = vld [vmem:[%s10 + $0x20] sm:$0xff]
  %v6024 = vld [vmem:[%s10 + $0x28] sm:$0xff]
  %v6025 = vld [vmem:[%s10 + $0x30] sm:$0xff]
  %v6026 = vld [vmem:[%s10 + $0x38] sm:$0xff]
  %v6027 = vld [vmem:[%s10 + $0x40] sm:$0xff]
  %v6028 = vld [vmem:[%s10 + $0x48] sm:$0xff]
  %v6029 = vld [vmem:[%s10 + $0x50] sm:$0xff]
  %v6030 = vld [vmem:[%s10 + $0x58] sm:$0xff]
  %v6031 = vld [vmem:[%s10 + $0x60] sm:$0xff]
  %v6032 = vld [vmem:[%s10 + $0x68] sm:$0xff]
  %v6033 = vld [vmem:[%s10 + $0x70] sm:$0xff]
  %v6034 = vld [vmem:[%s10 + $0x78] sm:$0xff]
  %v6035 = vld [vmem:[%s10 + $0x80] sm:$0xff]
  %v6036 = vld [vmem:[%s10 + $0x88] sm:$0xff]
  %v6037 = vld [vmem:[%s10 + $0x90] sm:$0xff]
  %v6038 = vld [vmem:[%s10 + $0x98] sm:$0xff]
  %v6039 = vld [vmem:[%s10 + $0xa0] sm:$0xff]
  %v6040 = vld [vmem:[%s10 + $0xa8] sm:$0xff]
  %v6041 = vld [vmem:[%s10 + $0xb0] sm:$0xff]
  %v6042 = vld [vmem:[%s10 + $0xb8] sm:$0xff]
  %v6043 = vld [vmem:[%s10 + $0xc0] sm:$0xff]
  %v6044 = vld [vmem:[%s10 + $0xc8] sm:$0xff]
  %v6045 = vld [vmem:[%s10 + $0xd0] sm:$0xff]
  %v6046 = vld [vmem:[%s10 + $0xd8] sm:$0xff]
  %v6047 = vld [vmem:[%s10 + $0xe0] sm:$0xff]
  %v6048 = vld [vmem:[%s10 + $0xe8] sm:$0xff]
  %v6049 = vld [vmem:[%s10 + $0xf0] sm:$0xff]
  %v6050 = vld [vmem:[%s10 + $0xf8] sm:$0xff]
  %v6051 = vld [vmem:[%s10 + $0x100] sm:$0xff]
  %v6052 = vld [vmem:[%s10 + $0x108] sm:$0xff]
  %v6053 = vld [vmem:[%s10 + $0x110] sm:$0xff]
  %v6054 = vld [vmem:[%s10 + $0x118] sm:$0xff]
  %v6055 = vld [vmem:[%s10 + $0x120] sm:$0xff]
  %v6056 = vld [vmem:[%s10 + $0x128] sm:$0xff]
  %v6057 = vld [vmem:[%s10 + $0x130] sm:$0xff]
  %v6058 = vld [vmem:[%s10 + $0x138] sm:$0xff]
  %v6059 = vld [vmem:[%s10 + $0x140] sm:$0xff]
  %v6060 = vld [vmem:[%s10 + $0x148] sm:$0xff]
  %v6061 = vld [vmem:[%s10 + $0x150] sm:$0xff]
  %v6062 = vld [vmem:[%s10 + $0x158] sm:$0xff]
  %v6063 = vld [vmem:[%s10 + $0x160] sm:$0xff]
  %v6064 = vld [vmem:[%s10 + $0x168] sm:$0xff]
  %v6065 = vld [vmem:[%s10 + $0x170] sm:$0xff]
  %v6066 = vld [vmem:[%s10 + $0x178] sm:$0xff]
  %v6067 = vld [vmem:[%s10 + $0x180] sm:$0xff]
  %v6068 = vld [vmem:[%s10 + $0x188] sm:$0xff]
  %v6069 = vld [vmem:[%s10 + $0x190] sm:$0xff]
  %v6070 = vld [vmem:[%s10 + $0x198] sm:$0xff]
  %v6071 = vld [vmem:[%s10 + $0x1a0] sm:$0xff]
  %v6072 = vld [vmem:[%s10 + $0x1a8] sm:$0xff]
  %v6073 = vld [vmem:[%s10 + $0x1b0] sm:$0xff]
  %v6074 = vld [vmem:[%s10 + $0x1b8] sm:$0xff]
  %v6075 = vld [vmem:[%s10 + $0x1c0] sm:$0xff]
  %v6076 = vld [vmem:[%s10 + $0x1c8] sm:$0xff]
  %v6077 = vld [vmem:[%s10 + $0x1d0] sm:$0xff]
  %v6078 = vld [vmem:[%s10 + $0x1d8] sm:$0xff]
  %v6079 = vld [vmem:[%s10 + $0x1e0] sm:$0xff]
  %v6080 = vld [vmem:[%s10 + $0x1e8] sm:$0xff]
  %v6081 = vld [vmem:[%s10 + $0x1f0] sm:$0xff]
  %v6082 = vld [vmem:[%s10 + $0x1f8] sm:$0xff]
  %v6083 = vld [vmem:[%s10 + $0x200] sm:$0xff]
  %v6084 = vld [vmem:[%s10 + $0x208] sm:$0xff]
  %v6085 = vld [vmem:[%s10 + $0x210] sm:$0xff]
  %v6086 = vld [vmem:[%s10 + $0x218] sm:$0xff]
  %v6087 = vld [vmem:[%s10 + $0x220] sm:$0xff]
  %v6088 = vld [vmem:[%s10 + $0x228] sm:$0xff]
  %v6089 = vld [vmem:[%s10 + $0x230] sm:$0xff]
  %v6090 = vld [vmem:[%s10 + $0x238] sm:$0xff]
  %v6091 = vld [vmem:[%s10 + $0x240] sm:$0xff]
  %v6092 = vld [vmem:[%s10 + $0x248] sm:$0xff]
  %v6093 = vld [vmem:[%s10 + $0x250] sm:$0xff]
  %v6094 = vld [vmem:[%s10 + $0x258] sm:$0xff]
  %v6095 = vld [vmem:[%s10 + $0x260] sm:$0xff]
  %v6096 = vld [vmem:[%s10 + $0x268] sm:$0xff]
  %v6097 = vld [vmem:[%s10 + $0x270] sm:$0xff]
  %v6098 = vld [vmem:[%s10 + $0x278] sm:$0xff]
  %v6099 = vld [vmem:[%s10 + $0x280] sm:$0xff]
  %v6100 = vld [vmem:[%s10 + $0x288] sm:$0xff]
  %v6101 = vld [vmem:[%s10 + $0x290] sm:$0xff]
  %v6102 = vld [vmem:[%s10 + $0x298] sm:$0xff]
  %v6103 = vld [vmem:[%s10 + $0x2a0] sm:$0xff]
  %v6104 = vld [vmem:[%s10 + $0x2a8] sm:$0xff]
  %v6105 = vld [vmem:[%s10 + $0x2b0] sm:$0xff]
  %v6106 = vld [vmem:[%s10 + $0x2b8] sm:$0xff]
  %v6107 = vld [vmem:[%s10 + $0x2c0] sm:$0xff]
  %v6108 = vld [vmem:[%s10 + $0x2c8] sm:$0xff]
  %v6109 = vld [vmem:[%s10 + $0x2d0] sm:$0xff]
  %v6110 = vld [vmem:[%s10 + $0x2d8] sm:$0xff]
  %v6111 = vld [vmem:[%s10 + $0x2e0] sm:$0xff]
  %v6112 = vld [vmem:[%s10 + $0x2e8] sm:$0xff]
  %v6113 = vld [vmem:[%s10 + $0x2f0] sm:$0xff]
  %v6114 = vld [vmem:[%s10 + $0x2f8] sm:$0xff]
  %v6115 = vld [vmem:[%s10 + $0x300] sm:$0xff]
  %v6116 = vld [vmem:[%s10 + $0x308] sm:$0xff]
  %v6117 = vld [vmem:[%s10 + $0x310] sm:$0xff]
  %v6118 = vld [vmem:[%s10 + $0x318] sm:$0xff]
  %v6119 = vld [vmem:[%s10 + $0x320] sm:$0xff]
  %v6120 = vld [vmem:[%s10 + $0x328] sm:$0xff]
  %v6121 = vld [vmem:[%s10 + $0x330] sm:$0xff]
  %v6122 = vld [vmem:[%s10 + $0x338] sm:$0xff]
  %v6123 = vld [vmem:[%s10 + $0x340] sm:$0xff]
  %v6124 = vld [vmem:[%s10 + $0x348] sm:$0xff]
  %v6125 = vld [vmem:[%s10 + $0x350] sm:$0xff]
  %v6126 = vld [vmem:[%s10 + $0x358] sm:$0xff]
  %v6127 = vld [vmem:[%s10 + $0x360] sm:$0xff]
  %v6128 = vld [vmem:[%s10 + $0x368] sm:$0xff]
  %v6129 = vld [vmem:[%s10 + $0x370] sm:$0xff]
  %v6130 = vld [vmem:[%s10 + $0x378] sm:$0xff]
  %v6131 = vld [vmem:[%s10 + $0x380] sm:$0xff]
  %v6132 = vld [vmem:[%s10 + $0x388] sm:$0xff]
  %v6133 = vld [vmem:[%s10 + $0x390] sm:$0xff]
  %v6134 = vld [vmem:[%s10 + $0x398] sm:$0xff]
  %v6135 = vld [vmem:[%s10 + $0x3a0] sm:$0xff]
  %v6136 = vld [vmem:[%s10 + $0x3a8] sm:$0xff]
  %v6137 = vld [vmem:[%s10 + $0x3b0] sm:$0xff]
  %v6138 = vld [vmem:[%s10 + $0x3b8] sm:$0xff]
  %v6139 = vld [vmem:[%s10 + $0x3c0] sm:$0xff]
  %v6140 = vld [vmem:[%s10 + $0x3c8] sm:$0xff]
  %v6141 = vld [vmem:[%s10 + $0x3d0] sm:$0xff]
  %v6142 = vld [vmem:[%s10 + $0x3d8] sm:$0xff]
  %v6143 = vld [vmem:[%s10 + $0x3e0] sm:$0xff]
  %v6144 = vld [vmem:[%s10 + $0x3e8] sm:$0xff]
  %v6145 = vld [vmem:[%s10 + $0x3f0] sm:$0xff]
  %v6146 = vld [vmem:[%s10 + $0x3f8] sm:$0xff]
  %v6147 = vld [vmem:[%s10 + $0x400] sm:$0xff]
  %v6148 = vld [vmem:[%s10 + $0x408] sm:$0xff]
  %v6149 = vld [vmem:[%s10 + $0x410] sm:$0xff]
  %v6150 = vld [vmem:[%s10 + $0x418] sm:$0xff]
  %v6151 = vld [vmem:[%s10 + $0x420] sm:$0xff]
  %v6152 = vld [vmem:[%s10 + $0x428] sm:$0xff]
  %v6153 = vld [vmem:[%s10 + $0x430] sm:$0xff]
  %v6154 = vld [vmem:[%s10 + $0x438] sm:$0xff]
  %v6155 = vld [vmem:[%s10 + $0x440] sm:$0xff]
  %v6156 = vld [vmem:[%s10 + $0x448] sm:$0xff]
  %v6157 = vld [vmem:[%s10 + $0x450] sm:$0xff]
  %v6158 = vld [vmem:[%s10 + $0x458] sm:$0xff]
  %v6159 = vld [vmem:[%s10 + $0x460] sm:$0xff]
  %v6160 = vld [vmem:[%s10 + $0x468] sm:$0xff]
  %v6161 = vld [vmem:[%s10 + $0x470] sm:$0xff]
  %v6162 = vld [vmem:[%s10 + $0x478] sm:$0xff]
  %v6163 = vld [vmem:[%s10 + $0x480] sm:$0xff]
  %v6164 = vld [vmem:[%s10 + $0x488] sm:$0xff]
  %v6165 = vld [vmem:[%s10 + $0x490] sm:$0xff]
  %v6166 = vld [vmem:[%s10 + $0x498] sm:$0xff]
  %v6167 = vld [vmem:[%s10 + $0x4a0] sm:$0xff]
  %v6168 = vld [vmem:[%s10 + $0x4a8] sm:$0xff]
  %v6169 = vld [vmem:[%s10 + $0x4b0] sm:$0xff]
  %v6170 = vld [vmem:[%s10 + $0x4b8] sm:$0xff]
  %v6171 = vld [vmem:[%s10 + $0x4c0] sm:$0xff]
  %v6172 = vld [vmem:[%s10 + $0x4c8] sm:$0xff]
  %v6173 = vld [vmem:[%s10 + $0x4d0] sm:$0xff]
  %v6174 = vld [vmem:[%s10 + $0x4d8] sm:$0xff]
  %v6175 = vld [vmem:[%s10 + $0x4e0] sm:$0xff]
  %v6176 = vld [vmem:[%s10 + $0x4e8] sm:$0xff]
  %v6177 = vld [vmem:[%s10 + $0x4f0] sm:$0xff]
  %v6178 = vld [vmem:[%s10 + $0x4f8] sm:$0xff]
  %v6179 = vld [vmem:[%s10 + $0x500] sm:$0xff]
  %v6180 = vld [vmem:[%s10 + $0x508] sm:$0xff]
  %v6181 = vld [vmem:[%s10 + $0x510] sm:$0xff]
  %v6182 = vld [vmem:[%s10 + $0x518] sm:$0xff]
  %v6183 = vld [vmem:[%s10 + $0x520] sm:$0xff]
  %v6184 = vld [vmem:[%s10 + $0x528] sm:$0xff]
  %v6185 = vld [vmem:[%s10 + $0x530] sm:$0xff]
  %v6186 = vld [vmem:[%s10 + $0x538] sm:$0xff]
  %v6187 = vld [vmem:[%s10 + $0x540] sm:$0xff]
  %v6188 = vld [vmem:[%s10 + $0x548] sm:$0xff]
  %v6189 = vld [vmem:[%s10 + $0x550] sm:$0xff]
  %v6190 = vld [vmem:[%s10 + $0x558] sm:$0xff]
  %v6191 = vld [vmem:[%s10 + $0x560] sm:$0xff]
  %v6192 = vld [vmem:[%s10 + $0x568] sm:$0xff]
  %v6193 = vld [vmem:[%s10 + $0x570] sm:$0xff]
  %v6194 = vld [vmem:[%s10 + $0x578] sm:$0xff]
  %v6195 = vld [vmem:[%s10 + $0x580] sm:$0xff]
  %v6196 = vld [vmem:[%s10 + $0x588] sm:$0xff]
  %v6197 = vld [vmem:[%s10 + $0x590] sm:$0xff]
  %v6198 = vld [vmem:[%s10 + $0x598] sm:$0xff]
  %v6199 = vld [vmem:[%s10 + $0x5a0] sm:$0xff]
  %v6200 = vld [vmem:[%s10 + $0x5a8] sm:$0xff]
  %v6201 = vld [vmem:[%s10 + $0x5b0] sm:$0xff]
  %v6202 = vld [vmem:[%s10 + $0x5b8] sm:$0xff]
  %v6203 = vld [vmem:[%s10 + $0x5c0] sm:$0xff]
  %v6204 = vld [vmem:[%s10 + $0x5c8] sm:$0xff]
  %v6205 = vld [vmem:[%s10 + $0x5d0] sm:$0xff]
  %v6206 = vld [vmem:[%s10 + $0x5d8] sm:$0xff]
  %v6207 = vld [vmem:[%s10 + $0x5e0] sm:$0xff]
  %v6208 = vld [vmem:[%s10 + $0x5e8] sm:$0xff]
  %v6209 = vld [vmem:[%s10 + $0x5f0] sm:$0xff]
  %v6210 = vld [vmem:[%s10 + $0x5f8] sm:$0xff]
  %v6211 = vld [vmem:[%s14 + $0x30] sm:$0x3]
  %v6213 = vlaneseq
  %v6214 = vshrl.u32 %v6213, 7
  %v6215 = vsub.s32 0, %v6214
  %v6216 = vrot.slane %v6211, %v6215
  %v6217 = vlaneseq
  %v6218 = vshrl.u32 %v6217, 7
  %v6219 = vsub.s32 1, %v6218
  %v6220 = vrot.slane %v6211, %v6219
  %v6415 = vunpack.c.l.b16 %v6019
  %v6416 = vunpack.c.h.b16 %v6019
  %v6417 = vunpack.c.l.b16 %v6020
  %v6418 = vunpack.c.h.b16 %v6020
  %v6419 = vunpack.c.l.b16 %v6021
  %v6420 = vunpack.c.h.b16 %v6021
  %v6421 = vunpack.c.l.b16 %v6022
  %v6422 = vunpack.c.h.b16 %v6022
  %v6423 = vunpack.c.l.b16 %v6023
  %v6424 = vunpack.c.h.b16 %v6023
  %v6425 = vunpack.c.l.b16 %v6024
  %v6426 = vunpack.c.h.b16 %v6024
  %v6427 = vunpack.c.l.b16 %v6025
  %v6428 = vunpack.c.h.b16 %v6025
  %v6429 = vunpack.c.l.b16 %v6026
  %v6430 = vunpack.c.h.b16 %v6026
  %v6431 = vunpack.c.l.b16 %v6027
  %v6432 = vunpack.c.h.b16 %v6027
  %v6433 = vunpack.c.l.b16 %v6028
  %v6434 = vunpack.c.h.b16 %v6028
  %v6435 = vunpack.c.l.b16 %v6029
  %v6436 = vunpack.c.h.b16 %v6029
  %v6437 = vunpack.c.l.b16 %v6030
  %v6438 = vunpack.c.h.b16 %v6030
  %v6439 = vunpack.c.l.b16 %v6031
  %v6440 = vunpack.c.h.b16 %v6031
  %v6441 = vunpack.c.l.b16 %v6032
  %v6442 = vunpack.c.h.b16 %v6032
  %v6443 = vunpack.c.l.b16 %v6033
  %v6444 = vunpack.c.h.b16 %v6033
  %v6445 = vunpack.c.l.b16 %v6034
  %v6446 = vunpack.c.h.b16 %v6034
  %v6447 = vunpack.c.l.b16 %v6035
  %v6448 = vunpack.c.h.b16 %v6035
  %v6449 = vunpack.c.l.b16 %v6036
  %v6450 = vunpack.c.h.b16 %v6036
  %v6451 = vunpack.c.l.b16 %v6037
  %v6452 = vunpack.c.h.b16 %v6037
  %v6453 = vunpack.c.l.b16 %v6038
  %v6454 = vunpack.c.h.b16 %v6038
  %v6455 = vunpack.c.l.b16 %v6039
  %v6456 = vunpack.c.h.b16 %v6039
  %v6457 = vunpack.c.l.b16 %v6040
  %v6458 = vunpack.c.h.b16 %v6040
  %v6459 = vunpack.c.l.b16 %v6041
  %v6460 = vunpack.c.h.b16 %v6041
  %v6461 = vunpack.c.l.b16 %v6042
  %v6462 = vunpack.c.h.b16 %v6042
  %v6463 = vunpack.c.l.b16 %v6043
  %v6464 = vunpack.c.h.b16 %v6043
  %v6465 = vunpack.c.l.b16 %v6044
  %v6466 = vunpack.c.h.b16 %v6044
  %v6467 = vunpack.c.l.b16 %v6045
  %v6468 = vunpack.c.h.b16 %v6045
  %v6469 = vunpack.c.l.b16 %v6046
  %v6470 = vunpack.c.h.b16 %v6046
  %v6471 = vunpack.c.l.b16 %v6047
  %v6472 = vunpack.c.h.b16 %v6047
  %v6473 = vunpack.c.l.b16 %v6048
  %v6474 = vunpack.c.h.b16 %v6048
  %v6475 = vunpack.c.l.b16 %v6049
  %v6476 = vunpack.c.h.b16 %v6049
  %v6477 = vunpack.c.l.b16 %v6050
  %v6478 = vunpack.c.h.b16 %v6050
  %v6479 = vunpack.c.l.b16 %v6051
  %v6480 = vunpack.c.h.b16 %v6051
  %v6481 = vunpack.c.l.b16 %v6052
  %v6482 = vunpack.c.h.b16 %v6052
  %v6483 = vunpack.c.l.b16 %v6053
  %v6484 = vunpack.c.h.b16 %v6053
  %v6485 = vunpack.c.l.b16 %v6054
  %v6486 = vunpack.c.h.b16 %v6054
  %v6487 = vunpack.c.l.b16 %v6055
  %v6488 = vunpack.c.h.b16 %v6055
  %v6489 = vunpack.c.l.b16 %v6056
  %v6490 = vunpack.c.h.b16 %v6056
  %v6491 = vunpack.c.l.b16 %v6057
  %v6492 = vunpack.c.h.b16 %v6057
  %v6493 = vunpack.c.l.b16 %v6058
  %v6494 = vunpack.c.h.b16 %v6058
  %v6495 = vunpack.c.l.b16 %v6059
  %v6496 = vunpack.c.h.b16 %v6059
  %v6497 = vunpack.c.l.b16 %v6060
  %v6498 = vunpack.c.h.b16 %v6060
  %v6499 = vunpack.c.l.b16 %v6061
  %v6500 = vunpack.c.h.b16 %v6061
  %v6501 = vunpack.c.l.b16 %v6062
  %v6502 = vunpack.c.h.b16 %v6062
  %v6503 = vunpack.c.l.b16 %v6063
  %v6504 = vunpack.c.h.b16 %v6063
  %v6505 = vunpack.c.l.b16 %v6064
  %v6506 = vunpack.c.h.b16 %v6064
  %v6507 = vunpack.c.l.b16 %v6065
  %v6508 = vunpack.c.h.b16 %v6065
  %v6509 = vunpack.c.l.b16 %v6066
  %v6510 = vunpack.c.h.b16 %v6066
  %v6511 = vunpack.c.l.b16 %v6067
  %v6512 = vunpack.c.h.b16 %v6067
  %v6513 = vunpack.c.l.b16 %v6068
  %v6514 = vunpack.c.h.b16 %v6068
  %v6515 = vunpack.c.l.b16 %v6069
  %v6516 = vunpack.c.h.b16 %v6069
  %v6517 = vunpack.c.l.b16 %v6070
  %v6518 = vunpack.c.h.b16 %v6070
  %v6519 = vunpack.c.l.b16 %v6071
  %v6520 = vunpack.c.h.b16 %v6071
  %v6521 = vunpack.c.l.b16 %v6072
  %v6522 = vunpack.c.h.b16 %v6072
  %v6523 = vunpack.c.l.b16 %v6073
  %v6524 = vunpack.c.h.b16 %v6073
  %v6525 = vunpack.c.l.b16 %v6074
  %v6526 = vunpack.c.h.b16 %v6074
  %v6527 = vunpack.c.l.b16 %v6075
  %v6528 = vunpack.c.h.b16 %v6075
  %v6529 = vunpack.c.l.b16 %v6076
  %v6530 = vunpack.c.h.b16 %v6076
  %v6531 = vunpack.c.l.b16 %v6077
  %v6532 = vunpack.c.h.b16 %v6077
  %v6533 = vunpack.c.l.b16 %v6078
  %v6534 = vunpack.c.h.b16 %v6078
  %v6535 = vunpack.c.l.b16 %v6079
  %v6536 = vunpack.c.h.b16 %v6079
  %v6537 = vunpack.c.l.b16 %v6080
  %v6538 = vunpack.c.h.b16 %v6080
  %v6539 = vunpack.c.l.b16 %v6081
  %v6540 = vunpack.c.h.b16 %v6081
  %v6541 = vunpack.c.l.b16 %v6082
  %v6542 = vunpack.c.h.b16 %v6082
  %v6543 = vunpack.c.l.b16 %v6083
  %v6544 = vunpack.c.h.b16 %v6083
  %v6545 = vunpack.c.l.b16 %v6084
  %v6546 = vunpack.c.h.b16 %v6084
  %v6547 = vunpack.c.l.b16 %v6085
  %v6548 = vunpack.c.h.b16 %v6085
  %v6549 = vunpack.c.l.b16 %v6086
  %v6550 = vunpack.c.h.b16 %v6086
  %v6551 = vunpack.c.l.b16 %v6087
  %v6552 = vunpack.c.h.b16 %v6087
  %v6553 = vunpack.c.l.b16 %v6088
  %v6554 = vunpack.c.h.b16 %v6088
  %v6555 = vunpack.c.l.b16 %v6089
  %v6556 = vunpack.c.h.b16 %v6089
  %v6557 = vunpack.c.l.b16 %v6090
  %v6558 = vunpack.c.h.b16 %v6090
  %v6559 = vunpack.c.l.b16 %v6091
  %v6560 = vunpack.c.h.b16 %v6091
  %v6561 = vunpack.c.l.b16 %v6092
  %v6562 = vunpack.c.h.b16 %v6092
  %v6563 = vunpack.c.l.b16 %v6093
  %v6564 = vunpack.c.h.b16 %v6093
  %v6565 = vunpack.c.l.b16 %v6094
  %v6566 = vunpack.c.h.b16 %v6094
  %v6567 = vunpack.c.l.b16 %v6095
  %v6568 = vunpack.c.h.b16 %v6095
  %v6569 = vunpack.c.l.b16 %v6096
  %v6570 = vunpack.c.h.b16 %v6096
  %v6571 = vunpack.c.l.b16 %v6097
  %v6572 = vunpack.c.h.b16 %v6097
  %v6573 = vunpack.c.l.b16 %v6098
  %v6574 = vunpack.c.h.b16 %v6098
  %v6575 = vunpack.c.l.b16 %v6099
  %v6576 = vunpack.c.h.b16 %v6099
  %v6577 = vunpack.c.l.b16 %v6100
  %v6578 = vunpack.c.h.b16 %v6100
  %v6579 = vunpack.c.l.b16 %v6101
  %v6580 = vunpack.c.h.b16 %v6101
  %v6581 = vunpack.c.l.b16 %v6102
  %v6582 = vunpack.c.h.b16 %v6102
  %v6583 = vunpack.c.l.b16 %v6103
  %v6584 = vunpack.c.h.b16 %v6103
  %v6585 = vunpack.c.l.b16 %v6104
  %v6586 = vunpack.c.h.b16 %v6104
  %v6587 = vunpack.c.l.b16 %v6105
  %v6588 = vunpack.c.h.b16 %v6105
  %v6589 = vunpack.c.l.b16 %v6106
  %v6590 = vunpack.c.h.b16 %v6106
  %v6591 = vunpack.c.l.b16 %v6107
  %v6592 = vunpack.c.h.b16 %v6107
  %v6593 = vunpack.c.l.b16 %v6108
  %v6594 = vunpack.c.h.b16 %v6108
  %v6595 = vunpack.c.l.b16 %v6109
  %v6596 = vunpack.c.h.b16 %v6109
  %v6597 = vunpack.c.l.b16 %v6110
  %v6598 = vunpack.c.h.b16 %v6110
  %v6599 = vunpack.c.l.b16 %v6111
  %v6600 = vunpack.c.h.b16 %v6111
  %v6601 = vunpack.c.l.b16 %v6112
  %v6602 = vunpack.c.h.b16 %v6112
  %v6603 = vunpack.c.l.b16 %v6113
  %v6604 = vunpack.c.h.b16 %v6113
  %v6605 = vunpack.c.l.b16 %v6114
  %v6606 = vunpack.c.h.b16 %v6114
  %v6607 = vunpack.c.l.b16 %v6115
  %v6608 = vunpack.c.h.b16 %v6115
  %v6609 = vunpack.c.l.b16 %v6116
  %v6610 = vunpack.c.h.b16 %v6116
  %v6611 = vunpack.c.l.b16 %v6117
  %v6612 = vunpack.c.h.b16 %v6117
  %v6613 = vunpack.c.l.b16 %v6118
  %v6614 = vunpack.c.h.b16 %v6118
  %v6615 = vunpack.c.l.b16 %v6119
  %v6616 = vunpack.c.h.b16 %v6119
  %v6617 = vunpack.c.l.b16 %v6120
  %v6618 = vunpack.c.h.b16 %v6120
  %v6619 = vunpack.c.l.b16 %v6121
  %v6620 = vunpack.c.h.b16 %v6121
  %v6621 = vunpack.c.l.b16 %v6122
  %v6622 = vunpack.c.h.b16 %v6122
  %v6623 = vunpack.c.l.b16 %v6123
  %v6624 = vunpack.c.h.b16 %v6123
  %v6625 = vunpack.c.l.b16 %v6124
  %v6626 = vunpack.c.h.b16 %v6124
  %v6627 = vunpack.c.l.b16 %v6125
  %v6628 = vunpack.c.h.b16 %v6125
  %v6629 = vunpack.c.l.b16 %v6126
  %v6630 = vunpack.c.h.b16 %v6126
  %v6631 = vunpack.c.l.b16 %v6127
  %v6632 = vunpack.c.h.b16 %v6127
  %v6633 = vunpack.c.l.b16 %v6128
  %v6634 = vunpack.c.h.b16 %v6128
  %v6635 = vunpack.c.l.b16 %v6129
  %v6636 = vunpack.c.h.b16 %v6129
  %v6637 = vunpack.c.l.b16 %v6130
  %v6638 = vunpack.c.h.b16 %v6130
  %v6639 = vunpack.c.l.b16 %v6131
  %v6640 = vunpack.c.h.b16 %v6131
  %v6641 = vunpack.c.l.b16 %v6132
  %v6642 = vunpack.c.h.b16 %v6132
  %v6643 = vunpack.c.l.b16 %v6133
  %v6644 = vunpack.c.h.b16 %v6133
  %v6645 = vunpack.c.l.b16 %v6134
  %v6646 = vunpack.c.h.b16 %v6134
  %v6647 = vunpack.c.l.b16 %v6135
  %v6648 = vunpack.c.h.b16 %v6135
  %v6649 = vunpack.c.l.b16 %v6136
  %v6650 = vunpack.c.h.b16 %v6136
  %v6651 = vunpack.c.l.b16 %v6137
  %v6652 = vunpack.c.h.b16 %v6137
  %v6653 = vunpack.c.l.b16 %v6138
  %v6654 = vunpack.c.h.b16 %v6138
  %v6655 = vunpack.c.l.b16 %v6139
  %v6656 = vunpack.c.h.b16 %v6139
  %v6657 = vunpack.c.l.b16 %v6140
  %v6658 = vunpack.c.h.b16 %v6140
  %v6659 = vunpack.c.l.b16 %v6141
  %v6660 = vunpack.c.h.b16 %v6141
  %v6661 = vunpack.c.l.b16 %v6142
  %v6662 = vunpack.c.h.b16 %v6142
  %v6663 = vunpack.c.l.b16 %v6143
  %v6664 = vunpack.c.h.b16 %v6143
  %v6665 = vunpack.c.l.b16 %v6144
  %v6666 = vunpack.c.h.b16 %v6144
  %v6667 = vunpack.c.l.b16 %v6145
  %v6668 = vunpack.c.h.b16 %v6145
  %v6669 = vunpack.c.l.b16 %v6146
  %v6670 = vunpack.c.h.b16 %v6146
  %v6671 = vunpack.c.l.b16 %v6147
  %v6672 = vunpack.c.h.b16 %v6147
  %v6673 = vunpack.c.l.b16 %v6148
  %v6674 = vunpack.c.h.b16 %v6148
  %v6675 = vunpack.c.l.b16 %v6149
  %v6676 = vunpack.c.h.b16 %v6149
  %v6677 = vunpack.c.l.b16 %v6150
  %v6678 = vunpack.c.h.b16 %v6150
  %v6679 = vunpack.c.l.b16 %v6151
  %v6680 = vunpack.c.h.b16 %v6151
  %v6681 = vunpack.c.l.b16 %v6152
  %v6682 = vunpack.c.h.b16 %v6152
  %v6683 = vunpack.c.l.b16 %v6153
  %v6684 = vunpack.c.h.b16 %v6153
  %v6685 = vunpack.c.l.b16 %v6154
  %v6686 = vunpack.c.h.b16 %v6154
  %v6687 = vunpack.c.l.b16 %v6155
  %v6688 = vunpack.c.h.b16 %v6155
  %v6689 = vunpack.c.l.b16 %v6156
  %v6690 = vunpack.c.h.b16 %v6156
  %v6691 = vunpack.c.l.b16 %v6157
  %v6692 = vunpack.c.h.b16 %v6157
  %v6693 = vunpack.c.l.b16 %v6158
  %v6694 = vunpack.c.h.b16 %v6158
  %v6695 = vunpack.c.l.b16 %v6159
  %v6696 = vunpack.c.h.b16 %v6159
  %v6697 = vunpack.c.l.b16 %v6160
  %v6698 = vunpack.c.h.b16 %v6160
  %v6699 = vunpack.c.l.b16 %v6161
  %v6700 = vunpack.c.h.b16 %v6161
  %v6701 = vunpack.c.l.b16 %v6162
  %v6702 = vunpack.c.h.b16 %v6162
  %v6703 = vunpack.c.l.b16 %v6163
  %v6704 = vunpack.c.h.b16 %v6163
  %v6705 = vunpack.c.l.b16 %v6164
  %v6706 = vunpack.c.h.b16 %v6164
  %v6707 = vunpack.c.l.b16 %v6165
  %v6708 = vunpack.c.h.b16 %v6165
  %v6709 = vunpack.c.l.b16 %v6166
  %v6710 = vunpack.c.h.b16 %v6166
  %v6711 = vunpack.c.l.b16 %v6167
  %v6712 = vunpack.c.h.b16 %v6167
  %v6713 = vunpack.c.l.b16 %v6168
  %v6714 = vunpack.c.h.b16 %v6168
  %v6715 = vunpack.c.l.b16 %v6169
  %v6716 = vunpack.c.h.b16 %v6169
  %v6717 = vunpack.c.l.b16 %v6170
  %v6718 = vunpack.c.h.b16 %v6170
  %v6719 = vunpack.c.l.b16 %v6171
  %v6720 = vunpack.c.h.b16 %v6171
  %v6721 = vunpack.c.l.b16 %v6172
  %v6722 = vunpack.c.h.b16 %v6172
  %v6723 = vunpack.c.l.b16 %v6173
  %v6724 = vunpack.c.h.b16 %v6173
  %v6725 = vunpack.c.l.b16 %v6174
  %v6726 = vunpack.c.h.b16 %v6174
  %v6727 = vunpack.c.l.b16 %v6175
  %v6728 = vunpack.c.h.b16 %v6175
  %v6729 = vunpack.c.l.b16 %v6176
  %v6730 = vunpack.c.h.b16 %v6176
  %v6731 = vunpack.c.l.b16 %v6177
  %v6732 = vunpack.c.h.b16 %v6177
  %v6733 = vunpack.c.l.b16 %v6178
  %v6734 = vunpack.c.h.b16 %v6178
  %v6735 = vunpack.c.l.b16 %v6179
  %v6736 = vunpack.c.h.b16 %v6179
  %v6737 = vunpack.c.l.b16 %v6180
  %v6738 = vunpack.c.h.b16 %v6180
  %v6739 = vunpack.c.l.b16 %v6181
  %v6740 = vunpack.c.h.b16 %v6181
  %v6741 = vunpack.c.l.b16 %v6182
  %v6742 = vunpack.c.h.b16 %v6182
  %v6743 = vunpack.c.l.b16 %v6183
  %v6744 = vunpack.c.h.b16 %v6183
  %v6745 = vunpack.c.l.b16 %v6184
  %v6746 = vunpack.c.h.b16 %v6184
  %v6747 = vunpack.c.l.b16 %v6185
  %v6748 = vunpack.c.h.b16 %v6185
  %v6749 = vunpack.c.l.b16 %v6186
  %v6750 = vunpack.c.h.b16 %v6186
  %v6751 = vunpack.c.l.b16 %v6187
  %v6752 = vunpack.c.h.b16 %v6187
  %v6753 = vunpack.c.l.b16 %v6188
  %v6754 = vunpack.c.h.b16 %v6188
  %v6755 = vunpack.c.l.b16 %v6189
  %v6756 = vunpack.c.h.b16 %v6189
  %v6757 = vunpack.c.l.b16 %v6190
  %v6758 = vunpack.c.h.b16 %v6190
  %v6759 = vunpack.c.l.b16 %v6191
  %v6760 = vunpack.c.h.b16 %v6191
  %v6761 = vunpack.c.l.b16 %v6192
  %v6762 = vunpack.c.h.b16 %v6192
  %v6763 = vunpack.c.l.b16 %v6193
  %v6764 = vunpack.c.h.b16 %v6193
  %v6765 = vunpack.c.l.b16 %v6194
  %v6766 = vunpack.c.h.b16 %v6194
  %v6767 = vunpack.c.l.b16 %v6195
  %v6768 = vunpack.c.h.b16 %v6195
  %v6769 = vunpack.c.l.b16 %v6196
  %v6770 = vunpack.c.h.b16 %v6196
  %v6771 = vunpack.c.l.b16 %v6197
  %v6772 = vunpack.c.h.b16 %v6197
  %v6773 = vunpack.c.l.b16 %v6198
  %v6774 = vunpack.c.h.b16 %v6198
  %v6775 = vunpack.c.l.b16 %v6199
  %v6776 = vunpack.c.h.b16 %v6199
  %v6777 = vunpack.c.l.b16 %v6200
  %v6778 = vunpack.c.h.b16 %v6200
  %v6779 = vunpack.c.l.b16 %v6201
  %v6780 = vunpack.c.h.b16 %v6201
  %v6781 = vunpack.c.l.b16 %v6202
  %v6782 = vunpack.c.h.b16 %v6202
  %v6783 = vunpack.c.l.b16 %v6203
  %v6784 = vunpack.c.h.b16 %v6203
  %v6785 = vunpack.c.l.b16 %v6204
  %v6786 = vunpack.c.h.b16 %v6204
  %v6787 = vunpack.c.l.b16 %v6205
  %v6788 = vunpack.c.h.b16 %v6205
  %v6789 = vunpack.c.l.b16 %v6206
  %v6790 = vunpack.c.h.b16 %v6206
  %v6791 = vunpack.c.l.b16 %v6207
  %v6792 = vunpack.c.h.b16 %v6207
  %v6793 = vunpack.c.l.b16 %v6208
  %v6794 = vunpack.c.h.b16 %v6208
  %v6795 = vunpack.c.l.b16 %v6209
  %v6796 = vunpack.c.h.b16 %v6209
  %v6797 = vunpack.c.l.b16 %v6210
  %v6798 = vunpack.c.h.b16 %v6210
  %v6799 = vpack.c.b16 %v6417, %v6415
  %v6800 = vpack.c.b16 %v6418, %v6416
  %v6801 = vpack.c.b16 %v6421, %v6419
  %v6802 = vpack.c.b16 %v6422, %v6420
  %v6803 = vpack.c.b16 %v6425, %v6423
  %v6804 = vpack.c.b16 %v6426, %v6424
  %v6805 = vpack.c.b16 %v6429, %v6427
  %v6806 = vpack.c.b16 %v6430, %v6428
  %v6807 = vpack.c.b16 %v6433, %v6431
  %v6808 = vpack.c.b16 %v6434, %v6432
  %v6809 = vpack.c.b16 %v6437, %v6435
  %v6810 = vpack.c.b16 %v6438, %v6436
  %v6811 = vpack.c.b16 %v6441, %v6439
  %v6812 = vpack.c.b16 %v6442, %v6440
  %v6813 = vpack.c.b16 %v6445, %v6443
  %v6814 = vpack.c.b16 %v6446, %v6444
  %v6815 = vpack.c.b16 %v6449, %v6447
  %v6816 = vpack.c.b16 %v6450, %v6448
  %v6817 = vpack.c.b16 %v6453, %v6451
  %v6818 = vpack.c.b16 %v6454, %v6452
  %v6819 = vpack.c.b16 %v6457, %v6455
  %v6820 = vpack.c.b16 %v6458, %v6456
  %v6821 = vpack.c.b16 %v6461, %v6459
  %v6822 = vpack.c.b16 %v6462, %v6460
  %v6823 = vpack.c.b16 %v6465, %v6463
  %v6824 = vpack.c.b16 %v6466, %v6464
  %v6825 = vpack.c.b16 %v6469, %v6467
  %v6826 = vpack.c.b16 %v6470, %v6468
  %v6827 = vpack.c.b16 %v6473, %v6471
  %v6828 = vpack.c.b16 %v6474, %v6472
  %v6829 = vpack.c.b16 %v6477, %v6475
  %v6830 = vpack.c.b16 %v6478, %v6476
  %v6831 = vpack.c.b16 %v6481, %v6479
  %v6832 = vpack.c.b16 %v6482, %v6480
  %v6833 = vpack.c.b16 %v6485, %v6483
  %v6834 = vpack.c.b16 %v6486, %v6484
  %v6835 = vpack.c.b16 %v6489, %v6487
  %v6836 = vpack.c.b16 %v6490, %v6488
  %v6837 = vpack.c.b16 %v6493, %v6491
  %v6838 = vpack.c.b16 %v6494, %v6492
  %v6839 = vpack.c.b16 %v6497, %v6495
  %v6840 = vpack.c.b16 %v6498, %v6496
  %v6841 = vpack.c.b16 %v6501, %v6499
  %v6842 = vpack.c.b16 %v6502, %v6500
  %v6843 = vpack.c.b16 %v6505, %v6503
  %v6844 = vpack.c.b16 %v6506, %v6504
  %v6845 = vpack.c.b16 %v6509, %v6507
  %v6846 = vpack.c.b16 %v6510, %v6508
  %v6847 = vpack.c.b16 %v6513, %v6511
  %v6848 = vpack.c.b16 %v6514, %v6512
  %v6849 = vpack.c.b16 %v6517, %v6515
  %v6850 = vpack.c.b16 %v6518, %v6516
  %v6851 = vpack.c.b16 %v6521, %v6519
  %v6852 = vpack.c.b16 %v6522, %v6520
  %v6853 = vpack.c.b16 %v6525, %v6523
  %v6854 = vpack.c.b16 %v6526, %v6524
  %v6855 = vpack.c.b16 %v6529, %v6527
  %v6856 = vpack.c.b16 %v6530, %v6528
  %v6857 = vpack.c.b16 %v6533, %v6531
  %v6858 = vpack.c.b16 %v6534, %v6532
  %v6859 = vpack.c.b16 %v6537, %v6535
  %v6860 = vpack.c.b16 %v6538, %v6536
  %v6861 = vpack.c.b16 %v6541, %v6539
  %v6862 = vpack.c.b16 %v6542, %v6540
  %v6863 = vpack.c.b16 %v6545, %v6543
  %v6864 = vpack.c.b16 %v6546, %v6544
  %v6865 = vpack.c.b16 %v6549, %v6547
  %v6866 = vpack.c.b16 %v6550, %v6548
  %v6867 = vpack.c.b16 %v6553, %v6551
  %v6868 = vpack.c.b16 %v6554, %v6552
  %v6869 = vpack.c.b16 %v6557, %v6555
  %v6870 = vpack.c.b16 %v6558, %v6556
  %v6871 = vpack.c.b16 %v6561, %v6559
  %v6872 = vpack.c.b16 %v6562, %v6560
  %v6873 = vpack.c.b16 %v6565, %v6563
  %v6874 = vpack.c.b16 %v6566, %v6564
  %v6875 = vpack.c.b16 %v6569, %v6567
  %v6876 = vpack.c.b16 %v6570, %v6568
  %v6877 = vpack.c.b16 %v6573, %v6571
  %v6878 = vpack.c.b16 %v6574, %v6572
  %v6879 = vpack.c.b16 %v6577, %v6575
  %v6880 = vpack.c.b16 %v6578, %v6576
  %v6881 = vpack.c.b16 %v6581, %v6579
  %v6882 = vpack.c.b16 %v6582, %v6580
  %v6883 = vpack.c.b16 %v6585, %v6583
  %v6884 = vpack.c.b16 %v6586, %v6584
  %v6885 = vpack.c.b16 %v6589, %v6587
  %v6886 = vpack.c.b16 %v6590, %v6588
  %v6887 = vpack.c.b16 %v6593, %v6591
  %v6888 = vpack.c.b16 %v6594, %v6592
  %v6889 = vpack.c.b16 %v6597, %v6595
  %v6890 = vpack.c.b16 %v6598, %v6596
  %v6891 = vpack.c.b16 %v6601, %v6599
  %v6892 = vpack.c.b16 %v6602, %v6600
  %v6893 = vpack.c.b16 %v6605, %v6603
  %v6894 = vpack.c.b16 %v6606, %v6604
  %v6895 = vpack.c.b16 %v6609, %v6607
  %v6896 = vpack.c.b16 %v6610, %v6608
  %v6897 = vpack.c.b16 %v6613, %v6611
  %v6898 = vpack.c.b16 %v6614, %v6612
  %v6899 = vpack.c.b16 %v6617, %v6615
  %v6900 = vpack.c.b16 %v6618, %v6616
  %v6901 = vpack.c.b16 %v6621, %v6619
  %v6902 = vpack.c.b16 %v6622, %v6620
  %v6903 = vpack.c.b16 %v6625, %v6623
  %v6904 = vpack.c.b16 %v6626, %v6624
  %v6905 = vpack.c.b16 %v6629, %v6627
  %v6906 = vpack.c.b16 %v6630, %v6628
  %v6907 = vpack.c.b16 %v6633, %v6631
  %v6908 = vpack.c.b16 %v6634, %v6632
  %v6909 = vpack.c.b16 %v6637, %v6635
  %v6910 = vpack.c.b16 %v6638, %v6636
  %v6911 = vpack.c.b16 %v6641, %v6639
  %v6912 = vpack.c.b16 %v6642, %v6640
  %v6913 = vpack.c.b16 %v6645, %v6643
  %v6914 = vpack.c.b16 %v6646, %v6644
  %v6915 = vpack.c.b16 %v6649, %v6647
  %v6916 = vpack.c.b16 %v6650, %v6648
  %v6917 = vpack.c.b16 %v6653, %v6651
  %v6918 = vpack.c.b16 %v6654, %v6652
  %v6919 = vpack.c.b16 %v6657, %v6655
  %v6920 = vpack.c.b16 %v6658, %v6656
  %v6921 = vpack.c.b16 %v6661, %v6659
  %v6922 = vpack.c.b16 %v6662, %v6660
  %v6923 = vpack.c.b16 %v6665, %v6663
  %v6924 = vpack.c.b16 %v6666, %v6664
  %v6925 = vpack.c.b16 %v6669, %v6667
  %v6926 = vpack.c.b16 %v6670, %v6668
  %v6927 = vpack.c.b16 %v6673, %v6671
  %v6928 = vpack.c.b16 %v6674, %v6672
  %v6929 = vpack.c.b16 %v6677, %v6675
  %v6930 = vpack.c.b16 %v6678, %v6676
  %v6931 = vpack.c.b16 %v6681, %v6679
  %v6932 = vpack.c.b16 %v6682, %v6680
  %v6933 = vpack.c.b16 %v6685, %v6683
  %v6934 = vpack.c.b16 %v6686, %v6684
  %v6935 = vpack.c.b16 %v6689, %v6687
  %v6936 = vpack.c.b16 %v6690, %v6688
  %v6937 = vpack.c.b16 %v6693, %v6691
  %v6938 = vpack.c.b16 %v6694, %v6692
  %v6939 = vpack.c.b16 %v6697, %v6695
  %v6940 = vpack.c.b16 %v6698, %v6696
  %v6941 = vpack.c.b16 %v6701, %v6699
  %v6942 = vpack.c.b16 %v6702, %v6700
  %v6943 = vpack.c.b16 %v6705, %v6703
  %v6944 = vpack.c.b16 %v6706, %v6704
  %v6945 = vpack.c.b16 %v6709, %v6707
  %v6946 = vpack.c.b16 %v6710, %v6708
  %v6947 = vpack.c.b16 %v6713, %v6711
  %v6948 = vpack.c.b16 %v6714, %v6712
  %v6949 = vpack.c.b16 %v6717, %v6715
  %v6950 = vpack.c.b16 %v6718, %v6716
  %v6951 = vpack.c.b16 %v6721, %v6719
  %v6952 = vpack.c.b16 %v6722, %v6720
  %v6953 = vpack.c.b16 %v6725, %v6723
  %v6954 = vpack.c.b16 %v6726, %v6724
  %v6955 = vpack.c.b16 %v6729, %v6727
  %v6956 = vpack.c.b16 %v6730, %v6728
  %v6957 = vpack.c.b16 %v6733, %v6731
  %v6958 = vpack.c.b16 %v6734, %v6732
  %v6959 = vpack.c.b16 %v6737, %v6735
  %v6960 = vpack.c.b16 %v6738, %v6736
  %v6961 = vpack.c.b16 %v6741, %v6739
  %v6962 = vpack.c.b16 %v6742, %v6740
  %v6963 = vpack.c.b16 %v6745, %v6743
  %v6964 = vpack.c.b16 %v6746, %v6744
  %v6965 = vpack.c.b16 %v6749, %v6747
  %v6966 = vpack.c.b16 %v6750, %v6748
  %v6967 = vpack.c.b16 %v6753, %v6751
  %v6968 = vpack.c.b16 %v6754, %v6752
  %v6969 = vpack.c.b16 %v6757, %v6755
  %v6970 = vpack.c.b16 %v6758, %v6756
  %v6971 = vpack.c.b16 %v6761, %v6759
  %v6972 = vpack.c.b16 %v6762, %v6760
  %v6973 = vpack.c.b16 %v6765, %v6763
  %v6974 = vpack.c.b16 %v6766, %v6764
  %v6975 = vpack.c.b16 %v6769, %v6767
  %v6976 = vpack.c.b16 %v6770, %v6768
  %v6977 = vpack.c.b16 %v6773, %v6771
  %v6978 = vpack.c.b16 %v6774, %v6772
  %v6979 = vpack.c.b16 %v6777, %v6775
  %v6980 = vpack.c.b16 %v6778, %v6776
  %v6981 = vpack.c.b16 %v6781, %v6779
  %v6982 = vpack.c.b16 %v6782, %v6780
  %v6983 = vpack.c.b16 %v6785, %v6783
  %v6984 = vpack.c.b16 %v6786, %v6784
  %v6985 = vpack.c.b16 %v6789, %v6787
  %v6986 = vpack.c.b16 %v6790, %v6788
  %v6987 = vpack.c.b16 %v6793, %v6791
  %v6988 = vpack.c.b16 %v6794, %v6792
  %v6989 = vpack.c.b16 %v6797, %v6795
  %v6990 = vpack.c.b16 %v6798, %v6796
  %7183 = vmatprep.subr.bf16.mxu0 %v6800
  %7184 = vmatpush1.bf16.msra.mxu0 %v6799
  %7185 = vmatprep.subr.bf16.mxu0 %v6802
  %7186 = vmatpush1.bf16.msra.mxu0 %v6801
  %7187 = vmatprep.subr.bf16.mxu0 %v6804
  %7188 = vmatpush1.bf16.msra.mxu0 %v6803
  %7189 = vmatprep.subr.bf16.mxu0 %v6806
  %7190 = vmatpush1.bf16.msra.mxu0 %v6805
  %7191 = vmatprep.subr.bf16.mxu0 %v6808
  %7192 = vmatpush1.bf16.msra.mxu0 %v6807
  %7193 = vmatprep.subr.bf16.mxu0 %v6810
  %7194 = vmatpush1.bf16.msra.mxu0 %v6809
  %7195 = vmatprep.subr.bf16.mxu0 %v6812
  %7196 = vmatpush1.bf16.msra.mxu0 %v6811
  %7197 = vmatprep.subr.bf16.mxu0 %v6814
  %7198 = vmatpush1.bf16.msra.mxu0 %v6813
  %7199 = vmatprep.subr.bf16.mxu0 %v6816
  %7200 = vmatpush1.bf16.msra.mxu0 %v6815
  %7201 = vmatprep.subr.bf16.mxu0 %v6818
  %7202 = vmatpush1.bf16.msra.mxu0 %v6817
  %7203 = vmatprep.subr.bf16.mxu0 %v6820
  %7204 = vmatpush1.bf16.msra.mxu0 %v6819
  %7205 = vmatprep.subr.bf16.mxu0 %v6822
  %7206 = vmatpush1.bf16.msra.mxu0 %v6821
  %7207 = vmatprep.subr.bf16.mxu0 %v6824
  %7208 = vmatpush1.bf16.msra.mxu0 %v6823
  %7209 = vmatprep.subr.bf16.mxu0 %v6826
  %7210 = vmatpush1.bf16.msra.mxu0 %v6825
  %7211 = vmatprep.subr.bf16.mxu0 %v6828
  %7212 = vmatpush1.bf16.msra.mxu0 %v6827
  %7213 = vmatprep.subr.bf16.mxu0 %v6830
  %7214 = vmatpush1.bf16.msra.mxu0 %v6829
  %7215 = vmatprep.mubr.bf16.mxu0 %v1220
  %7216 = vmatmul.mubr.bf16.gmra.mrb[0].mxu0 %v1219
  %v7217 = vpop.f32.mrb[0].mxu0
  %v7218 = vadd.f32 %v6216, %v7217
  %v7219 = vpop.f32.mrb[0].mxu0
  %v7220 = vadd.f32 %v6220, %v7219
  %v7221 = vpop.f32.mrb[0].mxu0
  %v7222 = vpop.f32.mrb[0].mxu0
  %7223 = vdwg.mxu0
  %7224 = vmatprep.subr.bf16.mxu0 %v6832
  %7225 = vmatpush1.bf16.msra.mxu0 %v6831
  %7226 = vmatprep.subr.bf16.mxu0 %v6834
  %7227 = vmatpush1.bf16.msra.mxu0 %v6833
  %7228 = vmatprep.subr.bf16.mxu0 %v6836
  %7229 = vmatpush1.bf16.msra.mxu0 %v6835
  %7230 = vmatprep.subr.bf16.mxu0 %v6838
  %7231 = vmatpush1.bf16.msra.mxu0 %v6837
  %7232 = vmatprep.subr.bf16.mxu0 %v6840
  %7233 = vmatpush1.bf16.msra.mxu0 %v6839
  %7234 = vmatprep.subr.bf16.mxu0 %v6842
  %7235 = vmatpush1.bf16.msra.mxu0 %v6841
  %7236 = vmatprep.subr.bf16.mxu0 %v6844
  %7237 = vmatpush1.bf16.msra.mxu0 %v6843
  %7238 = vmatprep.subr.bf16.mxu0 %v6846
  %7239 = vmatpush1.bf16.msra.mxu0 %v6845
  %7240 = vmatprep.subr.bf16.mxu0 %v6848
  %7241 = vmatpush1.bf16.msra.mxu0 %v6847
  %7242 = vmatprep.subr.bf16.mxu0 %v6850
  %7243 = vmatpush1.bf16.msra.mxu0 %v6849
  %7244 = vmatprep.subr.bf16.mxu0 %v6852
  %7245 = vmatpush1.bf16.msra.mxu0 %v6851
  %7246 = vmatprep.subr.bf16.mxu0 %v6854
  %7247 = vmatpush1.bf16.msra.mxu0 %v6853
  %7248 = vmatprep.subr.bf16.mxu0 %v6856
  %7249 = vmatpush1.bf16.msra.mxu0 %v6855
  %7250 = vmatprep.subr.bf16.mxu0 %v6858
  %7251 = vmatpush1.bf16.msra.mxu0 %v6857
  %7252 = vmatprep.subr.bf16.mxu0 %v6860
  %7253 = vmatpush1.bf16.msra.mxu0 %v6859
  %7254 = vmatprep.subr.bf16.mxu0 %v6862
  %7255 = vmatpush1.bf16.msra.mxu0 %v6861
  %7256 = vmatprep.mubr.bf16.mxu0 %v1222
  %7257 = vmatmul.mubr.bf16.gmra.mrb[0].mxu0 %v1221
  %v7258 = vpop.f32.mrb[0].mxu0
  %v7259 = vadd.f32 %v7218, %v7258
  %v7260 = vpop.f32.mrb[0].mxu0
  %v7261 = vadd.f32 %v7220, %v7260
  %v7262 = vpop.f32.mrb[0].mxu0
  %v7263 = vpop.f32.mrb[0].mxu0
  %7264 = vdwg.mxu0
  %7265 = vmatprep.subr.bf16.mxu0 %v6864
  %7266 = vmatpush1.bf16.msra.mxu0 %v6863
  %7267 = vmatprep.subr.bf16.mxu0 %v6866
  %7268 = vmatpush1.bf16.msra.mxu0 %v6865
  %7269 = vmatprep.subr.bf16.mxu0 %v6868
  %7270 = vmatpush1.bf16.msra.mxu0 %v6867
  %7271 = vmatprep.subr.bf16.mxu0 %v6870
  %7272 = vmatpush1.bf16.msra.mxu0 %v6869
  %7273 = vmatprep.subr.bf16.mxu0 %v6872
  %7274 = vmatpush1.bf16.msra.mxu0 %v6871
  %7275 = vmatprep.subr.bf16.mxu0 %v6874
  %7276 = vmatpush1.bf16.msra.mxu0 %v6873
  %7277 = vmatprep.subr.bf16.mxu0 %v6876
  %7278 = vmatpush1.bf16.msra.mxu0 %v6875
  %7279 = vmatprep.subr.bf16.mxu0 %v6878
  %7280 = vmatpush1.bf16.msra.mxu0 %v6877
  %7281 = vmatprep.subr.bf16.mxu0 %v6880
  %7282 = vmatpush1.bf16.msra.mxu0 %v6879
  %7283 = vmatprep.subr.bf16.mxu0 %v6882
  %7284 = vmatpush1.bf16.msra.mxu0 %v6881
  %7285 = vmatprep.subr.bf16.mxu0 %v6884
  %7286 = vmatpush1.bf16.msra.mxu0 %v6883
  %7287 = vmatprep.subr.bf16.mxu0 %v6886
  %7288 = vmatpush1.bf16.msra.mxu0 %v6885
  %7289 = vmatprep.subr.bf16.mxu0 %v6888
  %7290 = vmatpush1.bf16.msra.mxu0 %v6887
  %7291 = vmatprep.subr.bf16.mxu0 %v6890
  %7292 = vmatpush1.bf16.msra.mxu0 %v6889
  %7293 = vmatprep.subr.bf16.mxu0 %v6892
  %7294 = vmatpush1.bf16.msra.mxu0 %v6891
  %7295 = vmatprep.subr.bf16.mxu0 %v6894
  %7296 = vmatpush1.bf16.msra.mxu0 %v6893
  %7297 = vmatprep.mubr.bf16.mxu0 %v2066
  %7298 = vmatmul.mubr.bf16.gmra.mrb[0].mxu0 %v2065
  %v7299 = vpop.f32.mrb[0].mxu0
  %v7300 = vadd.f32 %v7259, %v7299
  %v7301 = vpop.f32.mrb[0].mxu0
  %v7302 = vadd.f32 %v7261, %v7301
  %v7303 = vpop.f32.mrb[0].mxu0
  %v7304 = vpop.f32.mrb[0].mxu0
  %7305 = vdwg.mxu0
  %7306 = vmatprep.subr.bf16.mxu0 %v6896
  %7307 = vmatpush1.bf16.msra.mxu0 %v6895
  %7308 = vmatprep.subr.bf16.mxu0 %v6898
  %7309 = vmatpush1.bf16.msra.mxu0 %v6897
  %7310 = vmatprep.subr.bf16.mxu0 %v6900
  %7311 = vmatpush1.bf16.msra.mxu0 %v6899
  %7312 = vmatprep.subr.bf16.mxu0 %v6902
  %7313 = vmatpush1.bf16.msra.mxu0 %v6901
  %7314 = vmatprep.subr.bf16.mxu0 %v6904
  %7315 = vmatpush1.bf16.msra.mxu0 %v6903
  %7316 = vmatprep.subr.bf16.mxu0 %v6906
  %7317 = vmatpush1.bf16.msra.mxu0 %v6905
  %7318 = vmatprep.subr.bf16.mxu0 %v6908
  %7319 = vmatpush1.bf16.msra.mxu0 %v6907
  %7320 = vmatprep.subr.bf16.mxu0 %v6910
  %7321 = vmatpush1.bf16.msra.mxu0 %v6909
  %7322 = vmatprep.subr.bf16.mxu0 %v6912
  %7323 = vmatpush1.bf16.msra.mxu0 %v6911
  %7324 = vmatprep.subr.bf16.mxu0 %v6914
  %7325 = vmatpush1.bf16.msra.mxu0 %v6913
  %7326 = vmatprep.subr.bf16.mxu0 %v6916
  %7327 = vmatpush1.bf16.msra.mxu0 %v6915
  %7328 = vmatprep.subr.bf16.mxu0 %v6918
  %7329 = vmatpush1.bf16.msra.mxu0 %v6917
  %7330 = vmatprep.subr.bf16.mxu0 %v6920
  %7331 = vmatpush1.bf16.msra.mxu0 %v6919
  %7332 = vmatprep.subr.bf16.mxu0 %v6922
  %7333 = vmatpush1.bf16.msra.mxu0 %v6921
  %7334 = vmatprep.subr.bf16.mxu0 %v6924
  %7335 = vmatpush1.bf16.msra.mxu0 %v6923
  %7336 = vmatprep.subr.bf16.mxu0 %v6926
  %7337 = vmatpush1.bf16.msra.mxu0 %v6925
  %7338 = vmatprep.mubr.bf16.mxu0 %v2068
  %7339 = vmatmul.mubr.bf16.gmra.mrb[0].mxu0 %v2067
  %v7340 = vpop.f32.mrb[0].mxu0
  %v7341 = vadd.f32 %v7300, %v7340
  %v7342 = vpop.f32.mrb[0].mxu0
  %v7343 = vadd.f32 %v7302, %v7342
  %v7344 = vpop.f32.mrb[0].mxu0
  %v7345 = vpop.f32.mrb[0].mxu0
  %7346 = vdwg.mxu0
  %7347 = vmatprep.subr.bf16.mxu0 %v6928
  %7348 = vmatpush1.bf16.msra.mxu0 %v6927
  %7349 = vmatprep.subr.bf16.mxu0 %v6930
  %7350 = vmatpush1.bf16.msra.mxu0 %v6929
  %7351 = vmatprep.subr.bf16.mxu0 %v6932
  %7352 = vmatpush1.bf16.msra.mxu0 %v6931
  %7353 = vmatprep.subr.bf16.mxu0 %v6934
  %7354 = vmatpush1.bf16.msra.mxu0 %v6933
  %7355 = vmatprep.subr.bf16.mxu0 %v6936
  %7356 = vmatpush1.bf16.msra.mxu0 %v6935
  %7357 = vmatprep.subr.bf16.mxu0 %v6938
  %7358 = vmatpush1.bf16.msra.mxu0 %v6937
  %7359 = vmatprep.subr.bf16.mxu0 %v6940
  %7360 = vmatpush1.bf16.msra.mxu0 %v6939
  %7361 = vmatprep.subr.bf16.mxu0 %v6942
  %7362 = vmatpush1.bf16.msra.mxu0 %v6941
  %7363 = vmatprep.subr.bf16.mxu0 %v6944
  %7364 = vmatpush1.bf16.msra.mxu0 %v6943
  %7365 = vmatprep.subr.bf16.mxu0 %v6946
  %7366 = vmatpush1.bf16.msra.mxu0 %v6945
  %7367 = vmatprep.subr.bf16.mxu0 %v6948
  %7368 = vmatpush1.bf16.msra.mxu0 %v6947
  %7369 = vmatprep.subr.bf16.mxu0 %v6950
  %7370 = vmatpush1.bf16.msra.mxu0 %v6949
  %7371 = vmatprep.subr.bf16.mxu0 %v6952
  %7372 = vmatpush1.bf16.msra.mxu0 %v6951
  %7373 = vmatprep.subr.bf16.mxu0 %v6954
  %7374 = vmatpush1.bf16.msra.mxu0 %v6953
  %7375 = vmatprep.subr.bf16.mxu0 %v6956
  %7376 = vmatpush1.bf16.msra.mxu0 %v6955
  %7377 = vmatprep.subr.bf16.mxu0 %v6958
  %7378 = vmatpush1.bf16.msra.mxu0 %v6957
  %7379 = vmatprep.mubr.bf16.mxu0 %v2070
  %7380 = vmatmul.mubr.bf16.gmra.mrb[0].mxu0 %v2069
  %v7381 = vpop.f32.mrb[0].mxu0
  %v7382 = vadd.f32 %v7341, %v7381
  %v7383 = vpop.f32.mrb[0].mxu0
  %v7384 = vadd.f32 %v7343, %v7383
  %v7385 = vpop.f32.mrb[0].mxu0
  %v7386 = vpop.f32.mrb[0].mxu0
  %7387 = vdwg.mxu0
  %7388 = vmatprep.subr.bf16.mxu0 %v6960
  %7389 = vmatpush1.bf16.msra.mxu0 %v6959
  %7390 = vmatprep.subr.bf16.mxu0 %v6962
  %7391 = vmatpush1.bf16.msra.mxu0 %v6961
  %7392 = vmatprep.subr.bf16.mxu0 %v6964
  %7393 = vmatpush1.bf16.msra.mxu0 %v6963
  %7394 = vmatprep.subr.bf16.mxu0 %v6966
  %7395 = vmatpush1.bf16.msra.mxu0 %v6965
  %7396 = vmatprep.subr.bf16.mxu0 %v6968
  %7397 = vmatpush1.bf16.msra.mxu0 %v6967
  %7398 = vmatprep.subr.bf16.mxu0 %v6970
  %7399 = vmatpush1.bf16.msra.mxu0 %v6969
  %7400 = vmatprep.subr.bf16.mxu0 %v6972
  %7401 = vmatpush1.bf16.msra.mxu0 %v6971
  %7402 = vmatprep.subr.bf16.mxu0 %v6974
  %7403 = vmatpush1.bf16.msra.mxu0 %v6973
  %7404 = vmatprep.subr.bf16.mxu0 %v6976
  %7405 = vmatpush1.bf16.msra.mxu0 %v6975
  %7406 = vmatprep.subr.bf16.mxu0 %v6978
  %7407 = vmatpush1.bf16.msra.mxu0 %v6977
  %7408 = vmatprep.subr.bf16.mxu0 %v6980
  %7409 = vmatpush1.bf16.msra.mxu0 %v6979
  %7410 = vmatprep.subr.bf16.mxu0 %v6982
  %7411 = vmatpush1.bf16.msra.mxu0 %v6981
  %7412 = vmatprep.subr.bf16.mxu0 %v6984
  %7413 = vmatpush1.bf16.msra.mxu0 %v6983
  %7414 = vmatprep.subr.bf16.mxu0 %v6986
  %7415 = vmatpush1.bf16.msra.mxu0 %v6985
  %7416 = vmatprep.subr.bf16.mxu0 %v6988
  %7417 = vmatpush1.bf16.msra.mxu0 %v6987
  %7418 = vmatprep.subr.bf16.mxu0 %v6990
  %7419 = vmatpush1.bf16.msra.mxu0 %v6989
  %7420 = vmatprep.mubr.bf16.mxu0 %v2072
  %7421 = vmatmul.mubr.bf16.gmra.mrb[0].mxu0 %v2071
  %v7422 = vpop.f32.mrb[0].mxu0
  %v7423 = vadd.f32 %v7382, %v7422
  %v7424 = vpop.f32.mrb[0].mxu0
  %v7425 = vadd.f32 %v7384, %v7424
  %v7426 = vpop.f32.mrb[0].mxu0
  %v7427 = vpop.f32.mrb[0].mxu0
  %7428 = vdwg.mxu0
  %v7429 = vmax.f32 %v7423, 0.0
  %v7430 = vmax.f32 %v7425, 0.0
  %v7431 = vpack.c.bf16 %v7429, %v7429
  %v7432 = vpack.c.bf16 %v7430, %v7430
  %v7433 = vld [vmem:[%s11] sm:$0xf]
  %v7434 = vld [vmem:[%s11 + $0x4] sm:$0xf]
  %v7435 = vld [vmem:[%s11 + $0x8] sm:$0xf]
  %v7436 = vld [vmem:[%s11 + $0xc] sm:$0xf]
  %v7437 = vld [vmem:[%s11 + $0x10] sm:$0xf]
  %v7438 = vld [vmem:[%s11 + $0x14] sm:$0xf]
  %v7439 = vld [vmem:[%s11 + $0x18] sm:$0xf]
  %v7440 = vld [vmem:[%s11 + $0x1c] sm:$0xf]
  %v7441 = vld [vmem:[%s11 + $0x20] sm:$0xf]
  %v7442 = vld [vmem:[%s11 + $0x24] sm:$0xf]
  %v7443 = vld [vmem:[%s11 + $0x28] sm:$0xf]
  %v7444 = vld [vmem:[%s11 + $0x2c] sm:$0xf]
  %v7445 = vld [vmem:[%s11 + $0x30] sm:$0xf]
  %v7446 = vld [vmem:[%s11 + $0x34] sm:$0xf]
  %v7447 = vld [vmem:[%s11 + $0x38] sm:$0xf]
  %v7448 = vld [vmem:[%s11 + $0x3c] sm:$0xf]
  %v7449 = vld [vmem:[%s11 + $0x40] sm:$0xf]
  %v7450 = vld [vmem:[%s11 + $0x44] sm:$0xf]
  %v7451 = vld [vmem:[%s11 + $0x48] sm:$0xf]
  %v7452 = vld [vmem:[%s11 + $0x4c] sm:$0xf]
  %v7453 = vld [vmem:[%s11 + $0x50] sm:$0xf]
  %v7454 = vld [vmem:[%s11 + $0x54] sm:$0xf]
  %v7455 = vld [vmem:[%s11 + $0x58] sm:$0xf]
  %v7456 = vld [vmem:[%s11 + $0x5c] sm:$0xf]
  %v7457 = vld [vmem:[%s11 + $0x60] sm:$0xf]
  %v7458 = vld [vmem:[%s11 + $0x64] sm:$0xf]
  %v7459 = vld [vmem:[%s11 + $0x68] sm:$0xf]
  %v7460 = vld [vmem:[%s11 + $0x6c] sm:$0xf]
  %v7461 = vld [vmem:[%s11 + $0x70] sm:$0xf]
  %v7462 = vld [vmem:[%s11 + $0x74] sm:$0xf]
  %v7463 = vld [vmem:[%s11 + $0x78] sm:$0xf]
  %v7464 = vld [vmem:[%s11 + $0x7c] sm:$0xf]
  %v7465 = vld [vmem:[%s14 + $0x32] sm:$0x1]
  %v7467 = vlaneseq
  %v7468 = vshrl.u32 %v7467, 7
  %v7469 = vsub.s32 0, %v7468
  %v7470 = vrot.slane %v7465, %v7469
  %v7504 = vunpack.c.l.b16 %v7433
  %v7505 = vunpack.c.l.b16 %v7434
  %v7506 = vunpack.c.l.b16 %v7435
  %v7507 = vunpack.c.l.b16 %v7436
  %v7508 = vunpack.c.l.b16 %v7437
  %v7509 = vunpack.c.l.b16 %v7438
  %v7510 = vunpack.c.l.b16 %v7439
  %v7511 = vunpack.c.l.b16 %v7440
  %v7512 = vunpack.c.l.b16 %v7441
  %v7513 = vunpack.c.l.b16 %v7442
  %v7514 = vunpack.c.l.b16 %v7443
  %v7515 = vunpack.c.l.b16 %v7444
  %v7516 = vunpack.c.l.b16 %v7445
  %v7517 = vunpack.c.l.b16 %v7446
  %v7518 = vunpack.c.l.b16 %v7447
  %v7519 = vunpack.c.l.b16 %v7448
  %v7520 = vunpack.c.l.b16 %v7449
  %v7521 = vunpack.c.l.b16 %v7450
  %v7522 = vunpack.c.l.b16 %v7451
  %v7523 = vunpack.c.l.b16 %v7452
  %v7524 = vunpack.c.l.b16 %v7453
  %v7525 = vunpack.c.l.b16 %v7454
  %v7526 = vunpack.c.l.b16 %v7455
  %v7527 = vunpack.c.l.b16 %v7456
  %v7528 = vunpack.c.l.b16 %v7457
  %v7529 = vunpack.c.l.b16 %v7458
  %v7530 = vunpack.c.l.b16 %v7459
  %v7531 = vunpack.c.l.b16 %v7460
  %v7532 = vunpack.c.l.b16 %v7461
  %v7533 = vunpack.c.l.b16 %v7462
  %v7534 = vunpack.c.l.b16 %v7463
  %v7535 = vunpack.c.l.b16 %v7464
  %v7536 = vpack.c.b16 %v7505, %v7504
  %v7537 = vpack.c.b16 %v7507, %v7506
  %v7538 = vpack.c.b16 %v7509, %v7508
  %v7539 = vpack.c.b16 %v7511, %v7510
  %v7540 = vpack.c.b16 %v7513, %v7512
  %v7541 = vpack.c.b16 %v7515, %v7514
  %v7542 = vpack.c.b16 %v7517, %v7516
  %v7543 = vpack.c.b16 %v7519, %v7518
  %v7544 = vpack.c.b16 %v7521, %v7520
  %v7545 = vpack.c.b16 %v7523, %v7522
  %v7546 = vpack.c.b16 %v7525, %v7524
  %v7547 = vpack.c.b16 %v7527, %v7526
  %v7548 = vpack.c.b16 %v7529, %v7528
  %v7549 = vpack.c.b16 %v7531, %v7530
  %v7550 = vpack.c.b16 %v7533, %v7532
  %v7551 = vpack.c.b16 %v7535, %v7534
  %7568 = vmatprep.subr.bf16.mxu0 0
  %7569 = vmatpush1.bf16.msra.mxu0 %v7536
  %7570 = vmatprep.subr.bf16.mxu0 0
  %7571 = vmatpush1.bf16.msra.mxu0 %v7537
  %7572 = vmatprep.subr.bf16.mxu0 0
  %7573 = vmatpush1.bf16.msra.mxu0 %v7538
  %7574 = vmatprep.subr.bf16.mxu0 0
  %7575 = vmatpush1.bf16.msra.mxu0 %v7539
  %7576 = vmatprep.subr.bf16.mxu0 0
  %7577 = vmatpush1.bf16.msra.mxu0 %v7540
  %7578 = vmatprep.subr.bf16.mxu0 0
  %7579 = vmatpush1.bf16.msra.mxu0 %v7541
  %7580 = vmatprep.subr.bf16.mxu0 0
  %7581 = vmatpush1.bf16.msra.mxu0 %v7542
  %7582 = vmatprep.subr.bf16.mxu0 0
  %7583 = vmatpush1.bf16.msra.mxu0 %v7543
  %7584 = vmatprep.subr.bf16.mxu0 0
  %7585 = vmatpush1.bf16.msra.mxu0 %v7544
  %7586 = vmatprep.subr.bf16.mxu0 0
  %7587 = vmatpush1.bf16.msra.mxu0 %v7545
  %7588 = vmatprep.subr.bf16.mxu0 0
  %7589 = vmatpush1.bf16.msra.mxu0 %v7546
  %7590 = vmatprep.subr.bf16.mxu0 0
  %7591 = vmatpush1.bf16.msra.mxu0 %v7547
  %7592 = vmatprep.subr.bf16.mxu0 0
  %7593 = vmatpush1.bf16.msra.mxu0 %v7548
  %7594 = vmatprep.subr.bf16.mxu0 0
  %7595 = vmatpush1.bf16.msra.mxu0 %v7549
  %7596 = vmatprep.subr.bf16.mxu0 0
  %7597 = vmatpush1.bf16.msra.mxu0 %v7550
  %7598 = vmatprep.subr.bf16.mxu0 0
  %7599 = vmatpush1.bf16.msra.mxu0 %v7551
  %7600 = vmatprep.mubr.bf16.mxu0 %v7432
  %7601 = vmatmul.mubr.bf16.gmra.mrb[0].mxu0 %v7431
  %v7602 = vpop.f32.mrb[0].mxu0
  %v7603 = vadd.f32 %v7470, %v7602
  %v7604 = vpop.f32.mrb[0].mxu0
  %v7605 = vpop.f32.mrb[0].mxu0
  %v7606 = vpop.f32.mrb[0].mxu0
  %7607 = vdwg.mxu0
  %v7608 = vld [vmem:[%s12] sm:$0xff]
  %v7609 = vld [vmem:[%s12 + $0x8] sm:$0xff]
  %v7610 = vld [vmem:[%s12 + $0x10] sm:$0xff]
  %v7611 = vld [vmem:[%s12 + $0x18] sm:$0xff]
  %v7612 = vld [vmem:[%s12 + $0x20] sm:$0xff]
  %v7613 = vld [vmem:[%s12 + $0x28] sm:$0xff]
  %v7614 = vld [vmem:[%s12 + $0x30] sm:$0xff]
  %v7615 = vld [vmem:[%s12 + $0x38] sm:$0xff]
  %v7616 = vld [vmem:[%s12 + $0x40] sm:$0xff]
  %v7617 = vld [vmem:[%s12 + $0x48] sm:$0xff]
  %v7618 = vld [vmem:[%s12 + $0x50] sm:$0xff]
  %v7619 = vld [vmem:[%s12 + $0x58] sm:$0xff]
  %v7620 = vld [vmem:[%s12 + $0x60] sm:$0xff]
  %v7621 = vld [vmem:[%s12 + $0x68] sm:$0xff]
  %v7622 = vld [vmem:[%s12 + $0x70] sm:$0xff]
  %v7623 = vld [vmem:[%s12 + $0x78] sm:$0xff]
  %v7624 = vld [vmem:[%s12 + $0x80] sm:$0xff]
  %v7625 = vld [vmem:[%s12 + $0x88] sm:$0xff]
  %v7626 = vld [vmem:[%s12 + $0x90] sm:$0xff]
  %v7627 = vld [vmem:[%s12 + $0x98] sm:$0xff]
  %v7628 = vld [vmem:[%s12 + $0xa0] sm:$0xff]
  %v7629 = vld [vmem:[%s12 + $0xa8] sm:$0xff]
  %v7630 = vld [vmem:[%s12 + $0xb0] sm:$0xff]
  %v7631 = vld [vmem:[%s12 + $0xb8] sm:$0xff]
  %v7632 = vld [vmem:[%s12 + $0xc0] sm:$0xff]
  %v7633 = vld [vmem:[%s12 + $0xc8] sm:$0xff]
  %v7634 = vld [vmem:[%s12 + $0xd0] sm:$0xff]
  %v7635 = vld [vmem:[%s12 + $0xd8] sm:$0xff]
  %v7636 = vld [vmem:[%s12 + $0xe0] sm:$0xff]
  %v7637 = vld [vmem:[%s12 + $0xe8] sm:$0xff]
  %v7638 = vld [vmem:[%s12 + $0xf0] sm:$0xff]
  %v7639 = vld [vmem:[%s12 + $0xf8] sm:$0xff]
  %v7640 = vld [vmem:[%s12 + $0x100] sm:$0xff]
  %v7641 = vld [vmem:[%s12 + $0x108] sm:$0xff]
  %v7642 = vld [vmem:[%s12 + $0x110] sm:$0xff]
  %v7643 = vld [vmem:[%s12 + $0x118] sm:$0xff]
  %v7644 = vld [vmem:[%s12 + $0x120] sm:$0xff]
  %v7645 = vld [vmem:[%s12 + $0x128] sm:$0xff]
  %v7646 = vld [vmem:[%s12 + $0x130] sm:$0xff]
  %v7647 = vld [vmem:[%s12 + $0x138] sm:$0xff]
  %v7648 = vld [vmem:[%s12 + $0x140] sm:$0xff]
  %v7649 = vld [vmem:[%s12 + $0x148] sm:$0xff]
  %v7650 = vld [vmem:[%s12 + $0x150] sm:$0xff]
  %v7651 = vld [vmem:[%s12 + $0x158] sm:$0xff]
  %v7652 = vld [vmem:[%s12 + $0x160] sm:$0xff]
  %v7653 = vld [vmem:[%s12 + $0x168] sm:$0xff]
  %v7654 = vld [vmem:[%s12 + $0x170] sm:$0xff]
  %v7655 = vld [vmem:[%s12 + $0x178] sm:$0xff]
  %v7656 = vld [vmem:[%s12 + $0x180] sm:$0xff]
  %v7657 = vld [vmem:[%s12 + $0x188] sm:$0xff]
  %v7658 = vld [vmem:[%s12 + $0x190] sm:$0xff]
  %v7659 = vld [vmem:[%s12 + $0x198] sm:$0xff]
  %v7660 = vld [vmem:[%s12 + $0x1a0] sm:$0xff]
  %v7661 = vld [vmem:[%s12 + $0x1a8] sm:$0xff]
  %v7662 = vld [vmem:[%s12 + $0x1b0] sm:$0xff]
  %v7663 = vld [vmem:[%s12 + $0x1b8] sm:$0xff]
  %v7664 = vld [vmem:[%s12 + $0x1c0] sm:$0xff]
  %v7665 = vld [vmem:[%s12 + $0x1c8] sm:$0xff]
  %v7666 = vld [vmem:[%s12 + $0x1d0] sm:$0xff]
  %v7667 = vld [vmem:[%s12 + $0x1d8] sm:$0xff]
  %v7668 = vld [vmem:[%s12 + $0x1e0] sm:$0xff]
  %v7669 = vld [vmem:[%s12 + $0x1e8] sm:$0xff]
  %v7670 = vld [vmem:[%s12 + $0x1f0] sm:$0xff]
  %v7671 = vld [vmem:[%s12 + $0x1f8] sm:$0xff]
  %v7672 = vld [vmem:[%s12 + $0x200] sm:$0xff]
  %v7673 = vld [vmem:[%s12 + $0x208] sm:$0xff]
  %v7674 = vld [vmem:[%s12 + $0x210] sm:$0xff]
  %v7675 = vld [vmem:[%s12 + $0x218] sm:$0xff]
  %v7676 = vld [vmem:[%s12 + $0x220] sm:$0xff]
  %v7677 = vld [vmem:[%s12 + $0x228] sm:$0xff]
  %v7678 = vld [vmem:[%s12 + $0x230] sm:$0xff]
  %v7679 = vld [vmem:[%s12 + $0x238] sm:$0xff]
  %v7680 = vld [vmem:[%s12 + $0x240] sm:$0xff]
  %v7681 = vld [vmem:[%s12 + $0x248] sm:$0xff]
  %v7682 = vld [vmem:[%s12 + $0x250] sm:$0xff]
  %v7683 = vld [vmem:[%s12 + $0x258] sm:$0xff]
  %v7684 = vld [vmem:[%s12 + $0x260] sm:$0xff]
  %v7685 = vld [vmem:[%s12 + $0x268] sm:$0xff]
  %v7686 = vld [vmem:[%s12 + $0x270] sm:$0xff]
  %v7687 = vld [vmem:[%s12 + $0x278] sm:$0xff]
  %v7688 = vld [vmem:[%s12 + $0x280] sm:$0xff]
  %v7689 = vld [vmem:[%s12 + $0x288] sm:$0xff]
  %v7690 = vld [vmem:[%s12 + $0x290] sm:$0xff]
  %v7691 = vld [vmem:[%s12 + $0x298] sm:$0xff]
  %v7692 = vld [vmem:[%s12 + $0x2a0] sm:$0xff]
  %v7693 = vld [vmem:[%s12 + $0x2a8] sm:$0xff]
  %v7694 = vld [vmem:[%s12 + $0x2b0] sm:$0xff]
  %v7695 = vld [vmem:[%s12 + $0x2b8] sm:$0xff]
  %v7696 = vld [vmem:[%s12 + $0x2c0] sm:$0xff]
  %v7697 = vld [vmem:[%s12 + $0x2c8] sm:$0xff]
  %v7698 = vld [vmem:[%s12 + $0x2d0] sm:$0xff]
  %v7699 = vld [vmem:[%s12 + $0x2d8] sm:$0xff]
  %v7700 = vld [vmem:[%s12 + $0x2e0] sm:$0xff]
  %v7701 = vld [vmem:[%s12 + $0x2e8] sm:$0xff]
  %v7702 = vld [vmem:[%s12 + $0x2f0] sm:$0xff]
  %v7703 = vld [vmem:[%s12 + $0x2f8] sm:$0xff]
  %v7704 = vld [vmem:[%s12 + $0x300] sm:$0xff]
  %v7705 = vld [vmem:[%s12 + $0x308] sm:$0xff]
  %v7706 = vld [vmem:[%s12 + $0x310] sm:$0xff]
  %v7707 = vld [vmem:[%s12 + $0x318] sm:$0xff]
  %v7708 = vld [vmem:[%s12 + $0x320] sm:$0xff]
  %v7709 = vld [vmem:[%s12 + $0x328] sm:$0xff]
  %v7710 = vld [vmem:[%s12 + $0x330] sm:$0xff]
  %v7711 = vld [vmem:[%s12 + $0x338] sm:$0xff]
  %v7712 = vld [vmem:[%s12 + $0x340] sm:$0xff]
  %v7713 = vld [vmem:[%s12 + $0x348] sm:$0xff]
  %v7714 = vld [vmem:[%s12 + $0x350] sm:$0xff]
  %v7715 = vld [vmem:[%s12 + $0x358] sm:$0xff]
  %v7716 = vld [vmem:[%s12 + $0x360] sm:$0xff]
  %v7717 = vld [vmem:[%s12 + $0x368] sm:$0xff]
  %v7718 = vld [vmem:[%s12 + $0x370] sm:$0xff]
  %v7719 = vld [vmem:[%s12 + $0x378] sm:$0xff]
  %v7720 = vld [vmem:[%s12 + $0x380] sm:$0xff]
  %v7721 = vld [vmem:[%s12 + $0x388] sm:$0xff]
  %v7722 = vld [vmem:[%s12 + $0x390] sm:$0xff]
  %v7723 = vld [vmem:[%s12 + $0x398] sm:$0xff]
  %v7724 = vld [vmem:[%s12 + $0x3a0] sm:$0xff]
  %v7725 = vld [vmem:[%s12 + $0x3a8] sm:$0xff]
  %v7726 = vld [vmem:[%s12 + $0x3b0] sm:$0xff]
  %v7727 = vld [vmem:[%s12 + $0x3b8] sm:$0xff]
  %v7728 = vld [vmem:[%s12 + $0x3c0] sm:$0xff]
  %v7729 = vld [vmem:[%s12 + $0x3c8] sm:$0xff]
  %v7730 = vld [vmem:[%s12 + $0x3d0] sm:$0xff]
  %v7731 = vld [vmem:[%s12 + $0x3d8] sm:$0xff]
  %v7732 = vld [vmem:[%s12 + $0x3e0] sm:$0xff]
  %v7733 = vld [vmem:[%s12 + $0x3e8] sm:$0xff]
  %v7734 = vld [vmem:[%s12 + $0x3f0] sm:$0xff]
  %v7735 = vld [vmem:[%s12 + $0x3f8] sm:$0xff]
  %v7736 = vld [vmem:[%s14 + $0x33] sm:$0xf]
  %v7738 = vlaneseq
  %v7739 = vshrl.u32 %v7738, 7
  %v7740 = vsub.s32 0, %v7739
  %v7741 = vrot.slane %v7736, %v7740
  %v7742 = vlaneseq
  %v7743 = vshrl.u32 %v7742, 7
  %v7744 = vsub.s32 1, %v7743
  %v7745 = vrot.slane %v7736, %v7744
  %v7746 = vlaneseq
  %v7747 = vshrl.u32 %v7746, 7
  %v7748 = vsub.s32 2, %v7747
  %v7749 = vrot.slane %v7736, %v7748
  %v7750 = vlaneseq
  %v7751 = vshrl.u32 %v7750, 7
  %v7752 = vsub.s32 3, %v7751
  %v7753 = vrot.slane %v7736, %v7752
  %v7886 = vunpack.c.l.b16 %v7608
  %v7887 = vunpack.c.h.b16 %v7608
  %v7888 = vunpack.c.l.b16 %v7609
  %v7889 = vunpack.c.h.b16 %v7609
  %v7890 = vunpack.c.l.b16 %v7610
  %v7891 = vunpack.c.h.b16 %v7610
  %v7892 = vunpack.c.l.b16 %v7611
  %v7893 = vunpack.c.h.b16 %v7611
  %v7894 = vunpack.c.l.b16 %v7612
  %v7895 = vunpack.c.h.b16 %v7612
  %v7896 = vunpack.c.l.b16 %v7613
  %v7897 = vunpack.c.h.b16 %v7613
  %v7898 = vunpack.c.l.b16 %v7614
  %v7899 = vunpack.c.h.b16 %v7614
  %v7900 = vunpack.c.l.b16 %v7615
  %v7901 = vunpack.c.h.b16 %v7615
  %v7902 = vunpack.c.l.b16 %v7616
  %v7903 = vunpack.c.h.b16 %v7616
  %v7904 = vunpack.c.l.b16 %v7617
  %v7905 = vunpack.c.h.b16 %v7617
  %v7906 = vunpack.c.l.b16 %v7618
  %v7907 = vunpack.c.h.b16 %v7618
  %v7908 = vunpack.c.l.b16 %v7619
  %v7909 = vunpack.c.h.b16 %v7619
  %v7910 = vunpack.c.l.b16 %v7620
  %v7911 = vunpack.c.h.b16 %v7620
  %v7912 = vunpack.c.l.b16 %v7621
  %v7913 = vunpack.c.h.b16 %v7621
  %v7914 = vunpack.c.l.b16 %v7622
  %v7915 = vunpack.c.h.b16 %v7622
  %v7916 = vunpack.c.l.b16 %v7623
  %v7917 = vunpack.c.h.b16 %v7623
  %v7918 = vunpack.c.l.b16 %v7624
  %v7919 = vunpack.c.h.b16 %v7624
  %v7920 = vunpack.c.l.b16 %v7625
  %v7921 = vunpack.c.h.b16 %v7625
  %v7922 = vunpack.c.l.b16 %v7626
  %v7923 = vunpack.c.h.b16 %v7626
  %v7924 = vunpack.c.l.b16 %v7627
  %v7925 = vunpack.c.h.b16 %v7627
  %v7926 = vunpack.c.l.b16 %v7628
  %v7927 = vunpack.c.h.b16 %v7628
  %v7928 = vunpack.c.l.b16 %v7629
  %v7929 = vunpack.c.h.b16 %v7629
  %v7930 = vunpack.c.l.b16 %v7630
  %v7931 = vunpack.c.h.b16 %v7630
  %v7932 = vunpack.c.l.b16 %v7631
  %v7933 = vunpack.c.h.b16 %v7631
  %v7934 = vunpack.c.l.b16 %v7632
  %v7935 = vunpack.c.h.b16 %v7632
  %v7936 = vunpack.c.l.b16 %v7633
  %v7937 = vunpack.c.h.b16 %v7633
  %v7938 = vunpack.c.l.b16 %v7634
  %v7939 = vunpack.c.h.b16 %v7634
  %v7940 = vunpack.c.l.b16 %v7635
  %v7941 = vunpack.c.h.b16 %v7635
  %v7942 = vunpack.c.l.b16 %v7636
  %v7943 = vunpack.c.h.b16 %v7636
  %v7944 = vunpack.c.l.b16 %v7637
  %v7945 = vunpack.c.h.b16 %v7637
  %v7946 = vunpack.c.l.b16 %v7638
  %v7947 = vunpack.c.h.b16 %v7638
  %v7948 = vunpack.c.l.b16 %v7639
  %v7949 = vunpack.c.h.b16 %v7639
  %v7950 = vunpack.c.l.b16 %v7640
  %v7951 = vunpack.c.h.b16 %v7640
  %v7952 = vunpack.c.l.b16 %v7641
  %v7953 = vunpack.c.h.b16 %v7641
  %v7954 = vunpack.c.l.b16 %v7642
  %v7955 = vunpack.c.h.b16 %v7642
  %v7956 = vunpack.c.l.b16 %v7643
  %v7957 = vunpack.c.h.b16 %v7643
  %v7958 = vunpack.c.l.b16 %v7644
  %v7959 = vunpack.c.h.b16 %v7644
  %v7960 = vunpack.c.l.b16 %v7645
  %v7961 = vunpack.c.h.b16 %v7645
  %v7962 = vunpack.c.l.b16 %v7646
  %v7963 = vunpack.c.h.b16 %v7646
  %v7964 = vunpack.c.l.b16 %v7647
  %v7965 = vunpack.c.h.b16 %v7647
  %v7966 = vunpack.c.l.b16 %v7648
  %v7967 = vunpack.c.h.b16 %v7648
  %v7968 = vunpack.c.l.b16 %v7649
  %v7969 = vunpack.c.h.b16 %v7649
  %v7970 = vunpack.c.l.b16 %v7650
  %v7971 = vunpack.c.h.b16 %v7650
  %v7972 = vunpack.c.l.b16 %v7651
  %v7973 = vunpack.c.h.b16 %v7651
  %v7974 = vunpack.c.l.b16 %v7652
  %v7975 = vunpack.c.h.b16 %v7652
  %v7976 = vunpack.c.l.b16 %v7653
  %v7977 = vunpack.c.h.b16 %v7653
  %v7978 = vunpack.c.l.b16 %v7654
  %v7979 = vunpack.c.h.b16 %v7654
  %v7980 = vunpack.c.l.b16 %v7655
  %v7981 = vunpack.c.h.b16 %v7655
  %v7982 = vunpack.c.l.b16 %v7656
  %v7983 = vunpack.c.h.b16 %v7656
  %v7984 = vunpack.c.l.b16 %v7657
  %v7985 = vunpack.c.h.b16 %v7657
  %v7986 = vunpack.c.l.b16 %v7658
  %v7987 = vunpack.c.h.b16 %v7658
  %v7988 = vunpack.c.l.b16 %v7659
  %v7989 = vunpack.c.h.b16 %v7659
  %v7990 = vunpack.c.l.b16 %v7660
  %v7991 = vunpack.c.h.b16 %v7660
  %v7992 = vunpack.c.l.b16 %v7661
  %v7993 = vunpack.c.h.b16 %v7661
  %v7994 = vunpack.c.l.b16 %v7662
  %v7995 = vunpack.c.h.b16 %v7662
  %v7996 = vunpack.c.l.b16 %v7663
  %v7997 = vunpack.c.h.b16 %v7663
  %v7998 = vunpack.c.l.b16 %v7664
  %v7999 = vunpack.c.h.b16 %v7664
  %v8000 = vunpack.c.l.b16 %v7665
  %v8001 = vunpack.c.h.b16 %v7665
  %v8002 = vunpack.c.l.b16 %v7666
  %v8003 = vunpack.c.h.b16 %v7666
  %v8004 = vunpack.c.l.b16 %v7667
  %v8005 = vunpack.c.h.b16 %v7667
  %v8006 = vunpack.c.l.b16 %v7668
  %v8007 = vunpack.c.h.b16 %v7668
  %v8008 = vunpack.c.l.b16 %v7669
  %v8009 = vunpack.c.h.b16 %v7669
  %v8010 = vunpack.c.l.b16 %v7670
  %v8011 = vunpack.c.h.b16 %v7670
  %v8012 = vunpack.c.l.b16 %v7671
  %v8013 = vunpack.c.h.b16 %v7671
  %v8014 = vunpack.c.l.b16 %v7672
  %v8015 = vunpack.c.h.b16 %v7672
  %v8016 = vunpack.c.l.b16 %v7673
  %v8017 = vunpack.c.h.b16 %v7673
  %v8018 = vunpack.c.l.b16 %v7674
  %v8019 = vunpack.c.h.b16 %v7674
  %v8020 = vunpack.c.l.b16 %v7675
  %v8021 = vunpack.c.h.b16 %v7675
  %v8022 = vunpack.c.l.b16 %v7676
  %v8023 = vunpack.c.h.b16 %v7676
  %v8024 = vunpack.c.l.b16 %v7677
  %v8025 = vunpack.c.h.b16 %v7677
  %v8026 = vunpack.c.l.b16 %v7678
  %v8027 = vunpack.c.h.b16 %v7678
  %v8028 = vunpack.c.l.b16 %v7679
  %v8029 = vunpack.c.h.b16 %v7679
  %v8030 = vunpack.c.l.b16 %v7680
  %v8031 = vunpack.c.h.b16 %v7680
  %v8032 = vunpack.c.l.b16 %v7681
  %v8033 = vunpack.c.h.b16 %v7681
  %v8034 = vunpack.c.l.b16 %v7682
  %v8035 = vunpack.c.h.b16 %v7682
  %v8036 = vunpack.c.l.b16 %v7683
  %v8037 = vunpack.c.h.b16 %v7683
  %v8038 = vunpack.c.l.b16 %v7684
  %v8039 = vunpack.c.h.b16 %v7684
  %v8040 = vunpack.c.l.b16 %v7685
  %v8041 = vunpack.c.h.b16 %v7685
  %v8042 = vunpack.c.l.b16 %v7686
  %v8043 = vunpack.c.h.b16 %v7686
  %v8044 = vunpack.c.l.b16 %v7687
  %v8045 = vunpack.c.h.b16 %v7687
  %v8046 = vunpack.c.l.b16 %v7688
  %v8047 = vunpack.c.h.b16 %v7688
  %v8048 = vunpack.c.l.b16 %v7689
  %v8049 = vunpack.c.h.b16 %v7689
  %v8050 = vunpack.c.l.b16 %v7690
  %v8051 = vunpack.c.h.b16 %v7690
  %v8052 = vunpack.c.l.b16 %v7691
  %v8053 = vunpack.c.h.b16 %v7691
  %v8054 = vunpack.c.l.b16 %v7692
  %v8055 = vunpack.c.h.b16 %v7692
  %v8056 = vunpack.c.l.b16 %v7693
  %v8057 = vunpack.c.h.b16 %v7693
  %v8058 = vunpack.c.l.b16 %v7694
  %v8059 = vunpack.c.h.b16 %v7694
  %v8060 = vunpack.c.l.b16 %v7695
  %v8061 = vunpack.c.h.b16 %v7695
  %v8062 = vunpack.c.l.b16 %v7696
  %v8063 = vunpack.c.h.b16 %v7696
  %v8064 = vunpack.c.l.b16 %v7697
  %v8065 = vunpack.c.h.b16 %v7697
  %v8066 = vunpack.c.l.b16 %v7698
  %v8067 = vunpack.c.h.b16 %v7698
  %v8068 = vunpack.c.l.b16 %v7699
  %v8069 = vunpack.c.h.b16 %v7699
  %v8070 = vunpack.c.l.b16 %v7700
  %v8071 = vunpack.c.h.b16 %v7700
  %v8072 = vunpack.c.l.b16 %v7701
  %v8073 = vunpack.c.h.b16 %v7701
  %v8074 = vunpack.c.l.b16 %v7702
  %v8075 = vunpack.c.h.b16 %v7702
  %v8076 = vunpack.c.l.b16 %v7703
  %v8077 = vunpack.c.h.b16 %v7703
  %v8078 = vunpack.c.l.b16 %v7704
  %v8079 = vunpack.c.h.b16 %v7704
  %v8080 = vunpack.c.l.b16 %v7705
  %v8081 = vunpack.c.h.b16 %v7705
  %v8082 = vunpack.c.l.b16 %v7706
  %v8083 = vunpack.c.h.b16 %v7706
  %v8084 = vunpack.c.l.b16 %v7707
  %v8085 = vunpack.c.h.b16 %v7707
  %v8086 = vunpack.c.l.b16 %v7708
  %v8087 = vunpack.c.h.b16 %v7708
  %v8088 = vunpack.c.l.b16 %v7709
  %v8089 = vunpack.c.h.b16 %v7709
  %v8090 = vunpack.c.l.b16 %v7710
  %v8091 = vunpack.c.h.b16 %v7710
  %v8092 = vunpack.c.l.b16 %v7711
  %v8093 = vunpack.c.h.b16 %v7711
  %v8094 = vunpack.c.l.b16 %v7712
  %v8095 = vunpack.c.h.b16 %v7712
  %v8096 = vunpack.c.l.b16 %v7713
  %v8097 = vunpack.c.h.b16 %v7713
  %v8098 = vunpack.c.l.b16 %v7714
  %v8099 = vunpack.c.h.b16 %v7714
  %v8100 = vunpack.c.l.b16 %v7715
  %v8101 = vunpack.c.h.b16 %v7715
  %v8102 = vunpack.c.l.b16 %v7716
  %v8103 = vunpack.c.h.b16 %v7716
  %v8104 = vunpack.c.l.b16 %v7717
  %v8105 = vunpack.c.h.b16 %v7717
  %v8106 = vunpack.c.l.b16 %v7718
  %v8107 = vunpack.c.h.b16 %v7718
  %v8108 = vunpack.c.l.b16 %v7719
  %v8109 = vunpack.c.h.b16 %v7719
  %v8110 = vunpack.c.l.b16 %v7720
  %v8111 = vunpack.c.h.b16 %v7720
  %v8112 = vunpack.c.l.b16 %v7721
  %v8113 = vunpack.c.h.b16 %v7721
  %v8114 = vunpack.c.l.b16 %v7722
  %v8115 = vunpack.c.h.b16 %v7722
  %v8116 = vunpack.c.l.b16 %v7723
  %v8117 = vunpack.c.h.b16 %v7723
  %v8118 = vunpack.c.l.b16 %v7724
  %v8119 = vunpack.c.h.b16 %v7724
  %v8120 = vunpack.c.l.b16 %v7725
  %v8121 = vunpack.c.h.b16 %v7725
  %v8122 = vunpack.c.l.b16 %v7726
  %v8123 = vunpack.c.h.b16 %v7726
  %v8124 = vunpack.c.l.b16 %v7727
  %v8125 = vunpack.c.h.b16 %v7727
  %v8126 = vunpack.c.l.b16 %v7728
  %v8127 = vunpack.c.h.b16 %v7728
  %v8128 = vunpack.c.l.b16 %v7729
  %v8129 = vunpack.c.h.b16 %v7729
  %v8130 = vunpack.c.l.b16 %v7730
  %v8131 = vunpack.c.h.b16 %v7730
  %v8132 = vunpack.c.l.b16 %v7731
  %v8133 = vunpack.c.h.b16 %v7731
  %v8134 = vunpack.c.l.b16 %v7732
  %v8135 = vunpack.c.h.b16 %v7732
  %v8136 = vunpack.c.l.b16 %v7733
  %v8137 = vunpack.c.h.b16 %v7733
  %v8138 = vunpack.c.l.b16 %v7734
  %v8139 = vunpack.c.h.b16 %v7734
  %v8140 = vunpack.c.l.b16 %v7735
  %v8141 = vunpack.c.h.b16 %v7735
  %v8142 = vpack.c.b16 %v7890, %v7886
  %v8143 = vpack.c.b16 %v7891, %v7887
  %v8144 = vpack.c.b16 %v7892, %v7888
  %v8145 = vpack.c.b16 %v7893, %v7889
  %v8146 = vpack.c.b16 %v7898, %v7894
  %v8147 = vpack.c.b16 %v7899, %v7895
  %v8148 = vpack.c.b16 %v7900, %v7896
  %v8149 = vpack.c.b16 %v7901, %v7897
  %v8150 = vpack.c.b16 %v7906, %v7902
  %v8151 = vpack.c.b16 %v7907, %v7903
  %v8152 = vpack.c.b16 %v7908, %v7904
  %v8153 = vpack.c.b16 %v7909, %v7905
  %v8154 = vpack.c.b16 %v7914, %v7910
  %v8155 = vpack.c.b16 %v7915, %v7911
  %v8156 = vpack.c.b16 %v7916, %v7912
  %v8157 = vpack.c.b16 %v7917, %v7913
  %v8158 = vpack.c.b16 %v7922, %v7918
  %v8159 = vpack.c.b16 %v7923, %v7919
  %v8160 = vpack.c.b16 %v7924, %v7920
  %v8161 = vpack.c.b16 %v7925, %v7921
  %v8162 = vpack.c.b16 %v7930, %v7926
  %v8163 = vpack.c.b16 %v7931, %v7927
  %v8164 = vpack.c.b16 %v7932, %v7928
  %v8165 = vpack.c.b16 %v7933, %v7929
  %v8166 = vpack.c.b16 %v7938, %v7934
  %v8167 = vpack.c.b16 %v7939, %v7935
  %v8168 = vpack.c.b16 %v7940, %v7936
  %v8169 = vpack.c.b16 %v7941, %v7937
  %v8170 = vpack.c.b16 %v7946, %v7942
  %v8171 = vpack.c.b16 %v7947, %v7943
  %v8172 = vpack.c.b16 %v7948, %v7944
  %v8173 = vpack.c.b16 %v7949, %v7945
  %v8174 = vpack.c.b16 %v7954, %v7950
  %v8175 = vpack.c.b16 %v7955, %v7951
  %v8176 = vpack.c.b16 %v7956, %v7952
  %v8177 = vpack.c.b16 %v7957, %v7953
  %v8178 = vpack.c.b16 %v7962, %v7958
  %v8179 = vpack.c.b16 %v7963, %v7959
  %v8180 = vpack.c.b16 %v7964, %v7960
  %v8181 = vpack.c.b16 %v7965, %v7961
  %v8182 = vpack.c.b16 %v7970, %v7966
  %v8183 = vpack.c.b16 %v7971, %v7967
  %v8184 = vpack.c.b16 %v7972, %v7968
  %v8185 = vpack.c.b16 %v7973, %v7969
  %v8186 = vpack.c.b16 %v7978, %v7974
  %v8187 = vpack.c.b16 %v7979, %v7975
  %v8188 = vpack.c.b16 %v7980, %v7976
  %v8189 = vpack.c.b16 %v7981, %v7977
  %v8190 = vpack.c.b16 %v7986, %v7982
  %v8191 = vpack.c.b16 %v7987, %v7983
  %v8192 = vpack.c.b16 %v7988, %v7984
  %v8193 = vpack.c.b16 %v7989, %v7985
  %v8194 = vpack.c.b16 %v7994, %v7990
  %v8195 = vpack.c.b16 %v7995, %v7991
  %v8196 = vpack.c.b16 %v7996, %v7992
  %v8197 = vpack.c.b16 %v7997, %v7993
  %v8198 = vpack.c.b16 %v8002, %v7998
  %v8199 = vpack.c.b16 %v8003, %v7999
  %v8200 = vpack.c.b16 %v8004, %v8000
  %v8201 = vpack.c.b16 %v8005, %v8001
  %v8202 = vpack.c.b16 %v8010, %v8006
  %v8203 = vpack.c.b16 %v8011, %v8007
  %v8204 = vpack.c.b16 %v8012, %v8008
  %v8205 = vpack.c.b16 %v8013, %v8009
  %v8206 = vpack.c.b16 %v8018, %v8014
  %v8207 = vpack.c.b16 %v8019, %v8015
  %v8208 = vpack.c.b16 %v8020, %v8016
  %v8209 = vpack.c.b16 %v8021, %v8017
  %v8210 = vpack.c.b16 %v8026, %v8022
  %v8211 = vpack.c.b16 %v8027, %v8023
  %v8212 = vpack.c.b16 %v8028, %v8024
  %v8213 = vpack.c.b16 %v8029, %v8025
  %v8214 = vpack.c.b16 %v8034, %v8030
  %v8215 = vpack.c.b16 %v8035, %v8031
  %v8216 = vpack.c.b16 %v8036, %v8032
  %v8217 = vpack.c.b16 %v8037, %v8033
  %v8218 = vpack.c.b16 %v8042, %v8038
  %v8219 = vpack.c.b16 %v8043, %v8039
  %v8220 = vpack.c.b16 %v8044, %v8040
  %v8221 = vpack.c.b16 %v8045, %v8041
  %v8222 = vpack.c.b16 %v8050, %v8046
  %v8223 = vpack.c.b16 %v8051, %v8047
  %v8224 = vpack.c.b16 %v8052, %v8048
  %v8225 = vpack.c.b16 %v8053, %v8049
  %v8226 = vpack.c.b16 %v8058, %v8054
  %v8227 = vpack.c.b16 %v8059, %v8055
  %v8228 = vpack.c.b16 %v8060, %v8056
  %v8229 = vpack.c.b16 %v8061, %v8057
  %v8230 = vpack.c.b16 %v8066, %v8062
  %v8231 = vpack.c.b16 %v8067, %v8063
  %v8232 = vpack.c.b16 %v8068, %v8064
  %v8233 = vpack.c.b16 %v8069, %v8065
  %v8234 = vpack.c.b16 %v8074, %v8070
  %v8235 = vpack.c.b16 %v8075, %v8071
  %v8236 = vpack.c.b16 %v8076, %v8072
  %v8237 = vpack.c.b16 %v8077, %v8073
  %v8238 = vpack.c.b16 %v8082, %v8078
  %v8239 = vpack.c.b16 %v8083, %v8079
  %v8240 = vpack.c.b16 %v8084, %v8080
  %v8241 = vpack.c.b16 %v8085, %v8081
  %v8242 = vpack.c.b16 %v8090, %v8086
  %v8243 = vpack.c.b16 %v8091, %v8087
  %v8244 = vpack.c.b16 %v8092, %v8088
  %v8245 = vpack.c.b16 %v8093, %v8089
  %v8246 = vpack.c.b16 %v8098, %v8094
  %v8247 = vpack.c.b16 %v8099, %v8095
  %v8248 = vpack.c.b16 %v8100, %v8096
  %v8249 = vpack.c.b16 %v8101, %v8097
  %v8250 = vpack.c.b16 %v8106, %v8102
  %v8251 = vpack.c.b16 %v8107, %v8103
  %v8252 = vpack.c.b16 %v8108, %v8104
  %v8253 = vpack.c.b16 %v8109, %v8105
  %v8254 = vpack.c.b16 %v8114, %v8110
  %v8255 = vpack.c.b16 %v8115, %v8111
  %v8256 = vpack.c.b16 %v8116, %v8112
  %v8257 = vpack.c.b16 %v8117, %v8113
  %v8258 = vpack.c.b16 %v8122, %v8118
  %v8259 = vpack.c.b16 %v8123, %v8119
  %v8260 = vpack.c.b16 %v8124, %v8120
  %v8261 = vpack.c.b16 %v8125, %v8121
  %v8262 = vpack.c.b16 %v8130, %v8126
  %v8263 = vpack.c.b16 %v8131, %v8127
  %v8264 = vpack.c.b16 %v8132, %v8128
  %v8265 = vpack.c.b16 %v8133, %v8129
  %v8266 = vpack.c.b16 %v8138, %v8134
  %v8267 = vpack.c.b16 %v8139, %v8135
  %v8268 = vpack.c.b16 %v8140, %v8136
  %v8269 = vpack.c.b16 %v8141, %v8137
  %8398 = vmatprep.subr.bf16.mxu0 %v8143
  %8399 = vmatpush1.bf16.msra.mxu0 %v8142
  %8400 = vmatprep.subr.bf16.mxu0 %v8147
  %8401 = vmatpush1.bf16.msra.mxu0 %v8146
  %8402 = vmatprep.subr.bf16.mxu0 %v8151
  %8403 = vmatpush1.bf16.msra.mxu0 %v8150
  %8404 = vmatprep.subr.bf16.mxu0 %v8155
  %8405 = vmatpush1.bf16.msra.mxu0 %v8154
  %8406 = vmatprep.subr.bf16.mxu0 %v8159
  %8407 = vmatpush1.bf16.msra.mxu0 %v8158
  %8408 = vmatprep.subr.bf16.mxu0 %v8163
  %8409 = vmatpush1.bf16.msra.mxu0 %v8162
  %8410 = vmatprep.subr.bf16.mxu0 %v8167
  %8411 = vmatpush1.bf16.msra.mxu0 %v8166
  %8412 = vmatprep.subr.bf16.mxu0 %v8171
  %8413 = vmatpush1.bf16.msra.mxu0 %v8170
  %8414 = vmatprep.subr.bf16.mxu0 %v8175
  %8415 = vmatpush1.bf16.msra.mxu0 %v8174
  %8416 = vmatprep.subr.bf16.mxu0 %v8179
  %8417 = vmatpush1.bf16.msra.mxu0 %v8178
  %8418 = vmatprep.subr.bf16.mxu0 %v8183
  %8419 = vmatpush1.bf16.msra.mxu0 %v8182
  %8420 = vmatprep.subr.bf16.mxu0 %v8187
  %8421 = vmatpush1.bf16.msra.mxu0 %v8186
  %8422 = vmatprep.subr.bf16.mxu0 %v8191
  %8423 = vmatpush1.bf16.msra.mxu0 %v8190
  %8424 = vmatprep.subr.bf16.mxu0 %v8195
  %8425 = vmatpush1.bf16.msra.mxu0 %v8194
  %8426 = vmatprep.subr.bf16.mxu0 %v8199
  %8427 = vmatpush1.bf16.msra.mxu0 %v8198
  %8428 = vmatprep.subr.bf16.mxu0 %v8203
  %8429 = vmatpush1.bf16.msra.mxu0 %v8202
  %8430 = vmatprep.mubr.bf16.mxu0 %v1220
  %8431 = vmatmul.mubr.bf16.gmra.mrb[0].mxu0 %v1219
  %v8432 = vpop.f32.mrb[0].mxu0
  %v8433 = vadd.f32 %v7741, %v8432
  %v8434 = vpop.f32.mrb[0].mxu0
  %v8435 = vadd.f32 %v7745, %v8434
  %v8436 = vpop.f32.mrb[0].mxu0
  %v8437 = vpop.f32.mrb[0].mxu0
  %8438 = vdwg.mxu0
  %8439 = vmatprep.subr.bf16.mxu0 %v8207
  %8440 = vmatpush1.bf16.msra.mxu0 %v8206
  %8441 = vmatprep.subr.bf16.mxu0 %v8211
  %8442 = vmatpush1.bf16.msra.mxu0 %v8210
  %8443 = vmatprep.subr.bf16.mxu0 %v8215
  %8444 = vmatpush1.bf16.msra.mxu0 %v8214
  %8445 = vmatprep.subr.bf16.mxu0 %v8219
  %8446 = vmatpush1.bf16.msra.mxu0 %v8218
  %8447 = vmatprep.subr.bf16.mxu0 %v8223
  %8448 = vmatpush1.bf16.msra.mxu0 %v8222
  %8449 = vmatprep.subr.bf16.mxu0 %v8227
  %8450 = vmatpush1.bf16.msra.mxu0 %v8226
  %8451 = vmatprep.subr.bf16.mxu0 %v8231
  %8452 = vmatpush1.bf16.msra.mxu0 %v8230
  %8453 = vmatprep.subr.bf16.mxu0 %v8235
  %8454 = vmatpush1.bf16.msra.mxu0 %v8234
  %8455 = vmatprep.subr.bf16.mxu0 %v8239
  %8456 = vmatpush1.bf16.msra.mxu0 %v8238
  %8457 = vmatprep.subr.bf16.mxu0 %v8243
  %8458 = vmatpush1.bf16.msra.mxu0 %v8242
  %8459 = vmatprep.subr.bf16.mxu0 %v8247
  %8460 = vmatpush1.bf16.msra.mxu0 %v8246
  %8461 = vmatprep.subr.bf16.mxu0 %v8251
  %8462 = vmatpush1.bf16.msra.mxu0 %v8250
  %8463 = vmatprep.subr.bf16.mxu0 %v8255
  %8464 = vmatpush1.bf16.msra.mxu0 %v8254
  %8465 = vmatprep.subr.bf16.mxu0 %v8259
  %8466 = vmatpush1.bf16.msra.mxu0 %v8258
  %8467 = vmatprep.subr.bf16.mxu0 %v8263
  %8468 = vmatpush1.bf16.msra.mxu0 %v8262
  %8469 = vmatprep.subr.bf16.mxu0 %v8267
  %8470 = vmatpush1.bf16.msra.mxu0 %v8266
  %8471 = vmatprep.mubr.bf16.mxu0 %v1222
  %8472 = vmatmul.mubr.bf16.gmra.mrb[0].mxu0 %v1221
  %v8473 = vpop.f32.mrb[0].mxu0
  %v8474 = vadd.f32 %v8433, %v8473
  %v8475 = vpop.f32.mrb[0].mxu0
  %v8476 = vadd.f32 %v8435, %v8475
  %v8477 = vpop.f32.mrb[0].mxu0
  %v8478 = vpop.f32.mrb[0].mxu0
  %8479 = vdwg.mxu0
  %8480 = vmatprep.subr.bf16.mxu0 %v8145
  %8481 = vmatpush1.bf16.msra.mxu0 %v8144
  %8482 = vmatprep.subr.bf16.mxu0 %v8149
  %8483 = vmatpush1.bf16.msra.mxu0 %v8148
  %8484 = vmatprep.subr.bf16.mxu0 %v8153
  %8485 = vmatpush1.bf16.msra.mxu0 %v8152
  %8486 = vmatprep.subr.bf16.mxu0 %v8157
  %8487 = vmatpush1.bf16.msra.mxu0 %v8156
  %8488 = vmatprep.subr.bf16.mxu0 %v8161
  %8489 = vmatpush1.bf16.msra.mxu0 %v8160
  %8490 = vmatprep.subr.bf16.mxu0 %v8165
  %8491 = vmatpush1.bf16.msra.mxu0 %v8164
  %8492 = vmatprep.subr.bf16.mxu0 %v8169
  %8493 = vmatpush1.bf16.msra.mxu0 %v8168
  %8494 = vmatprep.subr.bf16.mxu0 %v8173
  %8495 = vmatpush1.bf16.msra.mxu0 %v8172
  %8496 = vmatprep.subr.bf16.mxu0 %v8177
  %8497 = vmatpush1.bf16.msra.mxu0 %v8176
  %8498 = vmatprep.subr.bf16.mxu0 %v8181
  %8499 = vmatpush1.bf16.msra.mxu0 %v8180
  %8500 = vmatprep.subr.bf16.mxu0 %v8185
  %8501 = vmatpush1.bf16.msra.mxu0 %v8184
  %8502 = vmatprep.subr.bf16.mxu0 %v8189
  %8503 = vmatpush1.bf16.msra.mxu0 %v8188
  %8504 = vmatprep.subr.bf16.mxu0 %v8193
  %8505 = vmatpush1.bf16.msra.mxu0 %v8192
  %8506 = vmatprep.subr.bf16.mxu0 %v8197
  %8507 = vmatpush1.bf16.msra.mxu0 %v8196
  %8508 = vmatprep.subr.bf16.mxu0 %v8201
  %8509 = vmatpush1.bf16.msra.mxu0 %v8200
  %8510 = vmatprep.subr.bf16.mxu0 %v8205
  %8511 = vmatpush1.bf16.msra.mxu0 %v8204
  %8512 = vmatprep.mubr.bf16.mxu0 %v1220
  %8513 = vmatmul.mubr.bf16.gmra.mrb[0].mxu0 %v1219
  %v8514 = vpop.f32.mrb[0].mxu0
  %v8515 = vadd.f32 %v7749, %v8514
  %v8516 = vpop.f32.mrb[0].mxu0
  %v8517 = vadd.f32 %v7753, %v8516
  %v8518 = vpop.f32.mrb[0].mxu0
  %v8519 = vpop.f32.mrb[0].mxu0
  %8520 = vdwg.mxu0
  %8521 = vmatprep.subr.bf16.mxu0 %v8209
  %8522 = vmatpush1.bf16.msra.mxu0 %v8208
  %8523 = vmatprep.subr.bf16.mxu0 %v8213
  %8524 = vmatpush1.bf16.msra.mxu0 %v8212
  %8525 = vmatprep.subr.bf16.mxu0 %v8217
  %8526 = vmatpush1.bf16.msra.mxu0 %v8216
  %8527 = vmatprep.subr.bf16.mxu0 %v8221
  %8528 = vmatpush1.bf16.msra.mxu0 %v8220
  %8529 = vmatprep.subr.bf16.mxu0 %v8225
  %8530 = vmatpush1.bf16.msra.mxu0 %v8224
  %8531 = vmatprep.subr.bf16.mxu0 %v8229
  %8532 = vmatpush1.bf16.msra.mxu0 %v8228
  %8533 = vmatprep.subr.bf16.mxu0 %v8233
  %8534 = vmatpush1.bf16.msra.mxu0 %v8232
  %8535 = vmatprep.subr.bf16.mxu0 %v8237
  %8536 = vmatpush1.bf16.msra.mxu0 %v8236
  %8537 = vmatprep.subr.bf16.mxu0 %v8241
  %8538 = vmatpush1.bf16.msra.mxu0 %v8240
  %8539 = vmatprep.subr.bf16.mxu0 %v8245
  %8540 = vmatpush1.bf16.msra.mxu0 %v8244
  %8541 = vmatprep.subr.bf16.mxu0 %v8249
  %8542 = vmatpush1.bf16.msra.mxu0 %v8248
  %8543 = vmatprep.subr.bf16.mxu0 %v8253
  %8544 = vmatpush1.bf16.msra.mxu0 %v8252
  %8545 = vmatprep.subr.bf16.mxu0 %v8257
  %8546 = vmatpush1.bf16.msra.mxu0 %v8256
  %8547 = vmatprep.subr.bf16.mxu0 %v8261
  %8548 = vmatpush1.bf16.msra.mxu0 %v8260
  %8549 = vmatprep.subr.bf16.mxu0 %v8265
  %8550 = vmatpush1.bf16.msra.mxu0 %v8264
  %8551 = vmatprep.subr.bf16.mxu0 %v8269
  %8552 = vmatpush1.bf16.msra.mxu0 %v8268
  %8553 = vmatprep.mubr.bf16.mxu0 %v1222
  %8554 = vmatmul.mubr.bf16.gmra.mrb[0].mxu0 %v1221
  %v8555 = vpop.f32.mrb[0].mxu0
  %v8556 = vadd.f32 %v8515, %v8555
  %v8557 = vpop.f32.mrb[0].mxu0
  %v8558 = vadd.f32 %v8517, %v8557
  %v8559 = vpop.f32.mrb[0].mxu0
  %v8560 = vpop.f32.mrb[0].mxu0
  %8561 = vdwg.mxu0
  %v8562 = vmax.f32 %v8474, 0.0
  %v8563 = vmax.f32 %v8476, 0.0
  %v8564 = vmax.f32 %v8556, 0.0
  %v8565 = vmax.f32 %v8558, 0.0
  %v8566 = vpack.c.bf16 %v8562, %v8562
  %v8567 = vpack.c.bf16 %v8563, %v8563
  %v8568 = vpack.c.bf16 %v8564, %v8564
  %v8569 = vpack.c.bf16 %v8565, %v8565
  %v8570 = vld [vmem:[%s13] sm:$0xf]
  %v8571 = vld [vmem:[%s13 + $0x4] sm:$0xf]
  %v8572 = vld [vmem:[%s13 + $0x8] sm:$0xf]
  %v8573 = vld [vmem:[%s13 + $0xc] sm:$0xf]
  %v8574 = vld [vmem:[%s13 + $0x10] sm:$0xf]
  %v8575 = vld [vmem:[%s13 + $0x14] sm:$0xf]
  %v8576 = vld [vmem:[%s13 + $0x18] sm:$0xf]
  %v8577 = vld [vmem:[%s13 + $0x1c] sm:$0xf]
  %v8578 = vld [vmem:[%s13 + $0x20] sm:$0xf]
  %v8579 = vld [vmem:[%s13 + $0x24] sm:$0xf]
  %v8580 = vld [vmem:[%s13 + $0x28] sm:$0xf]
  %v8581 = vld [vmem:[%s13 + $0x2c] sm:$0xf]
  %v8582 = vld [vmem:[%s13 + $0x30] sm:$0xf]
  %v8583 = vld [vmem:[%s13 + $0x34] sm:$0xf]
  %v8584 = vld [vmem:[%s13 + $0x38] sm:$0xf]
  %v8585 = vld [vmem:[%s13 + $0x3c] sm:$0xf]
  %v8586 = vld [vmem:[%s13 + $0x40] sm:$0xf]
  %v8587 = vld [vmem:[%s13 + $0x44] sm:$0xf]
  %v8588 = vld [vmem:[%s13 + $0x48] sm:$0xf]
  %v8589 = vld [vmem:[%s13 + $0x4c] sm:$0xf]
  %v8590 = vld [vmem:[%s13 + $0x50] sm:$0xf]
  %v8591 = vld [vmem:[%s13 + $0x54] sm:$0xf]
  %v8592 = vld [vmem:[%s13 + $0x58] sm:$0xf]
  %v8593 = vld [vmem:[%s13 + $0x5c] sm:$0xf]
  %v8594 = vld [vmem:[%s13 + $0x60] sm:$0xf]
  %v8595 = vld [vmem:[%s13 + $0x64] sm:$0xf]
  %v8596 = vld [vmem:[%s13 + $0x68] sm:$0xf]
  %v8597 = vld [vmem:[%s13 + $0x6c] sm:$0xf]
  %v8598 = vld [vmem:[%s13 + $0x70] sm:$0xf]
  %v8599 = vld [vmem:[%s13 + $0x74] sm:$0xf]
  %v8600 = vld [vmem:[%s13 + $0x78] sm:$0xf]
  %v8601 = vld [vmem:[%s13 + $0x7c] sm:$0xf]
  %v8602 = vld [vmem:[%s13 + $0x80] sm:$0xf]
  %v8603 = vld [vmem:[%s13 + $0x84] sm:$0xf]
  %v8604 = vld [vmem:[%s13 + $0x88] sm:$0xf]
  %v8605 = vld [vmem:[%s13 + $0x8c] sm:$0xf]
  %v8606 = vld [vmem:[%s13 + $0x90] sm:$0xf]
  %v8607 = vld [vmem:[%s13 + $0x94] sm:$0xf]
  %v8608 = vld [vmem:[%s13 + $0x98] sm:$0xf]
  %v8609 = vld [vmem:[%s13 + $0x9c] sm:$0xf]
  %v8610 = vld [vmem:[%s13 + $0xa0] sm:$0xf]
  %v8611 = vld [vmem:[%s13 + $0xa4] sm:$0xf]
  %v8612 = vld [vmem:[%s13 + $0xa8] sm:$0xf]
  %v8613 = vld [vmem:[%s13 + $0xac] sm:$0xf]
  %v8614 = vld [vmem:[%s13 + $0xb0] sm:$0xf]
  %v8615 = vld [vmem:[%s13 + $0xb4] sm:$0xf]
  %v8616 = vld [vmem:[%s13 + $0xb8] sm:$0xf]
  %v8617 = vld [vmem:[%s13 + $0xbc] sm:$0xf]
  %v8618 = vld [vmem:[%s13 + $0xc0] sm:$0xf]
  %v8619 = vld [vmem:[%s13 + $0xc4] sm:$0xf]
  %v8620 = vld [vmem:[%s13 + $0xc8] sm:$0xf]
  %v8621 = vld [vmem:[%s13 + $0xcc] sm:$0xf]
  %v8622 = vld [vmem:[%s13 + $0xd0] sm:$0xf]
  %v8623 = vld [vmem:[%s13 + $0xd4] sm:$0xf]
  %v8624 = vld [vmem:[%s13 + $0xd8] sm:$0xf]
  %v8625 = vld [vmem:[%s13 + $0xdc] sm:$0xf]
  %v8626 = vld [vmem:[%s13 + $0xe0] sm:$0xf]
  %v8627 = vld [vmem:[%s13 + $0xe4] sm:$0xf]
  %v8628 = vld [vmem:[%s13 + $0xe8] sm:$0xf]
  %v8629 = vld [vmem:[%s13 + $0xec] sm:$0xf]
  %v8630 = vld [vmem:[%s13 + $0xf0] sm:$0xf]
  %v8631 = vld [vmem:[%s13 + $0xf4] sm:$0xf]
  %v8632 = vld [vmem:[%s13 + $0xf8] sm:$0xf]
  %v8633 = vld [vmem:[%s13 + $0xfc] sm:$0xf]
  %v8634 = vld [vmem:[%s14 + $0x37] sm:$0x1]
  %v8636 = vlaneseq
  %v8637 = vshrl.u32 %v8636, 7
  %v8638 = vsub.s32 0, %v8637
  %v8639 = vrot.slane %v8634, %v8638
  %v8705 = vunpack.c.l.b16 %v8570
  %v8706 = vunpack.c.l.b16 %v8571
  %v8707 = vunpack.c.l.b16 %v8572
  %v8708 = vunpack.c.l.b16 %v8573
  %v8709 = vunpack.c.l.b16 %v8574
  %v8710 = vunpack.c.l.b16 %v8575
  %v8711 = vunpack.c.l.b16 %v8576
  %v8712 = vunpack.c.l.b16 %v8577
  %v8713 = vunpack.c.l.b16 %v8578
  %v8714 = vunpack.c.l.b16 %v8579
  %v8715 = vunpack.c.l.b16 %v8580
  %v8716 = vunpack.c.l.b16 %v8581
  %v8717 = vunpack.c.l.b16 %v8582
  %v8718 = vunpack.c.l.b16 %v8583
  %v8719 = vunpack.c.l.b16 %v8584
  %v8720 = vunpack.c.l.b16 %v8585
  %v8721 = vunpack.c.l.b16 %v8586
  %v8722 = vunpack.c.l.b16 %v8587
  %v8723 = vunpack.c.l.b16 %v8588
  %v8724 = vunpack.c.l.b16 %v8589
  %v8725 = vunpack.c.l.b16 %v8590
  %v8726 = vunpack.c.l.b16 %v8591
  %v8727 = vunpack.c.l.b16 %v8592
  %v8728 = vunpack.c.l.b16 %v8593
  %v8729 = vunpack.c.l.b16 %v8594
  %v8730 = vunpack.c.l.b16 %v8595
  %v8731 = vunpack.c.l.b16 %v8596
  %v8732 = vunpack.c.l.b16 %v8597
  %v8733 = vunpack.c.l.b16 %v8598
  %v8734 = vunpack.c.l.b16 %v8599
  %v8735 = vunpack.c.l.b16 %v8600
  %v8736 = vunpack.c.l.b16 %v8601
  %v8737 = vunpack.c.l.b16 %v8602
  %v8738 = vunpack.c.l.b16 %v8603
  %v8739 = vunpack.c.l.b16 %v8604
  %v8740 = vunpack.c.l.b16 %v8605
  %v8741 = vunpack.c.l.b16 %v8606
  %v8742 = vunpack.c.l.b16 %v8607
  %v8743 = vunpack.c.l.b16 %v8608
  %v8744 = vunpack.c.l.b16 %v8609
  %v8745 = vunpack.c.l.b16 %v8610
  %v8746 = vunpack.c.l.b16 %v8611
  %v8747 = vunpack.c.l.b16 %v8612
  %v8748 = vunpack.c.l.b16 %v8613
  %v8749 = vunpack.c.l.b16 %v8614
  %v8750 = vunpack.c.l.b16 %v8615
  %v8751 = vunpack.c.l.b16 %v8616
  %v8752 = vunpack.c.l.b16 %v8617
  %v8753 = vunpack.c.l.b16 %v8618
  %v8754 = vunpack.c.l.b16 %v8619
  %v8755 = vunpack.c.l.b16 %v8620
  %v8756 = vunpack.c.l.b16 %v8621
  %v8757 = vunpack.c.l.b16 %v8622
  %v8758 = vunpack.c.l.b16 %v8623
  %v8759 = vunpack.c.l.b16 %v8624
  %v8760 = vunpack.c.l.b16 %v8625
  %v8761 = vunpack.c.l.b16 %v8626
  %v8762 = vunpack.c.l.b16 %v8627
  %v8763 = vunpack.c.l.b16 %v8628
  %v8764 = vunpack.c.l.b16 %v8629
  %v8765 = vunpack.c.l.b16 %v8630
  %v8766 = vunpack.c.l.b16 %v8631
  %v8767 = vunpack.c.l.b16 %v8632
  %v8768 = vunpack.c.l.b16 %v8633
  %v8769 = vpack.c.b16 %v8706, %v8705
  %v8770 = vpack.c.b16 %v8708, %v8707
  %v8771 = vpack.c.b16 %v8710, %v8709
  %v8772 = vpack.c.b16 %v8712, %v8711
  %v8773 = vpack.c.b16 %v8714, %v8713
  %v8774 = vpack.c.b16 %v8716, %v8715
  %v8775 = vpack.c.b16 %v8718, %v8717
  %v8776 = vpack.c.b16 %v8720, %v8719
  %v8777 = vpack.c.b16 %v8722, %v8721
  %v8778 = vpack.c.b16 %v8724, %v8723
  %v8779 = vpack.c.b16 %v8726, %v8725
  %v8780 = vpack.c.b16 %v8728, %v8727
  %v8781 = vpack.c.b16 %v8730, %v8729
  %v8782 = vpack.c.b16 %v8732, %v8731
  %v8783 = vpack.c.b16 %v8734, %v8733
  %v8784 = vpack.c.b16 %v8736, %v8735
  %v8785 = vpack.c.b16 %v8738, %v8737
  %v8786 = vpack.c.b16 %v8740, %v8739
  %v8787 = vpack.c.b16 %v8742, %v8741
  %v8788 = vpack.c.b16 %v8744, %v8743
  %v8789 = vpack.c.b16 %v8746, %v8745
  %v8790 = vpack.c.b16 %v8748, %v8747
  %v8791 = vpack.c.b16 %v8750, %v8749
  %v8792 = vpack.c.b16 %v8752, %v8751
  %v8793 = vpack.c.b16 %v8754, %v8753
  %v8794 = vpack.c.b16 %v8756, %v8755
  %v8795 = vpack.c.b16 %v8758, %v8757
  %v8796 = vpack.c.b16 %v8760, %v8759
  %v8797 = vpack.c.b16 %v8762, %v8761
  %v8798 = vpack.c.b16 %v8764, %v8763
  %v8799 = vpack.c.b16 %v8766, %v8765
  %v8800 = vpack.c.b16 %v8768, %v8767
  %8833 = vmatprep.subr.bf16.mxu0 0
  %8834 = vmatpush1.bf16.msra.mxu0 %v8769
  %8835 = vmatprep.subr.bf16.mxu0 0
  %8836 = vmatpush1.bf16.msra.mxu0 %v8770
  %8837 = vmatprep.subr.bf16.mxu0 0
  %8838 = vmatpush1.bf16.msra.mxu0 %v8771
  %8839 = vmatprep.subr.bf16.mxu0 0
  %8840 = vmatpush1.bf16.msra.mxu0 %v8772
  %8841 = vmatprep.subr.bf16.mxu0 0
  %8842 = vmatpush1.bf16.msra.mxu0 %v8773
  %8843 = vmatprep.subr.bf16.mxu0 0
  %8844 = vmatpush1.bf16.msra.mxu0 %v8774
  %8845 = vmatprep.subr.bf16.mxu0 0
  %8846 = vmatpush1.bf16.msra.mxu0 %v8775
  %8847 = vmatprep.subr.bf16.mxu0 0
  %8848 = vmatpush1.bf16.msra.mxu0 %v8776
  %8849 = vmatprep.subr.bf16.mxu0 0
  %8850 = vmatpush1.bf16.msra.mxu0 %v8777
  %8851 = vmatprep.subr.bf16.mxu0 0
  %8852 = vmatpush1.bf16.msra.mxu0 %v8778
  %8853 = vmatprep.subr.bf16.mxu0 0
  %8854 = vmatpush1.bf16.msra.mxu0 %v8779
  %8855 = vmatprep.subr.bf16.mxu0 0
  %8856 = vmatpush1.bf16.msra.mxu0 %v8780
  %8857 = vmatprep.subr.bf16.mxu0 0
  %8858 = vmatpush1.bf16.msra.mxu0 %v8781
  %8859 = vmatprep.subr.bf16.mxu0 0
  %8860 = vmatpush1.bf16.msra.mxu0 %v8782
  %8861 = vmatprep.subr.bf16.mxu0 0
  %8862 = vmatpush1.bf16.msra.mxu0 %v8783
  %8863 = vmatprep.subr.bf16.mxu0 0
  %8864 = vmatpush1.bf16.msra.mxu0 %v8784
  %8865 = vmatprep.mubr.bf16.mxu0 %v8567
  %8866 = vmatmul.mubr.bf16.gmra.mrb[0].mxu0 %v8566
  %v8867 = vpop.f32.mrb[0].mxu0
  %v8868 = vadd.f32 %v8639, %v8867
  %v8869 = vpop.f32.mrb[0].mxu0
  %v8870 = vpop.f32.mrb[0].mxu0
  %v8871 = vpop.f32.mrb[0].mxu0
  %8872 = vdwg.mxu0
  %8873 = vmatprep.subr.bf16.mxu0 0
  %8874 = vmatpush1.bf16.msra.mxu0 %v8785
  %8875 = vmatprep.subr.bf16.mxu0 0
  %8876 = vmatpush1.bf16.msra.mxu0 %v8786
  %8877 = vmatprep.subr.bf16.mxu0 0
  %8878 = vmatpush1.bf16.msra.mxu0 %v8787
  %8879 = vmatprep.subr.bf16.mxu0 0
  %8880 = vmatpush1.bf16.msra.mxu0 %v8788
  %8881 = vmatprep.subr.bf16.mxu0 0
  %8882 = vmatpush1.bf16.msra.mxu0 %v8789
  %8883 = vmatprep.subr.bf16.mxu0 0
  %8884 = vmatpush1.bf16.msra.mxu0 %v8790
  %8885 = vmatprep.subr.bf16.mxu0 0
  %8886 = vmatpush1.bf16.msra.mxu0 %v8791
  %8887 = vmatprep.subr.bf16.mxu0 0
  %8888 = vmatpush1.bf16.msra.mxu0 %v8792
  %8889 = vmatprep.subr.bf16.mxu0 0
  %8890 = vmatpush1.bf16.msra.mxu0 %v8793
  %8891 = vmatprep.subr.bf16.mxu0 0
  %8892 = vmatpush1.bf16.msra.mxu0 %v8794
  %8893 = vmatprep.subr.bf16.mxu0 0
  %8894 = vmatpush1.bf16.msra.mxu0 %v8795
  %8895 = vmatprep.subr.bf16.mxu0 0
  %8896 = vmatpush1.bf16.msra.mxu0 %v8796
  %8897 = vmatprep.subr.bf16.mxu0 0
  %8898 = vmatpush1.bf16.msra.mxu0 %v8797
  %8899 = vmatprep.subr.bf16.mxu0 0
  %8900 = vmatpush1.bf16.msra.mxu0 %v8798
  %8901 = vmatprep.subr.bf16.mxu0 0
  %8902 = vmatpush1.bf16.msra.mxu0 %v8799
  %8903 = vmatprep.subr.bf16.mxu0 0
  %8904 = vmatpush1.bf16.msra.mxu0 %v8800
  %8905 = vmatprep.mubr.bf16.mxu0 %v8569
  %8906 = vmatmul.mubr.bf16.gmra.mrb[0].mxu0 %v8568
  %v8907 = vpop.f32.mrb[0].mxu0
  %v8908 = vadd.f32 %v8868, %v8907
  %v8909 = vpop.f32.mrb[0].mxu0
  %v8910 = vpop.f32.mrb[0].mxu0
  %v8911 = vpop.f32.mrb[0].mxu0
  %8912 = vdwg.mxu0
  %8913 = vst [vmem:[%s15] sm:$0xff] 0.0
  %8914 = vst [vmem:[%s15 + $0x8] sm:$0xff] 0.0
  %8915 = vst [vmem:[%s15 + $0x10] sm:$0xff] 0.0
  %8916 = vst [vmem:[%s15 + $0x18] sm:$0xff] 0.0
  %8917 = vst [vmem:[%s15 + $0x20] sm:$0xff] 0.0
  %8918 = vst [vmem:[%s15 + $0x28] sm:$0xf] 0.0
  %v8938 = vcombine.low %v5645, %v5647
  %v8939 = vcombine.low %v5686, %v5688
  %v8941 = vunpack.c.l.s4 1983009808
  %v8942 = vunpack.c.0.s8 %v8941
  %v8943 = vlaneseq
  %v8944 = vshrl.u32 %v8943, 7
  %v8945 = vsub.s32 %v8942, %v8944
  %v8946 = vrot.slane %v8938, %v8945
  %v8948 = vunpack.c.l.s4 1983009808
  %v8949 = vunpack.c.0.s8 %v8948
  %v8950 = vlaneseq
  %v8951 = vshrl.u32 %v8950, 7
  %v8952 = vsub.s32 %v8949, %v8951
  %v8953 = vrot.slane %v8939, %v8952
  %v8954 = vcombine.low %v8946, %v8953
  %v8955 = vcombine.low %v5727, %v5729
  %v8956 = vcombine.low %v5768, %v5770
  %v8958 = vunpack.c.l.s4 1983009808
  %v8959 = vunpack.c.0.s8 %v8958
  %v8960 = vlaneseq
  %v8961 = vshrl.u32 %v8960, 7
  %v8962 = vsub.s32 %v8959, %v8961
  %v8963 = vrot.slane %v8955, %v8962
  %v8965 = vunpack.c.l.s4 1983009808
  %v8966 = vunpack.c.0.s8 %v8965
  %v8967 = vlaneseq
  %v8968 = vshrl.u32 %v8967, 7
  %v8969 = vsub.s32 %v8966, %v8968
  %v8970 = vrot.slane %v8956, %v8969
  %v8971 = vcombine.low %v8963, %v8970
  %v8972 = vcombine.low %v5809, %v5811
  %v8973 = vcombine.low %v5850, %v5852
  %v8975 = vunpack.c.l.s4 1983009808
  %v8976 = vunpack.c.0.s8 %v8975
  %v8977 = vlaneseq
  %v8978 = vshrl.u32 %v8977, 7
  %v8979 = vsub.s32 %v8976, %v8978
  %v8980 = vrot.slane %v8972, %v8979
  %v8982 = vunpack.c.l.s4 1983009808
  %v8983 = vunpack.c.0.s8 %v8982
  %v8984 = vlaneseq
  %v8985 = vshrl.u32 %v8984, 7
  %v8986 = vsub.s32 %v8983, %v8985
  %v8987 = vrot.slane %v8973, %v8986
  %v8988 = vcombine.low %v8980, %v8987
  %v8989 = vcombine.low %v5891, %v5893
  %v8990 = vcombine.low %v5932, %v5934
  %v8992 = vunpack.c.l.s4 1983009808
  %v8993 = vunpack.c.0.s8 %v8992
  %v8994 = vlaneseq
  %v8995 = vshrl.u32 %v8994, 7
  %v8996 = vsub.s32 %v8993, %v8995
  %v8997 = vrot.slane %v8989, %v8996
  %v8999 = vunpack.c.l.s4 1983009808
  %v9000 = vunpack.c.0.s8 %v8999
  %v9001 = vlaneseq
  %v9002 = vshrl.u32 %v9001, 7
  %v9003 = vsub.s32 %v9000, %v9002
  %v9004 = vrot.slane %v8990, %v9003
  %v9005 = vcombine.low %v8997, %v9004
  %v9006 = vcombine.low %v5973, %v5975
  %v9008 = vunpack.c.l.s4 1983009808
  %v9009 = vunpack.c.0.s8 %v9008
  %v9010 = vlaneseq
  %v9011 = vshrl.u32 %v9010, 7
  %v9012 = vsub.s32 %v9009, %v9011
  %v9013 = vrot.slane %v9006, %v9012
  %v9015 = vunpack.c.l.s4 1983009808
  %v9016 = vunpack.c.0.s8 %v9015
  %v9017 = vlaneseq
  %v9018 = vshrl.u32 %v9017, 7
  %v9019 = vsub.s32 %v9016, %v9018
  %v9020 = vrot.slane %v6014, %v9019
  %v9021 = vcombine.low %v9013, %v9020
  %9027 = vst [vmem:[%s15] sm:$0xff] %v8954
  %9028 = vst [vmem:[%s15 + $0x8] sm:$0xff] %v8971
  %9029 = vst [vmem:[%s15 + $0x10] sm:$0xff] %v8988
  %9030 = vst [vmem:[%s15 + $0x18] sm:$0xff] %v9005
  %vm9031 = vcmask 1043458
  %vm9032 = vmor %vm9031, %vm1313
  %vm9033 = vcmask 758788
  %vm9034 = vmor %vm9033, %vm9032
  %9035 = vst.msk [vmem:[%s15 + $0x20] sm:$0x3f] %vm9034, %v9021
  %vm9036 = vcmask 345088
  %9037 = vst.msk [vmem:[%s15 + $0x26] sm:$0x3] %vm9036, %v5113
  %vm9038 = vcmask 41984
  %9039 = vst.msk [vmem:[%s15 + $0x28] sm:$0x3] %vm9038, %v7603
  %vm9040 = vcmask 25600
  %9041 = vst.msk [vmem:[%s15 + $0x2a] sm:$0x3] %vm9040, %v8908
  // Predicated region
  $region62: #{pose_mano_forward.1} parent=0 // pred_check
    _
  $region63: #{pose_mano_forward.1} parent=0 // pred_check_branch
    %9043 = sbr.rel (0) target = $region65
  $region64: #{pose_mano_forward.1} parent=0 // pred_region
    _
  $region65: #{pose_mano_forward.1} parent=0 // pred_fallthru
    _
  // Predicated region
  $region66: #{pose_mano_forward.1} parent=0 // pred_check
    _
  $region67: #{pose_mano_forward.1} parent=0 // pred_check_branch
    %9045 = sbr.rel (0) target = $region69
  $region68: #{pose_mano_forward.1} parent=0 // pred_region
    _
  $region69: #{pose_mano_forward.1} parent=0 // pred_fallthru
    _

</llo_original>
